<compile_context>
chip_gen: v7x
topology: tpu7x:2x2x1
jax: 0.10.0
libtpu: 0.0.40
codegen_flags: <defaults>
</compile_context>

<pallas_src>
import numpy as np

import jax
import jax.numpy as jnp
from jax import lax
from jax.experimental import pallas as pl
from jax.experimental.pallas import tpu as pltpu

_SUB_BF16 = 16  # bf16 sublane packing


# ----------------------------------------------------------------------------
# Trace-time helpers (outside the kernel)
# ----------------------------------------------------------------------------
def _round_up(v, m):
    return (v + m - 1) // m * m


def _tap_layout(D, H, W):
    """Flat-index offset and 0/1 validity mask for each of the 27 conv taps."""
    HW = H * W
    p = np.arange(D * H * W)
    d, h, w = p // HW, (p // W) % H, p % W
    offsets, masks = [], []
    for kd in range(3):
        for kh in range(3):
            for kw in range(3):
                od, oh, ow = kd - 1, kh - 1, kw - 1
                offsets.append(od * HW + oh * W + ow)
                valid = ((d + od >= 0) & (d + od < D) &
                         (h + oh >= 0) & (h + oh < H) &
                         (w + ow >= 0) & (w + ow < W))
                masks.append(valid.astype(np.float32))
    return offsets, np.stack(masks, axis=0)          # python ints, (27, DHW)


def _pool_matrix(D, H, W, n_tile):
    """(n_tile*DHW, n_tile*Do*Ho*Wo) matrix with 0.125s: y @ P == AvgPool3d(2)."""
    Do, Ho, Wo = D // 2, H // 2, W // 2
    DHW, Q = D * H * W, Do * Ho * Wo
    p = np.arange(DHW)
    d, h, w = p // (H * W), (p // W) % H, p % W
    q = ((d // 2) * Ho + (h // 2)) * Wo + (w // 2)
    P = np.zeros((DHW, Q), np.float32)
    P[p, q] = 0.125
    Pb = np.zeros((n_tile * DHW, n_tile * Q), np.float32)
    for n in range(n_tile):
        Pb[n * DHW:(n + 1) * DHW, n * Q:(n + 1) * Q] = P
    return Pb


def _conv_weight_matrix(w, cin_pad, cout_pad):
    """PyTorch (Cout, Cin, 3,3,3) -> bf16 (cout_pad, 27*cin_pad), K=(kd,kh,kw,cin)."""
    cout, cin = w.shape[0], w.shape[1]
    w = jnp.pad(w, ((0, cout_pad - cout), (0, cin_pad - cin),
                    (0, 0), (0, 0), (0, 0)))
    w = jnp.transpose(w, (0, 2, 3, 4, 1)).reshape(cout_pad, 27 * cin_pad)
    return w.astype(jnp.bfloat16)


def _pick_n_tile(N, DHW, Q, Cin_pad, Cout_pad, budget_bytes=24 << 20):
    """Largest divisor of N whose per-step VMEM footprint fits the budget."""
    best = 1
    cmax = max(Cin_pad, Cout_pad)
    for t in range(1, N + 1):
        if N % t:
            continue
        L, Lp = t * DHW, t * Q
        vmem = (27 * cmax * L * 2                      # shared im2col slab (bf16)
                + (Cin_pad + Cout_pad) * (L + 2 * DHW) * 2  # margined activations
                + 2 * (L * Lp * 4)                     # pooling matrix (f32, dbl buf)
                + 2 * (27 * L * 2)                     # tap masks (bf16, dbl buf)
                + 2 * (Cin_pad * L * 2 + Cout_pad * Lp * 4))  # x in / pooled out
        if vmem <= budget_bytes:
            best = t
    return best


# ----------------------------------------------------------------------------
# Fused kernel
# ----------------------------------------------------------------------------
def _make_down_block_kernel(offsets, M, L, Cin_pad, Cout_pad):
    def kernel(x_ref, m_ref, p_ref, w1_ref, b1_ref, w2_ref, b2_ref, o_ref,
               xf_ref, hf_ref, a_ref):
        # Zero the halo margins; interiors (incl. pad channels, which arrive
        # zero-padded) are fully overwritten every grid step.
        xf_ref[:, :M] = jnp.zeros((Cin_pad, M), jnp.bfloat16)
        xf_ref[:, M + L:] = jnp.zeros((Cin_pad, M), jnp.bfloat16)
        hf_ref[:, :M] = jnp.zeros((Cout_pad, M), jnp.bfloat16)
        hf_ref[:, M + L:] = jnp.zeros((Cout_pad, M), jnp.bfloat16)

        def im2col(src_ref, C):
            # a[t*C + c, q] = src[c, q + offset_t] * mask_t[q]; each tap write
            # covers full bf16 sublane tiles (C is a multiple of 16).
            for t, off in enumerate(offsets):
                win = src_ref[:, M + off:M + off + L]          # (C, L) bf16
                a_ref[t * C:(t + 1) * C, :] = win * m_ref[t:t + 1, :]

        # --- conv1 + bias + ReLU: ONE (Cout_pad, 27*Cin_pad) x (27*Cin_pad, L)
        xf_ref[:, M:M + L] = x_ref[0]                          # (Cin_pad, L) bf16
        im2col(xf_ref, Cin_pad)
        h1 = jnp.dot(w1_ref[...], a_ref[:27 * Cin_pad, :],
                     preferred_element_type=jnp.float32)
        h1 = jnp.maximum(h1 + b1_ref[...], 0.0)                # (Cout_pad, L) f32

        # --- conv2 + bias + ReLU (h1 stays resident in VMEM, bf16) ----------
        hf_ref[:, M:M + L] = h1.astype(jnp.bfloat16)
        im2col(hf_ref, Cout_pad)
        y = jnp.dot(w2_ref[...], a_ref[:27 * Cout_pad, :],
                    preferred_element_type=jnp.float32)
        y = jnp.maximum(y + b2_ref[...], 0.0)                  # (Cout, L) f32

        # --- AvgPool3d(2): one MXU matmul against the precomputed pooling
        # matrix, then a single lane-dense block store of the pooled slab.
        pooled = jnp.dot(y, p_ref[...], preferred_element_type=jnp.float32)
        o_ref[0] = pooled.astype(o_ref.dtype)                  # (Cout, Lp)

    return kernel


# ----------------------------------------------------------------------------
# pallas_call wrapper
# ----------------------------------------------------------------------------
def down_block_forward(x_ncdhw, params, n_tile=None):
    """pool(relu(conv2(relu(conv1(x))))) — PyTorch NCDHW in / NCDHW out (f32)."""
    N, Cin, D, H, W = x_ncdhw.shape
    assert D % 2 == 0 and H % 2 == 0 and W % 2 == 0
    w1, b1, w2, b2 = params["w1"], params["b1"], params["w2"], params["b2"]
    Cout = w1.shape[0]

    Cin_pad = _round_up(Cin, _SUB_BF16)
    Cout_pad = _round_up(Cout, _SUB_BF16)
    DHW = D * H * W
    Do, Ho, Wo = D // 2, H // 2, W // 2
    Q = Do * Ho * Wo
    M = _round_up(H * W + W + 1, 128)          # halo margin, lane-aligned

    if n_tile is None:
        n_tile = _pick_n_tile(N, DHW, Q, Cin_pad, Cout_pad)
    assert N % n_tile == 0
    NT = N // n_tile
    L, Lp = n_tile * DHW, n_tile * Q

    # ---- trace-time repacks (plain XLA / numpy, outside the kernel) --------
    offsets, masks_np = _tap_layout(D, H, W)
    masks = jnp.asarray(np.tile(masks_np, (1, n_tile))).astype(jnp.bfloat16)
    pool_mat = jnp.asarray(_pool_matrix(D, H, W, n_tile))              # f32

    w1m = _conv_weight_matrix(w1, Cin_pad, Cout_pad)   # (Cout_pad, 27*Cin_pad)
    w2m = _conv_weight_matrix(w2, Cout_pad, Cout)      # (Cout,     27*Cout_pad)
    b1m = jnp.pad(b1, (0, Cout_pad - Cout)).reshape(Cout_pad, 1).astype(jnp.float32)
    b2m = b2.reshape(Cout, 1).astype(jnp.float32)

    # channel-first, flat-spatial, n_tile samples folded into the lane axis
    xr = x_ncdhw.reshape(NT, n_tile, Cin, DHW)
    xr = jnp.pad(xr, ((0, 0), (0, 0), (0, Cin_pad - Cin), (0, 0)))
    xr = jnp.transpose(xr, (0, 2, 1, 3)).reshape(NT, Cin_pad, L)
    xr = xr.astype(jnp.bfloat16)

    kernel = _make_down_block_kernel(offsets, M, L, Cin_pad, Cout_pad)

    out = pl.pallas_call(
        kernel,
        out_shape=jax.ShapeDtypeStruct((NT, Cout, Lp), jnp.float32),
        grid_spec=pltpu.PrefetchScalarGridSpec(
            num_scalar_prefetch=0,
            grid=(NT,),
            in_specs=[
                pl.BlockSpec((1, Cin_pad, L), lambda n: (n, 0, 0)),        # x
                pl.BlockSpec((27, L), lambda n: (0, 0)),                   # tap masks
                pl.BlockSpec((L, Lp), lambda n: (0, 0)),                   # pooling mat
                pl.BlockSpec((Cout_pad, 27 * Cin_pad), lambda n: (0, 0)),  # w1
                pl.BlockSpec((Cout_pad, 1), lambda n: (0, 0)),             # b1
                pl.BlockSpec((Cout, 27 * Cout_pad), lambda n: (0, 0)),     # w2
                pl.BlockSpec((Cout, 1), lambda n: (0, 0)),                 # b2
            ],
            out_specs=pl.BlockSpec((1, Cout, Lp), lambda n: (n, 0, 0)),
            scratch_shapes=[
                pltpu.VMEM((Cin_pad, L + 2 * M), jnp.bfloat16),    # margined x
                pltpu.VMEM((Cout_pad, L + 2 * M), jnp.bfloat16),   # margined h1
                pltpu.VMEM((27 * max(Cin_pad, Cout_pad), L),
                           jnp.bfloat16),                          # shared im2col
            ],
        ),
        compiler_params=pltpu.CompilerParams(
            dimension_semantics=("parallel",)),
    )(xr, masks, pool_mat, w1m, b1m, w2m, b2m)

    # un-fold the lane-axis batching back to NCDHW
    out = out.reshape(NT, Cout, n_tile, Q).transpose(0, 2, 1, 3)
    return out.reshape(N, Cout, Do, Ho, Wo)


# ----------------------------------------------------------------------------
# Pure-JAX reference (validation only)
# ----------------------------------------------------------------------------
def down_block_reference(x, w1, b1, w2, b2):
    dn = ("NCDHW", "OIDHW", "NCDHW")

    def conv(h, w, b):
        y = lax.conv_general_dilated(h, w, window_strides=(1, 1, 1),
                                     padding=((1, 1), (1, 1), (1, 1)),
                                     dimension_numbers=dn)
        return y + b.reshape(1, -1, 1, 1, 1)

    h = jnp.maximum(conv(x, w1, b1), 0.0)
    h = jnp.maximum(conv(h, w2, b2), 0.0)
    pooled = lax.reduce_window(h, 0.0, lax.add,
                               window_dimensions=(1, 1, 2, 2, 2),
                               window_strides=(1, 1, 2, 2, 2),
                               padding="VALID") / 8.0
    return pooled


# ----------------------------------------------------------------------------
if __name__ == "__main__":
    key = jax.random.PRNGKey(0)
    kx, k1, k2, k3, k4 = jax.random.split(key, 5)

    N, Cin, Cout, D, H, W = 2, 4, 8, 8, 8, 8
    x = jax.random.normal(kx, (N, Cin, D, H, W), jnp.float32)

    # PyTorch Conv3d weight layout: (Cout, Cin, kD, kH, kW)
    w1 = 0.1 * jax.random.normal(k1, (Cout, Cin, 3, 3, 3), jnp.float32)
    b1 = 0.1 * jax.random.normal(k2, (Cout,), jnp.float32)
    w2 = 0.1 * jax.random.normal(k3, (Cout, Cout, 3, 3, 3), jnp.float32)
    b2 = 0.1 * jax.random.normal(k4, (Cout,), jnp.float32)

    params = {"w1": w1, "b1": b1, "w2": w2, "b2": b2}
    out = jax.block_until_ready(down_block_forward(x, params))

    ref = down_block_reference(x, w1, b1, w2, b2)
    assert out.shape == ref.shape == (N, Cout, D // 2, H // 2, W // 2)

    # bf16 matmul operands (f32 accumulation) -> relaxed tolerance vs f32 ref
    err = float(jnp.max(jnp.abs(out - ref)))
    scale = float(jnp.max(jnp.abs(ref)))
    if err > 5e-2 * max(1.0, scale):
        raise AssertionError(f"mismatch, max abs err = {err} (scale {scale})")
    print("KERNEL_OK")
</pallas_src>

<mosaic_0001>
module attributes {stable_mosaic.version = 11 : i64} {
  func.func @kernel(%arg0: i32, %arg1: memref<1x16x1024xbf16, #tpu.memory_space<vmem>>, %arg2: memref<27x1024xbf16, #tpu.memory_space<vmem>>, %arg3: memref<1024x128xf32, #tpu.memory_space<vmem>>, %arg4: memref<16x432xbf16, #tpu.memory_space<vmem>>, %arg5: memref<16x1xf32, #tpu.memory_space<vmem>>, %arg6: memref<8x432xbf16, #tpu.memory_space<vmem>>, %arg7: memref<8x1xf32, #tpu.memory_space<vmem>>, %arg8: memref<1x8x128xf32, #tpu.memory_space<vmem>>, %arg9: memref<16x1280xbf16, #tpu.memory_space<vmem>>, %arg10: memref<16x1280xbf16, #tpu.memory_space<vmem>>, %arg11: memref<432x1024xbf16, #tpu.memory_space<vmem>>) attributes {dimension_semantics = [#tpu.dimension_semantics<parallel>], iteration_bounds = array<i64: 1>, scalar_prefetch = 0 : i64, scratch_operands = 3 : i64, tpu.core_type = #tpu.core_type<tc>, window_params = [{transform_indices = @transform_0, window_bounds = array<i64: 1, 16, 1024>}, {pipeline_mode = #tpu.pipeline_mode<synchronous>, transform_indices = @transform_1, window_bounds = array<i64: 27, 1024>}, {pipeline_mode = #tpu.pipeline_mode<synchronous>, transform_indices = @transform_2, window_bounds = array<i64: 1024, 128>}, {pipeline_mode = #tpu.pipeline_mode<synchronous>, transform_indices = @transform_3, window_bounds = array<i64: 16, 432>}, {pipeline_mode = #tpu.pipeline_mode<synchronous>, transform_indices = @transform_4, window_bounds = array<i64: 16, 1>}, {pipeline_mode = #tpu.pipeline_mode<synchronous>, transform_indices = @transform_5, window_bounds = array<i64: 8, 432>}, {pipeline_mode = #tpu.pipeline_mode<synchronous>, transform_indices = @transform_6, window_bounds = array<i64: 8, 1>}, {transform_indices = @transform_7, window_bounds = array<i64: 1, 8, 128>}]} {
    %cst = arith.constant 0.000000e+00 : bf16
    %0 = vector.broadcast %cst : bf16 to vector<16x128xbf16>
    %c0 = arith.constant 0 : index
    %c0_0 = arith.constant 0 : index
    %1 = vector.load %arg9[%c0, %c0_0] : memref<16x1280xbf16, #tpu.memory_space<vmem>>, vector<16x128xbf16>
    tpu.vector_store %arg9[%c0, %c0_0], %0 {strides = array<i32>} : memref<16x1280xbf16, #tpu.memory_space<vmem>>, vector<16x128xbf16>,
    %cst_1 = arith.constant 0.000000e+00 : bf16
    %2 = vector.broadcast %cst_1 : bf16 to vector<16x128xbf16>
    %c0_2 = arith.constant 0 : index
    %c1152 = arith.constant 1152 : index
    %3 = vector.load %arg9[%c0_2, %c1152] : memref<16x1280xbf16, #tpu.memory_space<vmem>>, vector<16x128xbf16>
    tpu.vector_store %arg9[%c0_2, %c1152], %2 {strides = array<i32>} : memref<16x1280xbf16, #tpu.memory_space<vmem>>, vector<16x128xbf16>,
    %cst_3 = arith.constant 0.000000e+00 : bf16
    %4 = vector.broadcast %cst_3 : bf16 to vector<16x128xbf16>
    %c0_4 = arith.constant 0 : index
    %c0_5 = arith.constant 0 : index
    %5 = vector.load %arg10[%c0_4, %c0_5] : memref<16x1280xbf16, #tpu.memory_space<vmem>>, vector<16x128xbf16>
    tpu.vector_store %arg10[%c0_4, %c0_5], %4 {strides = array<i32>} : memref<16x1280xbf16, #tpu.memory_space<vmem>>, vector<16x128xbf16>,
    %cst_6 = arith.constant 0.000000e+00 : bf16
    %6 = vector.broadcast %cst_6 : bf16 to vector<16x128xbf16>
    %c0_7 = arith.constant 0 : index
    %c1152_8 = arith.constant 1152 : index
    %7 = vector.load %arg10[%c0_7, %c1152_8] : memref<16x1280xbf16, #tpu.memory_space<vmem>>, vector<16x128xbf16>
    tpu.vector_store %arg10[%c0_7, %c1152_8], %6 {strides = array<i32>} : memref<16x1280xbf16, #tpu.memory_space<vmem>>, vector<16x128xbf16>,
    %c0_9 = arith.constant 0 : index
    %c0_10 = arith.constant 0 : index
    %c0_11 = arith.constant 0 : index
    %8 = vector.load %arg1[%c0_9, %c0_10, %c0_11] : memref<1x16x1024xbf16, #tpu.memory_space<vmem>>, vector<1x16x1024xbf16>
    %9 = vector.shape_cast %8 : vector<1x16x1024xbf16> to vector<16x1024xbf16>
    %c0_12 = arith.constant 0 : index
    %c128 = arith.constant 128 : index
    %10 = vector.load %arg9[%c0_12, %c128] : memref<16x1280xbf16, #tpu.memory_space<vmem>>, vector<16x1024xbf16>
    tpu.vector_store %arg9[%c0_12, %c128], %9 {strides = array<i32>} : memref<16x1280xbf16, #tpu.memory_space<vmem>>, vector<16x1024xbf16>,
    %c0_13 = arith.constant 0 : index
    %c55 = arith.constant 55 : index
    %11 = vector.load %arg9[%c0_13, %c55] : memref<16x1280xbf16, #tpu.memory_space<vmem>>, vector<16x1024xbf16>
    %c0_14 = arith.constant 0 : index
    %c0_15 = arith.constant 0 : index
    %12 = vector.load %arg2[%c0_14, %c0_15] : memref<27x1024xbf16, #tpu.memory_space<vmem>>, vector<1x1024xbf16>
    %13 = vector.broadcast %12 : vector<1x1024xbf16> to vector<16x1024xbf16>
    %14 = arith.mulf %11, %13 : vector<16x1024xbf16>
    %c0_16 = arith.constant 0 : index
    %c0_17 = arith.constant 0 : index
    %15 = vector.load %arg11[%c0_16, %c0_17] : memref<432x1024xbf16, #tpu.memory_space<vmem>>, vector<16x1024xbf16>
    tpu.vector_store %arg11[%c0_16, %c0_17], %14 {strides = array<i32>} : memref<432x1024xbf16, #tpu.memory_space<vmem>>, vector<16x1024xbf16>,
    %c0_18 = arith.constant 0 : index
    %c56 = arith.constant 56 : index
    %16 = vector.load %arg9[%c0_18, %c56] : memref<16x1280xbf16, #tpu.memory_space<vmem>>, vector<16x1024xbf16>
    %c1 = arith.constant 1 : index
    %c0_19 = arith.constant 0 : index
    %17 = vector.load %arg2[%c1, %c0_19] : memref<27x1024xbf16, #tpu.memory_space<vmem>>, vector<1x1024xbf16>
    %18 = vector.broadcast %17 : vector<1x1024xbf16> to vector<16x1024xbf16>
    %19 = arith.mulf %16, %18 : vector<16x1024xbf16>
    %c16 = arith.constant 16 : index
    %c0_20 = arith.constant 0 : index
    %20 = vector.load %arg11[%c16, %c0_20] : memref<432x1024xbf16, #tpu.memory_space<vmem>>, vector<16x1024xbf16>
    tpu.vector_store %arg11[%c16, %c0_20], %19 {strides = array<i32>} : memref<432x1024xbf16, #tpu.memory_space<vmem>>, vector<16x1024xbf16>,
    %c0_21 = arith.constant 0 : index
    %c57 = arith.constant 57 : index
    %21 = vector.load %arg9[%c0_21, %c57] : memref<16x1280xbf16, #tpu.memory_space<vmem>>, vector<16x1024xbf16>
    %c2 = arith.constant 2 : index
    %c0_22 = arith.constant 0 : index
    %22 = vector.load %arg2[%c2, %c0_22] : memref<27x1024xbf16, #tpu.memory_space<vmem>>, vector<1x1024xbf16>
    %23 = vector.broadcast %22 : vector<1x1024xbf16> to vector<16x1024xbf16>
    %24 = arith.mulf %21, %23 : vector<16x1024xbf16>
    %c32 = arith.constant 32 : index
    %c0_23 = arith.constant 0 : index
    %25 = vector.load %arg11[%c32, %c0_23] : memref<432x1024xbf16, #tpu.memory_space<vmem>>, vector<16x1024xbf16>
    tpu.vector_store %arg11[%c32, %c0_23], %24 {strides = array<i32>} : memref<432x1024xbf16, #tpu.memory_space<vmem>>, vector<16x1024xbf16>,
    %c0_24 = arith.constant 0 : index
    %c63 = arith.constant 63 : index
    %26 = vector.load %arg9[%c0_24, %c63] : memref<16x1280xbf16, #tpu.memory_space<vmem>>, vector<16x1024xbf16>
    %c3 = arith.constant 3 : index
    %c0_25 = arith.constant 0 : index
    %27 = vector.load %arg2[%c3, %c0_25] : memref<27x1024xbf16, #tpu.memory_space<vmem>>, vector<1x1024xbf16>
    %28 = vector.broadcast %27 : vector<1x1024xbf16> to vector<16x1024xbf16>
    %29 = arith.mulf %26, %28 : vector<16x1024xbf16>
    %c48 = arith.constant 48 : index
    %c0_26 = arith.constant 0 : index
    %30 = vector.load %arg11[%c48, %c0_26] : memref<432x1024xbf16, #tpu.memory_space<vmem>>, vector<16x1024xbf16>
    tpu.vector_store %arg11[%c48, %c0_26], %29 {strides = array<i32>} : memref<432x1024xbf16, #tpu.memory_space<vmem>>, vector<16x1024xbf16>,
    %c0_27 = arith.constant 0 : index
    %c64 = arith.constant 64 : index
    %31 = vector.load %arg9[%c0_27, %c64] : memref<16x1280xbf16, #tpu.memory_space<vmem>>, vector<16x1024xbf16>
    %c4 = arith.constant 4 : index
    %c0_28 = arith.constant 0 : index
    %32 = vector.load %arg2[%c4, %c0_28] : memref<27x1024xbf16, #tpu.memory_space<vmem>>, vector<1x1024xbf16>
    %33 = vector.broadcast %32 : vector<1x1024xbf16> to vector<16x1024xbf16>
    %34 = arith.mulf %31, %33 : vector<16x1024xbf16>
    %c64_29 = arith.constant 64 : index
    %c0_30 = arith.constant 0 : index
    %35 = vector.load %arg11[%c64_29, %c0_30] : memref<432x1024xbf16, #tpu.memory_space<vmem>>, vector<16x1024xbf16>
    tpu.vector_store %arg11[%c64_29, %c0_30], %34 {strides = array<i32>} : memref<432x1024xbf16, #tpu.memory_space<vmem>>, vector<16x1024xbf16>,
    %c0_31 = arith.constant 0 : index
    %c65 = arith.constant 65 : index
    %36 = vector.load %arg9[%c0_31, %c65] : memref<16x1280xbf16, #tpu.memory_space<vmem>>, vector<16x1024xbf16>
    %c5 = arith.constant 5 : index
    %c0_32 = arith.constant 0 : index
    %37 = vector.load %arg2[%c5, %c0_32] : memref<27x1024xbf16, #tpu.memory_space<vmem>>, vector<1x1024xbf16>
    %38 = vector.broadcast %37 : vector<1x1024xbf16> to vector<16x1024xbf16>
    %39 = arith.mulf %36, %38 : vector<16x1024xbf16>
    %c80 = arith.constant 80 : index
    %c0_33 = arith.constant 0 : index
    %40 = vector.load %arg11[%c80, %c0_33] : memref<432x1024xbf16, #tpu.memory_space<vmem>>, vector<16x1024xbf16>
    tpu.vector_store %arg11[%c80, %c0_33], %39 {strides = array<i32>} : memref<432x1024xbf16, #tpu.memory_space<vmem>>, vector<16x1024xbf16>,
    %c0_34 = arith.constant 0 : index
    %c71 = arith.constant 71 : index
    %41 = vector.load %arg9[%c0_34, %c71] : memref<16x1280xbf16, #tpu.memory_space<vmem>>, vector<16x1024xbf16>
    %c6 = arith.constant 6 : index
    %c0_35 = arith.constant 0 : index
    %42 = vector.load %arg2[%c6, %c0_35] : memref<27x1024xbf16, #tpu.memory_space<vmem>>, vector<1x1024xbf16>
    %43 = vector.broadcast %42 : vector<1x1024xbf16> to vector<16x1024xbf16>
    %44 = arith.mulf %41, %43 : vector<16x1024xbf16>
    %c96 = arith.constant 96 : index
    %c0_36 = arith.constant 0 : index
    %45 = vector.load %arg11[%c96, %c0_36] : memref<432x1024xbf16, #tpu.memory_space<vmem>>, vector<16x1024xbf16>
    tpu.vector_store %arg11[%c96, %c0_36], %44 {strides = array<i32>} : memref<432x1024xbf16, #tpu.memory_space<vmem>>, vector<16x1024xbf16>,
    %c0_37 = arith.constant 0 : index
    %c72 = arith.constant 72 : index
    %46 = vector.load %arg9[%c0_37, %c72] : memref<16x1280xbf16, #tpu.memory_space<vmem>>, vector<16x1024xbf16>
    %c7 = arith.constant 7 : index
    %c0_38 = arith.constant 0 : index
    %47 = vector.load %arg2[%c7, %c0_38] : memref<27x1024xbf16, #tpu.memory_space<vmem>>, vector<1x1024xbf16>
    %48 = vector.broadcast %47 : vector<1x1024xbf16> to vector<16x1024xbf16>
    %49 = arith.mulf %46, %48 : vector<16x1024xbf16>
    %c112 = arith.constant 112 : index
    %c0_39 = arith.constant 0 : index
    %50 = vector.load %arg11[%c112, %c0_39] : memref<432x1024xbf16, #tpu.memory_space<vmem>>, vector<16x1024xbf16>
    tpu.vector_store %arg11[%c112, %c0_39], %49 {strides = array<i32>} : memref<432x1024xbf16, #tpu.memory_space<vmem>>, vector<16x1024xbf16>,
    %c0_40 = arith.constant 0 : index
    %c73 = arith.constant 73 : index
    %51 = vector.load %arg9[%c0_40, %c73] : memref<16x1280xbf16, #tpu.memory_space<vmem>>, vector<16x1024xbf16>
    %c8 = arith.constant 8 : index
    %c0_41 = arith.constant 0 : index
    %52 = vector.load %arg2[%c8, %c0_41] : memref<27x1024xbf16, #tpu.memory_space<vmem>>, vector<1x1024xbf16>
    %53 = vector.broadcast %52 : vector<1x1024xbf16> to vector<16x1024xbf16>
    %54 = arith.mulf %51, %53 : vector<16x1024xbf16>
    %c128_42 = arith.constant 128 : index
    %c0_43 = arith.constant 0 : index
    %55 = vector.load %arg11[%c128_42, %c0_43] : memref<432x1024xbf16, #tpu.memory_space<vmem>>, vector<16x1024xbf16>
    tpu.vector_store %arg11[%c128_42, %c0_43], %54 {strides = array<i32>} : memref<432x1024xbf16, #tpu.memory_space<vmem>>, vector<16x1024xbf16>,
    %c0_44 = arith.constant 0 : index
    %c119 = arith.constant 119 : index
    %56 = vector.load %arg9[%c0_44, %c119] : memref<16x1280xbf16, #tpu.memory_space<vmem>>, vector<16x1024xbf16>
    %c9 = arith.constant 9 : index
    %c0_45 = arith.constant 0 : index
    %57 = vector.load %arg2[%c9, %c0_45] : memref<27x1024xbf16, #tpu.memory_space<vmem>>, vector<1x1024xbf16>
    %58 = vector.broadcast %57 : vector<1x1024xbf16> to vector<16x1024xbf16>
    %59 = arith.mulf %56, %58 : vector<16x1024xbf16>
    %c144 = arith.constant 144 : index
    %c0_46 = arith.constant 0 : index
    %60 = vector.load %arg11[%c144, %c0_46] : memref<432x1024xbf16, #tpu.memory_space<vmem>>, vector<16x1024xbf16>
    tpu.vector_store %arg11[%c144, %c0_46], %59 {strides = array<i32>} : memref<432x1024xbf16, #tpu.memory_space<vmem>>, vector<16x1024xbf16>,
    %c0_47 = arith.constant 0 : index
    %c120 = arith.constant 120 : index
    %61 = vector.load %arg9[%c0_47, %c120] : memref<16x1280xbf16, #tpu.memory_space<vmem>>, vector<16x1024xbf16>
    %c10 = arith.constant 10 : index
    %c0_48 = arith.constant 0 : index
    %62 = vector.load %arg2[%c10, %c0_48] : memref<27x1024xbf16, #tpu.memory_space<vmem>>, vector<1x1024xbf16>
    %63 = vector.broadcast %62 : vector<1x1024xbf16> to vector<16x1024xbf16>
    %64 = arith.mulf %61, %63 : vector<16x1024xbf16>
    %c160 = arith.constant 160 : index
    %c0_49 = arith.constant 0 : index
    %65 = vector.load %arg11[%c160, %c0_49] : memref<432x1024xbf16, #tpu.memory_space<vmem>>, vector<16x1024xbf16>
    tpu.vector_store %arg11[%c160, %c0_49], %64 {strides = array<i32>} : memref<432x1024xbf16, #tpu.memory_space<vmem>>, vector<16x1024xbf16>,
    %c0_50 = arith.constant 0 : index
    %c121 = arith.constant 121 : index
    %66 = vector.load %arg9[%c0_50, %c121] : memref<16x1280xbf16, #tpu.memory_space<vmem>>, vector<16x1024xbf16>
    %c11 = arith.constant 11 : index
    %c0_51 = arith.constant 0 : index
    %67 = vector.load %arg2[%c11, %c0_51] : memref<27x1024xbf16, #tpu.memory_space<vmem>>, vector<1x1024xbf16>
    %68 = vector.broadcast %67 : vector<1x1024xbf16> to vector<16x1024xbf16>
    %69 = arith.mulf %66, %68 : vector<16x1024xbf16>
    %c176 = arith.constant 176 : index
    %c0_52 = arith.constant 0 : index
    %70 = vector.load %arg11[%c176, %c0_52] : memref<432x1024xbf16, #tpu.memory_space<vmem>>, vector<16x1024xbf16>
    tpu.vector_store %arg11[%c176, %c0_52], %69 {strides = array<i32>} : memref<432x1024xbf16, #tpu.memory_space<vmem>>, vector<16x1024xbf16>,
    %c0_53 = arith.constant 0 : index
    %c127 = arith.constant 127 : index
    %71 = vector.load %arg9[%c0_53, %c127] : memref<16x1280xbf16, #tpu.memory_space<vmem>>, vector<16x1024xbf16>
    %c12 = arith.constant 12 : index
    %c0_54 = arith.constant 0 : index
    %72 = vector.load %arg2[%c12, %c0_54] : memref<27x1024xbf16, #tpu.memory_space<vmem>>, vector<1x1024xbf16>
    %73 = vector.broadcast %72 : vector<1x1024xbf16> to vector<16x1024xbf16>
    %74 = arith.mulf %71, %73 : vector<16x1024xbf16>
    %c192 = arith.constant 192 : index
    %c0_55 = arith.constant 0 : index
    %75 = vector.load %arg11[%c192, %c0_55] : memref<432x1024xbf16, #tpu.memory_space<vmem>>, vector<16x1024xbf16>
    tpu.vector_store %arg11[%c192, %c0_55], %74 {strides = array<i32>} : memref<432x1024xbf16, #tpu.memory_space<vmem>>, vector<16x1024xbf16>,
    %c0_56 = arith.constant 0 : index
    %c128_57 = arith.constant 128 : index
    %76 = vector.load %arg9[%c0_56, %c128_57] : memref<16x1280xbf16, #tpu.memory_space<vmem>>, vector<16x1024xbf16>
    %c13 = arith.constant 13 : index
    %c0_58 = arith.constant 0 : index
    %77 = vector.load %arg2[%c13, %c0_58] : memref<27x1024xbf16, #tpu.memory_space<vmem>>, vector<1x1024xbf16>
    %78 = vector.broadcast %77 : vector<1x1024xbf16> to vector<16x1024xbf16>
    %79 = arith.mulf %76, %78 : vector<16x1024xbf16>
    %c208 = arith.constant 208 : index
    %c0_59 = arith.constant 0 : index
    %80 = vector.load %arg11[%c208, %c0_59] : memref<432x1024xbf16, #tpu.memory_space<vmem>>, vector<16x1024xbf16>
    tpu.vector_store %arg11[%c208, %c0_59], %79 {strides = array<i32>} : memref<432x1024xbf16, #tpu.memory_space<vmem>>, vector<16x1024xbf16>,
    %c0_60 = arith.constant 0 : index
    %c129 = arith.constant 129 : index
    %81 = vector.load %arg9[%c0_60, %c129] : memref<16x1280xbf16, #tpu.memory_space<vmem>>, vector<16x1024xbf16>
    %c14 = arith.constant 14 : index
    %c0_61 = arith.constant 0 : index
    %82 = vector.load %arg2[%c14, %c0_61] : memref<27x1024xbf16, #tpu.memory_space<vmem>>, vector<1x1024xbf16>
    %83 = vector.broadcast %82 : vector<1x1024xbf16> to vector<16x1024xbf16>
    %84 = arith.mulf %81, %83 : vector<16x1024xbf16>
    %c224 = arith.constant 224 : index
    %c0_62 = arith.constant 0 : index
    %85 = vector.load %arg11[%c224, %c0_62] : memref<432x1024xbf16, #tpu.memory_space<vmem>>, vector<16x1024xbf16>
    tpu.vector_store %arg11[%c224, %c0_62], %84 {strides = array<i32>} : memref<432x1024xbf16, #tpu.memory_space<vmem>>, vector<16x1024xbf16>,
    %c0_63 = arith.constant 0 : index
    %c135 = arith.constant 135 : index
    %86 = vector.load %arg9[%c0_63, %c135] : memref<16x1280xbf16, #tpu.memory_space<vmem>>, vector<16x1024xbf16>
    %c15 = arith.constant 15 : index
    %c0_64 = arith.constant 0 : index
    %87 = vector.load %arg2[%c15, %c0_64] : memref<27x1024xbf16, #tpu.memory_space<vmem>>, vector<1x1024xbf16>
    %88 = vector.broadcast %87 : vector<1x1024xbf16> to vector<16x1024xbf16>
    %89 = arith.mulf %86, %88 : vector<16x1024xbf16>
    %c240 = arith.constant 240 : index
    %c0_65 = arith.constant 0 : index
    %90 = vector.load %arg11[%c240, %c0_65] : memref<432x1024xbf16, #tpu.memory_space<vmem>>, vector<16x1024xbf16>
    tpu.vector_store %arg11[%c240, %c0_65], %89 {strides = array<i32>} : memref<432x1024xbf16, #tpu.memory_space<vmem>>, vector<16x1024xbf16>,
    %c0_66 = arith.constant 0 : index
    %c136 = arith.constant 136 : index
    %91 = vector.load %arg9[%c0_66, %c136] : memref<16x1280xbf16, #tpu.memory_space<vmem>>, vector<16x1024xbf16>
    %c16_67 = arith.constant 16 : index
    %c0_68 = arith.constant 0 : index
    %92 = vector.load %arg2[%c16_67, %c0_68] : memref<27x1024xbf16, #tpu.memory_space<vmem>>, vector<1x1024xbf16>
    %93 = vector.broadcast %92 : vector<1x1024xbf16> to vector<16x1024xbf16>
    %94 = arith.mulf %91, %93 : vector<16x1024xbf16>
    %c256 = arith.constant 256 : index
    %c0_69 = arith.constant 0 : index
    %95 = vector.load %arg11[%c256, %c0_69] : memref<432x1024xbf16, #tpu.memory_space<vmem>>, vector<16x1024xbf16>
    tpu.vector_store %arg11[%c256, %c0_69], %94 {strides = array<i32>} : memref<432x1024xbf16, #tpu.memory_space<vmem>>, vector<16x1024xbf16>,
    %c0_70 = arith.constant 0 : index
    %c137 = arith.constant 137 : index
    %96 = vector.load %arg9[%c0_70, %c137] : memref<16x1280xbf16, #tpu.memory_space<vmem>>, vector<16x1024xbf16>
    %c17 = arith.constant 17 : index
    %c0_71 = arith.constant 0 : index
    %97 = vector.load %arg2[%c17, %c0_71] : memref<27x1024xbf16, #tpu.memory_space<vmem>>, vector<1x1024xbf16>
    %98 = vector.broadcast %97 : vector<1x1024xbf16> to vector<16x1024xbf16>
    %99 = arith.mulf %96, %98 : vector<16x1024xbf16>
    %c272 = arith.constant 272 : index
    %c0_72 = arith.constant 0 : index
    %100 = vector.load %arg11[%c272, %c0_72] : memref<432x1024xbf16, #tpu.memory_space<vmem>>, vector<16x1024xbf16>
    tpu.vector_store %arg11[%c272, %c0_72], %99 {strides = array<i32>} : memref<432x1024xbf16, #tpu.memory_space<vmem>>, vector<16x1024xbf16>,
    %c0_73 = arith.constant 0 : index
    %c183 = arith.constant 183 : index
    %101 = vector.load %arg9[%c0_73, %c183] : memref<16x1280xbf16, #tpu.memory_space<vmem>>, vector<16x1024xbf16>
    %c18 = arith.constant 18 : index
    %c0_74 = arith.constant 0 : index
    %102 = vector.load %arg2[%c18, %c0_74] : memref<27x1024xbf16, #tpu.memory_space<vmem>>, vector<1x1024xbf16>
    %103 = vector.broadcast %102 : vector<1x1024xbf16> to vector<16x1024xbf16>
    %104 = arith.mulf %101, %103 : vector<16x1024xbf16>
    %c288 = arith.constant 288 : index
    %c0_75 = arith.constant 0 : index
    %105 = vector.load %arg11[%c288, %c0_75] : memref<432x1024xbf16, #tpu.memory_space<vmem>>, vector<16x1024xbf16>
    tpu.vector_store %arg11[%c288, %c0_75], %104 {strides = array<i32>} : memref<432x1024xbf16, #tpu.memory_space<vmem>>, vector<16x1024xbf16>,
    %c0_76 = arith.constant 0 : index
    %c184 = arith.constant 184 : index
    %106 = vector.load %arg9[%c0_76, %c184] : memref<16x1280xbf16, #tpu.memory_space<vmem>>, vector<16x1024xbf16>
    %c19 = arith.constant 19 : index
    %c0_77 = arith.constant 0 : index
    %107 = vector.load %arg2[%c19, %c0_77] : memref<27x1024xbf16, #tpu.memory_space<vmem>>, vector<1x1024xbf16>
    %108 = vector.broadcast %107 : vector<1x1024xbf16> to vector<16x1024xbf16>
    %109 = arith.mulf %106, %108 : vector<16x1024xbf16>
    %c304 = arith.constant 304 : index
    %c0_78 = arith.constant 0 : index
    %110 = vector.load %arg11[%c304, %c0_78] : memref<432x1024xbf16, #tpu.memory_space<vmem>>, vector<16x1024xbf16>
    tpu.vector_store %arg11[%c304, %c0_78], %109 {strides = array<i32>} : memref<432x1024xbf16, #tpu.memory_space<vmem>>, vector<16x1024xbf16>,
    %c0_79 = arith.constant 0 : index
    %c185 = arith.constant 185 : index
    %111 = vector.load %arg9[%c0_79, %c185] : memref<16x1280xbf16, #tpu.memory_space<vmem>>, vector<16x1024xbf16>
    %c20 = arith.constant 20 : index
    %c0_80 = arith.constant 0 : index
    %112 = vector.load %arg2[%c20, %c0_80] : memref<27x1024xbf16, #tpu.memory_space<vmem>>, vector<1x1024xbf16>
    %113 = vector.broadcast %112 : vector<1x1024xbf16> to vector<16x1024xbf16>
    %114 = arith.mulf %111, %113 : vector<16x1024xbf16>
    %c320 = arith.constant 320 : index
    %c0_81 = arith.constant 0 : index
    %115 = vector.load %arg11[%c320, %c0_81] : memref<432x1024xbf16, #tpu.memory_space<vmem>>, vector<16x1024xbf16>
    tpu.vector_store %arg11[%c320, %c0_81], %114 {strides = array<i32>} : memref<432x1024xbf16, #tpu.memory_space<vmem>>, vector<16x1024xbf16>,
    %c0_82 = arith.constant 0 : index
    %c191 = arith.constant 191 : index
    %116 = vector.load %arg9[%c0_82, %c191] : memref<16x1280xbf16, #tpu.memory_space<vmem>>, vector<16x1024xbf16>
    %c21 = arith.constant 21 : index
    %c0_83 = arith.constant 0 : index
    %117 = vector.load %arg2[%c21, %c0_83] : memref<27x1024xbf16, #tpu.memory_space<vmem>>, vector<1x1024xbf16>
    %118 = vector.broadcast %117 : vector<1x1024xbf16> to vector<16x1024xbf16>
    %119 = arith.mulf %116, %118 : vector<16x1024xbf16>
    %c336 = arith.constant 336 : index
    %c0_84 = arith.constant 0 : index
    %120 = vector.load %arg11[%c336, %c0_84] : memref<432x1024xbf16, #tpu.memory_space<vmem>>, vector<16x1024xbf16>
    tpu.vector_store %arg11[%c336, %c0_84], %119 {strides = array<i32>} : memref<432x1024xbf16, #tpu.memory_space<vmem>>, vector<16x1024xbf16>,
    %c0_85 = arith.constant 0 : index
    %c192_86 = arith.constant 192 : index
    %121 = vector.load %arg9[%c0_85, %c192_86] : memref<16x1280xbf16, #tpu.memory_space<vmem>>, vector<16x1024xbf16>
    %c22 = arith.constant 22 : index
    %c0_87 = arith.constant 0 : index
    %122 = vector.load %arg2[%c22, %c0_87] : memref<27x1024xbf16, #tpu.memory_space<vmem>>, vector<1x1024xbf16>
    %123 = vector.broadcast %122 : vector<1x1024xbf16> to vector<16x1024xbf16>
    %124 = arith.mulf %121, %123 : vector<16x1024xbf16>
    %c352 = arith.constant 352 : index
    %c0_88 = arith.constant 0 : index
    %125 = vector.load %arg11[%c352, %c0_88] : memref<432x1024xbf16, #tpu.memory_space<vmem>>, vector<16x1024xbf16>
    tpu.vector_store %arg11[%c352, %c0_88], %124 {strides = array<i32>} : memref<432x1024xbf16, #tpu.memory_space<vmem>>, vector<16x1024xbf16>,
    %c0_89 = arith.constant 0 : index
    %c193 = arith.constant 193 : index
    %126 = vector.load %arg9[%c0_89, %c193] : memref<16x1280xbf16, #tpu.memory_space<vmem>>, vector<16x1024xbf16>
    %c23 = arith.constant 23 : index
    %c0_90 = arith.constant 0 : index
    %127 = vector.load %arg2[%c23, %c0_90] : memref<27x1024xbf16, #tpu.memory_space<vmem>>, vector<1x1024xbf16>
    %128 = vector.broadcast %127 : vector<1x1024xbf16> to vector<16x1024xbf16>
    %129 = arith.mulf %126, %128 : vector<16x1024xbf16>
    %c368 = arith.constant 368 : index
    %c0_91 = arith.constant 0 : index
    %130 = vector.load %arg11[%c368, %c0_91] : memref<432x1024xbf16, #tpu.memory_space<vmem>>, vector<16x1024xbf16>
    tpu.vector_store %arg11[%c368, %c0_91], %129 {strides = array<i32>} : memref<432x1024xbf16, #tpu.memory_space<vmem>>, vector<16x1024xbf16>,
    %c0_92 = arith.constant 0 : index
    %c199 = arith.constant 199 : index
    %131 = vector.load %arg9[%c0_92, %c199] : memref<16x1280xbf16, #tpu.memory_space<vmem>>, vector<16x1024xbf16>
    %c24 = arith.constant 24 : index
    %c0_93 = arith.constant 0 : index
    %132 = vector.load %arg2[%c24, %c0_93] : memref<27x1024xbf16, #tpu.memory_space<vmem>>, vector<1x1024xbf16>
    %133 = vector.broadcast %132 : vector<1x1024xbf16> to vector<16x1024xbf16>
    %134 = arith.mulf %131, %133 : vector<16x1024xbf16>
    %c384 = arith.constant 384 : index
    %c0_94 = arith.constant 0 : index
    %135 = vector.load %arg11[%c384, %c0_94] : memref<432x1024xbf16, #tpu.memory_space<vmem>>, vector<16x1024xbf16>
    tpu.vector_store %arg11[%c384, %c0_94], %134 {strides = array<i32>} : memref<432x1024xbf16, #tpu.memory_space<vmem>>, vector<16x1024xbf16>,
    %c0_95 = arith.constant 0 : index
    %c200 = arith.constant 200 : index
    %136 = vector.load %arg9[%c0_95, %c200] : memref<16x1280xbf16, #tpu.memory_space<vmem>>, vector<16x1024xbf16>
    %c25 = arith.constant 25 : index
    %c0_96 = arith.constant 0 : index
    %137 = vector.load %arg2[%c25, %c0_96] : memref<27x1024xbf16, #tpu.memory_space<vmem>>, vector<1x1024xbf16>
    %138 = vector.broadcast %137 : vector<1x1024xbf16> to vector<16x1024xbf16>
    %139 = arith.mulf %136, %138 : vector<16x1024xbf16>
    %c400 = arith.constant 400 : index
    %c0_97 = arith.constant 0 : index
    %140 = vector.load %arg11[%c400, %c0_97] : memref<432x1024xbf16, #tpu.memory_space<vmem>>, vector<16x1024xbf16>
    tpu.vector_store %arg11[%c400, %c0_97], %139 {strides = array<i32>} : memref<432x1024xbf16, #tpu.memory_space<vmem>>, vector<16x1024xbf16>,
    %c0_98 = arith.constant 0 : index
    %c201 = arith.constant 201 : index
    %141 = vector.load %arg9[%c0_98, %c201] : memref<16x1280xbf16, #tpu.memory_space<vmem>>, vector<16x1024xbf16>
    %c26 = arith.constant 26 : index
    %c0_99 = arith.constant 0 : index
    %142 = vector.load %arg2[%c26, %c0_99] : memref<27x1024xbf16, #tpu.memory_space<vmem>>, vector<1x1024xbf16>
    %143 = vector.broadcast %142 : vector<1x1024xbf16> to vector<16x1024xbf16>
    %144 = arith.mulf %141, %143 : vector<16x1024xbf16>
    %c416 = arith.constant 416 : index
    %c0_100 = arith.constant 0 : index
    %145 = vector.load %arg11[%c416, %c0_100] : memref<432x1024xbf16, #tpu.memory_space<vmem>>, vector<16x1024xbf16>
    tpu.vector_store %arg11[%c416, %c0_100], %144 {strides = array<i32>} : memref<432x1024xbf16, #tpu.memory_space<vmem>>, vector<16x1024xbf16>,
    %c0_101 = arith.constant 0 : index
    %c0_102 = arith.constant 0 : index
    %146 = vector.load %arg4[%c0_101, %c0_102] : memref<16x432xbf16, #tpu.memory_space<vmem>>, vector<16x432xbf16>
    %c0_103 = arith.constant 0 : index
    %c0_104 = arith.constant 0 : index
    %147 = vector.load %arg11[%c0_103, %c0_104] : memref<432x1024xbf16, #tpu.memory_space<vmem>>, vector<432x1024xbf16>
    %cst_105 = arith.constant dense<0.000000e+00> : vector<16x1024xf32>
    %148 = tpu.matmul %146, %147, %cst_105 {dimension_numbers = #tpu.dot_dimension_numbers<[1], [0], [0], [1], [0, 0, 1, 1], [], []>} : vector<16x432xbf16>, vector<432x1024xbf16>, vector<16x1024xf32> -> vector<16x1024xf32>
    %c0_106 = arith.constant 0 : index
    %c0_107 = arith.constant 0 : index
    %149 = vector.load %arg5[%c0_106, %c0_107] : memref<16x1xf32, #tpu.memory_space<vmem>>, vector<16x1xf32>
    %150 = vector.broadcast %149 : vector<16x1xf32> to vector<16x1024xf32>
    %151 = arith.addf %148, %150 : vector<16x1024xf32>
    %cst_108 = arith.constant 0.000000e+00 : f32
    %152 = vector.broadcast %cst_108 : f32 to vector<16x1024xf32>
    %153 = arith.maximumf %151, %152 : vector<16x1024xf32>
    %154 = arith.truncf %153 : vector<16x1024xf32> to vector<16x1024xbf16>
    %c0_109 = arith.constant 0 : index
    %c128_110 = arith.constant 128 : index
    %155 = vector.load %arg10[%c0_109, %c128_110] : memref<16x1280xbf16, #tpu.memory_space<vmem>>, vector<16x1024xbf16>
    tpu.vector_store %arg10[%c0_109, %c128_110], %154 {strides = array<i32>} : memref<16x1280xbf16, #tpu.memory_space<vmem>>, vector<16x1024xbf16>,
    %c0_111 = arith.constant 0 : index
    %c55_112 = arith.constant 55 : index
    %156 = vector.load %arg10[%c0_111, %c55_112] : memref<16x1280xbf16, #tpu.memory_space<vmem>>, vector<16x1024xbf16>
    %c0_113 = arith.constant 0 : index
    %c0_114 = arith.constant 0 : index
    %157 = vector.load %arg2[%c0_113, %c0_114] : memref<27x1024xbf16, #tpu.memory_space<vmem>>, vector<1x1024xbf16>
    %158 = vector.broadcast %157 : vector<1x1024xbf16> to vector<16x1024xbf16>
    %159 = arith.mulf %156, %158 : vector<16x1024xbf16>
    %c0_115 = arith.constant 0 : index
    %c0_116 = arith.constant 0 : index
    %160 = vector.load %arg11[%c0_115, %c0_116] : memref<432x1024xbf16, #tpu.memory_space<vmem>>, vector<16x1024xbf16>
    tpu.vector_store %arg11[%c0_115, %c0_116], %159 {strides = array<i32>} : memref<432x1024xbf16, #tpu.memory_space<vmem>>, vector<16x1024xbf16>,
    %c0_117 = arith.constant 0 : index
    %c56_118 = arith.constant 56 : index
    %161 = vector.load %arg10[%c0_117, %c56_118] : memref<16x1280xbf16, #tpu.memory_space<vmem>>, vector<16x1024xbf16>
    %c1_119 = arith.constant 1 : index
    %c0_120 = arith.constant 0 : index
    %162 = vector.load %arg2[%c1_119, %c0_120] : memref<27x1024xbf16, #tpu.memory_space<vmem>>, vector<1x1024xbf16>
    %163 = vector.broadcast %162 : vector<1x1024xbf16> to vector<16x1024xbf16>
    %164 = arith.mulf %161, %163 : vector<16x1024xbf16>
    %c16_121 = arith.constant 16 : index
    %c0_122 = arith.constant 0 : index
    %165 = vector.load %arg11[%c16_121, %c0_122] : memref<432x1024xbf16, #tpu.memory_space<vmem>>, vector<16x1024xbf16>
    tpu.vector_store %arg11[%c16_121, %c0_122], %164 {strides = array<i32>} : memref<432x1024xbf16, #tpu.memory_space<vmem>>, vector<16x1024xbf16>,
    %c0_123 = arith.constant 0 : index
    %c57_124 = arith.constant 57 : index
    %166 = vector.load %arg10[%c0_123, %c57_124] : memref<16x1280xbf16, #tpu.memory_space<vmem>>, vector<16x1024xbf16>
    %c2_125 = arith.constant 2 : index
    %c0_126 = arith.constant 0 : index
    %167 = vector.load %arg2[%c2_125, %c0_126] : memref<27x1024xbf16, #tpu.memory_space<vmem>>, vector<1x1024xbf16>
    %168 = vector.broadcast %167 : vector<1x1024xbf16> to vector<16x1024xbf16>
    %169 = arith.mulf %166, %168 : vector<16x1024xbf16>
    %c32_127 = arith.constant 32 : index
    %c0_128 = arith.constant 0 : index
    %170 = vector.load %arg11[%c32_127, %c0_128] : memref<432x1024xbf16, #tpu.memory_space<vmem>>, vector<16x1024xbf16>
    tpu.vector_store %arg11[%c32_127, %c0_128], %169 {strides = array<i32>} : memref<432x1024xbf16, #tpu.memory_space<vmem>>, vector<16x1024xbf16>,
    %c0_129 = arith.constant 0 : index
    %c63_130 = arith.constant 63 : index
    %171 = vector.load %arg10[%c0_129, %c63_130] : memref<16x1280xbf16, #tpu.memory_space<vmem>>, vector<16x1024xbf16>
    %c3_131 = arith.constant 3 : index
    %c0_132 = arith.constant 0 : index
    %172 = vector.load %arg2[%c3_131, %c0_132] : memref<27x1024xbf16, #tpu.memory_space<vmem>>, vector<1x1024xbf16>
    %173 = vector.broadcast %172 : vector<1x1024xbf16> to vector<16x1024xbf16>
    %174 = arith.mulf %171, %173 : vector<16x1024xbf16>
    %c48_133 = arith.constant 48 : index
    %c0_134 = arith.constant 0 : index
    %175 = vector.load %arg11[%c48_133, %c0_134] : memref<432x1024xbf16, #tpu.memory_space<vmem>>, vector<16x1024xbf16>
    tpu.vector_store %arg11[%c48_133, %c0_134], %174 {strides = array<i32>} : memref<432x1024xbf16, #tpu.memory_space<vmem>>, vector<16x1024xbf16>,
    %c0_135 = arith.constant 0 : index
    %c64_136 = arith.constant 64 : index
    %176 = vector.load %arg10[%c0_135, %c64_136] : memref<16x1280xbf16, #tpu.memory_space<vmem>>, vector<16x1024xbf16>
    %c4_137 = arith.constant 4 : index
    %c0_138 = arith.constant 0 : index
    %177 = vector.load %arg2[%c4_137, %c0_138] : memref<27x1024xbf16, #tpu.memory_space<vmem>>, vector<1x1024xbf16>
    %178 = vector.broadcast %177 : vector<1x1024xbf16> to vector<16x1024xbf16>
    %179 = arith.mulf %176, %178 : vector<16x1024xbf16>
    %c64_139 = arith.constant 64 : index
    %c0_140 = arith.constant 0 : index
    %180 = vector.load %arg11[%c64_139, %c0_140] : memref<432x1024xbf16, #tpu.memory_space<vmem>>, vector<16x1024xbf16>
    tpu.vector_store %arg11[%c64_139, %c0_140], %179 {strides = array<i32>} : memref<432x1024xbf16, #tpu.memory_space<vmem>>, vector<16x1024xbf16>,
    %c0_141 = arith.constant 0 : index
    %c65_142 = arith.constant 65 : index
    %181 = vector.load %arg10[%c0_141, %c65_142] : memref<16x1280xbf16, #tpu.memory_space<vmem>>, vector<16x1024xbf16>
    %c5_143 = arith.constant 5 : index
    %c0_144 = arith.constant 0 : index
    %182 = vector.load %arg2[%c5_143, %c0_144] : memref<27x1024xbf16, #tpu.memory_space<vmem>>, vector<1x1024xbf16>
    %183 = vector.broadcast %182 : vector<1x1024xbf16> to vector<16x1024xbf16>
    %184 = arith.mulf %181, %183 : vector<16x1024xbf16>
    %c80_145 = arith.constant 80 : index
    %c0_146 = arith.constant 0 : index
    %185 = vector.load %arg11[%c80_145, %c0_146] : memref<432x1024xbf16, #tpu.memory_space<vmem>>, vector<16x1024xbf16>
    tpu.vector_store %arg11[%c80_145, %c0_146], %184 {strides = array<i32>} : memref<432x1024xbf16, #tpu.memory_space<vmem>>, vector<16x1024xbf16>,
    %c0_147 = arith.constant 0 : index
    %c71_148 = arith.constant 71 : index
    %186 = vector.load %arg10[%c0_147, %c71_148] : memref<16x1280xbf16, #tpu.memory_space<vmem>>, vector<16x1024xbf16>
    %c6_149 = arith.constant 6 : index
    %c0_150 = arith.constant 0 : index
    %187 = vector.load %arg2[%c6_149, %c0_150] : memref<27x1024xbf16, #tpu.memory_space<vmem>>, vector<1x1024xbf16>
    %188 = vector.broadcast %187 : vector<1x1024xbf16> to vector<16x1024xbf16>
    %189 = arith.mulf %186, %188 : vector<16x1024xbf16>
    %c96_151 = arith.constant 96 : index
    %c0_152 = arith.constant 0 : index
    %190 = vector.load %arg11[%c96_151, %c0_152] : memref<432x1024xbf16, #tpu.memory_space<vmem>>, vector<16x1024xbf16>
    tpu.vector_store %arg11[%c96_151, %c0_152], %189 {strides = array<i32>} : memref<432x1024xbf16, #tpu.memory_space<vmem>>, vector<16x1024xbf16>,
    %c0_153 = arith.constant 0 : index
    %c72_154 = arith.constant 72 : index
    %191 = vector.load %arg10[%c0_153, %c72_154] : memref<16x1280xbf16, #tpu.memory_space<vmem>>, vector<16x1024xbf16>
    %c7_155 = arith.constant 7 : index
    %c0_156 = arith.constant 0 : index
    %192 = vector.load %arg2[%c7_155, %c0_156] : memref<27x1024xbf16, #tpu.memory_space<vmem>>, vector<1x1024xbf16>
    %193 = vector.broadcast %192 : vector<1x1024xbf16> to vector<16x1024xbf16>
    %194 = arith.mulf %191, %193 : vector<16x1024xbf16>
    %c112_157 = arith.constant 112 : index
    %c0_158 = arith.constant 0 : index
    %195 = vector.load %arg11[%c112_157, %c0_158] : memref<432x1024xbf16, #tpu.memory_space<vmem>>, vector<16x1024xbf16>
    tpu.vector_store %arg11[%c112_157, %c0_158], %194 {strides = array<i32>} : memref<432x1024xbf16, #tpu.memory_space<vmem>>, vector<16x1024xbf16>,
    %c0_159 = arith.constant 0 : index
    %c73_160 = arith.constant 73 : index
    %196 = vector.load %arg10[%c0_159, %c73_160] : memref<16x1280xbf16, #tpu.memory_space<vmem>>, vector<16x1024xbf16>
    %c8_161 = arith.constant 8 : index
    %c0_162 = arith.constant 0 : index
    %197 = vector.load %arg2[%c8_161, %c0_162] : memref<27x1024xbf16, #tpu.memory_space<vmem>>, vector<1x1024xbf16>
    %198 = vector.broadcast %197 : vector<1x1024xbf16> to vector<16x1024xbf16>
    %199 = arith.mulf %196, %198 : vector<16x1024xbf16>
    %c128_163 = arith.constant 128 : index
    %c0_164 = arith.constant 0 : index
    %200 = vector.load %arg11[%c128_163, %c0_164] : memref<432x1024xbf16, #tpu.memory_space<vmem>>, vector<16x1024xbf16>
    tpu.vector_store %arg11[%c128_163, %c0_164], %199 {strides = array<i32>} : memref<432x1024xbf16, #tpu.memory_space<vmem>>, vector<16x1024xbf16>,
    %c0_165 = arith.constant 0 : index
    %c119_166 = arith.constant 119 : index
    %201 = vector.load %arg10[%c0_165, %c119_166] : memref<16x1280xbf16, #tpu.memory_space<vmem>>, vector<16x1024xbf16>
    %c9_167 = arith.constant 9 : index
    %c0_168 = arith.constant 0 : index
    %202 = vector.load %arg2[%c9_167, %c0_168] : memref<27x1024xbf16, #tpu.memory_space<vmem>>, vector<1x1024xbf16>
    %203 = vector.broadcast %202 : vector<1x1024xbf16> to vector<16x1024xbf16>
    %204 = arith.mulf %201, %203 : vector<16x1024xbf16>
    %c144_169 = arith.constant 144 : index
    %c0_170 = arith.constant 0 : index
    %205 = vector.load %arg11[%c144_169, %c0_170] : memref<432x1024xbf16, #tpu.memory_space<vmem>>, vector<16x1024xbf16>
    tpu.vector_store %arg11[%c144_169, %c0_170], %204 {strides = array<i32>} : memref<432x1024xbf16, #tpu.memory_space<vmem>>, vector<16x1024xbf16>,
    %c0_171 = arith.constant 0 : index
    %c120_172 = arith.constant 120 : index
    %206 = vector.load %arg10[%c0_171, %c120_172] : memref<16x1280xbf16, #tpu.memory_space<vmem>>, vector<16x1024xbf16>
    %c10_173 = arith.constant 10 : index
    %c0_174 = arith.constant 0 : index
    %207 = vector.load %arg2[%c10_173, %c0_174] : memref<27x1024xbf16, #tpu.memory_space<vmem>>, vector<1x1024xbf16>
    %208 = vector.broadcast %207 : vector<1x1024xbf16> to vector<16x1024xbf16>
    %209 = arith.mulf %206, %208 : vector<16x1024xbf16>
    %c160_175 = arith.constant 160 : index
    %c0_176 = arith.constant 0 : index
    %210 = vector.load %arg11[%c160_175, %c0_176] : memref<432x1024xbf16, #tpu.memory_space<vmem>>, vector<16x1024xbf16>
    tpu.vector_store %arg11[%c160_175, %c0_176], %209 {strides = array<i32>} : memref<432x1024xbf16, #tpu.memory_space<vmem>>, vector<16x1024xbf16>,
    %c0_177 = arith.constant 0 : index
    %c121_178 = arith.constant 121 : index
    %211 = vector.load %arg10[%c0_177, %c121_178] : memref<16x1280xbf16, #tpu.memory_space<vmem>>, vector<16x1024xbf16>
    %c11_179 = arith.constant 11 : index
    %c0_180 = arith.constant 0 : index
    %212 = vector.load %arg2[%c11_179, %c0_180] : memref<27x1024xbf16, #tpu.memory_space<vmem>>, vector<1x1024xbf16>
    %213 = vector.broadcast %212 : vector<1x1024xbf16> to vector<16x1024xbf16>
    %214 = arith.mulf %211, %213 : vector<16x1024xbf16>
    %c176_181 = arith.constant 176 : index
    %c0_182 = arith.constant 0 : index
    %215 = vector.load %arg11[%c176_181, %c0_182] : memref<432x1024xbf16, #tpu.memory_space<vmem>>, vector<16x1024xbf16>
    tpu.vector_store %arg11[%c176_181, %c0_182], %214 {strides = array<i32>} : memref<432x1024xbf16, #tpu.memory_space<vmem>>, vector<16x1024xbf16>,
    %c0_183 = arith.constant 0 : index
    %c127_184 = arith.constant 127 : index
    %216 = vector.load %arg10[%c0_183, %c127_184] : memref<16x1280xbf16, #tpu.memory_space<vmem>>, vector<16x1024xbf16>
    %c12_185 = arith.constant 12 : index
    %c0_186 = arith.constant 0 : index
    %217 = vector.load %arg2[%c12_185, %c0_186] : memref<27x1024xbf16, #tpu.memory_space<vmem>>, vector<1x1024xbf16>
    %218 = vector.broadcast %217 : vector<1x1024xbf16> to vector<16x1024xbf16>
    %219 = arith.mulf %216, %218 : vector<16x1024xbf16>
    %c192_187 = arith.constant 192 : index
    %c0_188 = arith.constant 0 : index
    %220 = vector.load %arg11[%c192_187, %c0_188] : memref<432x1024xbf16, #tpu.memory_space<vmem>>, vector<16x1024xbf16>
    tpu.vector_store %arg11[%c192_187, %c0_188], %219 {strides = array<i32>} : memref<432x1024xbf16, #tpu.memory_space<vmem>>, vector<16x1024xbf16>,
    %c0_189 = arith.constant 0 : index
    %c128_190 = arith.constant 128 : index
    %221 = vector.load %arg10[%c0_189, %c128_190] : memref<16x1280xbf16, #tpu.memory_space<vmem>>, vector<16x1024xbf16>
    %c13_191 = arith.constant 13 : index
    %c0_192 = arith.constant 0 : index
    %222 = vector.load %arg2[%c13_191, %c0_192] : memref<27x1024xbf16, #tpu.memory_space<vmem>>, vector<1x1024xbf16>
    %223 = vector.broadcast %222 : vector<1x1024xbf16> to vector<16x1024xbf16>
    %224 = arith.mulf %221, %223 : vector<16x1024xbf16>
    %c208_193 = arith.constant 208 : index
    %c0_194 = arith.constant 0 : index
    %225 = vector.load %arg11[%c208_193, %c0_194] : memref<432x1024xbf16, #tpu.memory_space<vmem>>, vector<16x1024xbf16>
    tpu.vector_store %arg11[%c208_193, %c0_194], %224 {strides = array<i32>} : memref<432x1024xbf16, #tpu.memory_space<vmem>>, vector<16x1024xbf16>,
    %c0_195 = arith.constant 0 : index
    %c129_196 = arith.constant 129 : index
    %226 = vector.load %arg10[%c0_195, %c129_196] : memref<16x1280xbf16, #tpu.memory_space<vmem>>, vector<16x1024xbf16>
    %c14_197 = arith.constant 14 : index
    %c0_198 = arith.constant 0 : index
    %227 = vector.load %arg2[%c14_197, %c0_198] : memref<27x1024xbf16, #tpu.memory_space<vmem>>, vector<1x1024xbf16>
    %228 = vector.broadcast %227 : vector<1x1024xbf16> to vector<16x1024xbf16>
    %229 = arith.mulf %226, %228 : vector<16x1024xbf16>
    %c224_199 = arith.constant 224 : index
    %c0_200 = arith.constant 0 : index
    %230 = vector.load %arg11[%c224_199, %c0_200] : memref<432x1024xbf16, #tpu.memory_space<vmem>>, vector<16x1024xbf16>
    tpu.vector_store %arg11[%c224_199, %c0_200], %229 {strides = array<i32>} : memref<432x1024xbf16, #tpu.memory_space<vmem>>, vector<16x1024xbf16>,
    %c0_201 = arith.constant 0 : index
    %c135_202 = arith.constant 135 : index
    %231 = vector.load %arg10[%c0_201, %c135_202] : memref<16x1280xbf16, #tpu.memory_space<vmem>>, vector<16x1024xbf16>
    %c15_203 = arith.constant 15 : index
    %c0_204 = arith.constant 0 : index
    %232 = vector.load %arg2[%c15_203, %c0_204] : memref<27x1024xbf16, #tpu.memory_space<vmem>>, vector<1x1024xbf16>
    %233 = vector.broadcast %232 : vector<1x1024xbf16> to vector<16x1024xbf16>
    %234 = arith.mulf %231, %233 : vector<16x1024xbf16>
    %c240_205 = arith.constant 240 : index
    %c0_206 = arith.constant 0 : index
    %235 = vector.load %arg11[%c240_205, %c0_206] : memref<432x1024xbf16, #tpu.memory_space<vmem>>, vector<16x1024xbf16>
    tpu.vector_store %arg11[%c240_205, %c0_206], %234 {strides = array<i32>} : memref<432x1024xbf16, #tpu.memory_space<vmem>>, vector<16x1024xbf16>,
    %c0_207 = arith.constant 0 : index
    %c136_208 = arith.constant 136 : index
    %236 = vector.load %arg10[%c0_207, %c136_208] : memref<16x1280xbf16, #tpu.memory_space<vmem>>, vector<16x1024xbf16>
    %c16_209 = arith.constant 16 : index
    %c0_210 = arith.constant 0 : index
    %237 = vector.load %arg2[%c16_209, %c0_210] : memref<27x1024xbf16, #tpu.memory_space<vmem>>, vector<1x1024xbf16>
    %238 = vector.broadcast %237 : vector<1x1024xbf16> to vector<16x1024xbf16>
    %239 = arith.mulf %236, %238 : vector<16x1024xbf16>
    %c256_211 = arith.constant 256 : index
    %c0_212 = arith.constant 0 : index
    %240 = vector.load %arg11[%c256_211, %c0_212] : memref<432x1024xbf16, #tpu.memory_space<vmem>>, vector<16x1024xbf16>
    tpu.vector_store %arg11[%c256_211, %c0_212], %239 {strides = array<i32>} : memref<432x1024xbf16, #tpu.memory_space<vmem>>, vector<16x1024xbf16>,
    %c0_213 = arith.constant 0 : index
    %c137_214 = arith.constant 137 : index
    %241 = vector.load %arg10[%c0_213, %c137_214] : memref<16x1280xbf16, #tpu.memory_space<vmem>>, vector<16x1024xbf16>
    %c17_215 = arith.constant 17 : index
    %c0_216 = arith.constant 0 : index
    %242 = vector.load %arg2[%c17_215, %c0_216] : memref<27x1024xbf16, #tpu.memory_space<vmem>>, vector<1x1024xbf16>
    %243 = vector.broadcast %242 : vector<1x1024xbf16> to vector<16x1024xbf16>
    %244 = arith.mulf %241, %243 : vector<16x1024xbf16>
    %c272_217 = arith.constant 272 : index
    %c0_218 = arith.constant 0 : index
    %245 = vector.load %arg11[%c272_217, %c0_218] : memref<432x1024xbf16, #tpu.memory_space<vmem>>, vector<16x1024xbf16>
    tpu.vector_store %arg11[%c272_217, %c0_218], %244 {strides = array<i32>} : memref<432x1024xbf16, #tpu.memory_space<vmem>>, vector<16x1024xbf16>,
    %c0_219 = arith.constant 0 : index
    %c183_220 = arith.constant 183 : index
    %246 = vector.load %arg10[%c0_219, %c183_220] : memref<16x1280xbf16, #tpu.memory_space<vmem>>, vector<16x1024xbf16>
    %c18_221 = arith.constant 18 : index
    %c0_222 = arith.constant 0 : index
    %247 = vector.load %arg2[%c18_221, %c0_222] : memref<27x1024xbf16, #tpu.memory_space<vmem>>, vector<1x1024xbf16>
    %248 = vector.broadcast %247 : vector<1x1024xbf16> to vector<16x1024xbf16>
    %249 = arith.mulf %246, %248 : vector<16x1024xbf16>
    %c288_223 = arith.constant 288 : index
    %c0_224 = arith.constant 0 : index
    %250 = vector.load %arg11[%c288_223, %c0_224] : memref<432x1024xbf16, #tpu.memory_space<vmem>>, vector<16x1024xbf16>
    tpu.vector_store %arg11[%c288_223, %c0_224], %249 {strides = array<i32>} : memref<432x1024xbf16, #tpu.memory_space<vmem>>, vector<16x1024xbf16>,
    %c0_225 = arith.constant 0 : index
    %c184_226 = arith.constant 184 : index
    %251 = vector.load %arg10[%c0_225, %c184_226] : memref<16x1280xbf16, #tpu.memory_space<vmem>>, vector<16x1024xbf16>
    %c19_227 = arith.constant 19 : index
    %c0_228 = arith.constant 0 : index
    %252 = vector.load %arg2[%c19_227, %c0_228] : memref<27x1024xbf16, #tpu.memory_space<vmem>>, vector<1x1024xbf16>
    %253 = vector.broadcast %252 : vector<1x1024xbf16> to vector<16x1024xbf16>
    %254 = arith.mulf %251, %253 : vector<16x1024xbf16>
    %c304_229 = arith.constant 304 : index
    %c0_230 = arith.constant 0 : index
    %255 = vector.load %arg11[%c304_229, %c0_230] : memref<432x1024xbf16, #tpu.memory_space<vmem>>, vector<16x1024xbf16>
    tpu.vector_store %arg11[%c304_229, %c0_230], %254 {strides = array<i32>} : memref<432x1024xbf16, #tpu.memory_space<vmem>>, vector<16x1024xbf16>,
    %c0_231 = arith.constant 0 : index
    %c185_232 = arith.constant 185 : index
    %256 = vector.load %arg10[%c0_231, %c185_232] : memref<16x1280xbf16, #tpu.memory_space<vmem>>, vector<16x1024xbf16>
    %c20_233 = arith.constant 20 : index
    %c0_234 = arith.constant 0 : index
    %257 = vector.load %arg2[%c20_233, %c0_234] : memref<27x1024xbf16, #tpu.memory_space<vmem>>, vector<1x1024xbf16>
    %258 = vector.broadcast %257 : vector<1x1024xbf16> to vector<16x1024xbf16>
    %259 = arith.mulf %256, %258 : vector<16x1024xbf16>
    %c320_235 = arith.constant 320 : index
    %c0_236 = arith.constant 0 : index
    %260 = vector.load %arg11[%c320_235, %c0_236] : memref<432x1024xbf16, #tpu.memory_space<vmem>>, vector<16x1024xbf16>
    tpu.vector_store %arg11[%c320_235, %c0_236], %259 {strides = array<i32>} : memref<432x1024xbf16, #tpu.memory_space<vmem>>, vector<16x1024xbf16>,
    %c0_237 = arith.constant 0 : index
    %c191_238 = arith.constant 191 : index
    %261 = vector.load %arg10[%c0_237, %c191_238] : memref<16x1280xbf16, #tpu.memory_space<vmem>>, vector<16x1024xbf16>
    %c21_239 = arith.constant 21 : index
    %c0_240 = arith.constant 0 : index
    %262 = vector.load %arg2[%c21_239, %c0_240] : memref<27x1024xbf16, #tpu.memory_space<vmem>>, vector<1x1024xbf16>
    %263 = vector.broadcast %262 : vector<1x1024xbf16> to vector<16x1024xbf16>
    %264 = arith.mulf %261, %263 : vector<16x1024xbf16>
    %c336_241 = arith.constant 336 : index
    %c0_242 = arith.constant 0 : index
    %265 = vector.load %arg11[%c336_241, %c0_242] : memref<432x1024xbf16, #tpu.memory_space<vmem>>, vector<16x1024xbf16>
    tpu.vector_store %arg11[%c336_241, %c0_242], %264 {strides = array<i32>} : memref<432x1024xbf16, #tpu.memory_space<vmem>>, vector<16x1024xbf16>,
    %c0_243 = arith.constant 0 : index
    %c192_244 = arith.constant 192 : index
    %266 = vector.load %arg10[%c0_243, %c192_244] : memref<16x1280xbf16, #tpu.memory_space<vmem>>, vector<16x1024xbf16>
    %c22_245 = arith.constant 22 : index
    %c0_246 = arith.constant 0 : index
    %267 = vector.load %arg2[%c22_245, %c0_246] : memref<27x1024xbf16, #tpu.memory_space<vmem>>, vector<1x1024xbf16>
    %268 = vector.broadcast %267 : vector<1x1024xbf16> to vector<16x1024xbf16>
    %269 = arith.mulf %266, %268 : vector<16x1024xbf16>
    %c352_247 = arith.constant 352 : index
    %c0_248 = arith.constant 0 : index
    %270 = vector.load %arg11[%c352_247, %c0_248] : memref<432x1024xbf16, #tpu.memory_space<vmem>>, vector<16x1024xbf16>
    tpu.vector_store %arg11[%c352_247, %c0_248], %269 {strides = array<i32>} : memref<432x1024xbf16, #tpu.memory_space<vmem>>, vector<16x1024xbf16>,
    %c0_249 = arith.constant 0 : index
    %c193_250 = arith.constant 193 : index
    %271 = vector.load %arg10[%c0_249, %c193_250] : memref<16x1280xbf16, #tpu.memory_space<vmem>>, vector<16x1024xbf16>
    %c23_251 = arith.constant 23 : index
    %c0_252 = arith.constant 0 : index
    %272 = vector.load %arg2[%c23_251, %c0_252] : memref<27x1024xbf16, #tpu.memory_space<vmem>>, vector<1x1024xbf16>
    %273 = vector.broadcast %272 : vector<1x1024xbf16> to vector<16x1024xbf16>
    %274 = arith.mulf %271, %273 : vector<16x1024xbf16>
    %c368_253 = arith.constant 368 : index
    %c0_254 = arith.constant 0 : index
    %275 = vector.load %arg11[%c368_253, %c0_254] : memref<432x1024xbf16, #tpu.memory_space<vmem>>, vector<16x1024xbf16>
    tpu.vector_store %arg11[%c368_253, %c0_254], %274 {strides = array<i32>} : memref<432x1024xbf16, #tpu.memory_space<vmem>>, vector<16x1024xbf16>,
    %c0_255 = arith.constant 0 : index
    %c199_256 = arith.constant 199 : index
    %276 = vector.load %arg10[%c0_255, %c199_256] : memref<16x1280xbf16, #tpu.memory_space<vmem>>, vector<16x1024xbf16>
    %c24_257 = arith.constant 24 : index
    %c0_258 = arith.constant 0 : index
    %277 = vector.load %arg2[%c24_257, %c0_258] : memref<27x1024xbf16, #tpu.memory_space<vmem>>, vector<1x1024xbf16>
    %278 = vector.broadcast %277 : vector<1x1024xbf16> to vector<16x1024xbf16>
    %279 = arith.mulf %276, %278 : vector<16x1024xbf16>
    %c384_259 = arith.constant 384 : index
    %c0_260 = arith.constant 0 : index
    %280 = vector.load %arg11[%c384_259, %c0_260] : memref<432x1024xbf16, #tpu.memory_space<vmem>>, vector<16x1024xbf16>
    tpu.vector_store %arg11[%c384_259, %c0_260], %279 {strides = array<i32>} : memref<432x1024xbf16, #tpu.memory_space<vmem>>, vector<16x1024xbf16>,
    %c0_261 = arith.constant 0 : index
    %c200_262 = arith.constant 200 : index
    %281 = vector.load %arg10[%c0_261, %c200_262] : memref<16x1280xbf16, #tpu.memory_space<vmem>>, vector<16x1024xbf16>
    %c25_263 = arith.constant 25 : index
    %c0_264 = arith.constant 0 : index
    %282 = vector.load %arg2[%c25_263, %c0_264] : memref<27x1024xbf16, #tpu.memory_space<vmem>>, vector<1x1024xbf16>
    %283 = vector.broadcast %282 : vector<1x1024xbf16> to vector<16x1024xbf16>
    %284 = arith.mulf %281, %283 : vector<16x1024xbf16>
    %c400_265 = arith.constant 400 : index
    %c0_266 = arith.constant 0 : index
    %285 = vector.load %arg11[%c400_265, %c0_266] : memref<432x1024xbf16, #tpu.memory_space<vmem>>, vector<16x1024xbf16>
    tpu.vector_store %arg11[%c400_265, %c0_266], %284 {strides = array<i32>} : memref<432x1024xbf16, #tpu.memory_space<vmem>>, vector<16x1024xbf16>,
    %c0_267 = arith.constant 0 : index
    %c201_268 = arith.constant 201 : index
    %286 = vector.load %arg10[%c0_267, %c201_268] : memref<16x1280xbf16, #tpu.memory_space<vmem>>, vector<16x1024xbf16>
    %c26_269 = arith.constant 26 : index
    %c0_270 = arith.constant 0 : index
    %287 = vector.load %arg2[%c26_269, %c0_270] : memref<27x1024xbf16, #tpu.memory_space<vmem>>, vector<1x1024xbf16>
    %288 = vector.broadcast %287 : vector<1x1024xbf16> to vector<16x1024xbf16>
    %289 = arith.mulf %286, %288 : vector<16x1024xbf16>
    %c416_271 = arith.constant 416 : index
    %c0_272 = arith.constant 0 : index
    %290 = vector.load %arg11[%c416_271, %c0_272] : memref<432x1024xbf16, #tpu.memory_space<vmem>>, vector<16x1024xbf16>
    tpu.vector_store %arg11[%c416_271, %c0_272], %289 {strides = array<i32>} : memref<432x1024xbf16, #tpu.memory_space<vmem>>, vector<16x1024xbf16>,
    %c0_273 = arith.constant 0 : index
    %c0_274 = arith.constant 0 : index
    %291 = vector.load %arg6[%c0_273, %c0_274] : memref<8x432xbf16, #tpu.memory_space<vmem>>, vector<8x432xbf16>
    %c0_275 = arith.constant 0 : index
    %c0_276 = arith.constant 0 : index
    %292 = vector.load %arg11[%c0_275, %c0_276] : memref<432x1024xbf16, #tpu.memory_space<vmem>>, vector<432x1024xbf16>
    %cst_277 = arith.constant dense<0.000000e+00> : vector<8x1024xf32>
    %293 = tpu.matmul %291, %292, %cst_277 {dimension_numbers = #tpu.dot_dimension_numbers<[1], [0], [0], [1], [0, 0, 1, 1], [], []>} : vector<8x432xbf16>, vector<432x1024xbf16>, vector<8x1024xf32> -> vector<8x1024xf32>
    %c0_278 = arith.constant 0 : index
    %c0_279 = arith.constant 0 : index
    %294 = vector.load %arg7[%c0_278, %c0_279] : memref<8x1xf32, #tpu.memory_space<vmem>>, vector<8x1xf32>
    %295 = vector.broadcast %294 : vector<8x1xf32> to vector<8x1024xf32>
    %296 = arith.addf %293, %295 : vector<8x1024xf32>
    %cst_280 = arith.constant 0.000000e+00 : f32
    %297 = vector.broadcast %cst_280 : f32 to vector<8x1024xf32>
    %298 = arith.maximumf %296, %297 : vector<8x1024xf32>
    %c0_281 = arith.constant 0 : index
    %c0_282 = arith.constant 0 : index
    %299 = vector.load %arg3[%c0_281, %c0_282] : memref<1024x128xf32, #tpu.memory_space<vmem>>, vector<1024x128xf32>
    %cst_283 = arith.constant dense<0.000000e+00> : vector<8x128xf32>
    %300 = tpu.matmul %298, %299, %cst_283 {dimension_numbers = #tpu.dot_dimension_numbers<[1], [0], [0], [1], [0, 0, 1, 1], [], []>} : vector<8x1024xf32>, vector<1024x128xf32>, vector<8x128xf32> -> vector<8x128xf32>
    %c0_284 = arith.constant 0 : index
    %c0_285 = arith.constant 0 : index
    %c0_286 = arith.constant 0 : index
    %301 = vector.load %arg8[%c0_284, %c0_285, %c0_286] : memref<1x8x128xf32, #tpu.memory_space<vmem>>, vector<1x8x128xf32>
    %302 = vector.shape_cast %301 : vector<1x8x128xf32> to vector<8x128xf32>
    %303 = vector.shape_cast %300 : vector<8x128xf32> to vector<1x8x128xf32>
    tpu.vector_store %arg8[%c0_284, %c0_285, %c0_286], %303 {strides = array<i32>} : memref<1x8x128xf32, #tpu.memory_space<vmem>>, vector<1x8x128xf32>,
    return
  }
  func.func @transform_0(%arg0: i32) -> (i32, i32, i32) {
    %c0_i32 = arith.constant 0 : i32
    %c0_i32_0 = arith.constant 0 : i32
    %c0_i32_1 = arith.constant 0 : i32
    return %arg0, %c0_i32, %c0_i32_0 : i32, i32, i32
  }
  func.func @transform_1(%arg0: i32) -> (i32, i32) {
    %c0_i32 = arith.constant 0 : i32
    %c0_i32_0 = arith.constant 0 : i32
    %c0_i32_1 = arith.constant 0 : i32
    return %c0_i32, %c0_i32_0 : i32, i32
  }
  func.func @transform_2(%arg0: i32) -> (i32, i32) {
    %c0_i32 = arith.constant 0 : i32
    %c0_i32_0 = arith.constant 0 : i32
    %c0_i32_1 = arith.constant 0 : i32
    return %c0_i32, %c0_i32_0 : i32, i32
  }
  func.func @transform_3(%arg0: i32) -> (i32, i32) {
    %c0_i32 = arith.constant 0 : i32
    %c0_i32_0 = arith.constant 0 : i32
    %c0_i32_1 = arith.constant 0 : i32
    return %c0_i32, %c0_i32_0 : i32, i32
  }
  func.func @transform_4(%arg0: i32) -> (i32, i32) {
    %c0_i32 = arith.constant 0 : i32
    %c0_i32_0 = arith.constant 0 : i32
    %c0_i32_1 = arith.constant 0 : i32
    return %c0_i32, %c0_i32_0 : i32, i32
  }
  func.func @transform_5(%arg0: i32) -> (i32, i32) {
    %c0_i32 = arith.constant 0 : i32
    %c0_i32_0 = arith.constant 0 : i32
    %c0_i32_1 = arith.constant 0 : i32
    return %c0_i32, %c0_i32_0 : i32, i32
  }
  func.func @transform_6(%arg0: i32) -> (i32, i32) {
    %c0_i32 = arith.constant 0 : i32
    %c0_i32_0 = arith.constant 0 : i32
    %c0_i32_1 = arith.constant 0 : i32
    return %c0_i32, %c0_i32_0 : i32, i32
  }
  func.func @transform_7(%arg0: i32) -> (i32, i32, i32) {
    %c0_i32 = arith.constant 0 : i32
    %c0_i32_0 = arith.constant 0 : i32
    %c0_i32_1 = arith.constant 0 : i32
    return %arg0, %c0_i32, %c0_i32_0 : i32, i32, i32
  }
}

</mosaic_0001>

<llo_original>
// kernel: tpu_custom_call.1
$region0: #{tpu_custom_call.1}
  #allocation0 [shape = 'u32[]', space=smem, size = 0x4, offset = 0x4, fixed_abs, tag = 'smem constant byte address 0x4 - core index']
  #allocation1 [shape = 'u32[144,128]{1,0:T(1,128)}', space=vmem, size = 0x12000, scoped, tag = 'internal scratch']
  #allocation2 [shape = 'bf16[16,1280]{1,0:T(16,128)(2,1)}', space=vmem, size = 0xa000, scoped, tag = 'scratch operand']
  #allocation3 [shape = 'bf16[16,1280]{1,0:T(16,128)(2,1)}', space=vmem, size = 0xa000, scoped, tag = 'scratch operand']
  #allocation4 [shape = 'bf16[432,1024]{1,0:T(16,128)(2,1)}', space=vmem, size = 0xd8000, scoped, tag = 'scratch operand']
  %s0 = inlined_call_operand.hbm [shape: bf16[1,16,1024], index: 0, kind: input, shape index: {}]
  %s1 = inlined_call_operand.hbm [shape: bf16[27,1024], index: 1, kind: input, shape index: {}]
  %s2 = inlined_call_operand.hbm [shape: f32[1024,128], index: 2, kind: input, shape index: {}]
  %s3 = inlined_call_operand.vmem [shape: bf16[16,432], index: 3, kind: input, shape index: {}]
  %s4 = inlined_call_operand.vmem [shape: f32[16,1], index: 4, kind: input, shape index: {}]
  %s5 = inlined_call_operand.hbm [shape: bf16[8,432], index: 5, kind: input, shape index: {}]
  %s6 = inlined_call_operand.vmem [shape: f32[8,1], index: 6, kind: input, shape index: {}]
  %s7 = inlined_call_operand.hbm [shape: f32[1,8,128], index: 7, kind: output, shape index: {}]
  %s8 = sld [smem:[#allocation0]]
  $region54: #{tpu_custom_call.1} parent=0
    _
  %s10 = ssub.s32 1, %s8
  %s11 = scalar_select 0, %s10, %s8
  $region1: #{tpu_custom_call.1} parent=0
    #allocation5 [shape = 'u8[32768]{0}', space=vmem, size = 0x8000, scoped, tag = 'input window, operand 0, single buffered']
    #allocation6 [shape = 's32[1]{0}', space=sflag, size = 0x4, scoped, tag = 'scoped memory for tpu_custom_call.1']
    #allocation7 [shape = 's32[1]{0}', space=sflag, size = 0x4, scoped, tag = 'scoped memory for tpu_custom_call.1']
    #allocation8 [shape = 'u8[65536]{0}', space=vmem, size = 0x10000, scoped, tag = 'input window, operand 1, single buffered']
    #allocation9 [shape = 's32[1]{0}', space=sflag, size = 0x4, scoped, tag = 'scoped memory for tpu_custom_call.1']
    #allocation10 [shape = 'u8[524288]{0}', space=vmem, size = 0x80000, scoped, tag = 'input window, operand 2, single buffered']
    #allocation11 [shape = 'u8[8192]{0}', space=vmem, size = 0x2000, scoped, tag = 'input window, operand 5, single buffered']
    #allocation12 [shape = 's32[1]{0}', space=sflag, size = 0x4, scoped, tag = 'scoped memory for tpu_custom_call.1']
    #allocation13 [shape = 'u8[4096]{0}', space=vmem, size = 0x1000, scoped, tag = 'output window, operand 0, single buffered']
    %12 = vsyncpa [#allocation6], 0
    %13 = vsyncpa [#allocation9], 0
    %14 = vsyncpa [#allocation12], 0
    %15 = vsyncpa [#allocation7], 0
    // Predicated region
    $region2: #{tpu_custom_call.1} parent=1 // pred_check
      _
    $region3: #{tpu_custom_call.1} parent=1 // pred_check_branch
      %17 = sbr.rel (0) target = $region5
    $region4: #{tpu_custom_call.1} parent=1 // pred_region
      %s19 = ssub.s32 1024, 1024
      %20 = vsyncadd [#allocation6], %s19
      %s21 = sshll.u32 [#allocation5], 4
      %s22 = int_to_ptr.vmem [resolvable:$true] %s21
      %27 = dma.hbm_to_vmem [thread:$0]  %s0, 1024, %s22, [#allocation6], 512, 512, 32
    $region5: #{tpu_custom_call.1} parent=1 // pred_fallthru
      _
    // Predicated region
    $region6: #{tpu_custom_call.1} parent=1 // pred_check
      _
    $region7: #{tpu_custom_call.1} parent=1 // pred_check_branch
      %29 = sbr.rel (0) target = $region9
    $region8: #{tpu_custom_call.1} parent=1 // pred_region
      %s31 = ssub.s32 2048, 2048
      %32 = vsyncadd [#allocation9], %s31
      %s33 = sshll.u32 [#allocation8], 4
      %s34 = int_to_ptr.vmem [resolvable:$true] %s33
      %39 = dma.hbm_to_vmem [thread:$0]  %s1, 2048, %s34, [#allocation9], 512, 512, 32
    $region9: #{tpu_custom_call.1} parent=1 // pred_fallthru
      _
    // Predicated region
    $region10: #{tpu_custom_call.1} parent=1 // pred_check
      _
    $region11: #{tpu_custom_call.1} parent=1 // pred_check_branch
      %41 = sbr.rel (0) target = $region13
    $region12: #{tpu_custom_call.1} parent=1 // pred_region
      %s43 = ssub.s32 16384, 16384
      %44 = vsyncadd [#allocation9], %s43
      %s45 = sshll.u32 [#allocation10], 4
      %s46 = int_to_ptr.vmem [resolvable:$true] %s45
      %51 = dma.hbm_to_vmem [thread:$0]  %s2, 16384, %s46, [#allocation9], 128, 128, 8
    $region13: #{tpu_custom_call.1} parent=1 // pred_fallthru
      _
    // Predicated region
    $region14: #{tpu_custom_call.1} parent=1 // pred_check
      _
    $region15: #{tpu_custom_call.1} parent=1 // pred_check_branch
      %53 = sbr.rel (0) target = $region17
    $region16: #{tpu_custom_call.1} parent=1 // pred_region
      _
    $region17: #{tpu_custom_call.1} parent=1 // pred_fallthru
      _
    // Predicated region
    $region18: #{tpu_custom_call.1} parent=1 // pred_check
      _
    $region19: #{tpu_custom_call.1} parent=1 // pred_check_branch
      %55 = sbr.rel (0) target = $region21
    $region20: #{tpu_custom_call.1} parent=1 // pred_region
      _
    $region21: #{tpu_custom_call.1} parent=1 // pred_fallthru
      _
    // Predicated region
    $region22: #{tpu_custom_call.1} parent=1 // pred_check
      _
    $region23: #{tpu_custom_call.1} parent=1 // pred_check_branch
      %57 = sbr.rel (0) target = $region25
    $region24: #{tpu_custom_call.1} parent=1 // pred_region
      %s59 = ssub.s32 256, 256
      %60 = vsyncadd [#allocation12], %s59
      %s62 = sshll.u32 [#allocation11], 4
      %s63 = int_to_ptr.vmem [resolvable:$true] %s62
      %65 = dma.hbm_to_vmem [thread:$0]  %s5, 256, %s63, [#allocation12]
    $region25: #{tpu_custom_call.1} parent=1 // pred_fallthru
      _
    // Predicated region
    $region26: #{tpu_custom_call.1} parent=1 // pred_check
      _
    $region27: #{tpu_custom_call.1} parent=1 // pred_check_branch
      %67 = sbr.rel (0) target = $region29
    $region28: #{tpu_custom_call.1} parent=1 // pred_region
      _
    $region29: #{tpu_custom_call.1} parent=1 // pred_fallthru
      _
    // Predicated region
    $region30: #{tpu_custom_call.1} parent=1 // pred_check
      _
    $region31: #{tpu_custom_call.1} parent=1 // pred_check_branch
      %69 = sbr.rel (0) target = $region33
    $region32: #{tpu_custom_call.1} parent=1 // pred_region
      %70 = dma.done [#allocation6], 1024
    $region33: #{tpu_custom_call.1} parent=1 // pred_fallthru
      _
    // Predicated region
    $region34: #{tpu_custom_call.1} parent=1 // pred_check
      _
    $region35: #{tpu_custom_call.1} parent=1 // pred_check_branch
      %72 = sbr.rel (0) target = $region37
    $region36: #{tpu_custom_call.1} parent=1 // pred_region
      %73 = dma.done [#allocation9], 2048
    $region37: #{tpu_custom_call.1} parent=1 // pred_fallthru
      _
    // Predicated region
    $region38: #{tpu_custom_call.1} parent=1 // pred_check
      _
    $region39: #{tpu_custom_call.1} parent=1 // pred_check_branch
      %75 = sbr.rel (0) target = $region41
    $region40: #{tpu_custom_call.1} parent=1 // pred_region
      %76 = dma.done [#allocation9], 16384
    $region41: #{tpu_custom_call.1} parent=1 // pred_fallthru
      _
    // Predicated region
    $region42: #{tpu_custom_call.1} parent=1 // pred_check
      _
    $region43: #{tpu_custom_call.1} parent=1 // pred_check_branch
      %78 = sbr.rel (0) target = $region45
    $region44: #{tpu_custom_call.1} parent=1 // pred_region
      %79 = dma.done [#allocation12], 256
    $region45: #{tpu_custom_call.1} parent=1 // pred_fallthru
      _
    %81 = vst [vmem:[#allocation2] sm:$0xff] 0
    %82 = vst [vmem:[#allocation2 + $0x48] sm:$0xff] 0
    %83 = vst [vmem:[#allocation3] sm:$0xff] 0
    %84 = vst [vmem:[#allocation3 + $0x48] sm:$0xff] 0
    %v85 = vld [vmem:[#allocation5] sm:$0xff]
    %v86 = vld [vmem:[#allocation5 + $0x8] sm:$0xff]
    %v87 = vld [vmem:[#allocation5 + $0x10] sm:$0xff]
    %v88 = vld [vmem:[#allocation5 + $0x18] sm:$0xff]
    %v89 = vld [vmem:[#allocation5 + $0x20] sm:$0xff]
    %v90 = vld [vmem:[#allocation5 + $0x28] sm:$0xff]
    %v91 = vld [vmem:[#allocation5 + $0x30] sm:$0xff]
    %v92 = vld [vmem:[#allocation5 + $0x38] sm:$0xff]
    %v101 = vunpack.c.l.b16 %v85
    %v102 = vunpack.c.h.b16 %v85
    %v103 = vunpack.c.l.b16 %v86
    %v104 = vunpack.c.h.b16 %v86
    %v105 = vunpack.c.l.b16 %v87
    %v106 = vunpack.c.h.b16 %v87
    %v107 = vunpack.c.l.b16 %v88
    %v108 = vunpack.c.h.b16 %v88
    %v109 = vunpack.c.l.b16 %v89
    %v110 = vunpack.c.h.b16 %v89
    %v111 = vunpack.c.l.b16 %v90
    %v112 = vunpack.c.h.b16 %v90
    %v113 = vunpack.c.l.b16 %v91
    %v114 = vunpack.c.h.b16 %v91
    %v115 = vunpack.c.l.b16 %v92
    %v116 = vunpack.c.h.b16 %v92
    %v117 = vpack.c.b16 %v109, %v101
    %v118 = vpack.c.b16 %v110, %v102
    %v119 = vpack.c.b16 %v111, %v103
    %v120 = vpack.c.b16 %v112, %v104
    %v121 = vpack.c.b16 %v113, %v105
    %v122 = vpack.c.b16 %v114, %v106
    %v123 = vpack.c.b16 %v115, %v107
    %v124 = vpack.c.b16 %v116, %v108
    %133 = vst [vmem:[#allocation2 + $0x8] sm:$0xff] %v117
    %134 = vst [vmem:[#allocation2 + $0x10] sm:$0xff] %v118
    %135 = vst [vmem:[#allocation2 + $0x18] sm:$0xff] %v119
    %136 = vst [vmem:[#allocation2 + $0x20] sm:$0xff] %v120
    %137 = vst [vmem:[#allocation2 + $0x28] sm:$0xff] %v121
    %138 = vst [vmem:[#allocation2 + $0x30] sm:$0xff] %v122
    %139 = vst [vmem:[#allocation2 + $0x38] sm:$0xff] %v123
    %140 = vst [vmem:[#allocation2 + $0x40] sm:$0xff] %v124
    %v141 = vld [vmem:[#allocation2] sm:$0xff]
    %v142 = vld [vmem:[#allocation2 + $0x8] sm:$0xff]
    %v143 = vld [vmem:[#allocation2 + $0x10] sm:$0xff]
    %v144 = vld [vmem:[#allocation2 + $0x18] sm:$0xff]
    %v145 = vld [vmem:[#allocation2 + $0x20] sm:$0xff]
    %v146 = vld [vmem:[#allocation2 + $0x28] sm:$0xff]
    %v147 = vld [vmem:[#allocation2 + $0x30] sm:$0xff]
    %v148 = vld [vmem:[#allocation2 + $0x38] sm:$0xff]
    %v149 = vld [vmem:[#allocation2 + $0x40] sm:$0xff]
    %v150 = vld [vmem:[#allocation8] sm:$0x11]
    %v151 = vld [vmem:[#allocation8 + $0x8] sm:$0x11]
    %v152 = vld [vmem:[#allocation8 + $0x10] sm:$0x11]
    %v153 = vld [vmem:[#allocation8 + $0x18] sm:$0x11]
    %v158 = vunpack.c.l.b16 %v150
    %v159 = vunpack.c.h.b16 %v150
    %v160 = vunpack.c.l.b16 %v151
    %v161 = vunpack.c.h.b16 %v151
    %v162 = vunpack.c.l.b16 %v152
    %v163 = vunpack.c.h.b16 %v152
    %v164 = vunpack.c.l.b16 %v153
    %v165 = vunpack.c.h.b16 %v153
    %v166 = vpack.c.b16 %v158, %v158
    %v167 = vpack.c.b16 %v159, %v159
    %v168 = vpack.c.b16 %v160, %v160
    %v169 = vpack.c.b16 %v161, %v161
    %v170 = vpack.c.b16 %v162, %v162
    %v171 = vpack.c.b16 %v163, %v163
    %v172 = vpack.c.b16 %v164, %v164
    %v173 = vpack.c.b16 %v165, %v165
    %v175 = vpack.i.b16 %v166, %v166
    %v177 = vlaneseq
    %v178 = vshrl.u32 %v177, 7
    %v179 = vsub.s32 0, %v178
    %v180 = vrot.slane %v175, %v179
    %v182 = vpack.i.b16 %v167, %v167
    %v184 = vlaneseq
    %v185 = vshrl.u32 %v184, 7
    %v186 = vsub.s32 0, %v185
    %v187 = vrot.slane %v182, %v186
    %v189 = vpack.i.b16 %v168, %v168
    %v191 = vlaneseq
    %v192 = vshrl.u32 %v191, 7
    %v193 = vsub.s32 0, %v192
    %v194 = vrot.slane %v189, %v193
    %v196 = vpack.i.b16 %v169, %v169
    %v198 = vlaneseq
    %v199 = vshrl.u32 %v198, 7
    %v200 = vsub.s32 0, %v199
    %v201 = vrot.slane %v196, %v200
    %v203 = vpack.i.b16 %v170, %v170
    %v205 = vlaneseq
    %v206 = vshrl.u32 %v205, 7
    %v207 = vsub.s32 0, %v206
    %v208 = vrot.slane %v203, %v207
    %v210 = vpack.i.b16 %v171, %v171
    %v212 = vlaneseq
    %v213 = vshrl.u32 %v212, 7
    %v214 = vsub.s32 0, %v213
    %v215 = vrot.slane %v210, %v214
    %v217 = vpack.i.b16 %v172, %v172
    %v219 = vlaneseq
    %v220 = vshrl.u32 %v219, 7
    %v221 = vsub.s32 0, %v220
    %v222 = vrot.slane %v217, %v221
    %v224 = vpack.i.b16 %v173, %v173
    %v226 = vlaneseq
    %v227 = vshrl.u32 %v226, 7
    %v228 = vsub.s32 0, %v227
    %v229 = vrot.slane %v224, %v228
    %238 = vrot.lane.b32.xlu0 %v180, 55
    %v239 = vpop.permute.xlu0 %238
    %240 = vrot.lane.b32.xlu0 %v187, 55
    %v241 = vpop.permute.xlu0 %240
    %242 = vrot.lane.b32.xlu0 %v194, 55
    %v243 = vpop.permute.xlu0 %242
    %244 = vrot.lane.b32.xlu0 %v201, 55
    %v245 = vpop.permute.xlu0 %244
    %246 = vrot.lane.b32.xlu0 %v208, 55
    %v247 = vpop.permute.xlu0 %246
    %248 = vrot.lane.b32.xlu0 %v215, 55
    %v249 = vpop.permute.xlu0 %248
    %250 = vrot.lane.b32.xlu0 %v222, 55
    %v251 = vpop.permute.xlu0 %250
    %252 = vrot.lane.b32.xlu0 %v229, 55
    %v253 = vpop.permute.xlu0 %252
    %vm254 = vcmask 449536
    %v255 = vsel %vm254, %v239, %v241
    %v256 = vsel %vm254, %v241, %v243
    %v257 = vsel %vm254, %v243, %v245
    %v258 = vsel %vm254, %v245, %v247
    %v259 = vsel %vm254, %v247, %v249
    %v260 = vsel %vm254, %v249, %v251
    %v261 = vsel %vm254, %v251, %v253
    %v271 = vmul.bf16 %v141, %v239
    %v272 = vmul.bf16 %v142, %v255
    %v273 = vmul.bf16 %v143, %v256
    %v274 = vmul.bf16 %v144, %v257
    %v275 = vmul.bf16 %v145, %v258
    %v276 = vmul.bf16 %v146, %v259
    %v277 = vmul.bf16 %v147, %v260
    %v278 = vmul.bf16 %v148, %v261
    %v279 = vmul.bf16 %v149, %v253
    %289 = vrot.lane.b32.xlu0 %v271, 73
    %v290 = vpop.permute.xlu0 %289
    %291 = vrot.lane.b32.xlu0 %v272, 73
    %v292 = vpop.permute.xlu0 %291
    %293 = vrot.lane.b32.xlu0 %v273, 73
    %v294 = vpop.permute.xlu0 %293
    %295 = vrot.lane.b32.xlu0 %v274, 73
    %v296 = vpop.permute.xlu0 %295
    %297 = vrot.lane.b32.xlu0 %v275, 73
    %v298 = vpop.permute.xlu0 %297
    %299 = vrot.lane.b32.xlu0 %v276, 73
    %v300 = vpop.permute.xlu0 %299
    %301 = vrot.lane.b32.xlu0 %v277, 73
    %v302 = vpop.permute.xlu0 %301
    %303 = vrot.lane.b32.xlu0 %v278, 73
    %v304 = vpop.permute.xlu0 %303
    %305 = vrot.lane.b32.xlu0 %v279, 73
    %v306 = vpop.permute.xlu0 %305
    %vm307 = vcmask 596992
    %v308 = vsel %vm307, %v290, %v292
    %v309 = vsel %vm307, %v292, %v294
    %v310 = vsel %vm307, %v294, %v296
    %v311 = vsel %vm307, %v296, %v298
    %v312 = vsel %vm307, %v298, %v300
    %v313 = vsel %vm307, %v300, %v302
    %v314 = vsel %vm307, %v302, %v304
    %v315 = vsel %vm307, %v304, %v306
    %324 = vst [vmem:[#allocation4] sm:$0xff] %v308
    %325 = vst [vmem:[#allocation4 + $0x8] sm:$0xff] %v309
    %326 = vst [vmem:[#allocation4 + $0x10] sm:$0xff] %v310
    %327 = vst [vmem:[#allocation4 + $0x18] sm:$0xff] %v311
    %328 = vst [vmem:[#allocation4 + $0x20] sm:$0xff] %v312
    %329 = vst [vmem:[#allocation4 + $0x28] sm:$0xff] %v313
    %330 = vst [vmem:[#allocation4 + $0x30] sm:$0xff] %v314
    %331 = vst [vmem:[#allocation4 + $0x38] sm:$0xff] %v315
    %v332 = vld [vmem:[#allocation2] sm:$0xff]
    %v333 = vld [vmem:[#allocation2 + $0x8] sm:$0xff]
    %v334 = vld [vmem:[#allocation2 + $0x10] sm:$0xff]
    %v335 = vld [vmem:[#allocation2 + $0x18] sm:$0xff]
    %v336 = vld [vmem:[#allocation2 + $0x20] sm:$0xff]
    %v337 = vld [vmem:[#allocation2 + $0x28] sm:$0xff]
    %v338 = vld [vmem:[#allocation2 + $0x30] sm:$0xff]
    %v339 = vld [vmem:[#allocation2 + $0x38] sm:$0xff]
    %v340 = vld [vmem:[#allocation2 + $0x40] sm:$0xff]
    %v341 = vld [vmem:[#allocation8] sm:$0x11]
    %v342 = vld [vmem:[#allocation8 + $0x8] sm:$0x11]
    %v343 = vld [vmem:[#allocation8 + $0x10] sm:$0x11]
    %v344 = vld [vmem:[#allocation8 + $0x18] sm:$0x11]
    %v349 = vunpack.c.l.b16 %v341
    %v350 = vunpack.c.h.b16 %v341
    %v351 = vunpack.c.l.b16 %v342
    %v352 = vunpack.c.h.b16 %v342
    %v353 = vunpack.c.l.b16 %v343
    %v354 = vunpack.c.h.b16 %v343
    %v355 = vunpack.c.l.b16 %v344
    %v356 = vunpack.c.h.b16 %v344
    %v357 = vpack.c.b16 %v349, %v349
    %v358 = vpack.c.b16 %v350, %v350
    %v359 = vpack.c.b16 %v351, %v351
    %v360 = vpack.c.b16 %v352, %v352
    %v361 = vpack.c.b16 %v353, %v353
    %v362 = vpack.c.b16 %v354, %v354
    %v363 = vpack.c.b16 %v355, %v355
    %v364 = vpack.c.b16 %v356, %v356
    %v366 = vshrl.u32 %v357, 16
    %v367 = vpack.i.b16 %v366, %v366
    %v369 = vlaneseq
    %v370 = vshrl.u32 %v369, 7
    %v371 = vsub.s32 0, %v370
    %v372 = vrot.slane %v367, %v371
    %v374 = vshrl.u32 %v358, 16
    %v375 = vpack.i.b16 %v374, %v374
    %v377 = vlaneseq
    %v378 = vshrl.u32 %v377, 7
    %v379 = vsub.s32 0, %v378
    %v380 = vrot.slane %v375, %v379
    %v382 = vshrl.u32 %v359, 16
    %v383 = vpack.i.b16 %v382, %v382
    %v385 = vlaneseq
    %v386 = vshrl.u32 %v385, 7
    %v387 = vsub.s32 0, %v386
    %v388 = vrot.slane %v383, %v387
    %v390 = vshrl.u32 %v360, 16
    %v391 = vpack.i.b16 %v390, %v390
    %v393 = vlaneseq
    %v394 = vshrl.u32 %v393, 7
    %v395 = vsub.s32 0, %v394
    %v396 = vrot.slane %v391, %v395
    %v398 = vshrl.u32 %v361, 16
    %v399 = vpack.i.b16 %v398, %v398
    %v401 = vlaneseq
    %v402 = vshrl.u32 %v401, 7
    %v403 = vsub.s32 0, %v402
    %v404 = vrot.slane %v399, %v403
    %v406 = vshrl.u32 %v362, 16
    %v407 = vpack.i.b16 %v406, %v406
    %v409 = vlaneseq
    %v410 = vshrl.u32 %v409, 7
    %v411 = vsub.s32 0, %v410
    %v412 = vrot.slane %v407, %v411
    %v414 = vshrl.u32 %v363, 16
    %v415 = vpack.i.b16 %v414, %v414
    %v417 = vlaneseq
    %v418 = vshrl.u32 %v417, 7
    %v419 = vsub.s32 0, %v418
    %v420 = vrot.slane %v415, %v419
    %v422 = vshrl.u32 %v364, 16
    %v423 = vpack.i.b16 %v422, %v422
    %v425 = vlaneseq
    %v426 = vshrl.u32 %v425, 7
    %v427 = vsub.s32 0, %v426
    %v428 = vrot.slane %v423, %v427
    %437 = vrot.lane.b32.xlu0 %v372, 56
    %v438 = vpop.permute.xlu0 %437
    %439 = vrot.lane.b32.xlu0 %v380, 56
    %v440 = vpop.permute.xlu0 %439
    %441 = vrot.lane.b32.xlu0 %v388, 56
    %v442 = vpop.permute.xlu0 %441
    %443 = vrot.lane.b32.xlu0 %v396, 56
    %v444 = vpop.permute.xlu0 %443
    %445 = vrot.lane.b32.xlu0 %v404, 56
    %v446 = vpop.permute.xlu0 %445
    %447 = vrot.lane.b32.xlu0 %v412, 56
    %v448 = vpop.permute.xlu0 %447
    %449 = vrot.lane.b32.xlu0 %v420, 56
    %v450 = vpop.permute.xlu0 %449
    %451 = vrot.lane.b32.xlu0 %v428, 56
    %v452 = vpop.permute.xlu0 %451
    %vm453 = vcmask 457728
    %v454 = vsel %vm453, %v438, %v440
    %v455 = vsel %vm453, %v440, %v442
    %v456 = vsel %vm453, %v442, %v444
    %v457 = vsel %vm453, %v444, %v446
    %v458 = vsel %vm453, %v446, %v448
    %v459 = vsel %vm453, %v448, %v450
    %v460 = vsel %vm453, %v450, %v452
    %v470 = vmul.bf16 %v332, %v438
    %v471 = vmul.bf16 %v333, %v454
    %v472 = vmul.bf16 %v334, %v455
    %v473 = vmul.bf16 %v335, %v456
    %v474 = vmul.bf16 %v336, %v457
    %v475 = vmul.bf16 %v337, %v458
    %v476 = vmul.bf16 %v338, %v459
    %v477 = vmul.bf16 %v339, %v460
    %v478 = vmul.bf16 %v340, %v452
    %488 = vrot.lane.b32.xlu0 %v470, 72
    %v489 = vpop.permute.xlu0 %488
    %490 = vrot.lane.b32.xlu0 %v471, 72
    %v491 = vpop.permute.xlu0 %490
    %492 = vrot.lane.b32.xlu0 %v472, 72
    %v493 = vpop.permute.xlu0 %492
    %494 = vrot.lane.b32.xlu0 %v473, 72
    %v495 = vpop.permute.xlu0 %494
    %496 = vrot.lane.b32.xlu0 %v474, 72
    %v497 = vpop.permute.xlu0 %496
    %498 = vrot.lane.b32.xlu0 %v475, 72
    %v499 = vpop.permute.xlu0 %498
    %500 = vrot.lane.b32.xlu0 %v476, 72
    %v501 = vpop.permute.xlu0 %500
    %502 = vrot.lane.b32.xlu0 %v477, 72
    %v503 = vpop.permute.xlu0 %502
    %504 = vrot.lane.b32.xlu0 %v478, 72
    %v505 = vpop.permute.xlu0 %504
    %vm506 = vcmask 588800
    %v507 = vsel %vm506, %v489, %v491
    %v508 = vsel %vm506, %v491, %v493
    %v509 = vsel %vm506, %v493, %v495
    %v510 = vsel %vm506, %v495, %v497
    %v511 = vsel %vm506, %v497, %v499
    %v512 = vsel %vm506, %v499, %v501
    %v513 = vsel %vm506, %v501, %v503
    %v514 = vsel %vm506, %v503, %v505
    %523 = vst [vmem:[#allocation4 + $0x40] sm:$0xff] %v507
    %524 = vst [vmem:[#allocation4 + $0x48] sm:$0xff] %v508
    %525 = vst [vmem:[#allocation4 + $0x50] sm:$0xff] %v509
    %526 = vst [vmem:[#allocation4 + $0x58] sm:$0xff] %v510
    %527 = vst [vmem:[#allocation4 + $0x60] sm:$0xff] %v511
    %528 = vst [vmem:[#allocation4 + $0x68] sm:$0xff] %v512
    %529 = vst [vmem:[#allocation4 + $0x70] sm:$0xff] %v513
    %530 = vst [vmem:[#allocation4 + $0x78] sm:$0xff] %v514
    %v531 = vld [vmem:[#allocation2] sm:$0xff]
    %v532 = vld [vmem:[#allocation2 + $0x8] sm:$0xff]
    %v533 = vld [vmem:[#allocation2 + $0x10] sm:$0xff]
    %v534 = vld [vmem:[#allocation2 + $0x18] sm:$0xff]
    %v535 = vld [vmem:[#allocation2 + $0x20] sm:$0xff]
    %v536 = vld [vmem:[#allocation2 + $0x28] sm:$0xff]
    %v537 = vld [vmem:[#allocation2 + $0x30] sm:$0xff]
    %v538 = vld [vmem:[#allocation2 + $0x38] sm:$0xff]
    %v539 = vld [vmem:[#allocation2 + $0x40] sm:$0xff]
    %v540 = vld [vmem:[#allocation8] sm:$0x22]
    %v541 = vld [vmem:[#allocation8 + $0x8] sm:$0x22]
    %v542 = vld [vmem:[#allocation8 + $0x10] sm:$0x22]
    %v543 = vld [vmem:[#allocation8 + $0x18] sm:$0x22]
    %v548 = vunpack.c.l.b16 %v540
    %v549 = vunpack.c.h.b16 %v540
    %v550 = vunpack.c.l.b16 %v541
    %v551 = vunpack.c.h.b16 %v541
    %v552 = vunpack.c.l.b16 %v542
    %v553 = vunpack.c.h.b16 %v542
    %v554 = vunpack.c.l.b16 %v543
    %v555 = vunpack.c.h.b16 %v543
    %v556 = vpack.c.b16 %v548, %v548
    %v557 = vpack.c.b16 %v549, %v549
    %v558 = vpack.c.b16 %v550, %v550
    %v559 = vpack.c.b16 %v551, %v551
    %v560 = vpack.c.b16 %v552, %v552
    %v561 = vpack.c.b16 %v553, %v553
    %v562 = vpack.c.b16 %v554, %v554
    %v563 = vpack.c.b16 %v555, %v555
    %v565 = vpack.i.b16 %v556, %v556
    %v567 = vlaneseq
    %v568 = vshrl.u32 %v567, 7
    %v569 = vsub.s32 1, %v568
    %v570 = vrot.slane %v565, %v569
    %v572 = vpack.i.b16 %v557, %v557
    %v574 = vlaneseq
    %v575 = vshrl.u32 %v574, 7
    %v576 = vsub.s32 1, %v575
    %v577 = vrot.slane %v572, %v576
    %v579 = vpack.i.b16 %v558, %v558
    %v581 = vlaneseq
    %v582 = vshrl.u32 %v581, 7
    %v583 = vsub.s32 1, %v582
    %v584 = vrot.slane %v579, %v583
    %v586 = vpack.i.b16 %v559, %v559
    %v588 = vlaneseq
    %v589 = vshrl.u32 %v588, 7
    %v590 = vsub.s32 1, %v589
    %v591 = vrot.slane %v586, %v590
    %v593 = vpack.i.b16 %v560, %v560
    %v595 = vlaneseq
    %v596 = vshrl.u32 %v595, 7
    %v597 = vsub.s32 1, %v596
    %v598 = vrot.slane %v593, %v597
    %v600 = vpack.i.b16 %v561, %v561
    %v602 = vlaneseq
    %v603 = vshrl.u32 %v602, 7
    %v604 = vsub.s32 1, %v603
    %v605 = vrot.slane %v600, %v604
    %v607 = vpack.i.b16 %v562, %v562
    %v609 = vlaneseq
    %v610 = vshrl.u32 %v609, 7
    %v611 = vsub.s32 1, %v610
    %v612 = vrot.slane %v607, %v611
    %v614 = vpack.i.b16 %v563, %v563
    %v616 = vlaneseq
    %v617 = vshrl.u32 %v616, 7
    %v618 = vsub.s32 1, %v617
    %v619 = vrot.slane %v614, %v618
    %628 = vrot.lane.b32.xlu0 %v570, 57
    %v629 = vpop.permute.xlu0 %628
    %630 = vrot.lane.b32.xlu0 %v577, 57
    %v631 = vpop.permute.xlu0 %630
    %632 = vrot.lane.b32.xlu0 %v584, 57
    %v633 = vpop.permute.xlu0 %632
    %634 = vrot.lane.b32.xlu0 %v591, 57
    %v635 = vpop.permute.xlu0 %634
    %636 = vrot.lane.b32.xlu0 %v598, 57
    %v637 = vpop.permute.xlu0 %636
    %638 = vrot.lane.b32.xlu0 %v605, 57
    %v639 = vpop.permute.xlu0 %638
    %640 = vrot.lane.b32.xlu0 %v612, 57
    %v641 = vpop.permute.xlu0 %640
    %642 = vrot.lane.b32.xlu0 %v619, 57
    %v643 = vpop.permute.xlu0 %642
    %vm644 = vcmask 465920
    %v645 = vsel %vm644, %v629, %v631
    %v646 = vsel %vm644, %v631, %v633
    %v647 = vsel %vm644, %v633, %v635
    %v648 = vsel %vm644, %v635, %v637
    %v649 = vsel %vm644, %v637, %v639
    %v650 = vsel %vm644, %v639, %v641
    %v651 = vsel %vm644, %v641, %v643
    %v661 = vmul.bf16 %v531, %v629
    %v662 = vmul.bf16 %v532, %v645
    %v663 = vmul.bf16 %v533, %v646
    %v664 = vmul.bf16 %v534, %v647
    %v665 = vmul.bf16 %v535, %v648
    %v666 = vmul.bf16 %v536, %v649
    %v667 = vmul.bf16 %v537, %v650
    %v668 = vmul.bf16 %v538, %v651
    %v669 = vmul.bf16 %v539, %v643
    %679 = vrot.lane.b32.xlu0 %v661, 71
    %v680 = vpop.permute.xlu0 %679
    %681 = vrot.lane.b32.xlu0 %v662, 71
    %v682 = vpop.permute.xlu0 %681
    %683 = vrot.lane.b32.xlu0 %v663, 71
    %v684 = vpop.permute.xlu0 %683
    %685 = vrot.lane.b32.xlu0 %v664, 71
    %v686 = vpop.permute.xlu0 %685
    %687 = vrot.lane.b32.xlu0 %v665, 71
    %v688 = vpop.permute.xlu0 %687
    %689 = vrot.lane.b32.xlu0 %v666, 71
    %v690 = vpop.permute.xlu0 %689
    %691 = vrot.lane.b32.xlu0 %v667, 71
    %v692 = vpop.permute.xlu0 %691
    %693 = vrot.lane.b32.xlu0 %v668, 71
    %v694 = vpop.permute.xlu0 %693
    %695 = vrot.lane.b32.xlu0 %v669, 71
    %v696 = vpop.permute.xlu0 %695
    %vm697 = vcmask 580608
    %v698 = vsel %vm697, %v680, %v682
    %v699 = vsel %vm697, %v682, %v684
    %v700 = vsel %vm697, %v684, %v686
    %v701 = vsel %vm697, %v686, %v688
    %v702 = vsel %vm697, %v688, %v690
    %v703 = vsel %vm697, %v690, %v692
    %v704 = vsel %vm697, %v692, %v694
    %v705 = vsel %vm697, %v694, %v696
    %714 = vst [vmem:[#allocation4 + $0x80] sm:$0xff] %v698
    %715 = vst [vmem:[#allocation4 + $0x88] sm:$0xff] %v699
    %716 = vst [vmem:[#allocation4 + $0x90] sm:$0xff] %v700
    %717 = vst [vmem:[#allocation4 + $0x98] sm:$0xff] %v701
    %718 = vst [vmem:[#allocation4 + $0xa0] sm:$0xff] %v702
    %719 = vst [vmem:[#allocation4 + $0xa8] sm:$0xff] %v703
    %720 = vst [vmem:[#allocation4 + $0xb0] sm:$0xff] %v704
    %721 = vst [vmem:[#allocation4 + $0xb8] sm:$0xff] %v705
    %v722 = vld [vmem:[#allocation2] sm:$0xff]
    %v723 = vld [vmem:[#allocation2 + $0x8] sm:$0xff]
    %v724 = vld [vmem:[#allocation2 + $0x10] sm:$0xff]
    %v725 = vld [vmem:[#allocation2 + $0x18] sm:$0xff]
    %v726 = vld [vmem:[#allocation2 + $0x20] sm:$0xff]
    %v727 = vld [vmem:[#allocation2 + $0x28] sm:$0xff]
    %v728 = vld [vmem:[#allocation2 + $0x30] sm:$0xff]
    %v729 = vld [vmem:[#allocation2 + $0x38] sm:$0xff]
    %v730 = vld [vmem:[#allocation2 + $0x40] sm:$0xff]
    %v731 = vld [vmem:[#allocation8] sm:$0x22]
    %v732 = vld [vmem:[#allocation8 + $0x8] sm:$0x22]
    %v733 = vld [vmem:[#allocation8 + $0x10] sm:$0x22]
    %v734 = vld [vmem:[#allocation8 + $0x18] sm:$0x22]
    %v739 = vunpack.c.l.b16 %v731
    %v740 = vunpack.c.h.b16 %v731
    %v741 = vunpack.c.l.b16 %v732
    %v742 = vunpack.c.h.b16 %v732
    %v743 = vunpack.c.l.b16 %v733
    %v744 = vunpack.c.h.b16 %v733
    %v745 = vunpack.c.l.b16 %v734
    %v746 = vunpack.c.h.b16 %v734
    %v747 = vpack.c.b16 %v739, %v739
    %v748 = vpack.c.b16 %v740, %v740
    %v749 = vpack.c.b16 %v741, %v741
    %v750 = vpack.c.b16 %v742, %v742
    %v751 = vpack.c.b16 %v743, %v743
    %v752 = vpack.c.b16 %v744, %v744
    %v753 = vpack.c.b16 %v745, %v745
    %v754 = vpack.c.b16 %v746, %v746
    %v756 = vshrl.u32 %v747, 16
    %v757 = vpack.i.b16 %v756, %v756
    %v759 = vlaneseq
    %v760 = vshrl.u32 %v759, 7
    %v761 = vsub.s32 1, %v760
    %v762 = vrot.slane %v757, %v761
    %v764 = vshrl.u32 %v748, 16
    %v765 = vpack.i.b16 %v764, %v764
    %v767 = vlaneseq
    %v768 = vshrl.u32 %v767, 7
    %v769 = vsub.s32 1, %v768
    %v770 = vrot.slane %v765, %v769
    %v772 = vshrl.u32 %v749, 16
    %v773 = vpack.i.b16 %v772, %v772
    %v775 = vlaneseq
    %v776 = vshrl.u32 %v775, 7
    %v777 = vsub.s32 1, %v776
    %v778 = vrot.slane %v773, %v777
    %v780 = vshrl.u32 %v750, 16
    %v781 = vpack.i.b16 %v780, %v780
    %v783 = vlaneseq
    %v784 = vshrl.u32 %v783, 7
    %v785 = vsub.s32 1, %v784
    %v786 = vrot.slane %v781, %v785
    %v788 = vshrl.u32 %v751, 16
    %v789 = vpack.i.b16 %v788, %v788
    %v791 = vlaneseq
    %v792 = vshrl.u32 %v791, 7
    %v793 = vsub.s32 1, %v792
    %v794 = vrot.slane %v789, %v793
    %v796 = vshrl.u32 %v752, 16
    %v797 = vpack.i.b16 %v796, %v796
    %v799 = vlaneseq
    %v800 = vshrl.u32 %v799, 7
    %v801 = vsub.s32 1, %v800
    %v802 = vrot.slane %v797, %v801
    %v804 = vshrl.u32 %v753, 16
    %v805 = vpack.i.b16 %v804, %v804
    %v807 = vlaneseq
    %v808 = vshrl.u32 %v807, 7
    %v809 = vsub.s32 1, %v808
    %v810 = vrot.slane %v805, %v809
    %v812 = vshrl.u32 %v754, 16
    %v813 = vpack.i.b16 %v812, %v812
    %v815 = vlaneseq
    %v816 = vshrl.u32 %v815, 7
    %v817 = vsub.s32 1, %v816
    %v818 = vrot.slane %v813, %v817
    %827 = vrot.lane.b32.xlu0 %v762, 63
    %v828 = vpop.permute.xlu0 %827
    %829 = vrot.lane.b32.xlu0 %v770, 63
    %v830 = vpop.permute.xlu0 %829
    %831 = vrot.lane.b32.xlu0 %v778, 63
    %v832 = vpop.permute.xlu0 %831
    %833 = vrot.lane.b32.xlu0 %v786, 63
    %v834 = vpop.permute.xlu0 %833
    %835 = vrot.lane.b32.xlu0 %v794, 63
    %v836 = vpop.permute.xlu0 %835
    %837 = vrot.lane.b32.xlu0 %v802, 63
    %v838 = vpop.permute.xlu0 %837
    %839 = vrot.lane.b32.xlu0 %v810, 63
    %v840 = vpop.permute.xlu0 %839
    %841 = vrot.lane.b32.xlu0 %v818, 63
    %v842 = vpop.permute.xlu0 %841
    %vm843 = vcmask 515072
    %v844 = vsel %vm843, %v828, %v830
    %v845 = vsel %vm843, %v830, %v832
    %v846 = vsel %vm843, %v832, %v834
    %v847 = vsel %vm843, %v834, %v836
    %v848 = vsel %vm843, %v836, %v838
    %v849 = vsel %vm843, %v838, %v840
    %v850 = vsel %vm843, %v840, %v842
    %v860 = vmul.bf16 %v722, %v828
    %v861 = vmul.bf16 %v723, %v844
    %v862 = vmul.bf16 %v724, %v845
    %v863 = vmul.bf16 %v725, %v846
    %v864 = vmul.bf16 %v726, %v847
    %v865 = vmul.bf16 %v727, %v848
    %v866 = vmul.bf16 %v728, %v849
    %v867 = vmul.bf16 %v729, %v850
    %v868 = vmul.bf16 %v730, %v842
    %878 = vrot.lane.b32.xlu0 %v860, 65
    %v879 = vpop.permute.xlu0 %878
    %880 = vrot.lane.b32.xlu0 %v861, 65
    %v881 = vpop.permute.xlu0 %880
    %882 = vrot.lane.b32.xlu0 %v862, 65
    %v883 = vpop.permute.xlu0 %882
    %884 = vrot.lane.b32.xlu0 %v863, 65
    %v885 = vpop.permute.xlu0 %884
    %886 = vrot.lane.b32.xlu0 %v864, 65
    %v887 = vpop.permute.xlu0 %886
    %888 = vrot.lane.b32.xlu0 %v865, 65
    %v889 = vpop.permute.xlu0 %888
    %890 = vrot.lane.b32.xlu0 %v866, 65
    %v891 = vpop.permute.xlu0 %890
    %892 = vrot.lane.b32.xlu0 %v867, 65
    %v893 = vpop.permute.xlu0 %892
    %894 = vrot.lane.b32.xlu0 %v868, 65
    %v895 = vpop.permute.xlu0 %894
    %vm896 = vcmask 531456
    %v897 = vsel %vm896, %v879, %v881
    %v898 = vsel %vm896, %v881, %v883
    %v899 = vsel %vm896, %v883, %v885
    %v900 = vsel %vm896, %v885, %v887
    %v901 = vsel %vm896, %v887, %v889
    %v902 = vsel %vm896, %v889, %v891
    %v903 = vsel %vm896, %v891, %v893
    %v904 = vsel %vm896, %v893, %v895
    %913 = vst [vmem:[#allocation4 + $0xc0] sm:$0xff] %v897
    %914 = vst [vmem:[#allocation4 + $0xc8] sm:$0xff] %v898
    %915 = vst [vmem:[#allocation4 + $0xd0] sm:$0xff] %v899
    %916 = vst [vmem:[#allocation4 + $0xd8] sm:$0xff] %v900
    %917 = vst [vmem:[#allocation4 + $0xe0] sm:$0xff] %v901
    %918 = vst [vmem:[#allocation4 + $0xe8] sm:$0xff] %v902
    %919 = vst [vmem:[#allocation4 + $0xf0] sm:$0xff] %v903
    %920 = vst [vmem:[#allocation4 + $0xf8] sm:$0xff] %v904
    %v921 = vld [vmem:[#allocation2] sm:$0xff]
    %v922 = vld [vmem:[#allocation2 + $0x8] sm:$0xff]
    %v923 = vld [vmem:[#allocation2 + $0x10] sm:$0xff]
    %v924 = vld [vmem:[#allocation2 + $0x18] sm:$0xff]
    %v925 = vld [vmem:[#allocation2 + $0x20] sm:$0xff]
    %v926 = vld [vmem:[#allocation2 + $0x28] sm:$0xff]
    %v927 = vld [vmem:[#allocation2 + $0x30] sm:$0xff]
    %v928 = vld [vmem:[#allocation2 + $0x38] sm:$0xff]
    %v929 = vld [vmem:[#allocation2 + $0x40] sm:$0xff]
    %v930 = vld [vmem:[#allocation8] sm:$0x44]
    %v931 = vld [vmem:[#allocation8 + $0x8] sm:$0x44]
    %v932 = vld [vmem:[#allocation8 + $0x10] sm:$0x44]
    %v933 = vld [vmem:[#allocation8 + $0x18] sm:$0x44]
    %v938 = vunpack.c.l.b16 %v930
    %v939 = vunpack.c.h.b16 %v930
    %v940 = vunpack.c.l.b16 %v931
    %v941 = vunpack.c.h.b16 %v931
    %v942 = vunpack.c.l.b16 %v932
    %v943 = vunpack.c.h.b16 %v932
    %v944 = vunpack.c.l.b16 %v933
    %v945 = vunpack.c.h.b16 %v933
    %v946 = vpack.c.b16 %v938, %v938
    %v947 = vpack.c.b16 %v939, %v939
    %v948 = vpack.c.b16 %v940, %v940
    %v949 = vpack.c.b16 %v941, %v941
    %v950 = vpack.c.b16 %v942, %v942
    %v951 = vpack.c.b16 %v943, %v943
    %v952 = vpack.c.b16 %v944, %v944
    %v953 = vpack.c.b16 %v945, %v945
    %v955 = vpack.i.b16 %v946, %v946
    %v957 = vlaneseq
    %v958 = vshrl.u32 %v957, 7
    %v959 = vsub.s32 2, %v958
    %v960 = vrot.slane %v955, %v959
    %v962 = vpack.i.b16 %v947, %v947
    %v964 = vlaneseq
    %v965 = vshrl.u32 %v964, 7
    %v966 = vsub.s32 2, %v965
    %v967 = vrot.slane %v962, %v966
    %v969 = vpack.i.b16 %v948, %v948
    %v971 = vlaneseq
    %v972 = vshrl.u32 %v971, 7
    %v973 = vsub.s32 2, %v972
    %v974 = vrot.slane %v969, %v973
    %v976 = vpack.i.b16 %v949, %v949
    %v978 = vlaneseq
    %v979 = vshrl.u32 %v978, 7
    %v980 = vsub.s32 2, %v979
    %v981 = vrot.slane %v976, %v980
    %v983 = vpack.i.b16 %v950, %v950
    %v985 = vlaneseq
    %v986 = vshrl.u32 %v985, 7
    %v987 = vsub.s32 2, %v986
    %v988 = vrot.slane %v983, %v987
    %v990 = vpack.i.b16 %v951, %v951
    %v992 = vlaneseq
    %v993 = vshrl.u32 %v992, 7
    %v994 = vsub.s32 2, %v993
    %v995 = vrot.slane %v990, %v994
    %v997 = vpack.i.b16 %v952, %v952
    %v999 = vlaneseq
    %v1000 = vshrl.u32 %v999, 7
    %v1001 = vsub.s32 2, %v1000
    %v1002 = vrot.slane %v997, %v1001
    %v1004 = vpack.i.b16 %v953, %v953
    %v1006 = vlaneseq
    %v1007 = vshrl.u32 %v1006, 7
    %v1008 = vsub.s32 2, %v1007
    %v1009 = vrot.slane %v1004, %v1008
    %1018 = vrot.lane.b32.xlu0 %v960, 64
    %v1019 = vpop.permute.xlu0 %1018
    %1020 = vrot.lane.b32.xlu0 %v967, 64
    %v1021 = vpop.permute.xlu0 %1020
    %1022 = vrot.lane.b32.xlu0 %v974, 64
    %v1023 = vpop.permute.xlu0 %1022
    %1024 = vrot.lane.b32.xlu0 %v981, 64
    %v1025 = vpop.permute.xlu0 %1024
    %1026 = vrot.lane.b32.xlu0 %v988, 64
    %v1027 = vpop.permute.xlu0 %1026
    %1028 = vrot.lane.b32.xlu0 %v995, 64
    %v1029 = vpop.permute.xlu0 %1028
    %1030 = vrot.lane.b32.xlu0 %v1002, 64
    %v1031 = vpop.permute.xlu0 %1030
    %1032 = vrot.lane.b32.xlu0 %v1009, 64
    %v1033 = vpop.permute.xlu0 %1032
    %vm1034 = vcmask 523264
    %v1035 = vsel %vm1034, %v1019, %v1021
    %v1036 = vsel %vm1034, %v1021, %v1023
    %v1037 = vsel %vm1034, %v1023, %v1025
    %v1038 = vsel %vm1034, %v1025, %v1027
    %v1039 = vsel %vm1034, %v1027, %v1029
    %v1040 = vsel %vm1034, %v1029, %v1031
    %v1041 = vsel %vm1034, %v1031, %v1033
    %v1051 = vmul.bf16 %v921, %v1019
    %v1052 = vmul.bf16 %v922, %v1035
    %v1053 = vmul.bf16 %v923, %v1036
    %v1054 = vmul.bf16 %v924, %v1037
    %v1055 = vmul.bf16 %v925, %v1038
    %v1056 = vmul.bf16 %v926, %v1039
    %v1057 = vmul.bf16 %v927, %v1040
    %v1058 = vmul.bf16 %v928, %v1041
    %v1059 = vmul.bf16 %v929, %v1033
    %1069 = vrot.lane.b32.xlu0 %v1051, 64
    %v1070 = vpop.permute.xlu0 %1069
    %1071 = vrot.lane.b32.xlu0 %v1052, 64
    %v1072 = vpop.permute.xlu0 %1071
    %1073 = vrot.lane.b32.xlu0 %v1053, 64
    %v1074 = vpop.permute.xlu0 %1073
    %1075 = vrot.lane.b32.xlu0 %v1054, 64
    %v1076 = vpop.permute.xlu0 %1075
    %1077 = vrot.lane.b32.xlu0 %v1055, 64
    %v1078 = vpop.permute.xlu0 %1077
    %1079 = vrot.lane.b32.xlu0 %v1056, 64
    %v1080 = vpop.permute.xlu0 %1079
    %1081 = vrot.lane.b32.xlu0 %v1057, 64
    %v1082 = vpop.permute.xlu0 %1081
    %1083 = vrot.lane.b32.xlu0 %v1058, 64
    %v1084 = vpop.permute.xlu0 %1083
    %1085 = vrot.lane.b32.xlu0 %v1059, 64
    %v1086 = vpop.permute.xlu0 %1085
    %v1087 = vsel %vm1034, %v1070, %v1072
    %v1088 = vsel %vm1034, %v1072, %v1074
    %v1089 = vsel %vm1034, %v1074, %v1076
    %v1090 = vsel %vm1034, %v1076, %v1078
    %v1091 = vsel %vm1034, %v1078, %v1080
    %v1092 = vsel %vm1034, %v1080, %v1082
    %v1093 = vsel %vm1034, %v1082, %v1084
    %v1094 = vsel %vm1034, %v1084, %v1086
    %1103 = vst [vmem:[#allocation4 + $0x100] sm:$0xff] %v1087
    %1104 = vst [vmem:[#allocation4 + $0x108] sm:$0xff] %v1088
    %1105 = vst [vmem:[#allocation4 + $0x110] sm:$0xff] %v1089
    %1106 = vst [vmem:[#allocation4 + $0x118] sm:$0xff] %v1090
    %1107 = vst [vmem:[#allocation4 + $0x120] sm:$0xff] %v1091
    %1108 = vst [vmem:[#allocation4 + $0x128] sm:$0xff] %v1092
    %1109 = vst [vmem:[#allocation4 + $0x130] sm:$0xff] %v1093
    %1110 = vst [vmem:[#allocation4 + $0x138] sm:$0xff] %v1094
    %v1111 = vld [vmem:[#allocation2] sm:$0xff]
    %v1112 = vld [vmem:[#allocation2 + $0x8] sm:$0xff]
    %v1113 = vld [vmem:[#allocation2 + $0x10] sm:$0xff]
    %v1114 = vld [vmem:[#allocation2 + $0x18] sm:$0xff]
    %v1115 = vld [vmem:[#allocation2 + $0x20] sm:$0xff]
    %v1116 = vld [vmem:[#allocation2 + $0x28] sm:$0xff]
    %v1117 = vld [vmem:[#allocation2 + $0x30] sm:$0xff]
    %v1118 = vld [vmem:[#allocation2 + $0x38] sm:$0xff]
    %v1119 = vld [vmem:[#allocation2 + $0x40] sm:$0xff]
    %v1120 = vld [vmem:[#allocation8] sm:$0x44]
    %v1121 = vld [vmem:[#allocation8 + $0x8] sm:$0x44]
    %v1122 = vld [vmem:[#allocation8 + $0x10] sm:$0x44]
    %v1123 = vld [vmem:[#allocation8 + $0x18] sm:$0x44]
    %v1128 = vunpack.c.l.b16 %v1120
    %v1129 = vunpack.c.h.b16 %v1120
    %v1130 = vunpack.c.l.b16 %v1121
    %v1131 = vunpack.c.h.b16 %v1121
    %v1132 = vunpack.c.l.b16 %v1122
    %v1133 = vunpack.c.h.b16 %v1122
    %v1134 = vunpack.c.l.b16 %v1123
    %v1135 = vunpack.c.h.b16 %v1123
    %v1136 = vpack.c.b16 %v1128, %v1128
    %v1137 = vpack.c.b16 %v1129, %v1129
    %v1138 = vpack.c.b16 %v1130, %v1130
    %v1139 = vpack.c.b16 %v1131, %v1131
    %v1140 = vpack.c.b16 %v1132, %v1132
    %v1141 = vpack.c.b16 %v1133, %v1133
    %v1142 = vpack.c.b16 %v1134, %v1134
    %v1143 = vpack.c.b16 %v1135, %v1135
    %v1145 = vshrl.u32 %v1136, 16
    %v1146 = vpack.i.b16 %v1145, %v1145
    %v1148 = vlaneseq
    %v1149 = vshrl.u32 %v1148, 7
    %v1150 = vsub.s32 2, %v1149
    %v1151 = vrot.slane %v1146, %v1150
    %v1153 = vshrl.u32 %v1137, 16
    %v1154 = vpack.i.b16 %v1153, %v1153
    %v1156 = vlaneseq
    %v1157 = vshrl.u32 %v1156, 7
    %v1158 = vsub.s32 2, %v1157
    %v1159 = vrot.slane %v1154, %v1158
    %v1161 = vshrl.u32 %v1138, 16
    %v1162 = vpack.i.b16 %v1161, %v1161
    %v1164 = vlaneseq
    %v1165 = vshrl.u32 %v1164, 7
    %v1166 = vsub.s32 2, %v1165
    %v1167 = vrot.slane %v1162, %v1166
    %v1169 = vshrl.u32 %v1139, 16
    %v1170 = vpack.i.b16 %v1169, %v1169
    %v1172 = vlaneseq
    %v1173 = vshrl.u32 %v1172, 7
    %v1174 = vsub.s32 2, %v1173
    %v1175 = vrot.slane %v1170, %v1174
    %v1177 = vshrl.u32 %v1140, 16
    %v1178 = vpack.i.b16 %v1177, %v1177
    %v1180 = vlaneseq
    %v1181 = vshrl.u32 %v1180, 7
    %v1182 = vsub.s32 2, %v1181
    %v1183 = vrot.slane %v1178, %v1182
    %v1185 = vshrl.u32 %v1141, 16
    %v1186 = vpack.i.b16 %v1185, %v1185
    %v1188 = vlaneseq
    %v1189 = vshrl.u32 %v1188, 7
    %v1190 = vsub.s32 2, %v1189
    %v1191 = vrot.slane %v1186, %v1190
    %v1193 = vshrl.u32 %v1142, 16
    %v1194 = vpack.i.b16 %v1193, %v1193
    %v1196 = vlaneseq
    %v1197 = vshrl.u32 %v1196, 7
    %v1198 = vsub.s32 2, %v1197
    %v1199 = vrot.slane %v1194, %v1198
    %v1201 = vshrl.u32 %v1143, 16
    %v1202 = vpack.i.b16 %v1201, %v1201
    %v1204 = vlaneseq
    %v1205 = vshrl.u32 %v1204, 7
    %v1206 = vsub.s32 2, %v1205
    %v1207 = vrot.slane %v1202, %v1206
    %1216 = vrot.lane.b32.xlu0 %v1151, 65
    %v1217 = vpop.permute.xlu0 %1216
    %1218 = vrot.lane.b32.xlu0 %v1159, 65
    %v1219 = vpop.permute.xlu0 %1218
    %1220 = vrot.lane.b32.xlu0 %v1167, 65
    %v1221 = vpop.permute.xlu0 %1220
    %1222 = vrot.lane.b32.xlu0 %v1175, 65
    %v1223 = vpop.permute.xlu0 %1222
    %1224 = vrot.lane.b32.xlu0 %v1183, 65
    %v1225 = vpop.permute.xlu0 %1224
    %1226 = vrot.lane.b32.xlu0 %v1191, 65
    %v1227 = vpop.permute.xlu0 %1226
    %1228 = vrot.lane.b32.xlu0 %v1199, 65
    %v1229 = vpop.permute.xlu0 %1228
    %1230 = vrot.lane.b32.xlu0 %v1207, 65
    %v1231 = vpop.permute.xlu0 %1230
    %v1232 = vsel %vm896, %v1217, %v1219
    %v1233 = vsel %vm896, %v1219, %v1221
    %v1234 = vsel %vm896, %v1221, %v1223
    %v1235 = vsel %vm896, %v1223, %v1225
    %v1236 = vsel %vm896, %v1225, %v1227
    %v1237 = vsel %vm896, %v1227, %v1229
    %v1238 = vsel %vm896, %v1229, %v1231
    %v1248 = vmul.bf16 %v1111, %v1217
    %v1249 = vmul.bf16 %v1112, %v1232
    %v1250 = vmul.bf16 %v1113, %v1233
    %v1251 = vmul.bf16 %v1114, %v1234
    %v1252 = vmul.bf16 %v1115, %v1235
    %v1253 = vmul.bf16 %v1116, %v1236
    %v1254 = vmul.bf16 %v1117, %v1237
    %v1255 = vmul.bf16 %v1118, %v1238
    %v1256 = vmul.bf16 %v1119, %v1231
    %1266 = vrot.lane.b32.xlu0 %v1248, 63
    %v1267 = vpop.permute.xlu0 %1266
    %1268 = vrot.lane.b32.xlu0 %v1249, 63
    %v1269 = vpop.permute.xlu0 %1268
    %1270 = vrot.lane.b32.xlu0 %v1250, 63
    %v1271 = vpop.permute.xlu0 %1270
    %1272 = vrot.lane.b32.xlu0 %v1251, 63
    %v1273 = vpop.permute.xlu0 %1272
    %1274 = vrot.lane.b32.xlu0 %v1252, 63
    %v1275 = vpop.permute.xlu0 %1274
    %1276 = vrot.lane.b32.xlu0 %v1253, 63
    %v1277 = vpop.permute.xlu0 %1276
    %1278 = vrot.lane.b32.xlu0 %v1254, 63
    %v1279 = vpop.permute.xlu0 %1278
    %1280 = vrot.lane.b32.xlu0 %v1255, 63
    %v1281 = vpop.permute.xlu0 %1280
    %1282 = vrot.lane.b32.xlu0 %v1256, 63
    %v1283 = vpop.permute.xlu0 %1282
    %v1284 = vsel %vm843, %v1267, %v1269
    %v1285 = vsel %vm843, %v1269, %v1271
    %v1286 = vsel %vm843, %v1271, %v1273
    %v1287 = vsel %vm843, %v1273, %v1275
    %v1288 = vsel %vm843, %v1275, %v1277
    %v1289 = vsel %vm843, %v1277, %v1279
    %v1290 = vsel %vm843, %v1279, %v1281
    %v1291 = vsel %vm843, %v1281, %v1283
    %1300 = vst [vmem:[#allocation4 + $0x140] sm:$0xff] %v1284
    %1301 = vst [vmem:[#allocation4 + $0x148] sm:$0xff] %v1285
    %1302 = vst [vmem:[#allocation4 + $0x150] sm:$0xff] %v1286
    %1303 = vst [vmem:[#allocation4 + $0x158] sm:$0xff] %v1287
    %1304 = vst [vmem:[#allocation4 + $0x160] sm:$0xff] %v1288
    %1305 = vst [vmem:[#allocation4 + $0x168] sm:$0xff] %v1289
    %1306 = vst [vmem:[#allocation4 + $0x170] sm:$0xff] %v1290
    %1307 = vst [vmem:[#allocation4 + $0x178] sm:$0xff] %v1291
    %v1308 = vld [vmem:[#allocation2] sm:$0xff]
    %v1309 = vld [vmem:[#allocation2 + $0x8] sm:$0xff]
    %v1310 = vld [vmem:[#allocation2 + $0x10] sm:$0xff]
    %v1311 = vld [vmem:[#allocation2 + $0x18] sm:$0xff]
    %v1312 = vld [vmem:[#allocation2 + $0x20] sm:$0xff]
    %v1313 = vld [vmem:[#allocation2 + $0x28] sm:$0xff]
    %v1314 = vld [vmem:[#allocation2 + $0x30] sm:$0xff]
    %v1315 = vld [vmem:[#allocation2 + $0x38] sm:$0xff]
    %v1316 = vld [vmem:[#allocation2 + $0x40] sm:$0xff]
    %v1317 = vld [vmem:[#allocation8] sm:$0x88]
    %v1318 = vld [vmem:[#allocation8 + $0x8] sm:$0x88]
    %v1319 = vld [vmem:[#allocation8 + $0x10] sm:$0x88]
    %v1320 = vld [vmem:[#allocation8 + $0x18] sm:$0x88]
    %v1325 = vunpack.c.l.b16 %v1317
    %v1326 = vunpack.c.h.b16 %v1317
    %v1327 = vunpack.c.l.b16 %v1318
    %v1328 = vunpack.c.h.b16 %v1318
    %v1329 = vunpack.c.l.b16 %v1319
    %v1330 = vunpack.c.h.b16 %v1319
    %v1331 = vunpack.c.l.b16 %v1320
    %v1332 = vunpack.c.h.b16 %v1320
    %v1333 = vpack.c.b16 %v1325, %v1325
    %v1334 = vpack.c.b16 %v1326, %v1326
    %v1335 = vpack.c.b16 %v1327, %v1327
    %v1336 = vpack.c.b16 %v1328, %v1328
    %v1337 = vpack.c.b16 %v1329, %v1329
    %v1338 = vpack.c.b16 %v1330, %v1330
    %v1339 = vpack.c.b16 %v1331, %v1331
    %v1340 = vpack.c.b16 %v1332, %v1332
    %v1342 = vpack.i.b16 %v1333, %v1333
    %v1344 = vlaneseq
    %v1345 = vshrl.u32 %v1344, 7
    %v1346 = vsub.s32 3, %v1345
    %v1347 = vrot.slane %v1342, %v1346
    %v1349 = vpack.i.b16 %v1334, %v1334
    %v1351 = vlaneseq
    %v1352 = vshrl.u32 %v1351, 7
    %v1353 = vsub.s32 3, %v1352
    %v1354 = vrot.slane %v1349, %v1353
    %v1356 = vpack.i.b16 %v1335, %v1335
    %v1358 = vlaneseq
    %v1359 = vshrl.u32 %v1358, 7
    %v1360 = vsub.s32 3, %v1359
    %v1361 = vrot.slane %v1356, %v1360
    %v1363 = vpack.i.b16 %v1336, %v1336
    %v1365 = vlaneseq
    %v1366 = vshrl.u32 %v1365, 7
    %v1367 = vsub.s32 3, %v1366
    %v1368 = vrot.slane %v1363, %v1367
    %v1370 = vpack.i.b16 %v1337, %v1337
    %v1372 = vlaneseq
    %v1373 = vshrl.u32 %v1372, 7
    %v1374 = vsub.s32 3, %v1373
    %v1375 = vrot.slane %v1370, %v1374
    %v1377 = vpack.i.b16 %v1338, %v1338
    %v1379 = vlaneseq
    %v1380 = vshrl.u32 %v1379, 7
    %v1381 = vsub.s32 3, %v1380
    %v1382 = vrot.slane %v1377, %v1381
    %v1384 = vpack.i.b16 %v1339, %v1339
    %v1386 = vlaneseq
    %v1387 = vshrl.u32 %v1386, 7
    %v1388 = vsub.s32 3, %v1387
    %v1389 = vrot.slane %v1384, %v1388
    %v1391 = vpack.i.b16 %v1340, %v1340
    %v1393 = vlaneseq
    %v1394 = vshrl.u32 %v1393, 7
    %v1395 = vsub.s32 3, %v1394
    %v1396 = vrot.slane %v1391, %v1395
    %1405 = vrot.lane.b32.xlu0 %v1347, 71
    %v1406 = vpop.permute.xlu0 %1405
    %1407 = vrot.lane.b32.xlu0 %v1354, 71
    %v1408 = vpop.permute.xlu0 %1407
    %1409 = vrot.lane.b32.xlu0 %v1361, 71
    %v1410 = vpop.permute.xlu0 %1409
    %1411 = vrot.lane.b32.xlu0 %v1368, 71
    %v1412 = vpop.permute.xlu0 %1411
    %1413 = vrot.lane.b32.xlu0 %v1375, 71
    %v1414 = vpop.permute.xlu0 %1413
    %1415 = vrot.lane.b32.xlu0 %v1382, 71
    %v1416 = vpop.permute.xlu0 %1415
    %1417 = vrot.lane.b32.xlu0 %v1389, 71
    %v1418 = vpop.permute.xlu0 %1417
    %1419 = vrot.lane.b32.xlu0 %v1396, 71
    %v1420 = vpop.permute.xlu0 %1419
    %v1421 = vsel %vm697, %v1406, %v1408
    %v1422 = vsel %vm697, %v1408, %v1410
    %v1423 = vsel %vm697, %v1410, %v1412
    %v1424 = vsel %vm697, %v1412, %v1414
    %v1425 = vsel %vm697, %v1414, %v1416
    %v1426 = vsel %vm697, %v1416, %v1418
    %v1427 = vsel %vm697, %v1418, %v1420
    %v1437 = vmul.bf16 %v1308, %v1406
    %v1438 = vmul.bf16 %v1309, %v1421
    %v1439 = vmul.bf16 %v1310, %v1422
    %v1440 = vmul.bf16 %v1311, %v1423
    %v1441 = vmul.bf16 %v1312, %v1424
    %v1442 = vmul.bf16 %v1313, %v1425
    %v1443 = vmul.bf16 %v1314, %v1426
    %v1444 = vmul.bf16 %v1315, %v1427
    %v1445 = vmul.bf16 %v1316, %v1420
    %1455 = vrot.lane.b32.xlu0 %v1437, 57
    %v1456 = vpop.permute.xlu0 %1455
    %1457 = vrot.lane.b32.xlu0 %v1438, 57
    %v1458 = vpop.permute.xlu0 %1457
    %1459 = vrot.lane.b32.xlu0 %v1439, 57
    %v1460 = vpop.permute.xlu0 %1459
    %1461 = vrot.lane.b32.xlu0 %v1440, 57
    %v1462 = vpop.permute.xlu0 %1461
    %1463 = vrot.lane.b32.xlu0 %v1441, 57
    %v1464 = vpop.permute.xlu0 %1463
    %1465 = vrot.lane.b32.xlu0 %v1442, 57
    %v1466 = vpop.permute.xlu0 %1465
    %1467 = vrot.lane.b32.xlu0 %v1443, 57
    %v1468 = vpop.permute.xlu0 %1467
    %1469 = vrot.lane.b32.xlu0 %v1444, 57
    %v1470 = vpop.permute.xlu0 %1469
    %1471 = vrot.lane.b32.xlu0 %v1445, 57
    %v1472 = vpop.permute.xlu0 %1471
    %v1473 = vsel %vm644, %v1456, %v1458
    %v1474 = vsel %vm644, %v1458, %v1460
    %v1475 = vsel %vm644, %v1460, %v1462
    %v1476 = vsel %vm644, %v1462, %v1464
    %v1477 = vsel %vm644, %v1464, %v1466
    %v1478 = vsel %vm644, %v1466, %v1468
    %v1479 = vsel %vm644, %v1468, %v1470
    %v1480 = vsel %vm644, %v1470, %v1472
    %1489 = vst [vmem:[#allocation4 + $0x180] sm:$0xff] %v1473
    %1490 = vst [vmem:[#allocation4 + $0x188] sm:$0xff] %v1474
    %1491 = vst [vmem:[#allocation4 + $0x190] sm:$0xff] %v1475
    %1492 = vst [vmem:[#allocation4 + $0x198] sm:$0xff] %v1476
    %1493 = vst [vmem:[#allocation4 + $0x1a0] sm:$0xff] %v1477
    %1494 = vst [vmem:[#allocation4 + $0x1a8] sm:$0xff] %v1478
    %1495 = vst [vmem:[#allocation4 + $0x1b0] sm:$0xff] %v1479
    %1496 = vst [vmem:[#allocation4 + $0x1b8] sm:$0xff] %v1480
    %v1497 = vld [vmem:[#allocation2] sm:$0xff]
    %v1498 = vld [vmem:[#allocation2 + $0x8] sm:$0xff]
    %v1499 = vld [vmem:[#allocation2 + $0x10] sm:$0xff]
    %v1500 = vld [vmem:[#allocation2 + $0x18] sm:$0xff]
    %v1501 = vld [vmem:[#allocation2 + $0x20] sm:$0xff]
    %v1502 = vld [vmem:[#allocation2 + $0x28] sm:$0xff]
    %v1503 = vld [vmem:[#allocation2 + $0x30] sm:$0xff]
    %v1504 = vld [vmem:[#allocation2 + $0x38] sm:$0xff]
    %v1505 = vld [vmem:[#allocation2 + $0x40] sm:$0xff]
    %v1506 = vld [vmem:[#allocation8] sm:$0x88]
    %v1507 = vld [vmem:[#allocation8 + $0x8] sm:$0x88]
    %v1508 = vld [vmem:[#allocation8 + $0x10] sm:$0x88]
    %v1509 = vld [vmem:[#allocation8 + $0x18] sm:$0x88]
    %v1514 = vunpack.c.l.b16 %v1506
    %v1515 = vunpack.c.h.b16 %v1506
    %v1516 = vunpack.c.l.b16 %v1507
    %v1517 = vunpack.c.h.b16 %v1507
    %v1518 = vunpack.c.l.b16 %v1508
    %v1519 = vunpack.c.h.b16 %v1508
    %v1520 = vunpack.c.l.b16 %v1509
    %v1521 = vunpack.c.h.b16 %v1509
    %v1522 = vpack.c.b16 %v1514, %v1514
    %v1523 = vpack.c.b16 %v1515, %v1515
    %v1524 = vpack.c.b16 %v1516, %v1516
    %v1525 = vpack.c.b16 %v1517, %v1517
    %v1526 = vpack.c.b16 %v1518, %v1518
    %v1527 = vpack.c.b16 %v1519, %v1519
    %v1528 = vpack.c.b16 %v1520, %v1520
    %v1529 = vpack.c.b16 %v1521, %v1521
    %v1531 = vshrl.u32 %v1522, 16
    %v1532 = vpack.i.b16 %v1531, %v1531
    %v1534 = vlaneseq
    %v1535 = vshrl.u32 %v1534, 7
    %v1536 = vsub.s32 3, %v1535
    %v1537 = vrot.slane %v1532, %v1536
    %v1539 = vshrl.u32 %v1523, 16
    %v1540 = vpack.i.b16 %v1539, %v1539
    %v1542 = vlaneseq
    %v1543 = vshrl.u32 %v1542, 7
    %v1544 = vsub.s32 3, %v1543
    %v1545 = vrot.slane %v1540, %v1544
    %v1547 = vshrl.u32 %v1524, 16
    %v1548 = vpack.i.b16 %v1547, %v1547
    %v1550 = vlaneseq
    %v1551 = vshrl.u32 %v1550, 7
    %v1552 = vsub.s32 3, %v1551
    %v1553 = vrot.slane %v1548, %v1552
    %v1555 = vshrl.u32 %v1525, 16
    %v1556 = vpack.i.b16 %v1555, %v1555
    %v1558 = vlaneseq
    %v1559 = vshrl.u32 %v1558, 7
    %v1560 = vsub.s32 3, %v1559
    %v1561 = vrot.slane %v1556, %v1560
    %v1563 = vshrl.u32 %v1526, 16
    %v1564 = vpack.i.b16 %v1563, %v1563
    %v1566 = vlaneseq
    %v1567 = vshrl.u32 %v1566, 7
    %v1568 = vsub.s32 3, %v1567
    %v1569 = vrot.slane %v1564, %v1568
    %v1571 = vshrl.u32 %v1527, 16
    %v1572 = vpack.i.b16 %v1571, %v1571
    %v1574 = vlaneseq
    %v1575 = vshrl.u32 %v1574, 7
    %v1576 = vsub.s32 3, %v1575
    %v1577 = vrot.slane %v1572, %v1576
    %v1579 = vshrl.u32 %v1528, 16
    %v1580 = vpack.i.b16 %v1579, %v1579
    %v1582 = vlaneseq
    %v1583 = vshrl.u32 %v1582, 7
    %v1584 = vsub.s32 3, %v1583
    %v1585 = vrot.slane %v1580, %v1584
    %v1587 = vshrl.u32 %v1529, 16
    %v1588 = vpack.i.b16 %v1587, %v1587
    %v1590 = vlaneseq
    %v1591 = vshrl.u32 %v1590, 7
    %v1592 = vsub.s32 3, %v1591
    %v1593 = vrot.slane %v1588, %v1592
    %1602 = vrot.lane.b32.xlu0 %v1537, 72
    %v1603 = vpop.permute.xlu0 %1602
    %1604 = vrot.lane.b32.xlu0 %v1545, 72
    %v1605 = vpop.permute.xlu0 %1604
    %1606 = vrot.lane.b32.xlu0 %v1553, 72
    %v1607 = vpop.permute.xlu0 %1606
    %1608 = vrot.lane.b32.xlu0 %v1561, 72
    %v1609 = vpop.permute.xlu0 %1608
    %1610 = vrot.lane.b32.xlu0 %v1569, 72
    %v1611 = vpop.permute.xlu0 %1610
    %1612 = vrot.lane.b32.xlu0 %v1577, 72
    %v1613 = vpop.permute.xlu0 %1612
    %1614 = vrot.lane.b32.xlu0 %v1585, 72
    %v1615 = vpop.permute.xlu0 %1614
    %1616 = vrot.lane.b32.xlu0 %v1593, 72
    %v1617 = vpop.permute.xlu0 %1616
    %v1618 = vsel %vm506, %v1603, %v1605
    %v1619 = vsel %vm506, %v1605, %v1607
    %v1620 = vsel %vm506, %v1607, %v1609
    %v1621 = vsel %vm506, %v1609, %v1611
    %v1622 = vsel %vm506, %v1611, %v1613
    %v1623 = vsel %vm506, %v1613, %v1615
    %v1624 = vsel %vm506, %v1615, %v1617
    %v1634 = vmul.bf16 %v1497, %v1603
    %v1635 = vmul.bf16 %v1498, %v1618
    %v1636 = vmul.bf16 %v1499, %v1619
    %v1637 = vmul.bf16 %v1500, %v1620
    %v1638 = vmul.bf16 %v1501, %v1621
    %v1639 = vmul.bf16 %v1502, %v1622
    %v1640 = vmul.bf16 %v1503, %v1623
    %v1641 = vmul.bf16 %v1504, %v1624
    %v1642 = vmul.bf16 %v1505, %v1617
    %1652 = vrot.lane.b32.xlu0 %v1634, 56
    %v1653 = vpop.permute.xlu0 %1652
    %1654 = vrot.lane.b32.xlu0 %v1635, 56
    %v1655 = vpop.permute.xlu0 %1654
    %1656 = vrot.lane.b32.xlu0 %v1636, 56
    %v1657 = vpop.permute.xlu0 %1656
    %1658 = vrot.lane.b32.xlu0 %v1637, 56
    %v1659 = vpop.permute.xlu0 %1658
    %1660 = vrot.lane.b32.xlu0 %v1638, 56
    %v1661 = vpop.permute.xlu0 %1660
    %1662 = vrot.lane.b32.xlu0 %v1639, 56
    %v1663 = vpop.permute.xlu0 %1662
    %1664 = vrot.lane.b32.xlu0 %v1640, 56
    %v1665 = vpop.permute.xlu0 %1664
    %1666 = vrot.lane.b32.xlu0 %v1641, 56
    %v1667 = vpop.permute.xlu0 %1666
    %1668 = vrot.lane.b32.xlu0 %v1642, 56
    %v1669 = vpop.permute.xlu0 %1668
    %v1670 = vsel %vm453, %v1653, %v1655
    %v1671 = vsel %vm453, %v1655, %v1657
    %v1672 = vsel %vm453, %v1657, %v1659
    %v1673 = vsel %vm453, %v1659, %v1661
    %v1674 = vsel %vm453, %v1661, %v1663
    %v1675 = vsel %vm453, %v1663, %v1665
    %v1676 = vsel %vm453, %v1665, %v1667
    %v1677 = vsel %vm453, %v1667, %v1669
    %1686 = vst [vmem:[#allocation4 + $0x1c0] sm:$0xff] %v1670
    %1687 = vst [vmem:[#allocation4 + $0x1c8] sm:$0xff] %v1671
    %1688 = vst [vmem:[#allocation4 + $0x1d0] sm:$0xff] %v1672
    %1689 = vst [vmem:[#allocation4 + $0x1d8] sm:$0xff] %v1673
    %1690 = vst [vmem:[#allocation4 + $0x1e0] sm:$0xff] %v1674
    %1691 = vst [vmem:[#allocation4 + $0x1e8] sm:$0xff] %v1675
    %1692 = vst [vmem:[#allocation4 + $0x1f0] sm:$0xff] %v1676
    %1693 = vst [vmem:[#allocation4 + $0x1f8] sm:$0xff] %v1677
    %v1694 = vld [vmem:[#allocation2] sm:$0xff]
    %v1695 = vld [vmem:[#allocation2 + $0x8] sm:$0xff]
    %v1696 = vld [vmem:[#allocation2 + $0x10] sm:$0xff]
    %v1697 = vld [vmem:[#allocation2 + $0x18] sm:$0xff]
    %v1698 = vld [vmem:[#allocation2 + $0x20] sm:$0xff]
    %v1699 = vld [vmem:[#allocation2 + $0x28] sm:$0xff]
    %v1700 = vld [vmem:[#allocation2 + $0x30] sm:$0xff]
    %v1701 = vld [vmem:[#allocation2 + $0x38] sm:$0xff]
    %v1702 = vld [vmem:[#allocation2 + $0x40] sm:$0xff]
    %v1703 = vld [vmem:[#allocation8 + $0x20] sm:$0x11]
    %v1704 = vld [vmem:[#allocation8 + $0x28] sm:$0x11]
    %v1705 = vld [vmem:[#allocation8 + $0x30] sm:$0x11]
    %v1706 = vld [vmem:[#allocation8 + $0x38] sm:$0x11]
    %v1711 = vunpack.c.l.b16 %v1703
    %v1712 = vunpack.c.h.b16 %v1703
    %v1713 = vunpack.c.l.b16 %v1704
    %v1714 = vunpack.c.h.b16 %v1704
    %v1715 = vunpack.c.l.b16 %v1705
    %v1716 = vunpack.c.h.b16 %v1705
    %v1717 = vunpack.c.l.b16 %v1706
    %v1718 = vunpack.c.h.b16 %v1706
    %v1719 = vpack.c.b16 %v1711, %v1711
    %v1720 = vpack.c.b16 %v1712, %v1712
    %v1721 = vpack.c.b16 %v1713, %v1713
    %v1722 = vpack.c.b16 %v1714, %v1714
    %v1723 = vpack.c.b16 %v1715, %v1715
    %v1724 = vpack.c.b16 %v1716, %v1716
    %v1725 = vpack.c.b16 %v1717, %v1717
    %v1726 = vpack.c.b16 %v1718, %v1718
    %v1728 = vpack.i.b16 %v1719, %v1719
    %v1730 = vlaneseq
    %v1731 = vshrl.u32 %v1730, 7
    %v1732 = vsub.s32 0, %v1731
    %v1733 = vrot.slane %v1728, %v1732
    %v1735 = vpack.i.b16 %v1720, %v1720
    %v1737 = vlaneseq
    %v1738 = vshrl.u32 %v1737, 7
    %v1739 = vsub.s32 0, %v1738
    %v1740 = vrot.slane %v1735, %v1739
    %v1742 = vpack.i.b16 %v1721, %v1721
    %v1744 = vlaneseq
    %v1745 = vshrl.u32 %v1744, 7
    %v1746 = vsub.s32 0, %v1745
    %v1747 = vrot.slane %v1742, %v1746
    %v1749 = vpack.i.b16 %v1722, %v1722
    %v1751 = vlaneseq
    %v1752 = vshrl.u32 %v1751, 7
    %v1753 = vsub.s32 0, %v1752
    %v1754 = vrot.slane %v1749, %v1753
    %v1756 = vpack.i.b16 %v1723, %v1723
    %v1758 = vlaneseq
    %v1759 = vshrl.u32 %v1758, 7
    %v1760 = vsub.s32 0, %v1759
    %v1761 = vrot.slane %v1756, %v1760
    %v1763 = vpack.i.b16 %v1724, %v1724
    %v1765 = vlaneseq
    %v1766 = vshrl.u32 %v1765, 7
    %v1767 = vsub.s32 0, %v1766
    %v1768 = vrot.slane %v1763, %v1767
    %v1770 = vpack.i.b16 %v1725, %v1725
    %v1772 = vlaneseq
    %v1773 = vshrl.u32 %v1772, 7
    %v1774 = vsub.s32 0, %v1773
    %v1775 = vrot.slane %v1770, %v1774
    %v1777 = vpack.i.b16 %v1726, %v1726
    %v1779 = vlaneseq
    %v1780 = vshrl.u32 %v1779, 7
    %v1781 = vsub.s32 0, %v1780
    %v1782 = vrot.slane %v1777, %v1781
    %1791 = vrot.lane.b32.xlu0 %v1733, 73
    %v1792 = vpop.permute.xlu0 %1791
    %1793 = vrot.lane.b32.xlu0 %v1740, 73
    %v1794 = vpop.permute.xlu0 %1793
    %1795 = vrot.lane.b32.xlu0 %v1747, 73
    %v1796 = vpop.permute.xlu0 %1795
    %1797 = vrot.lane.b32.xlu0 %v1754, 73
    %v1798 = vpop.permute.xlu0 %1797
    %1799 = vrot.lane.b32.xlu0 %v1761, 73
    %v1800 = vpop.permute.xlu0 %1799
    %1801 = vrot.lane.b32.xlu0 %v1768, 73
    %v1802 = vpop.permute.xlu0 %1801
    %1803 = vrot.lane.b32.xlu0 %v1775, 73
    %v1804 = vpop.permute.xlu0 %1803
    %1805 = vrot.lane.b32.xlu0 %v1782, 73
    %v1806 = vpop.permute.xlu0 %1805
    %v1807 = vsel %vm307, %v1792, %v1794
    %v1808 = vsel %vm307, %v1794, %v1796
    %v1809 = vsel %vm307, %v1796, %v1798
    %v1810 = vsel %vm307, %v1798, %v1800
    %v1811 = vsel %vm307, %v1800, %v1802
    %v1812 = vsel %vm307, %v1802, %v1804
    %v1813 = vsel %vm307, %v1804, %v1806
    %v1823 = vmul.bf16 %v1694, %v1792
    %v1824 = vmul.bf16 %v1695, %v1807
    %v1825 = vmul.bf16 %v1696, %v1808
    %v1826 = vmul.bf16 %v1697, %v1809
    %v1827 = vmul.bf16 %v1698, %v1810
    %v1828 = vmul.bf16 %v1699, %v1811
    %v1829 = vmul.bf16 %v1700, %v1812
    %v1830 = vmul.bf16 %v1701, %v1813
    %v1831 = vmul.bf16 %v1702, %v1806
    %1841 = vrot.lane.b32.xlu0 %v1823, 55
    %v1842 = vpop.permute.xlu0 %1841
    %1843 = vrot.lane.b32.xlu0 %v1824, 55
    %v1844 = vpop.permute.xlu0 %1843
    %1845 = vrot.lane.b32.xlu0 %v1825, 55
    %v1846 = vpop.permute.xlu0 %1845
    %1847 = vrot.lane.b32.xlu0 %v1826, 55
    %v1848 = vpop.permute.xlu0 %1847
    %1849 = vrot.lane.b32.xlu0 %v1827, 55
    %v1850 = vpop.permute.xlu0 %1849
    %1851 = vrot.lane.b32.xlu0 %v1828, 55
    %v1852 = vpop.permute.xlu0 %1851
    %1853 = vrot.lane.b32.xlu0 %v1829, 55
    %v1854 = vpop.permute.xlu0 %1853
    %1855 = vrot.lane.b32.xlu0 %v1830, 55
    %v1856 = vpop.permute.xlu0 %1855
    %1857 = vrot.lane.b32.xlu0 %v1831, 55
    %v1858 = vpop.permute.xlu0 %1857
    %v1859 = vsel %vm254, %v1842, %v1844
    %v1860 = vsel %vm254, %v1844, %v1846
    %v1861 = vsel %vm254, %v1846, %v1848
    %v1862 = vsel %vm254, %v1848, %v1850
    %v1863 = vsel %vm254, %v1850, %v1852
    %v1864 = vsel %vm254, %v1852, %v1854
    %v1865 = vsel %vm254, %v1854, %v1856
    %v1866 = vsel %vm254, %v1856, %v1858
    %1875 = vst [vmem:[#allocation4 + $0x200] sm:$0xff] %v1859
    %1876 = vst [vmem:[#allocation4 + $0x208] sm:$0xff] %v1860
    %1877 = vst [vmem:[#allocation4 + $0x210] sm:$0xff] %v1861
    %1878 = vst [vmem:[#allocation4 + $0x218] sm:$0xff] %v1862
    %1879 = vst [vmem:[#allocation4 + $0x220] sm:$0xff] %v1863
    %1880 = vst [vmem:[#allocation4 + $0x228] sm:$0xff] %v1864
    %1881 = vst [vmem:[#allocation4 + $0x230] sm:$0xff] %v1865
    %1882 = vst [vmem:[#allocation4 + $0x238] sm:$0xff] %v1866
    %v1883 = vld [vmem:[#allocation2] sm:$0xff]
    %v1884 = vld [vmem:[#allocation2 + $0x8] sm:$0xff]
    %v1885 = vld [vmem:[#allocation2 + $0x10] sm:$0xff]
    %v1886 = vld [vmem:[#allocation2 + $0x18] sm:$0xff]
    %v1887 = vld [vmem:[#allocation2 + $0x20] sm:$0xff]
    %v1888 = vld [vmem:[#allocation2 + $0x28] sm:$0xff]
    %v1889 = vld [vmem:[#allocation2 + $0x30] sm:$0xff]
    %v1890 = vld [vmem:[#allocation2 + $0x38] sm:$0xff]
    %v1891 = vld [vmem:[#allocation2 + $0x40] sm:$0xff]
    %v1892 = vld [vmem:[#allocation8 + $0x20] sm:$0x11]
    %v1893 = vld [vmem:[#allocation8 + $0x28] sm:$0x11]
    %v1894 = vld [vmem:[#allocation8 + $0x30] sm:$0x11]
    %v1895 = vld [vmem:[#allocation8 + $0x38] sm:$0x11]
    %v1900 = vunpack.c.l.b16 %v1892
    %v1901 = vunpack.c.h.b16 %v1892
    %v1902 = vunpack.c.l.b16 %v1893
    %v1903 = vunpack.c.h.b16 %v1893
    %v1904 = vunpack.c.l.b16 %v1894
    %v1905 = vunpack.c.h.b16 %v1894
    %v1906 = vunpack.c.l.b16 %v1895
    %v1907 = vunpack.c.h.b16 %v1895
    %v1908 = vpack.c.b16 %v1900, %v1900
    %v1909 = vpack.c.b16 %v1901, %v1901
    %v1910 = vpack.c.b16 %v1902, %v1902
    %v1911 = vpack.c.b16 %v1903, %v1903
    %v1912 = vpack.c.b16 %v1904, %v1904
    %v1913 = vpack.c.b16 %v1905, %v1905
    %v1914 = vpack.c.b16 %v1906, %v1906
    %v1915 = vpack.c.b16 %v1907, %v1907
    %v1917 = vshrl.u32 %v1908, 16
    %v1918 = vpack.i.b16 %v1917, %v1917
    %v1920 = vlaneseq
    %v1921 = vshrl.u32 %v1920, 7
    %v1922 = vsub.s32 0, %v1921
    %v1923 = vrot.slane %v1918, %v1922
    %v1925 = vshrl.u32 %v1909, 16
    %v1926 = vpack.i.b16 %v1925, %v1925
    %v1928 = vlaneseq
    %v1929 = vshrl.u32 %v1928, 7
    %v1930 = vsub.s32 0, %v1929
    %v1931 = vrot.slane %v1926, %v1930
    %v1933 = vshrl.u32 %v1910, 16
    %v1934 = vpack.i.b16 %v1933, %v1933
    %v1936 = vlaneseq
    %v1937 = vshrl.u32 %v1936, 7
    %v1938 = vsub.s32 0, %v1937
    %v1939 = vrot.slane %v1934, %v1938
    %v1941 = vshrl.u32 %v1911, 16
    %v1942 = vpack.i.b16 %v1941, %v1941
    %v1944 = vlaneseq
    %v1945 = vshrl.u32 %v1944, 7
    %v1946 = vsub.s32 0, %v1945
    %v1947 = vrot.slane %v1942, %v1946
    %v1949 = vshrl.u32 %v1912, 16
    %v1950 = vpack.i.b16 %v1949, %v1949
    %v1952 = vlaneseq
    %v1953 = vshrl.u32 %v1952, 7
    %v1954 = vsub.s32 0, %v1953
    %v1955 = vrot.slane %v1950, %v1954
    %v1957 = vshrl.u32 %v1913, 16
    %v1958 = vpack.i.b16 %v1957, %v1957
    %v1960 = vlaneseq
    %v1961 = vshrl.u32 %v1960, 7
    %v1962 = vsub.s32 0, %v1961
    %v1963 = vrot.slane %v1958, %v1962
    %v1965 = vshrl.u32 %v1914, 16
    %v1966 = vpack.i.b16 %v1965, %v1965
    %v1968 = vlaneseq
    %v1969 = vshrl.u32 %v1968, 7
    %v1970 = vsub.s32 0, %v1969
    %v1971 = vrot.slane %v1966, %v1970
    %v1973 = vshrl.u32 %v1915, 16
    %v1974 = vpack.i.b16 %v1973, %v1973
    %v1976 = vlaneseq
    %v1977 = vshrl.u32 %v1976, 7
    %v1978 = vsub.s32 0, %v1977
    %v1979 = vrot.slane %v1974, %v1978
    %1988 = vrot.lane.b32.xlu0 %v1923, 119
    %v1989 = vpop.permute.xlu0 %1988
    %1990 = vrot.lane.b32.xlu0 %v1931, 119
    %v1991 = vpop.permute.xlu0 %1990
    %1992 = vrot.lane.b32.xlu0 %v1939, 119
    %v1993 = vpop.permute.xlu0 %1992
    %1994 = vrot.lane.b32.xlu0 %v1947, 119
    %v1995 = vpop.permute.xlu0 %1994
    %1996 = vrot.lane.b32.xlu0 %v1955, 119
    %v1997 = vpop.permute.xlu0 %1996
    %1998 = vrot.lane.b32.xlu0 %v1963, 119
    %v1999 = vpop.permute.xlu0 %1998
    %2000 = vrot.lane.b32.xlu0 %v1971, 119
    %v2001 = vpop.permute.xlu0 %2000
    %2002 = vrot.lane.b32.xlu0 %v1979, 119
    %v2003 = vpop.permute.xlu0 %2002
    %vm2004 = vcmask 973824
    %v2005 = vsel %vm2004, %v1989, %v1991
    %v2006 = vsel %vm2004, %v1991, %v1993
    %v2007 = vsel %vm2004, %v1993, %v1995
    %v2008 = vsel %vm2004, %v1995, %v1997
    %v2009 = vsel %vm2004, %v1997, %v1999
    %v2010 = vsel %vm2004, %v1999, %v2001
    %v2011 = vsel %vm2004, %v2001, %v2003
    %v2021 = vmul.bf16 %v1883, %v1989
    %v2022 = vmul.bf16 %v1884, %v2005
    %v2023 = vmul.bf16 %v1885, %v2006
    %v2024 = vmul.bf16 %v1886, %v2007
    %v2025 = vmul.bf16 %v1887, %v2008
    %v2026 = vmul.bf16 %v1888, %v2009
    %v2027 = vmul.bf16 %v1889, %v2010
    %v2028 = vmul.bf16 %v1890, %v2011
    %v2029 = vmul.bf16 %v1891, %v2003
    %2039 = vrot.lane.b32.xlu0 %v2021, 9
    %v2040 = vpop.permute.xlu0 %2039
    %2041 = vrot.lane.b32.xlu0 %v2022, 9
    %v2042 = vpop.permute.xlu0 %2041
    %2043 = vrot.lane.b32.xlu0 %v2023, 9
    %v2044 = vpop.permute.xlu0 %2043
    %2045 = vrot.lane.b32.xlu0 %v2024, 9
    %v2046 = vpop.permute.xlu0 %2045
    %2047 = vrot.lane.b32.xlu0 %v2025, 9
    %v2048 = vpop.permute.xlu0 %2047
    %2049 = vrot.lane.b32.xlu0 %v2026, 9
    %v2050 = vpop.permute.xlu0 %2049
    %2051 = vrot.lane.b32.xlu0 %v2027, 9
    %v2052 = vpop.permute.xlu0 %2051
    %2053 = vrot.lane.b32.xlu0 %v2028, 9
    %v2054 = vpop.permute.xlu0 %2053
    %2055 = vrot.lane.b32.xlu0 %v2029, 9
    %v2056 = vpop.permute.xlu0 %2055
    %vm2057 = vcmask 72704
    %v2058 = vsel %vm2057, %v2040, %v2042
    %v2059 = vsel %vm2057, %v2042, %v2044
    %v2060 = vsel %vm2057, %v2044, %v2046
    %v2061 = vsel %vm2057, %v2046, %v2048
    %v2062 = vsel %vm2057, %v2048, %v2050
    %v2063 = vsel %vm2057, %v2050, %v2052
    %v2064 = vsel %vm2057, %v2052, %v2054
    %v2065 = vsel %vm2057, %v2054, %v2056
    %2074 = vst [vmem:[#allocation4 + $0x240] sm:$0xff] %v2058
    %2075 = vst [vmem:[#allocation4 + $0x248] sm:$0xff] %v2059
    %2076 = vst [vmem:[#allocation4 + $0x250] sm:$0xff] %v2060
    %2077 = vst [vmem:[#allocation4 + $0x258] sm:$0xff] %v2061
    %2078 = vst [vmem:[#allocation4 + $0x260] sm:$0xff] %v2062
    %2079 = vst [vmem:[#allocation4 + $0x268] sm:$0xff] %v2063
    %2080 = vst [vmem:[#allocation4 + $0x270] sm:$0xff] %v2064
    %2081 = vst [vmem:[#allocation4 + $0x278] sm:$0xff] %v2065
    %v2082 = vld [vmem:[#allocation2] sm:$0xff]
    %v2083 = vld [vmem:[#allocation2 + $0x8] sm:$0xff]
    %v2084 = vld [vmem:[#allocation2 + $0x10] sm:$0xff]
    %v2085 = vld [vmem:[#allocation2 + $0x18] sm:$0xff]
    %v2086 = vld [vmem:[#allocation2 + $0x20] sm:$0xff]
    %v2087 = vld [vmem:[#allocation2 + $0x28] sm:$0xff]
    %v2088 = vld [vmem:[#allocation2 + $0x30] sm:$0xff]
    %v2089 = vld [vmem:[#allocation2 + $0x38] sm:$0xff]
    %v2090 = vld [vmem:[#allocation2 + $0x40] sm:$0xff]
    %v2091 = vld [vmem:[#allocation8 + $0x20] sm:$0x22]
    %v2092 = vld [vmem:[#allocation8 + $0x28] sm:$0x22]
    %v2093 = vld [vmem:[#allocation8 + $0x30] sm:$0x22]
    %v2094 = vld [vmem:[#allocation8 + $0x38] sm:$0x22]
    %v2099 = vunpack.c.l.b16 %v2091
    %v2100 = vunpack.c.h.b16 %v2091
    %v2101 = vunpack.c.l.b16 %v2092
    %v2102 = vunpack.c.h.b16 %v2092
    %v2103 = vunpack.c.l.b16 %v2093
    %v2104 = vunpack.c.h.b16 %v2093
    %v2105 = vunpack.c.l.b16 %v2094
    %v2106 = vunpack.c.h.b16 %v2094
    %v2107 = vpack.c.b16 %v2099, %v2099
    %v2108 = vpack.c.b16 %v2100, %v2100
    %v2109 = vpack.c.b16 %v2101, %v2101
    %v2110 = vpack.c.b16 %v2102, %v2102
    %v2111 = vpack.c.b16 %v2103, %v2103
    %v2112 = vpack.c.b16 %v2104, %v2104
    %v2113 = vpack.c.b16 %v2105, %v2105
    %v2114 = vpack.c.b16 %v2106, %v2106
    %v2116 = vpack.i.b16 %v2107, %v2107
    %v2118 = vlaneseq
    %v2119 = vshrl.u32 %v2118, 7
    %v2120 = vsub.s32 1, %v2119
    %v2121 = vrot.slane %v2116, %v2120
    %v2123 = vpack.i.b16 %v2108, %v2108
    %v2125 = vlaneseq
    %v2126 = vshrl.u32 %v2125, 7
    %v2127 = vsub.s32 1, %v2126
    %v2128 = vrot.slane %v2123, %v2127
    %v2130 = vpack.i.b16 %v2109, %v2109
    %v2132 = vlaneseq
    %v2133 = vshrl.u32 %v2132, 7
    %v2134 = vsub.s32 1, %v2133
    %v2135 = vrot.slane %v2130, %v2134
    %v2137 = vpack.i.b16 %v2110, %v2110
    %v2139 = vlaneseq
    %v2140 = vshrl.u32 %v2139, 7
    %v2141 = vsub.s32 1, %v2140
    %v2142 = vrot.slane %v2137, %v2141
    %v2144 = vpack.i.b16 %v2111, %v2111
    %v2146 = vlaneseq
    %v2147 = vshrl.u32 %v2146, 7
    %v2148 = vsub.s32 1, %v2147
    %v2149 = vrot.slane %v2144, %v2148
    %v2151 = vpack.i.b16 %v2112, %v2112
    %v2153 = vlaneseq
    %v2154 = vshrl.u32 %v2153, 7
    %v2155 = vsub.s32 1, %v2154
    %v2156 = vrot.slane %v2151, %v2155
    %v2158 = vpack.i.b16 %v2113, %v2113
    %v2160 = vlaneseq
    %v2161 = vshrl.u32 %v2160, 7
    %v2162 = vsub.s32 1, %v2161
    %v2163 = vrot.slane %v2158, %v2162
    %v2165 = vpack.i.b16 %v2114, %v2114
    %v2167 = vlaneseq
    %v2168 = vshrl.u32 %v2167, 7
    %v2169 = vsub.s32 1, %v2168
    %v2170 = vrot.slane %v2165, %v2169
    %2179 = vrot.lane.b32.xlu0 %v2121, 120
    %v2180 = vpop.permute.xlu0 %2179
    %2181 = vrot.lane.b32.xlu0 %v2128, 120
    %v2182 = vpop.permute.xlu0 %2181
    %2183 = vrot.lane.b32.xlu0 %v2135, 120
    %v2184 = vpop.permute.xlu0 %2183
    %2185 = vrot.lane.b32.xlu0 %v2142, 120
    %v2186 = vpop.permute.xlu0 %2185
    %2187 = vrot.lane.b32.xlu0 %v2149, 120
    %v2188 = vpop.permute.xlu0 %2187
    %2189 = vrot.lane.b32.xlu0 %v2156, 120
    %v2190 = vpop.permute.xlu0 %2189
    %2191 = vrot.lane.b32.xlu0 %v2163, 120
    %v2192 = vpop.permute.xlu0 %2191
    %2193 = vrot.lane.b32.xlu0 %v2170, 120
    %v2194 = vpop.permute.xlu0 %2193
    %vm2195 = vcmask 982016
    %v2196 = vsel %vm2195, %v2180, %v2182
    %v2197 = vsel %vm2195, %v2182, %v2184
    %v2198 = vsel %vm2195, %v2184, %v2186
    %v2199 = vsel %vm2195, %v2186, %v2188
    %v2200 = vsel %vm2195, %v2188, %v2190
    %v2201 = vsel %vm2195, %v2190, %v2192
    %v2202 = vsel %vm2195, %v2192, %v2194
    %v2212 = vmul.bf16 %v2082, %v2180
    %v2213 = vmul.bf16 %v2083, %v2196
    %v2214 = vmul.bf16 %v2084, %v2197
    %v2215 = vmul.bf16 %v2085, %v2198
    %v2216 = vmul.bf16 %v2086, %v2199
    %v2217 = vmul.bf16 %v2087, %v2200
    %v2218 = vmul.bf16 %v2088, %v2201
    %v2219 = vmul.bf16 %v2089, %v2202
    %v2220 = vmul.bf16 %v2090, %v2194
    %2230 = vrot.lane.b32.xlu0 %v2212, 8
    %v2231 = vpop.permute.xlu0 %2230
    %2232 = vrot.lane.b32.xlu0 %v2213, 8
    %v2233 = vpop.permute.xlu0 %2232
    %2234 = vrot.lane.b32.xlu0 %v2214, 8
    %v2235 = vpop.permute.xlu0 %2234
    %2236 = vrot.lane.b32.xlu0 %v2215, 8
    %v2237 = vpop.permute.xlu0 %2236
    %2238 = vrot.lane.b32.xlu0 %v2216, 8
    %v2239 = vpop.permute.xlu0 %2238
    %2240 = vrot.lane.b32.xlu0 %v2217, 8
    %v2241 = vpop.permute.xlu0 %2240
    %2242 = vrot.lane.b32.xlu0 %v2218, 8
    %v2243 = vpop.permute.xlu0 %2242
    %2244 = vrot.lane.b32.xlu0 %v2219, 8
    %v2245 = vpop.permute.xlu0 %2244
    %2246 = vrot.lane.b32.xlu0 %v2220, 8
    %v2247 = vpop.permute.xlu0 %2246
    %vm2248 = vcmask 64512
    %v2249 = vsel %vm2248, %v2231, %v2233
    %v2250 = vsel %vm2248, %v2233, %v2235
    %v2251 = vsel %vm2248, %v2235, %v2237
    %v2252 = vsel %vm2248, %v2237, %v2239
    %v2253 = vsel %vm2248, %v2239, %v2241
    %v2254 = vsel %vm2248, %v2241, %v2243
    %v2255 = vsel %vm2248, %v2243, %v2245
    %v2256 = vsel %vm2248, %v2245, %v2247
    %2265 = vst [vmem:[#allocation4 + $0x280] sm:$0xff] %v2249
    %2266 = vst [vmem:[#allocation4 + $0x288] sm:$0xff] %v2250
    %2267 = vst [vmem:[#allocation4 + $0x290] sm:$0xff] %v2251
    %2268 = vst [vmem:[#allocation4 + $0x298] sm:$0xff] %v2252
    %2269 = vst [vmem:[#allocation4 + $0x2a0] sm:$0xff] %v2253
    %2270 = vst [vmem:[#allocation4 + $0x2a8] sm:$0xff] %v2254
    %2271 = vst [vmem:[#allocation4 + $0x2b0] sm:$0xff] %v2255
    %2272 = vst [vmem:[#allocation4 + $0x2b8] sm:$0xff] %v2256
    %v2273 = vld [vmem:[#allocation2] sm:$0xff]
    %v2274 = vld [vmem:[#allocation2 + $0x8] sm:$0xff]
    %v2275 = vld [vmem:[#allocation2 + $0x10] sm:$0xff]
    %v2276 = vld [vmem:[#allocation2 + $0x18] sm:$0xff]
    %v2277 = vld [vmem:[#allocation2 + $0x20] sm:$0xff]
    %v2278 = vld [vmem:[#allocation2 + $0x28] sm:$0xff]
    %v2279 = vld [vmem:[#allocation2 + $0x30] sm:$0xff]
    %v2280 = vld [vmem:[#allocation2 + $0x38] sm:$0xff]
    %v2281 = vld [vmem:[#allocation2 + $0x40] sm:$0xff]
    %v2282 = vld [vmem:[#allocation8 + $0x20] sm:$0x22]
    %v2283 = vld [vmem:[#allocation8 + $0x28] sm:$0x22]
    %v2284 = vld [vmem:[#allocation8 + $0x30] sm:$0x22]
    %v2285 = vld [vmem:[#allocation8 + $0x38] sm:$0x22]
    %v2290 = vunpack.c.l.b16 %v2282
    %v2291 = vunpack.c.h.b16 %v2282
    %v2292 = vunpack.c.l.b16 %v2283
    %v2293 = vunpack.c.h.b16 %v2283
    %v2294 = vunpack.c.l.b16 %v2284
    %v2295 = vunpack.c.h.b16 %v2284
    %v2296 = vunpack.c.l.b16 %v2285
    %v2297 = vunpack.c.h.b16 %v2285
    %v2298 = vpack.c.b16 %v2290, %v2290
    %v2299 = vpack.c.b16 %v2291, %v2291
    %v2300 = vpack.c.b16 %v2292, %v2292
    %v2301 = vpack.c.b16 %v2293, %v2293
    %v2302 = vpack.c.b16 %v2294, %v2294
    %v2303 = vpack.c.b16 %v2295, %v2295
    %v2304 = vpack.c.b16 %v2296, %v2296
    %v2305 = vpack.c.b16 %v2297, %v2297
    %v2307 = vshrl.u32 %v2298, 16
    %v2308 = vpack.i.b16 %v2307, %v2307
    %v2310 = vlaneseq
    %v2311 = vshrl.u32 %v2310, 7
    %v2312 = vsub.s32 1, %v2311
    %v2313 = vrot.slane %v2308, %v2312
    %v2315 = vshrl.u32 %v2299, 16
    %v2316 = vpack.i.b16 %v2315, %v2315
    %v2318 = vlaneseq
    %v2319 = vshrl.u32 %v2318, 7
    %v2320 = vsub.s32 1, %v2319
    %v2321 = vrot.slane %v2316, %v2320
    %v2323 = vshrl.u32 %v2300, 16
    %v2324 = vpack.i.b16 %v2323, %v2323
    %v2326 = vlaneseq
    %v2327 = vshrl.u32 %v2326, 7
    %v2328 = vsub.s32 1, %v2327
    %v2329 = vrot.slane %v2324, %v2328
    %v2331 = vshrl.u32 %v2301, 16
    %v2332 = vpack.i.b16 %v2331, %v2331
    %v2334 = vlaneseq
    %v2335 = vshrl.u32 %v2334, 7
    %v2336 = vsub.s32 1, %v2335
    %v2337 = vrot.slane %v2332, %v2336
    %v2339 = vshrl.u32 %v2302, 16
    %v2340 = vpack.i.b16 %v2339, %v2339
    %v2342 = vlaneseq
    %v2343 = vshrl.u32 %v2342, 7
    %v2344 = vsub.s32 1, %v2343
    %v2345 = vrot.slane %v2340, %v2344
    %v2347 = vshrl.u32 %v2303, 16
    %v2348 = vpack.i.b16 %v2347, %v2347
    %v2350 = vlaneseq
    %v2351 = vshrl.u32 %v2350, 7
    %v2352 = vsub.s32 1, %v2351
    %v2353 = vrot.slane %v2348, %v2352
    %v2355 = vshrl.u32 %v2304, 16
    %v2356 = vpack.i.b16 %v2355, %v2355
    %v2358 = vlaneseq
    %v2359 = vshrl.u32 %v2358, 7
    %v2360 = vsub.s32 1, %v2359
    %v2361 = vrot.slane %v2356, %v2360
    %v2363 = vshrl.u32 %v2305, 16
    %v2364 = vpack.i.b16 %v2363, %v2363
    %v2366 = vlaneseq
    %v2367 = vshrl.u32 %v2366, 7
    %v2368 = vsub.s32 1, %v2367
    %v2369 = vrot.slane %v2364, %v2368
    %2378 = vrot.lane.b32.xlu0 %v2313, 121
    %v2379 = vpop.permute.xlu0 %2378
    %2380 = vrot.lane.b32.xlu0 %v2321, 121
    %v2381 = vpop.permute.xlu0 %2380
    %2382 = vrot.lane.b32.xlu0 %v2329, 121
    %v2383 = vpop.permute.xlu0 %2382
    %2384 = vrot.lane.b32.xlu0 %v2337, 121
    %v2385 = vpop.permute.xlu0 %2384
    %2386 = vrot.lane.b32.xlu0 %v2345, 121
    %v2387 = vpop.permute.xlu0 %2386
    %2388 = vrot.lane.b32.xlu0 %v2353, 121
    %v2389 = vpop.permute.xlu0 %2388
    %2390 = vrot.lane.b32.xlu0 %v2361, 121
    %v2391 = vpop.permute.xlu0 %2390
    %2392 = vrot.lane.b32.xlu0 %v2369, 121
    %v2393 = vpop.permute.xlu0 %2392
    %vm2394 = vcmask 990208
    %v2395 = vsel %vm2394, %v2379, %v2381
    %v2396 = vsel %vm2394, %v2381, %v2383
    %v2397 = vsel %vm2394, %v2383, %v2385
    %v2398 = vsel %vm2394, %v2385, %v2387
    %v2399 = vsel %vm2394, %v2387, %v2389
    %v2400 = vsel %vm2394, %v2389, %v2391
    %v2401 = vsel %vm2394, %v2391, %v2393
    %v2411 = vmul.bf16 %v2273, %v2379
    %v2412 = vmul.bf16 %v2274, %v2395
    %v2413 = vmul.bf16 %v2275, %v2396
    %v2414 = vmul.bf16 %v2276, %v2397
    %v2415 = vmul.bf16 %v2277, %v2398
    %v2416 = vmul.bf16 %v2278, %v2399
    %v2417 = vmul.bf16 %v2279, %v2400
    %v2418 = vmul.bf16 %v2280, %v2401
    %v2419 = vmul.bf16 %v2281, %v2393
    %2429 = vrot.lane.b32.xlu0 %v2411, 7
    %v2430 = vpop.permute.xlu0 %2429
    %2431 = vrot.lane.b32.xlu0 %v2412, 7
    %v2432 = vpop.permute.xlu0 %2431
    %2433 = vrot.lane.b32.xlu0 %v2413, 7
    %v2434 = vpop.permute.xlu0 %2433
    %2435 = vrot.lane.b32.xlu0 %v2414, 7
    %v2436 = vpop.permute.xlu0 %2435
    %2437 = vrot.lane.b32.xlu0 %v2415, 7
    %v2438 = vpop.permute.xlu0 %2437
    %2439 = vrot.lane.b32.xlu0 %v2416, 7
    %v2440 = vpop.permute.xlu0 %2439
    %2441 = vrot.lane.b32.xlu0 %v2417, 7
    %v2442 = vpop.permute.xlu0 %2441
    %2443 = vrot.lane.b32.xlu0 %v2418, 7
    %v2444 = vpop.permute.xlu0 %2443
    %2445 = vrot.lane.b32.xlu0 %v2419, 7
    %v2446 = vpop.permute.xlu0 %2445
    %vm2447 = vcmask 56320
    %v2448 = vsel %vm2447, %v2430, %v2432
    %v2449 = vsel %vm2447, %v2432, %v2434
    %v2450 = vsel %vm2447, %v2434, %v2436
    %v2451 = vsel %vm2447, %v2436, %v2438
    %v2452 = vsel %vm2447, %v2438, %v2440
    %v2453 = vsel %vm2447, %v2440, %v2442
    %v2454 = vsel %vm2447, %v2442, %v2444
    %v2455 = vsel %vm2447, %v2444, %v2446
    %2464 = vst [vmem:[#allocation4 + $0x2c0] sm:$0xff] %v2448
    %2465 = vst [vmem:[#allocation4 + $0x2c8] sm:$0xff] %v2449
    %2466 = vst [vmem:[#allocation4 + $0x2d0] sm:$0xff] %v2450
    %2467 = vst [vmem:[#allocation4 + $0x2d8] sm:$0xff] %v2451
    %2468 = vst [vmem:[#allocation4 + $0x2e0] sm:$0xff] %v2452
    %2469 = vst [vmem:[#allocation4 + $0x2e8] sm:$0xff] %v2453
    %2470 = vst [vmem:[#allocation4 + $0x2f0] sm:$0xff] %v2454
    %2471 = vst [vmem:[#allocation4 + $0x2f8] sm:$0xff] %v2455
    %v2472 = vld [vmem:[#allocation2] sm:$0xff]
    %v2473 = vld [vmem:[#allocation2 + $0x8] sm:$0xff]
    %v2474 = vld [vmem:[#allocation2 + $0x10] sm:$0xff]
    %v2475 = vld [vmem:[#allocation2 + $0x18] sm:$0xff]
    %v2476 = vld [vmem:[#allocation2 + $0x20] sm:$0xff]
    %v2477 = vld [vmem:[#allocation2 + $0x28] sm:$0xff]
    %v2478 = vld [vmem:[#allocation2 + $0x30] sm:$0xff]
    %v2479 = vld [vmem:[#allocation2 + $0x38] sm:$0xff]
    %v2480 = vld [vmem:[#allocation2 + $0x40] sm:$0xff]
    %v2481 = vld [vmem:[#allocation8 + $0x20] sm:$0x44]
    %v2482 = vld [vmem:[#allocation8 + $0x28] sm:$0x44]
    %v2483 = vld [vmem:[#allocation8 + $0x30] sm:$0x44]
    %v2484 = vld [vmem:[#allocation8 + $0x38] sm:$0x44]
    %v2489 = vunpack.c.l.b16 %v2481
    %v2490 = vunpack.c.h.b16 %v2481
    %v2491 = vunpack.c.l.b16 %v2482
    %v2492 = vunpack.c.h.b16 %v2482
    %v2493 = vunpack.c.l.b16 %v2483
    %v2494 = vunpack.c.h.b16 %v2483
    %v2495 = vunpack.c.l.b16 %v2484
    %v2496 = vunpack.c.h.b16 %v2484
    %v2497 = vpack.c.b16 %v2489, %v2489
    %v2498 = vpack.c.b16 %v2490, %v2490
    %v2499 = vpack.c.b16 %v2491, %v2491
    %v2500 = vpack.c.b16 %v2492, %v2492
    %v2501 = vpack.c.b16 %v2493, %v2493
    %v2502 = vpack.c.b16 %v2494, %v2494
    %v2503 = vpack.c.b16 %v2495, %v2495
    %v2504 = vpack.c.b16 %v2496, %v2496
    %v2506 = vpack.i.b16 %v2497, %v2497
    %v2508 = vlaneseq
    %v2509 = vshrl.u32 %v2508, 7
    %v2510 = vsub.s32 2, %v2509
    %v2511 = vrot.slane %v2506, %v2510
    %v2513 = vpack.i.b16 %v2498, %v2498
    %v2515 = vlaneseq
    %v2516 = vshrl.u32 %v2515, 7
    %v2517 = vsub.s32 2, %v2516
    %v2518 = vrot.slane %v2513, %v2517
    %v2520 = vpack.i.b16 %v2499, %v2499
    %v2522 = vlaneseq
    %v2523 = vshrl.u32 %v2522, 7
    %v2524 = vsub.s32 2, %v2523
    %v2525 = vrot.slane %v2520, %v2524
    %v2527 = vpack.i.b16 %v2500, %v2500
    %v2529 = vlaneseq
    %v2530 = vshrl.u32 %v2529, 7
    %v2531 = vsub.s32 2, %v2530
    %v2532 = vrot.slane %v2527, %v2531
    %v2534 = vpack.i.b16 %v2501, %v2501
    %v2536 = vlaneseq
    %v2537 = vshrl.u32 %v2536, 7
    %v2538 = vsub.s32 2, %v2537
    %v2539 = vrot.slane %v2534, %v2538
    %v2541 = vpack.i.b16 %v2502, %v2502
    %v2543 = vlaneseq
    %v2544 = vshrl.u32 %v2543, 7
    %v2545 = vsub.s32 2, %v2544
    %v2546 = vrot.slane %v2541, %v2545
    %v2548 = vpack.i.b16 %v2503, %v2503
    %v2550 = vlaneseq
    %v2551 = vshrl.u32 %v2550, 7
    %v2552 = vsub.s32 2, %v2551
    %v2553 = vrot.slane %v2548, %v2552
    %v2555 = vpack.i.b16 %v2504, %v2504
    %v2557 = vlaneseq
    %v2558 = vshrl.u32 %v2557, 7
    %v2559 = vsub.s32 2, %v2558
    %v2560 = vrot.slane %v2555, %v2559
    %2569 = vrot.lane.b32.xlu0 %v2511, 127
    %v2570 = vpop.permute.xlu0 %2569
    %2571 = vrot.lane.b32.xlu0 %v2518, 127
    %v2572 = vpop.permute.xlu0 %2571
    %2573 = vrot.lane.b32.xlu0 %v2525, 127
    %v2574 = vpop.permute.xlu0 %2573
    %2575 = vrot.lane.b32.xlu0 %v2532, 127
    %v2576 = vpop.permute.xlu0 %2575
    %2577 = vrot.lane.b32.xlu0 %v2539, 127
    %v2578 = vpop.permute.xlu0 %2577
    %2579 = vrot.lane.b32.xlu0 %v2546, 127
    %v2580 = vpop.permute.xlu0 %2579
    %2581 = vrot.lane.b32.xlu0 %v2553, 127
    %v2582 = vpop.permute.xlu0 %2581
    %2583 = vrot.lane.b32.xlu0 %v2560, 127
    %v2584 = vpop.permute.xlu0 %2583
    %vm2585 = vcmask 1039360
    %v2586 = vsel %vm2585, %v2570, %v2572
    %v2587 = vsel %vm2585, %v2572, %v2574
    %v2588 = vsel %vm2585, %v2574, %v2576
    %v2589 = vsel %vm2585, %v2576, %v2578
    %v2590 = vsel %vm2585, %v2578, %v2580
    %v2591 = vsel %vm2585, %v2580, %v2582
    %v2592 = vsel %vm2585, %v2582, %v2584
    %v2602 = vmul.bf16 %v2472, %v2570
    %v2603 = vmul.bf16 %v2473, %v2586
    %v2604 = vmul.bf16 %v2474, %v2587
    %v2605 = vmul.bf16 %v2475, %v2588
    %v2606 = vmul.bf16 %v2476, %v2589
    %v2607 = vmul.bf16 %v2477, %v2590
    %v2608 = vmul.bf16 %v2478, %v2591
    %v2609 = vmul.bf16 %v2479, %v2592
    %v2610 = vmul.bf16 %v2480, %v2584
    %2620 = vrot.lane.b32.xlu0 %v2602, 1
    %v2621 = vpop.permute.xlu0 %2620
    %2622 = vrot.lane.b32.xlu0 %v2603, 1
    %v2623 = vpop.permute.xlu0 %2622
    %2624 = vrot.lane.b32.xlu0 %v2604, 1
    %v2625 = vpop.permute.xlu0 %2624
    %2626 = vrot.lane.b32.xlu0 %v2605, 1
    %v2627 = vpop.permute.xlu0 %2626
    %2628 = vrot.lane.b32.xlu0 %v2606, 1
    %v2629 = vpop.permute.xlu0 %2628
    %2630 = vrot.lane.b32.xlu0 %v2607, 1
    %v2631 = vpop.permute.xlu0 %2630
    %2632 = vrot.lane.b32.xlu0 %v2608, 1
    %v2633 = vpop.permute.xlu0 %2632
    %2634 = vrot.lane.b32.xlu0 %v2609, 1
    %v2635 = vpop.permute.xlu0 %2634
    %2636 = vrot.lane.b32.xlu0 %v2610, 1
    %v2637 = vpop.permute.xlu0 %2636
    %vm2638 = vcmask 7168
    %v2639 = vsel %vm2638, %v2621, %v2623
    %v2640 = vsel %vm2638, %v2623, %v2625
    %v2641 = vsel %vm2638, %v2625, %v2627
    %v2642 = vsel %vm2638, %v2627, %v2629
    %v2643 = vsel %vm2638, %v2629, %v2631
    %v2644 = vsel %vm2638, %v2631, %v2633
    %v2645 = vsel %vm2638, %v2633, %v2635
    %v2646 = vsel %vm2638, %v2635, %v2637
    %2655 = vst [vmem:[#allocation4 + $0x300] sm:$0xff] %v2639
    %2656 = vst [vmem:[#allocation4 + $0x308] sm:$0xff] %v2640
    %2657 = vst [vmem:[#allocation4 + $0x310] sm:$0xff] %v2641
    %2658 = vst [vmem:[#allocation4 + $0x318] sm:$0xff] %v2642
    %2659 = vst [vmem:[#allocation4 + $0x320] sm:$0xff] %v2643
    %2660 = vst [vmem:[#allocation4 + $0x328] sm:$0xff] %v2644
    %2661 = vst [vmem:[#allocation4 + $0x330] sm:$0xff] %v2645
    %2662 = vst [vmem:[#allocation4 + $0x338] sm:$0xff] %v2646
    %v2663 = vld [vmem:[#allocation2 + $0x8] sm:$0xff]
    %v2664 = vld [vmem:[#allocation2 + $0x10] sm:$0xff]
    %v2665 = vld [vmem:[#allocation2 + $0x18] sm:$0xff]
    %v2666 = vld [vmem:[#allocation2 + $0x20] sm:$0xff]
    %v2667 = vld [vmem:[#allocation2 + $0x28] sm:$0xff]
    %v2668 = vld [vmem:[#allocation2 + $0x30] sm:$0xff]
    %v2669 = vld [vmem:[#allocation2 + $0x38] sm:$0xff]
    %v2670 = vld [vmem:[#allocation2 + $0x40] sm:$0xff]
    %v2671 = vld [vmem:[#allocation8 + $0x20] sm:$0x44]
    %v2672 = vld [vmem:[#allocation8 + $0x28] sm:$0x44]
    %v2673 = vld [vmem:[#allocation8 + $0x30] sm:$0x44]
    %v2674 = vld [vmem:[#allocation8 + $0x38] sm:$0x44]
    %v2679 = vunpack.c.l.b16 %v2671
    %v2680 = vunpack.c.h.b16 %v2671
    %v2681 = vunpack.c.l.b16 %v2672
    %v2682 = vunpack.c.h.b16 %v2672
    %v2683 = vunpack.c.l.b16 %v2673
    %v2684 = vunpack.c.h.b16 %v2673
    %v2685 = vunpack.c.l.b16 %v2674
    %v2686 = vunpack.c.h.b16 %v2674
    %v2687 = vpack.c.b16 %v2679, %v2679
    %v2688 = vpack.c.b16 %v2680, %v2680
    %v2689 = vpack.c.b16 %v2681, %v2681
    %v2690 = vpack.c.b16 %v2682, %v2682
    %v2691 = vpack.c.b16 %v2683, %v2683
    %v2692 = vpack.c.b16 %v2684, %v2684
    %v2693 = vpack.c.b16 %v2685, %v2685
    %v2694 = vpack.c.b16 %v2686, %v2686
    %v2696 = vshrl.u32 %v2687, 16
    %v2697 = vpack.i.b16 %v2696, %v2696
    %v2699 = vlaneseq
    %v2700 = vshrl.u32 %v2699, 7
    %v2701 = vsub.s32 2, %v2700
    %v2702 = vrot.slane %v2697, %v2701
    %v2704 = vshrl.u32 %v2688, 16
    %v2705 = vpack.i.b16 %v2704, %v2704
    %v2707 = vlaneseq
    %v2708 = vshrl.u32 %v2707, 7
    %v2709 = vsub.s32 2, %v2708
    %v2710 = vrot.slane %v2705, %v2709
    %v2712 = vshrl.u32 %v2689, 16
    %v2713 = vpack.i.b16 %v2712, %v2712
    %v2715 = vlaneseq
    %v2716 = vshrl.u32 %v2715, 7
    %v2717 = vsub.s32 2, %v2716
    %v2718 = vrot.slane %v2713, %v2717
    %v2720 = vshrl.u32 %v2690, 16
    %v2721 = vpack.i.b16 %v2720, %v2720
    %v2723 = vlaneseq
    %v2724 = vshrl.u32 %v2723, 7
    %v2725 = vsub.s32 2, %v2724
    %v2726 = vrot.slane %v2721, %v2725
    %v2728 = vshrl.u32 %v2691, 16
    %v2729 = vpack.i.b16 %v2728, %v2728
    %v2731 = vlaneseq
    %v2732 = vshrl.u32 %v2731, 7
    %v2733 = vsub.s32 2, %v2732
    %v2734 = vrot.slane %v2729, %v2733
    %v2736 = vshrl.u32 %v2692, 16
    %v2737 = vpack.i.b16 %v2736, %v2736
    %v2739 = vlaneseq
    %v2740 = vshrl.u32 %v2739, 7
    %v2741 = vsub.s32 2, %v2740
    %v2742 = vrot.slane %v2737, %v2741
    %v2744 = vshrl.u32 %v2693, 16
    %v2745 = vpack.i.b16 %v2744, %v2744
    %v2747 = vlaneseq
    %v2748 = vshrl.u32 %v2747, 7
    %v2749 = vsub.s32 2, %v2748
    %v2750 = vrot.slane %v2745, %v2749
    %v2752 = vshrl.u32 %v2694, 16
    %v2753 = vpack.i.b16 %v2752, %v2752
    %v2755 = vlaneseq
    %v2756 = vshrl.u32 %v2755, 7
    %v2757 = vsub.s32 2, %v2756
    %v2758 = vrot.slane %v2753, %v2757
    %v2759 = vmul.bf16 %v2663, %v2702
    %v2760 = vmul.bf16 %v2664, %v2710
    %v2761 = vmul.bf16 %v2665, %v2718
    %v2762 = vmul.bf16 %v2666, %v2726
    %v2763 = vmul.bf16 %v2667, %v2734
    %v2764 = vmul.bf16 %v2668, %v2742
    %v2765 = vmul.bf16 %v2669, %v2750
    %v2766 = vmul.bf16 %v2670, %v2758
    %2767 = vst [vmem:[#allocation4 + $0x340] sm:$0xff] %v2759
    %2768 = vst [vmem:[#allocation4 + $0x348] sm:$0xff] %v2760
    %2769 = vst [vmem:[#allocation4 + $0x350] sm:$0xff] %v2761
    %2770 = vst [vmem:[#allocation4 + $0x358] sm:$0xff] %v2762
    %2771 = vst [vmem:[#allocation4 + $0x360] sm:$0xff] %v2763
    %2772 = vst [vmem:[#allocation4 + $0x368] sm:$0xff] %v2764
    %2773 = vst [vmem:[#allocation4 + $0x370] sm:$0xff] %v2765
    %2774 = vst [vmem:[#allocation4 + $0x378] sm:$0xff] %v2766
    %v2775 = vld [vmem:[#allocation2 + $0x8] sm:$0xff]
    %v2776 = vld [vmem:[#allocation2 + $0x10] sm:$0xff]
    %v2777 = vld [vmem:[#allocation2 + $0x18] sm:$0xff]
    %v2778 = vld [vmem:[#allocation2 + $0x20] sm:$0xff]
    %v2779 = vld [vmem:[#allocation2 + $0x28] sm:$0xff]
    %v2780 = vld [vmem:[#allocation2 + $0x30] sm:$0xff]
    %v2781 = vld [vmem:[#allocation2 + $0x38] sm:$0xff]
    %v2782 = vld [vmem:[#allocation2 + $0x40] sm:$0xff]
    %v2783 = vld [vmem:[#allocation2 + $0x48] sm:$0xff]
    %v2784 = vld [vmem:[#allocation8 + $0x20] sm:$0x88]
    %v2785 = vld [vmem:[#allocation8 + $0x28] sm:$0x88]
    %v2786 = vld [vmem:[#allocation8 + $0x30] sm:$0x88]
    %v2787 = vld [vmem:[#allocation8 + $0x38] sm:$0x88]
    %v2792 = vunpack.c.l.b16 %v2784
    %v2793 = vunpack.c.h.b16 %v2784
    %v2794 = vunpack.c.l.b16 %v2785
    %v2795 = vunpack.c.h.b16 %v2785
    %v2796 = vunpack.c.l.b16 %v2786
    %v2797 = vunpack.c.h.b16 %v2786
    %v2798 = vunpack.c.l.b16 %v2787
    %v2799 = vunpack.c.h.b16 %v2787
    %v2800 = vpack.c.b16 %v2792, %v2792
    %v2801 = vpack.c.b16 %v2793, %v2793
    %v2802 = vpack.c.b16 %v2794, %v2794
    %v2803 = vpack.c.b16 %v2795, %v2795
    %v2804 = vpack.c.b16 %v2796, %v2796
    %v2805 = vpack.c.b16 %v2797, %v2797
    %v2806 = vpack.c.b16 %v2798, %v2798
    %v2807 = vpack.c.b16 %v2799, %v2799
    %v2809 = vpack.i.b16 %v2800, %v2800
    %v2811 = vlaneseq
    %v2812 = vshrl.u32 %v2811, 7
    %v2813 = vsub.s32 3, %v2812
    %v2814 = vrot.slane %v2809, %v2813
    %v2816 = vpack.i.b16 %v2801, %v2801
    %v2818 = vlaneseq
    %v2819 = vshrl.u32 %v2818, 7
    %v2820 = vsub.s32 3, %v2819
    %v2821 = vrot.slane %v2816, %v2820
    %v2823 = vpack.i.b16 %v2802, %v2802
    %v2825 = vlaneseq
    %v2826 = vshrl.u32 %v2825, 7
    %v2827 = vsub.s32 3, %v2826
    %v2828 = vrot.slane %v2823, %v2827
    %v2830 = vpack.i.b16 %v2803, %v2803
    %v2832 = vlaneseq
    %v2833 = vshrl.u32 %v2832, 7
    %v2834 = vsub.s32 3, %v2833
    %v2835 = vrot.slane %v2830, %v2834
    %v2837 = vpack.i.b16 %v2804, %v2804
    %v2839 = vlaneseq
    %v2840 = vshrl.u32 %v2839, 7
    %v2841 = vsub.s32 3, %v2840
    %v2842 = vrot.slane %v2837, %v2841
    %v2844 = vpack.i.b16 %v2805, %v2805
    %v2846 = vlaneseq
    %v2847 = vshrl.u32 %v2846, 7
    %v2848 = vsub.s32 3, %v2847
    %v2849 = vrot.slane %v2844, %v2848
    %v2851 = vpack.i.b16 %v2806, %v2806
    %v2853 = vlaneseq
    %v2854 = vshrl.u32 %v2853, 7
    %v2855 = vsub.s32 3, %v2854
    %v2856 = vrot.slane %v2851, %v2855
    %v2858 = vpack.i.b16 %v2807, %v2807
    %v2860 = vlaneseq
    %v2861 = vshrl.u32 %v2860, 7
    %v2862 = vsub.s32 3, %v2861
    %v2863 = vrot.slane %v2858, %v2862
    %2872 = vrot.lane.b32.xlu0 %v2814, 1
    %v2873 = vpop.permute.xlu0 %2872
    %2874 = vrot.lane.b32.xlu0 %v2821, 1
    %v2875 = vpop.permute.xlu0 %2874
    %2876 = vrot.lane.b32.xlu0 %v2828, 1
    %v2877 = vpop.permute.xlu0 %2876
    %2878 = vrot.lane.b32.xlu0 %v2835, 1
    %v2879 = vpop.permute.xlu0 %2878
    %2880 = vrot.lane.b32.xlu0 %v2842, 1
    %v2881 = vpop.permute.xlu0 %2880
    %2882 = vrot.lane.b32.xlu0 %v2849, 1
    %v2883 = vpop.permute.xlu0 %2882
    %2884 = vrot.lane.b32.xlu0 %v2856, 1
    %v2885 = vpop.permute.xlu0 %2884
    %2886 = vrot.lane.b32.xlu0 %v2863, 1
    %v2887 = vpop.permute.xlu0 %2886
    %v2888 = vsel %vm2638, %v2873, %v2875
    %v2889 = vsel %vm2638, %v2875, %v2877
    %v2890 = vsel %vm2638, %v2877, %v2879
    %v2891 = vsel %vm2638, %v2879, %v2881
    %v2892 = vsel %vm2638, %v2881, %v2883
    %v2893 = vsel %vm2638, %v2883, %v2885
    %v2894 = vsel %vm2638, %v2885, %v2887
    %v2904 = vmul.bf16 %v2775, %v2873
    %v2905 = vmul.bf16 %v2776, %v2888
    %v2906 = vmul.bf16 %v2777, %v2889
    %v2907 = vmul.bf16 %v2778, %v2890
    %v2908 = vmul.bf16 %v2779, %v2891
    %v2909 = vmul.bf16 %v2780, %v2892
    %v2910 = vmul.bf16 %v2781, %v2893
    %v2911 = vmul.bf16 %v2782, %v2894
    %v2912 = vmul.bf16 %v2783, %v2887
    %2922 = vrot.lane.b32.xlu0 %v2904, 127
    %v2923 = vpop.permute.xlu0 %2922
    %2924 = vrot.lane.b32.xlu0 %v2905, 127
    %v2925 = vpop.permute.xlu0 %2924
    %2926 = vrot.lane.b32.xlu0 %v2906, 127
    %v2927 = vpop.permute.xlu0 %2926
    %2928 = vrot.lane.b32.xlu0 %v2907, 127
    %v2929 = vpop.permute.xlu0 %2928
    %2930 = vrot.lane.b32.xlu0 %v2908, 127
    %v2931 = vpop.permute.xlu0 %2930
    %2932 = vrot.lane.b32.xlu0 %v2909, 127
    %v2933 = vpop.permute.xlu0 %2932
    %2934 = vrot.lane.b32.xlu0 %v2910, 127
    %v2935 = vpop.permute.xlu0 %2934
    %2936 = vrot.lane.b32.xlu0 %v2911, 127
    %v2937 = vpop.permute.xlu0 %2936
    %2938 = vrot.lane.b32.xlu0 %v2912, 127
    %v2939 = vpop.permute.xlu0 %2938
    %v2940 = vsel %vm2585, %v2923, %v2925
    %v2941 = vsel %vm2585, %v2925, %v2927
    %v2942 = vsel %vm2585, %v2927, %v2929
    %v2943 = vsel %vm2585, %v2929, %v2931
    %v2944 = vsel %vm2585, %v2931, %v2933
    %v2945 = vsel %vm2585, %v2933, %v2935
    %v2946 = vsel %vm2585, %v2935, %v2937
    %v2947 = vsel %vm2585, %v2937, %v2939
    %2956 = vst [vmem:[#allocation4 + $0x380] sm:$0xff] %v2940
    %2957 = vst [vmem:[#allocation4 + $0x388] sm:$0xff] %v2941
    %2958 = vst [vmem:[#allocation4 + $0x390] sm:$0xff] %v2942
    %2959 = vst [vmem:[#allocation4 + $0x398] sm:$0xff] %v2943
    %2960 = vst [vmem:[#allocation4 + $0x3a0] sm:$0xff] %v2944
    %2961 = vst [vmem:[#allocation4 + $0x3a8] sm:$0xff] %v2945
    %2962 = vst [vmem:[#allocation4 + $0x3b0] sm:$0xff] %v2946
    %2963 = vst [vmem:[#allocation4 + $0x3b8] sm:$0xff] %v2947
    %v2964 = vld [vmem:[#allocation2 + $0x8] sm:$0xff]
    %v2965 = vld [vmem:[#allocation2 + $0x10] sm:$0xff]
    %v2966 = vld [vmem:[#allocation2 + $0x18] sm:$0xff]
    %v2967 = vld [vmem:[#allocation2 + $0x20] sm:$0xff]
    %v2968 = vld [vmem:[#allocation2 + $0x28] sm:$0xff]
    %v2969 = vld [vmem:[#allocation2 + $0x30] sm:$0xff]
    %v2970 = vld [vmem:[#allocation2 + $0x38] sm:$0xff]
    %v2971 = vld [vmem:[#allocation2 + $0x40] sm:$0xff]
    %v2972 = vld [vmem:[#allocation2 + $0x48] sm:$0xff]
    %v2973 = vld [vmem:[#allocation8 + $0x20] sm:$0x88]
    %v2974 = vld [vmem:[#allocation8 + $0x28] sm:$0x88]
    %v2975 = vld [vmem:[#allocation8 + $0x30] sm:$0x88]
    %v2976 = vld [vmem:[#allocation8 + $0x38] sm:$0x88]
    %v2981 = vunpack.c.l.b16 %v2973
    %v2982 = vunpack.c.h.b16 %v2973
    %v2983 = vunpack.c.l.b16 %v2974
    %v2984 = vunpack.c.h.b16 %v2974
    %v2985 = vunpack.c.l.b16 %v2975
    %v2986 = vunpack.c.h.b16 %v2975
    %v2987 = vunpack.c.l.b16 %v2976
    %v2988 = vunpack.c.h.b16 %v2976
    %v2989 = vpack.c.b16 %v2981, %v2981
    %v2990 = vpack.c.b16 %v2982, %v2982
    %v2991 = vpack.c.b16 %v2983, %v2983
    %v2992 = vpack.c.b16 %v2984, %v2984
    %v2993 = vpack.c.b16 %v2985, %v2985
    %v2994 = vpack.c.b16 %v2986, %v2986
    %v2995 = vpack.c.b16 %v2987, %v2987
    %v2996 = vpack.c.b16 %v2988, %v2988
    %v2998 = vshrl.u32 %v2989, 16
    %v2999 = vpack.i.b16 %v2998, %v2998
    %v3001 = vlaneseq
    %v3002 = vshrl.u32 %v3001, 7
    %v3003 = vsub.s32 3, %v3002
    %v3004 = vrot.slane %v2999, %v3003
    %v3006 = vshrl.u32 %v2990, 16
    %v3007 = vpack.i.b16 %v3006, %v3006
    %v3009 = vlaneseq
    %v3010 = vshrl.u32 %v3009, 7
    %v3011 = vsub.s32 3, %v3010
    %v3012 = vrot.slane %v3007, %v3011
    %v3014 = vshrl.u32 %v2991, 16
    %v3015 = vpack.i.b16 %v3014, %v3014
    %v3017 = vlaneseq
    %v3018 = vshrl.u32 %v3017, 7
    %v3019 = vsub.s32 3, %v3018
    %v3020 = vrot.slane %v3015, %v3019
    %v3022 = vshrl.u32 %v2992, 16
    %v3023 = vpack.i.b16 %v3022, %v3022
    %v3025 = vlaneseq
    %v3026 = vshrl.u32 %v3025, 7
    %v3027 = vsub.s32 3, %v3026
    %v3028 = vrot.slane %v3023, %v3027
    %v3030 = vshrl.u32 %v2993, 16
    %v3031 = vpack.i.b16 %v3030, %v3030
    %v3033 = vlaneseq
    %v3034 = vshrl.u32 %v3033, 7
    %v3035 = vsub.s32 3, %v3034
    %v3036 = vrot.slane %v3031, %v3035
    %v3038 = vshrl.u32 %v2994, 16
    %v3039 = vpack.i.b16 %v3038, %v3038
    %v3041 = vlaneseq
    %v3042 = vshrl.u32 %v3041, 7
    %v3043 = vsub.s32 3, %v3042
    %v3044 = vrot.slane %v3039, %v3043
    %v3046 = vshrl.u32 %v2995, 16
    %v3047 = vpack.i.b16 %v3046, %v3046
    %v3049 = vlaneseq
    %v3050 = vshrl.u32 %v3049, 7
    %v3051 = vsub.s32 3, %v3050
    %v3052 = vrot.slane %v3047, %v3051
    %v3054 = vshrl.u32 %v2996, 16
    %v3055 = vpack.i.b16 %v3054, %v3054
    %v3057 = vlaneseq
    %v3058 = vshrl.u32 %v3057, 7
    %v3059 = vsub.s32 3, %v3058
    %v3060 = vrot.slane %v3055, %v3059
    %3069 = vrot.lane.b32.xlu0 %v3004, 7
    %v3070 = vpop.permute.xlu0 %3069
    %3071 = vrot.lane.b32.xlu0 %v3012, 7
    %v3072 = vpop.permute.xlu0 %3071
    %3073 = vrot.lane.b32.xlu0 %v3020, 7
    %v3074 = vpop.permute.xlu0 %3073
    %3075 = vrot.lane.b32.xlu0 %v3028, 7
    %v3076 = vpop.permute.xlu0 %3075
    %3077 = vrot.lane.b32.xlu0 %v3036, 7
    %v3078 = vpop.permute.xlu0 %3077
    %3079 = vrot.lane.b32.xlu0 %v3044, 7
    %v3080 = vpop.permute.xlu0 %3079
    %3081 = vrot.lane.b32.xlu0 %v3052, 7
    %v3082 = vpop.permute.xlu0 %3081
    %3083 = vrot.lane.b32.xlu0 %v3060, 7
    %v3084 = vpop.permute.xlu0 %3083
    %v3085 = vsel %vm2447, %v3070, %v3072
    %v3086 = vsel %vm2447, %v3072, %v3074
    %v3087 = vsel %vm2447, %v3074, %v3076
    %v3088 = vsel %vm2447, %v3076, %v3078
    %v3089 = vsel %vm2447, %v3078, %v3080
    %v3090 = vsel %vm2447, %v3080, %v3082
    %v3091 = vsel %vm2447, %v3082, %v3084
    %v3101 = vmul.bf16 %v2964, %v3070
    %v3102 = vmul.bf16 %v2965, %v3085
    %v3103 = vmul.bf16 %v2966, %v3086
    %v3104 = vmul.bf16 %v2967, %v3087
    %v3105 = vmul.bf16 %v2968, %v3088
    %v3106 = vmul.bf16 %v2969, %v3089
    %v3107 = vmul.bf16 %v2970, %v3090
    %v3108 = vmul.bf16 %v2971, %v3091
    %v3109 = vmul.bf16 %v2972, %v3084
    %3119 = vrot.lane.b32.xlu0 %v3101, 121
    %v3120 = vpop.permute.xlu0 %3119
    %3121 = vrot.lane.b32.xlu0 %v3102, 121
    %v3122 = vpop.permute.xlu0 %3121
    %3123 = vrot.lane.b32.xlu0 %v3103, 121
    %v3124 = vpop.permute.xlu0 %3123
    %3125 = vrot.lane.b32.xlu0 %v3104, 121
    %v3126 = vpop.permute.xlu0 %3125
    %3127 = vrot.lane.b32.xlu0 %v3105, 121
    %v3128 = vpop.permute.xlu0 %3127
    %3129 = vrot.lane.b32.xlu0 %v3106, 121
    %v3130 = vpop.permute.xlu0 %3129
    %3131 = vrot.lane.b32.xlu0 %v3107, 121
    %v3132 = vpop.permute.xlu0 %3131
    %3133 = vrot.lane.b32.xlu0 %v3108, 121
    %v3134 = vpop.permute.xlu0 %3133
    %3135 = vrot.lane.b32.xlu0 %v3109, 121
    %v3136 = vpop.permute.xlu0 %3135
    %v3137 = vsel %vm2394, %v3120, %v3122
    %v3138 = vsel %vm2394, %v3122, %v3124
    %v3139 = vsel %vm2394, %v3124, %v3126
    %v3140 = vsel %vm2394, %v3126, %v3128
    %v3141 = vsel %vm2394, %v3128, %v3130
    %v3142 = vsel %vm2394, %v3130, %v3132
    %v3143 = vsel %vm2394, %v3132, %v3134
    %v3144 = vsel %vm2394, %v3134, %v3136
    %3153 = vst [vmem:[#allocation4 + $0x3c0] sm:$0xff] %v3137
    %3154 = vst [vmem:[#allocation4 + $0x3c8] sm:$0xff] %v3138
    %3155 = vst [vmem:[#allocation4 + $0x3d0] sm:$0xff] %v3139
    %3156 = vst [vmem:[#allocation4 + $0x3d8] sm:$0xff] %v3140
    %3157 = vst [vmem:[#allocation4 + $0x3e0] sm:$0xff] %v3141
    %3158 = vst [vmem:[#allocation4 + $0x3e8] sm:$0xff] %v3142
    %3159 = vst [vmem:[#allocation4 + $0x3f0] sm:$0xff] %v3143
    %3160 = vst [vmem:[#allocation4 + $0x3f8] sm:$0xff] %v3144
    %v3161 = vld [vmem:[#allocation2 + $0x8] sm:$0xff]
    %v3162 = vld [vmem:[#allocation2 + $0x10] sm:$0xff]
    %v3163 = vld [vmem:[#allocation2 + $0x18] sm:$0xff]
    %v3164 = vld [vmem:[#allocation2 + $0x20] sm:$0xff]
    %v3165 = vld [vmem:[#allocation2 + $0x28] sm:$0xff]
    %v3166 = vld [vmem:[#allocation2 + $0x30] sm:$0xff]
    %v3167 = vld [vmem:[#allocation2 + $0x38] sm:$0xff]
    %v3168 = vld [vmem:[#allocation2 + $0x40] sm:$0xff]
    %v3169 = vld [vmem:[#allocation2 + $0x48] sm:$0xff]
    %v3170 = vld [vmem:[#allocation8 + $0x40] sm:$0x11]
    %v3171 = vld [vmem:[#allocation8 + $0x48] sm:$0x11]
    %v3172 = vld [vmem:[#allocation8 + $0x50] sm:$0x11]
    %v3173 = vld [vmem:[#allocation8 + $0x58] sm:$0x11]
    %v3178 = vunpack.c.l.b16 %v3170
    %v3179 = vunpack.c.h.b16 %v3170
    %v3180 = vunpack.c.l.b16 %v3171
    %v3181 = vunpack.c.h.b16 %v3171
    %v3182 = vunpack.c.l.b16 %v3172
    %v3183 = vunpack.c.h.b16 %v3172
    %v3184 = vunpack.c.l.b16 %v3173
    %v3185 = vunpack.c.h.b16 %v3173
    %v3186 = vpack.c.b16 %v3178, %v3178
    %v3187 = vpack.c.b16 %v3179, %v3179
    %v3188 = vpack.c.b16 %v3180, %v3180
    %v3189 = vpack.c.b16 %v3181, %v3181
    %v3190 = vpack.c.b16 %v3182, %v3182
    %v3191 = vpack.c.b16 %v3183, %v3183
    %v3192 = vpack.c.b16 %v3184, %v3184
    %v3193 = vpack.c.b16 %v3185, %v3185
    %v3195 = vpack.i.b16 %v3186, %v3186
    %v3197 = vlaneseq
    %v3198 = vshrl.u32 %v3197, 7
    %v3199 = vsub.s32 0, %v3198
    %v3200 = vrot.slane %v3195, %v3199
    %v3202 = vpack.i.b16 %v3187, %v3187
    %v3204 = vlaneseq
    %v3205 = vshrl.u32 %v3204, 7
    %v3206 = vsub.s32 0, %v3205
    %v3207 = vrot.slane %v3202, %v3206
    %v3209 = vpack.i.b16 %v3188, %v3188
    %v3211 = vlaneseq
    %v3212 = vshrl.u32 %v3211, 7
    %v3213 = vsub.s32 0, %v3212
    %v3214 = vrot.slane %v3209, %v3213
    %v3216 = vpack.i.b16 %v3189, %v3189
    %v3218 = vlaneseq
    %v3219 = vshrl.u32 %v3218, 7
    %v3220 = vsub.s32 0, %v3219
    %v3221 = vrot.slane %v3216, %v3220
    %v3223 = vpack.i.b16 %v3190, %v3190
    %v3225 = vlaneseq
    %v3226 = vshrl.u32 %v3225, 7
    %v3227 = vsub.s32 0, %v3226
    %v3228 = vrot.slane %v3223, %v3227
    %v3230 = vpack.i.b16 %v3191, %v3191
    %v3232 = vlaneseq
    %v3233 = vshrl.u32 %v3232, 7
    %v3234 = vsub.s32 0, %v3233
    %v3235 = vrot.slane %v3230, %v3234
    %v3237 = vpack.i.b16 %v3192, %v3192
    %v3239 = vlaneseq
    %v3240 = vshrl.u32 %v3239, 7
    %v3241 = vsub.s32 0, %v3240
    %v3242 = vrot.slane %v3237, %v3241
    %v3244 = vpack.i.b16 %v3193, %v3193
    %v3246 = vlaneseq
    %v3247 = vshrl.u32 %v3246, 7
    %v3248 = vsub.s32 0, %v3247
    %v3249 = vrot.slane %v3244, %v3248
    %3258 = vrot.lane.b32.xlu0 %v3200, 8
    %v3259 = vpop.permute.xlu0 %3258
    %3260 = vrot.lane.b32.xlu0 %v3207, 8
    %v3261 = vpop.permute.xlu0 %3260
    %3262 = vrot.lane.b32.xlu0 %v3214, 8
    %v3263 = vpop.permute.xlu0 %3262
    %3264 = vrot.lane.b32.xlu0 %v3221, 8
    %v3265 = vpop.permute.xlu0 %3264
    %3266 = vrot.lane.b32.xlu0 %v3228, 8
    %v3267 = vpop.permute.xlu0 %3266
    %3268 = vrot.lane.b32.xlu0 %v3235, 8
    %v3269 = vpop.permute.xlu0 %3268
    %3270 = vrot.lane.b32.xlu0 %v3242, 8
    %v3271 = vpop.permute.xlu0 %3270
    %3272 = vrot.lane.b32.xlu0 %v3249, 8
    %v3273 = vpop.permute.xlu0 %3272
    %v3274 = vsel %vm2248, %v3259, %v3261
    %v3275 = vsel %vm2248, %v3261, %v3263
    %v3276 = vsel %vm2248, %v3263, %v3265
    %v3277 = vsel %vm2248, %v3265, %v3267
    %v3278 = vsel %vm2248, %v3267, %v3269
    %v3279 = vsel %vm2248, %v3269, %v3271
    %v3280 = vsel %vm2248, %v3271, %v3273
    %v3290 = vmul.bf16 %v3161, %v3259
    %v3291 = vmul.bf16 %v3162, %v3274
    %v3292 = vmul.bf16 %v3163, %v3275
    %v3293 = vmul.bf16 %v3164, %v3276
    %v3294 = vmul.bf16 %v3165, %v3277
    %v3295 = vmul.bf16 %v3166, %v3278
    %v3296 = vmul.bf16 %v3167, %v3279
    %v3297 = vmul.bf16 %v3168, %v3280
    %v3298 = vmul.bf16 %v3169, %v3273
    %3308 = vrot.lane.b32.xlu0 %v3290, 120
    %v3309 = vpop.permute.xlu0 %3308
    %3310 = vrot.lane.b32.xlu0 %v3291, 120
    %v3311 = vpop.permute.xlu0 %3310
    %3312 = vrot.lane.b32.xlu0 %v3292, 120
    %v3313 = vpop.permute.xlu0 %3312
    %3314 = vrot.lane.b32.xlu0 %v3293, 120
    %v3315 = vpop.permute.xlu0 %3314
    %3316 = vrot.lane.b32.xlu0 %v3294, 120
    %v3317 = vpop.permute.xlu0 %3316
    %3318 = vrot.lane.b32.xlu0 %v3295, 120
    %v3319 = vpop.permute.xlu0 %3318
    %3320 = vrot.lane.b32.xlu0 %v3296, 120
    %v3321 = vpop.permute.xlu0 %3320
    %3322 = vrot.lane.b32.xlu0 %v3297, 120
    %v3323 = vpop.permute.xlu0 %3322
    %3324 = vrot.lane.b32.xlu0 %v3298, 120
    %v3325 = vpop.permute.xlu0 %3324
    %v3326 = vsel %vm2195, %v3309, %v3311
    %v3327 = vsel %vm2195, %v3311, %v3313
    %v3328 = vsel %vm2195, %v3313, %v3315
    %v3329 = vsel %vm2195, %v3315, %v3317
    %v3330 = vsel %vm2195, %v3317, %v3319
    %v3331 = vsel %vm2195, %v3319, %v3321
    %v3332 = vsel %vm2195, %v3321, %v3323
    %v3333 = vsel %vm2195, %v3323, %v3325
    %3342 = vst [vmem:[#allocation4 + $0x400] sm:$0xff] %v3326
    %3343 = vst [vmem:[#allocation4 + $0x408] sm:$0xff] %v3327
    %3344 = vst [vmem:[#allocation4 + $0x410] sm:$0xff] %v3328
    %3345 = vst [vmem:[#allocation4 + $0x418] sm:$0xff] %v3329
    %3346 = vst [vmem:[#allocation4 + $0x420] sm:$0xff] %v3330
    %3347 = vst [vmem:[#allocation4 + $0x428] sm:$0xff] %v3331
    %3348 = vst [vmem:[#allocation4 + $0x430] sm:$0xff] %v3332
    %3349 = vst [vmem:[#allocation4 + $0x438] sm:$0xff] %v3333
    %v3350 = vld [vmem:[#allocation2 + $0x8] sm:$0xff]
    %v3351 = vld [vmem:[#allocation2 + $0x10] sm:$0xff]
    %v3352 = vld [vmem:[#allocation2 + $0x18] sm:$0xff]
    %v3353 = vld [vmem:[#allocation2 + $0x20] sm:$0xff]
    %v3354 = vld [vmem:[#allocation2 + $0x28] sm:$0xff]
    %v3355 = vld [vmem:[#allocation2 + $0x30] sm:$0xff]
    %v3356 = vld [vmem:[#allocation2 + $0x38] sm:$0xff]
    %v3357 = vld [vmem:[#allocation2 + $0x40] sm:$0xff]
    %v3358 = vld [vmem:[#allocation2 + $0x48] sm:$0xff]
    %v3359 = vld [vmem:[#allocation8 + $0x40] sm:$0x11]
    %v3360 = vld [vmem:[#allocation8 + $0x48] sm:$0x11]
    %v3361 = vld [vmem:[#allocation8 + $0x50] sm:$0x11]
    %v3362 = vld [vmem:[#allocation8 + $0x58] sm:$0x11]
    %v3367 = vunpack.c.l.b16 %v3359
    %v3368 = vunpack.c.h.b16 %v3359
    %v3369 = vunpack.c.l.b16 %v3360
    %v3370 = vunpack.c.h.b16 %v3360
    %v3371 = vunpack.c.l.b16 %v3361
    %v3372 = vunpack.c.h.b16 %v3361
    %v3373 = vunpack.c.l.b16 %v3362
    %v3374 = vunpack.c.h.b16 %v3362
    %v3375 = vpack.c.b16 %v3367, %v3367
    %v3376 = vpack.c.b16 %v3368, %v3368
    %v3377 = vpack.c.b16 %v3369, %v3369
    %v3378 = vpack.c.b16 %v3370, %v3370
    %v3379 = vpack.c.b16 %v3371, %v3371
    %v3380 = vpack.c.b16 %v3372, %v3372
    %v3381 = vpack.c.b16 %v3373, %v3373
    %v3382 = vpack.c.b16 %v3374, %v3374
    %v3384 = vshrl.u32 %v3375, 16
    %v3385 = vpack.i.b16 %v3384, %v3384
    %v3387 = vlaneseq
    %v3388 = vshrl.u32 %v3387, 7
    %v3389 = vsub.s32 0, %v3388
    %v3390 = vrot.slane %v3385, %v3389
    %v3392 = vshrl.u32 %v3376, 16
    %v3393 = vpack.i.b16 %v3392, %v3392
    %v3395 = vlaneseq
    %v3396 = vshrl.u32 %v3395, 7
    %v3397 = vsub.s32 0, %v3396
    %v3398 = vrot.slane %v3393, %v3397
    %v3400 = vshrl.u32 %v3377, 16
    %v3401 = vpack.i.b16 %v3400, %v3400
    %v3403 = vlaneseq
    %v3404 = vshrl.u32 %v3403, 7
    %v3405 = vsub.s32 0, %v3404
    %v3406 = vrot.slane %v3401, %v3405
    %v3408 = vshrl.u32 %v3378, 16
    %v3409 = vpack.i.b16 %v3408, %v3408
    %v3411 = vlaneseq
    %v3412 = vshrl.u32 %v3411, 7
    %v3413 = vsub.s32 0, %v3412
    %v3414 = vrot.slane %v3409, %v3413
    %v3416 = vshrl.u32 %v3379, 16
    %v3417 = vpack.i.b16 %v3416, %v3416
    %v3419 = vlaneseq
    %v3420 = vshrl.u32 %v3419, 7
    %v3421 = vsub.s32 0, %v3420
    %v3422 = vrot.slane %v3417, %v3421
    %v3424 = vshrl.u32 %v3380, 16
    %v3425 = vpack.i.b16 %v3424, %v3424
    %v3427 = vlaneseq
    %v3428 = vshrl.u32 %v3427, 7
    %v3429 = vsub.s32 0, %v3428
    %v3430 = vrot.slane %v3425, %v3429
    %v3432 = vshrl.u32 %v3381, 16
    %v3433 = vpack.i.b16 %v3432, %v3432
    %v3435 = vlaneseq
    %v3436 = vshrl.u32 %v3435, 7
    %v3437 = vsub.s32 0, %v3436
    %v3438 = vrot.slane %v3433, %v3437
    %v3440 = vshrl.u32 %v3382, 16
    %v3441 = vpack.i.b16 %v3440, %v3440
    %v3443 = vlaneseq
    %v3444 = vshrl.u32 %v3443, 7
    %v3445 = vsub.s32 0, %v3444
    %v3446 = vrot.slane %v3441, %v3445
    %3455 = vrot.lane.b32.xlu0 %v3390, 9
    %v3456 = vpop.permute.xlu0 %3455
    %3457 = vrot.lane.b32.xlu0 %v3398, 9
    %v3458 = vpop.permute.xlu0 %3457
    %3459 = vrot.lane.b32.xlu0 %v3406, 9
    %v3460 = vpop.permute.xlu0 %3459
    %3461 = vrot.lane.b32.xlu0 %v3414, 9
    %v3462 = vpop.permute.xlu0 %3461
    %3463 = vrot.lane.b32.xlu0 %v3422, 9
    %v3464 = vpop.permute.xlu0 %3463
    %3465 = vrot.lane.b32.xlu0 %v3430, 9
    %v3466 = vpop.permute.xlu0 %3465
    %3467 = vrot.lane.b32.xlu0 %v3438, 9
    %v3468 = vpop.permute.xlu0 %3467
    %3469 = vrot.lane.b32.xlu0 %v3446, 9
    %v3470 = vpop.permute.xlu0 %3469
    %v3471 = vsel %vm2057, %v3456, %v3458
    %v3472 = vsel %vm2057, %v3458, %v3460
    %v3473 = vsel %vm2057, %v3460, %v3462
    %v3474 = vsel %vm2057, %v3462, %v3464
    %v3475 = vsel %vm2057, %v3464, %v3466
    %v3476 = vsel %vm2057, %v3466, %v3468
    %v3477 = vsel %vm2057, %v3468, %v3470
    %v3487 = vmul.bf16 %v3350, %v3456
    %v3488 = vmul.bf16 %v3351, %v3471
    %v3489 = vmul.bf16 %v3352, %v3472
    %v3490 = vmul.bf16 %v3353, %v3473
    %v3491 = vmul.bf16 %v3354, %v3474
    %v3492 = vmul.bf16 %v3355, %v3475
    %v3493 = vmul.bf16 %v3356, %v3476
    %v3494 = vmul.bf16 %v3357, %v3477
    %v3495 = vmul.bf16 %v3358, %v3470
    %3505 = vrot.lane.b32.xlu0 %v3487, 119
    %v3506 = vpop.permute.xlu0 %3505
    %3507 = vrot.lane.b32.xlu0 %v3488, 119
    %v3508 = vpop.permute.xlu0 %3507
    %3509 = vrot.lane.b32.xlu0 %v3489, 119
    %v3510 = vpop.permute.xlu0 %3509
    %3511 = vrot.lane.b32.xlu0 %v3490, 119
    %v3512 = vpop.permute.xlu0 %3511
    %3513 = vrot.lane.b32.xlu0 %v3491, 119
    %v3514 = vpop.permute.xlu0 %3513
    %3515 = vrot.lane.b32.xlu0 %v3492, 119
    %v3516 = vpop.permute.xlu0 %3515
    %3517 = vrot.lane.b32.xlu0 %v3493, 119
    %v3518 = vpop.permute.xlu0 %3517
    %3519 = vrot.lane.b32.xlu0 %v3494, 119
    %v3520 = vpop.permute.xlu0 %3519
    %3521 = vrot.lane.b32.xlu0 %v3495, 119
    %v3522 = vpop.permute.xlu0 %3521
    %v3523 = vsel %vm2004, %v3506, %v3508
    %v3524 = vsel %vm2004, %v3508, %v3510
    %v3525 = vsel %vm2004, %v3510, %v3512
    %v3526 = vsel %vm2004, %v3512, %v3514
    %v3527 = vsel %vm2004, %v3514, %v3516
    %v3528 = vsel %vm2004, %v3516, %v3518
    %v3529 = vsel %vm2004, %v3518, %v3520
    %v3530 = vsel %vm2004, %v3520, %v3522
    %3539 = vst [vmem:[#allocation4 + $0x440] sm:$0xff] %v3523
    %3540 = vst [vmem:[#allocation4 + $0x448] sm:$0xff] %v3524
    %3541 = vst [vmem:[#allocation4 + $0x450] sm:$0xff] %v3525
    %3542 = vst [vmem:[#allocation4 + $0x458] sm:$0xff] %v3526
    %3543 = vst [vmem:[#allocation4 + $0x460] sm:$0xff] %v3527
    %3544 = vst [vmem:[#allocation4 + $0x468] sm:$0xff] %v3528
    %3545 = vst [vmem:[#allocation4 + $0x470] sm:$0xff] %v3529
    %3546 = vst [vmem:[#allocation4 + $0x478] sm:$0xff] %v3530
    %v3547 = vld [vmem:[#allocation2 + $0x8] sm:$0xff]
    %v3548 = vld [vmem:[#allocation2 + $0x10] sm:$0xff]
    %v3549 = vld [vmem:[#allocation2 + $0x18] sm:$0xff]
    %v3550 = vld [vmem:[#allocation2 + $0x20] sm:$0xff]
    %v3551 = vld [vmem:[#allocation2 + $0x28] sm:$0xff]
    %v3552 = vld [vmem:[#allocation2 + $0x30] sm:$0xff]
    %v3553 = vld [vmem:[#allocation2 + $0x38] sm:$0xff]
    %v3554 = vld [vmem:[#allocation2 + $0x40] sm:$0xff]
    %v3555 = vld [vmem:[#allocation2 + $0x48] sm:$0xff]
    %v3556 = vld [vmem:[#allocation8 + $0x40] sm:$0x22]
    %v3557 = vld [vmem:[#allocation8 + $0x48] sm:$0x22]
    %v3558 = vld [vmem:[#allocation8 + $0x50] sm:$0x22]
    %v3559 = vld [vmem:[#allocation8 + $0x58] sm:$0x22]
    %v3564 = vunpack.c.l.b16 %v3556
    %v3565 = vunpack.c.h.b16 %v3556
    %v3566 = vunpack.c.l.b16 %v3557
    %v3567 = vunpack.c.h.b16 %v3557
    %v3568 = vunpack.c.l.b16 %v3558
    %v3569 = vunpack.c.h.b16 %v3558
    %v3570 = vunpack.c.l.b16 %v3559
    %v3571 = vunpack.c.h.b16 %v3559
    %v3572 = vpack.c.b16 %v3564, %v3564
    %v3573 = vpack.c.b16 %v3565, %v3565
    %v3574 = vpack.c.b16 %v3566, %v3566
    %v3575 = vpack.c.b16 %v3567, %v3567
    %v3576 = vpack.c.b16 %v3568, %v3568
    %v3577 = vpack.c.b16 %v3569, %v3569
    %v3578 = vpack.c.b16 %v3570, %v3570
    %v3579 = vpack.c.b16 %v3571, %v3571
    %v3581 = vpack.i.b16 %v3572, %v3572
    %v3583 = vlaneseq
    %v3584 = vshrl.u32 %v3583, 7
    %v3585 = vsub.s32 1, %v3584
    %v3586 = vrot.slane %v3581, %v3585
    %v3588 = vpack.i.b16 %v3573, %v3573
    %v3590 = vlaneseq
    %v3591 = vshrl.u32 %v3590, 7
    %v3592 = vsub.s32 1, %v3591
    %v3593 = vrot.slane %v3588, %v3592
    %v3595 = vpack.i.b16 %v3574, %v3574
    %v3597 = vlaneseq
    %v3598 = vshrl.u32 %v3597, 7
    %v3599 = vsub.s32 1, %v3598
    %v3600 = vrot.slane %v3595, %v3599
    %v3602 = vpack.i.b16 %v3575, %v3575
    %v3604 = vlaneseq
    %v3605 = vshrl.u32 %v3604, 7
    %v3606 = vsub.s32 1, %v3605
    %v3607 = vrot.slane %v3602, %v3606
    %v3609 = vpack.i.b16 %v3576, %v3576
    %v3611 = vlaneseq
    %v3612 = vshrl.u32 %v3611, 7
    %v3613 = vsub.s32 1, %v3612
    %v3614 = vrot.slane %v3609, %v3613
    %v3616 = vpack.i.b16 %v3577, %v3577
    %v3618 = vlaneseq
    %v3619 = vshrl.u32 %v3618, 7
    %v3620 = vsub.s32 1, %v3619
    %v3621 = vrot.slane %v3616, %v3620
    %v3623 = vpack.i.b16 %v3578, %v3578
    %v3625 = vlaneseq
    %v3626 = vshrl.u32 %v3625, 7
    %v3627 = vsub.s32 1, %v3626
    %v3628 = vrot.slane %v3623, %v3627
    %v3630 = vpack.i.b16 %v3579, %v3579
    %v3632 = vlaneseq
    %v3633 = vshrl.u32 %v3632, 7
    %v3634 = vsub.s32 1, %v3633
    %v3635 = vrot.slane %v3630, %v3634
    %3644 = vrot.lane.b32.xlu0 %v3586, 55
    %v3645 = vpop.permute.xlu0 %3644
    %3646 = vrot.lane.b32.xlu0 %v3593, 55
    %v3647 = vpop.permute.xlu0 %3646
    %3648 = vrot.lane.b32.xlu0 %v3600, 55
    %v3649 = vpop.permute.xlu0 %3648
    %3650 = vrot.lane.b32.xlu0 %v3607, 55
    %v3651 = vpop.permute.xlu0 %3650
    %3652 = vrot.lane.b32.xlu0 %v3614, 55
    %v3653 = vpop.permute.xlu0 %3652
    %3654 = vrot.lane.b32.xlu0 %v3621, 55
    %v3655 = vpop.permute.xlu0 %3654
    %3656 = vrot.lane.b32.xlu0 %v3628, 55
    %v3657 = vpop.permute.xlu0 %3656
    %3658 = vrot.lane.b32.xlu0 %v3635, 55
    %v3659 = vpop.permute.xlu0 %3658
    %v3660 = vsel %vm254, %v3645, %v3647
    %v3661 = vsel %vm254, %v3647, %v3649
    %v3662 = vsel %vm254, %v3649, %v3651
    %v3663 = vsel %vm254, %v3651, %v3653
    %v3664 = vsel %vm254, %v3653, %v3655
    %v3665 = vsel %vm254, %v3655, %v3657
    %v3666 = vsel %vm254, %v3657, %v3659
    %v3676 = vmul.bf16 %v3547, %v3645
    %v3677 = vmul.bf16 %v3548, %v3660
    %v3678 = vmul.bf16 %v3549, %v3661
    %v3679 = vmul.bf16 %v3550, %v3662
    %v3680 = vmul.bf16 %v3551, %v3663
    %v3681 = vmul.bf16 %v3552, %v3664
    %v3682 = vmul.bf16 %v3553, %v3665
    %v3683 = vmul.bf16 %v3554, %v3666
    %v3684 = vmul.bf16 %v3555, %v3659
    %3694 = vrot.lane.b32.xlu0 %v3676, 73
    %v3695 = vpop.permute.xlu0 %3694
    %3696 = vrot.lane.b32.xlu0 %v3677, 73
    %v3697 = vpop.permute.xlu0 %3696
    %3698 = vrot.lane.b32.xlu0 %v3678, 73
    %v3699 = vpop.permute.xlu0 %3698
    %3700 = vrot.lane.b32.xlu0 %v3679, 73
    %v3701 = vpop.permute.xlu0 %3700
    %3702 = vrot.lane.b32.xlu0 %v3680, 73
    %v3703 = vpop.permute.xlu0 %3702
    %3704 = vrot.lane.b32.xlu0 %v3681, 73
    %v3705 = vpop.permute.xlu0 %3704
    %3706 = vrot.lane.b32.xlu0 %v3682, 73
    %v3707 = vpop.permute.xlu0 %3706
    %3708 = vrot.lane.b32.xlu0 %v3683, 73
    %v3709 = vpop.permute.xlu0 %3708
    %3710 = vrot.lane.b32.xlu0 %v3684, 73
    %v3711 = vpop.permute.xlu0 %3710
    %v3712 = vsel %vm307, %v3695, %v3697
    %v3713 = vsel %vm307, %v3697, %v3699
    %v3714 = vsel %vm307, %v3699, %v3701
    %v3715 = vsel %vm307, %v3701, %v3703
    %v3716 = vsel %vm307, %v3703, %v3705
    %v3717 = vsel %vm307, %v3705, %v3707
    %v3718 = vsel %vm307, %v3707, %v3709
    %v3719 = vsel %vm307, %v3709, %v3711
    %3728 = vst [vmem:[#allocation4 + $0x480] sm:$0xff] %v3712
    %3729 = vst [vmem:[#allocation4 + $0x488] sm:$0xff] %v3713
    %3730 = vst [vmem:[#allocation4 + $0x490] sm:$0xff] %v3714
    %3731 = vst [vmem:[#allocation4 + $0x498] sm:$0xff] %v3715
    %3732 = vst [vmem:[#allocation4 + $0x4a0] sm:$0xff] %v3716
    %3733 = vst [vmem:[#allocation4 + $0x4a8] sm:$0xff] %v3717
    %3734 = vst [vmem:[#allocation4 + $0x4b0] sm:$0xff] %v3718
    %3735 = vst [vmem:[#allocation4 + $0x4b8] sm:$0xff] %v3719
    %v3736 = vld [vmem:[#allocation2 + $0x8] sm:$0xff]
    %v3737 = vld [vmem:[#allocation2 + $0x10] sm:$0xff]
    %v3738 = vld [vmem:[#allocation2 + $0x18] sm:$0xff]
    %v3739 = vld [vmem:[#allocation2 + $0x20] sm:$0xff]
    %v3740 = vld [vmem:[#allocation2 + $0x28] sm:$0xff]
    %v3741 = vld [vmem:[#allocation2 + $0x30] sm:$0xff]
    %v3742 = vld [vmem:[#allocation2 + $0x38] sm:$0xff]
    %v3743 = vld [vmem:[#allocation2 + $0x40] sm:$0xff]
    %v3744 = vld [vmem:[#allocation2 + $0x48] sm:$0xff]
    %v3745 = vld [vmem:[#allocation8 + $0x40] sm:$0x22]
    %v3746 = vld [vmem:[#allocation8 + $0x48] sm:$0x22]
    %v3747 = vld [vmem:[#allocation8 + $0x50] sm:$0x22]
    %v3748 = vld [vmem:[#allocation8 + $0x58] sm:$0x22]
    %v3753 = vunpack.c.l.b16 %v3745
    %v3754 = vunpack.c.h.b16 %v3745
    %v3755 = vunpack.c.l.b16 %v3746
    %v3756 = vunpack.c.h.b16 %v3746
    %v3757 = vunpack.c.l.b16 %v3747
    %v3758 = vunpack.c.h.b16 %v3747
    %v3759 = vunpack.c.l.b16 %v3748
    %v3760 = vunpack.c.h.b16 %v3748
    %v3761 = vpack.c.b16 %v3753, %v3753
    %v3762 = vpack.c.b16 %v3754, %v3754
    %v3763 = vpack.c.b16 %v3755, %v3755
    %v3764 = vpack.c.b16 %v3756, %v3756
    %v3765 = vpack.c.b16 %v3757, %v3757
    %v3766 = vpack.c.b16 %v3758, %v3758
    %v3767 = vpack.c.b16 %v3759, %v3759
    %v3768 = vpack.c.b16 %v3760, %v3760
    %v3770 = vshrl.u32 %v3761, 16
    %v3771 = vpack.i.b16 %v3770, %v3770
    %v3773 = vlaneseq
    %v3774 = vshrl.u32 %v3773, 7
    %v3775 = vsub.s32 1, %v3774
    %v3776 = vrot.slane %v3771, %v3775
    %v3778 = vshrl.u32 %v3762, 16
    %v3779 = vpack.i.b16 %v3778, %v3778
    %v3781 = vlaneseq
    %v3782 = vshrl.u32 %v3781, 7
    %v3783 = vsub.s32 1, %v3782
    %v3784 = vrot.slane %v3779, %v3783
    %v3786 = vshrl.u32 %v3763, 16
    %v3787 = vpack.i.b16 %v3786, %v3786
    %v3789 = vlaneseq
    %v3790 = vshrl.u32 %v3789, 7
    %v3791 = vsub.s32 1, %v3790
    %v3792 = vrot.slane %v3787, %v3791
    %v3794 = vshrl.u32 %v3764, 16
    %v3795 = vpack.i.b16 %v3794, %v3794
    %v3797 = vlaneseq
    %v3798 = vshrl.u32 %v3797, 7
    %v3799 = vsub.s32 1, %v3798
    %v3800 = vrot.slane %v3795, %v3799
    %v3802 = vshrl.u32 %v3765, 16
    %v3803 = vpack.i.b16 %v3802, %v3802
    %v3805 = vlaneseq
    %v3806 = vshrl.u32 %v3805, 7
    %v3807 = vsub.s32 1, %v3806
    %v3808 = vrot.slane %v3803, %v3807
    %v3810 = vshrl.u32 %v3766, 16
    %v3811 = vpack.i.b16 %v3810, %v3810
    %v3813 = vlaneseq
    %v3814 = vshrl.u32 %v3813, 7
    %v3815 = vsub.s32 1, %v3814
    %v3816 = vrot.slane %v3811, %v3815
    %v3818 = vshrl.u32 %v3767, 16
    %v3819 = vpack.i.b16 %v3818, %v3818
    %v3821 = vlaneseq
    %v3822 = vshrl.u32 %v3821, 7
    %v3823 = vsub.s32 1, %v3822
    %v3824 = vrot.slane %v3819, %v3823
    %v3826 = vshrl.u32 %v3768, 16
    %v3827 = vpack.i.b16 %v3826, %v3826
    %v3829 = vlaneseq
    %v3830 = vshrl.u32 %v3829, 7
    %v3831 = vsub.s32 1, %v3830
    %v3832 = vrot.slane %v3827, %v3831
    %3841 = vrot.lane.b32.xlu0 %v3776, 56
    %v3842 = vpop.permute.xlu0 %3841
    %3843 = vrot.lane.b32.xlu0 %v3784, 56
    %v3844 = vpop.permute.xlu0 %3843
    %3845 = vrot.lane.b32.xlu0 %v3792, 56
    %v3846 = vpop.permute.xlu0 %3845
    %3847 = vrot.lane.b32.xlu0 %v3800, 56
    %v3848 = vpop.permute.xlu0 %3847
    %3849 = vrot.lane.b32.xlu0 %v3808, 56
    %v3850 = vpop.permute.xlu0 %3849
    %3851 = vrot.lane.b32.xlu0 %v3816, 56
    %v3852 = vpop.permute.xlu0 %3851
    %3853 = vrot.lane.b32.xlu0 %v3824, 56
    %v3854 = vpop.permute.xlu0 %3853
    %3855 = vrot.lane.b32.xlu0 %v3832, 56
    %v3856 = vpop.permute.xlu0 %3855
    %v3857 = vsel %vm453, %v3842, %v3844
    %v3858 = vsel %vm453, %v3844, %v3846
    %v3859 = vsel %vm453, %v3846, %v3848
    %v3860 = vsel %vm453, %v3848, %v3850
    %v3861 = vsel %vm453, %v3850, %v3852
    %v3862 = vsel %vm453, %v3852, %v3854
    %v3863 = vsel %vm453, %v3854, %v3856
    %v3873 = vmul.bf16 %v3736, %v3842
    %v3874 = vmul.bf16 %v3737, %v3857
    %v3875 = vmul.bf16 %v3738, %v3858
    %v3876 = vmul.bf16 %v3739, %v3859
    %v3877 = vmul.bf16 %v3740, %v3860
    %v3878 = vmul.bf16 %v3741, %v3861
    %v3879 = vmul.bf16 %v3742, %v3862
    %v3880 = vmul.bf16 %v3743, %v3863
    %v3881 = vmul.bf16 %v3744, %v3856
    %3891 = vrot.lane.b32.xlu0 %v3873, 72
    %v3892 = vpop.permute.xlu0 %3891
    %3893 = vrot.lane.b32.xlu0 %v3874, 72
    %v3894 = vpop.permute.xlu0 %3893
    %3895 = vrot.lane.b32.xlu0 %v3875, 72
    %v3896 = vpop.permute.xlu0 %3895
    %3897 = vrot.lane.b32.xlu0 %v3876, 72
    %v3898 = vpop.permute.xlu0 %3897
    %3899 = vrot.lane.b32.xlu0 %v3877, 72
    %v3900 = vpop.permute.xlu0 %3899
    %3901 = vrot.lane.b32.xlu0 %v3878, 72
    %v3902 = vpop.permute.xlu0 %3901
    %3903 = vrot.lane.b32.xlu0 %v3879, 72
    %v3904 = vpop.permute.xlu0 %3903
    %3905 = vrot.lane.b32.xlu0 %v3880, 72
    %v3906 = vpop.permute.xlu0 %3905
    %3907 = vrot.lane.b32.xlu0 %v3881, 72
    %v3908 = vpop.permute.xlu0 %3907
    %v3909 = vsel %vm506, %v3892, %v3894
    %v3910 = vsel %vm506, %v3894, %v3896
    %v3911 = vsel %vm506, %v3896, %v3898
    %v3912 = vsel %vm506, %v3898, %v3900
    %v3913 = vsel %vm506, %v3900, %v3902
    %v3914 = vsel %vm506, %v3902, %v3904
    %v3915 = vsel %vm506, %v3904, %v3906
    %v3916 = vsel %vm506, %v3906, %v3908
    %3925 = vst [vmem:[#allocation4 + $0x4c0] sm:$0xff] %v3909
    %3926 = vst [vmem:[#allocation4 + $0x4c8] sm:$0xff] %v3910
    %3927 = vst [vmem:[#allocation4 + $0x4d0] sm:$0xff] %v3911
    %3928 = vst [vmem:[#allocation4 + $0x4d8] sm:$0xff] %v3912
    %3929 = vst [vmem:[#allocation4 + $0x4e0] sm:$0xff] %v3913
    %3930 = vst [vmem:[#allocation4 + $0x4e8] sm:$0xff] %v3914
    %3931 = vst [vmem:[#allocation4 + $0x4f0] sm:$0xff] %v3915
    %3932 = vst [vmem:[#allocation4 + $0x4f8] sm:$0xff] %v3916
    %v3933 = vld [vmem:[#allocation2 + $0x8] sm:$0xff]
    %v3934 = vld [vmem:[#allocation2 + $0x10] sm:$0xff]
    %v3935 = vld [vmem:[#allocation2 + $0x18] sm:$0xff]
    %v3936 = vld [vmem:[#allocation2 + $0x20] sm:$0xff]
    %v3937 = vld [vmem:[#allocation2 + $0x28] sm:$0xff]
    %v3938 = vld [vmem:[#allocation2 + $0x30] sm:$0xff]
    %v3939 = vld [vmem:[#allocation2 + $0x38] sm:$0xff]
    %v3940 = vld [vmem:[#allocation2 + $0x40] sm:$0xff]
    %v3941 = vld [vmem:[#allocation2 + $0x48] sm:$0xff]
    %v3942 = vld [vmem:[#allocation8 + $0x40] sm:$0x44]
    %v3943 = vld [vmem:[#allocation8 + $0x48] sm:$0x44]
    %v3944 = vld [vmem:[#allocation8 + $0x50] sm:$0x44]
    %v3945 = vld [vmem:[#allocation8 + $0x58] sm:$0x44]
    %v3950 = vunpack.c.l.b16 %v3942
    %v3951 = vunpack.c.h.b16 %v3942
    %v3952 = vunpack.c.l.b16 %v3943
    %v3953 = vunpack.c.h.b16 %v3943
    %v3954 = vunpack.c.l.b16 %v3944
    %v3955 = vunpack.c.h.b16 %v3944
    %v3956 = vunpack.c.l.b16 %v3945
    %v3957 = vunpack.c.h.b16 %v3945
    %v3958 = vpack.c.b16 %v3950, %v3950
    %v3959 = vpack.c.b16 %v3951, %v3951
    %v3960 = vpack.c.b16 %v3952, %v3952
    %v3961 = vpack.c.b16 %v3953, %v3953
    %v3962 = vpack.c.b16 %v3954, %v3954
    %v3963 = vpack.c.b16 %v3955, %v3955
    %v3964 = vpack.c.b16 %v3956, %v3956
    %v3965 = vpack.c.b16 %v3957, %v3957
    %v3967 = vpack.i.b16 %v3958, %v3958
    %v3969 = vlaneseq
    %v3970 = vshrl.u32 %v3969, 7
    %v3971 = vsub.s32 2, %v3970
    %v3972 = vrot.slane %v3967, %v3971
    %v3974 = vpack.i.b16 %v3959, %v3959
    %v3976 = vlaneseq
    %v3977 = vshrl.u32 %v3976, 7
    %v3978 = vsub.s32 2, %v3977
    %v3979 = vrot.slane %v3974, %v3978
    %v3981 = vpack.i.b16 %v3960, %v3960
    %v3983 = vlaneseq
    %v3984 = vshrl.u32 %v3983, 7
    %v3985 = vsub.s32 2, %v3984
    %v3986 = vrot.slane %v3981, %v3985
    %v3988 = vpack.i.b16 %v3961, %v3961
    %v3990 = vlaneseq
    %v3991 = vshrl.u32 %v3990, 7
    %v3992 = vsub.s32 2, %v3991
    %v3993 = vrot.slane %v3988, %v3992
    %v3995 = vpack.i.b16 %v3962, %v3962
    %v3997 = vlaneseq
    %v3998 = vshrl.u32 %v3997, 7
    %v3999 = vsub.s32 2, %v3998
    %v4000 = vrot.slane %v3995, %v3999
    %v4002 = vpack.i.b16 %v3963, %v3963
    %v4004 = vlaneseq
    %v4005 = vshrl.u32 %v4004, 7
    %v4006 = vsub.s32 2, %v4005
    %v4007 = vrot.slane %v4002, %v4006
    %v4009 = vpack.i.b16 %v3964, %v3964
    %v4011 = vlaneseq
    %v4012 = vshrl.u32 %v4011, 7
    %v4013 = vsub.s32 2, %v4012
    %v4014 = vrot.slane %v4009, %v4013
    %v4016 = vpack.i.b16 %v3965, %v3965
    %v4018 = vlaneseq
    %v4019 = vshrl.u32 %v4018, 7
    %v4020 = vsub.s32 2, %v4019
    %v4021 = vrot.slane %v4016, %v4020
    %4030 = vrot.lane.b32.xlu0 %v3972, 57
    %v4031 = vpop.permute.xlu0 %4030
    %4032 = vrot.lane.b32.xlu0 %v3979, 57
    %v4033 = vpop.permute.xlu0 %4032
    %4034 = vrot.lane.b32.xlu0 %v3986, 57
    %v4035 = vpop.permute.xlu0 %4034
    %4036 = vrot.lane.b32.xlu0 %v3993, 57
    %v4037 = vpop.permute.xlu0 %4036
    %4038 = vrot.lane.b32.xlu0 %v4000, 57
    %v4039 = vpop.permute.xlu0 %4038
    %4040 = vrot.lane.b32.xlu0 %v4007, 57
    %v4041 = vpop.permute.xlu0 %4040
    %4042 = vrot.lane.b32.xlu0 %v4014, 57
    %v4043 = vpop.permute.xlu0 %4042
    %4044 = vrot.lane.b32.xlu0 %v4021, 57
    %v4045 = vpop.permute.xlu0 %4044
    %v4046 = vsel %vm644, %v4031, %v4033
    %v4047 = vsel %vm644, %v4033, %v4035
    %v4048 = vsel %vm644, %v4035, %v4037
    %v4049 = vsel %vm644, %v4037, %v4039
    %v4050 = vsel %vm644, %v4039, %v4041
    %v4051 = vsel %vm644, %v4041, %v4043
    %v4052 = vsel %vm644, %v4043, %v4045
    %v4062 = vmul.bf16 %v3933, %v4031
    %v4063 = vmul.bf16 %v3934, %v4046
    %v4064 = vmul.bf16 %v3935, %v4047
    %v4065 = vmul.bf16 %v3936, %v4048
    %v4066 = vmul.bf16 %v3937, %v4049
    %v4067 = vmul.bf16 %v3938, %v4050
    %v4068 = vmul.bf16 %v3939, %v4051
    %v4069 = vmul.bf16 %v3940, %v4052
    %v4070 = vmul.bf16 %v3941, %v4045
    %4080 = vrot.lane.b32.xlu0 %v4062, 71
    %v4081 = vpop.permute.xlu0 %4080
    %4082 = vrot.lane.b32.xlu0 %v4063, 71
    %v4083 = vpop.permute.xlu0 %4082
    %4084 = vrot.lane.b32.xlu0 %v4064, 71
    %v4085 = vpop.permute.xlu0 %4084
    %4086 = vrot.lane.b32.xlu0 %v4065, 71
    %v4087 = vpop.permute.xlu0 %4086
    %4088 = vrot.lane.b32.xlu0 %v4066, 71
    %v4089 = vpop.permute.xlu0 %4088
    %4090 = vrot.lane.b32.xlu0 %v4067, 71
    %v4091 = vpop.permute.xlu0 %4090
    %4092 = vrot.lane.b32.xlu0 %v4068, 71
    %v4093 = vpop.permute.xlu0 %4092
    %4094 = vrot.lane.b32.xlu0 %v4069, 71
    %v4095 = vpop.permute.xlu0 %4094
    %4096 = vrot.lane.b32.xlu0 %v4070, 71
    %v4097 = vpop.permute.xlu0 %4096
    %v4098 = vsel %vm697, %v4081, %v4083
    %v4099 = vsel %vm697, %v4083, %v4085
    %v4100 = vsel %vm697, %v4085, %v4087
    %v4101 = vsel %vm697, %v4087, %v4089
    %v4102 = vsel %vm697, %v4089, %v4091
    %v4103 = vsel %vm697, %v4091, %v4093
    %v4104 = vsel %vm697, %v4093, %v4095
    %v4105 = vsel %vm697, %v4095, %v4097
    %4114 = vst [vmem:[#allocation4 + $0x500] sm:$0xff] %v4098
    %4115 = vst [vmem:[#allocation4 + $0x508] sm:$0xff] %v4099
    %4116 = vst [vmem:[#allocation4 + $0x510] sm:$0xff] %v4100
    %4117 = vst [vmem:[#allocation4 + $0x518] sm:$0xff] %v4101
    %4118 = vst [vmem:[#allocation4 + $0x520] sm:$0xff] %v4102
    %4119 = vst [vmem:[#allocation4 + $0x528] sm:$0xff] %v4103
    %4120 = vst [vmem:[#allocation4 + $0x530] sm:$0xff] %v4104
    %4121 = vst [vmem:[#allocation4 + $0x538] sm:$0xff] %v4105
    %v4122 = vld [vmem:[#allocation2 + $0x8] sm:$0xff]
    %v4123 = vld [vmem:[#allocation2 + $0x10] sm:$0xff]
    %v4124 = vld [vmem:[#allocation2 + $0x18] sm:$0xff]
    %v4125 = vld [vmem:[#allocation2 + $0x20] sm:$0xff]
    %v4126 = vld [vmem:[#allocation2 + $0x28] sm:$0xff]
    %v4127 = vld [vmem:[#allocation2 + $0x30] sm:$0xff]
    %v4128 = vld [vmem:[#allocation2 + $0x38] sm:$0xff]
    %v4129 = vld [vmem:[#allocation2 + $0x40] sm:$0xff]
    %v4130 = vld [vmem:[#allocation2 + $0x48] sm:$0xff]
    %v4131 = vld [vmem:[#allocation8 + $0x40] sm:$0x44]
    %v4132 = vld [vmem:[#allocation8 + $0x48] sm:$0x44]
    %v4133 = vld [vmem:[#allocation8 + $0x50] sm:$0x44]
    %v4134 = vld [vmem:[#allocation8 + $0x58] sm:$0x44]
    %v4139 = vunpack.c.l.b16 %v4131
    %v4140 = vunpack.c.h.b16 %v4131
    %v4141 = vunpack.c.l.b16 %v4132
    %v4142 = vunpack.c.h.b16 %v4132
    %v4143 = vunpack.c.l.b16 %v4133
    %v4144 = vunpack.c.h.b16 %v4133
    %v4145 = vunpack.c.l.b16 %v4134
    %v4146 = vunpack.c.h.b16 %v4134
    %v4147 = vpack.c.b16 %v4139, %v4139
    %v4148 = vpack.c.b16 %v4140, %v4140
    %v4149 = vpack.c.b16 %v4141, %v4141
    %v4150 = vpack.c.b16 %v4142, %v4142
    %v4151 = vpack.c.b16 %v4143, %v4143
    %v4152 = vpack.c.b16 %v4144, %v4144
    %v4153 = vpack.c.b16 %v4145, %v4145
    %v4154 = vpack.c.b16 %v4146, %v4146
    %v4156 = vshrl.u32 %v4147, 16
    %v4157 = vpack.i.b16 %v4156, %v4156
    %v4159 = vlaneseq
    %v4160 = vshrl.u32 %v4159, 7
    %v4161 = vsub.s32 2, %v4160
    %v4162 = vrot.slane %v4157, %v4161
    %v4164 = vshrl.u32 %v4148, 16
    %v4165 = vpack.i.b16 %v4164, %v4164
    %v4167 = vlaneseq
    %v4168 = vshrl.u32 %v4167, 7
    %v4169 = vsub.s32 2, %v4168
    %v4170 = vrot.slane %v4165, %v4169
    %v4172 = vshrl.u32 %v4149, 16
    %v4173 = vpack.i.b16 %v4172, %v4172
    %v4175 = vlaneseq
    %v4176 = vshrl.u32 %v4175, 7
    %v4177 = vsub.s32 2, %v4176
    %v4178 = vrot.slane %v4173, %v4177
    %v4180 = vshrl.u32 %v4150, 16
    %v4181 = vpack.i.b16 %v4180, %v4180
    %v4183 = vlaneseq
    %v4184 = vshrl.u32 %v4183, 7
    %v4185 = vsub.s32 2, %v4184
    %v4186 = vrot.slane %v4181, %v4185
    %v4188 = vshrl.u32 %v4151, 16
    %v4189 = vpack.i.b16 %v4188, %v4188
    %v4191 = vlaneseq
    %v4192 = vshrl.u32 %v4191, 7
    %v4193 = vsub.s32 2, %v4192
    %v4194 = vrot.slane %v4189, %v4193
    %v4196 = vshrl.u32 %v4152, 16
    %v4197 = vpack.i.b16 %v4196, %v4196
    %v4199 = vlaneseq
    %v4200 = vshrl.u32 %v4199, 7
    %v4201 = vsub.s32 2, %v4200
    %v4202 = vrot.slane %v4197, %v4201
    %v4204 = vshrl.u32 %v4153, 16
    %v4205 = vpack.i.b16 %v4204, %v4204
    %v4207 = vlaneseq
    %v4208 = vshrl.u32 %v4207, 7
    %v4209 = vsub.s32 2, %v4208
    %v4210 = vrot.slane %v4205, %v4209
    %v4212 = vshrl.u32 %v4154, 16
    %v4213 = vpack.i.b16 %v4212, %v4212
    %v4215 = vlaneseq
    %v4216 = vshrl.u32 %v4215, 7
    %v4217 = vsub.s32 2, %v4216
    %v4218 = vrot.slane %v4213, %v4217
    %4227 = vrot.lane.b32.xlu0 %v4162, 63
    %v4228 = vpop.permute.xlu0 %4227
    %4229 = vrot.lane.b32.xlu0 %v4170, 63
    %v4230 = vpop.permute.xlu0 %4229
    %4231 = vrot.lane.b32.xlu0 %v4178, 63
    %v4232 = vpop.permute.xlu0 %4231
    %4233 = vrot.lane.b32.xlu0 %v4186, 63
    %v4234 = vpop.permute.xlu0 %4233
    %4235 = vrot.lane.b32.xlu0 %v4194, 63
    %v4236 = vpop.permute.xlu0 %4235
    %4237 = vrot.lane.b32.xlu0 %v4202, 63
    %v4238 = vpop.permute.xlu0 %4237
    %4239 = vrot.lane.b32.xlu0 %v4210, 63
    %v4240 = vpop.permute.xlu0 %4239
    %4241 = vrot.lane.b32.xlu0 %v4218, 63
    %v4242 = vpop.permute.xlu0 %4241
    %v4243 = vsel %vm843, %v4228, %v4230
    %v4244 = vsel %vm843, %v4230, %v4232
    %v4245 = vsel %vm843, %v4232, %v4234
    %v4246 = vsel %vm843, %v4234, %v4236
    %v4247 = vsel %vm843, %v4236, %v4238
    %v4248 = vsel %vm843, %v4238, %v4240
    %v4249 = vsel %vm843, %v4240, %v4242
    %v4259 = vmul.bf16 %v4122, %v4228
    %v4260 = vmul.bf16 %v4123, %v4243
    %v4261 = vmul.bf16 %v4124, %v4244
    %v4262 = vmul.bf16 %v4125, %v4245
    %v4263 = vmul.bf16 %v4126, %v4246
    %v4264 = vmul.bf16 %v4127, %v4247
    %v4265 = vmul.bf16 %v4128, %v4248
    %v4266 = vmul.bf16 %v4129, %v4249
    %v4267 = vmul.bf16 %v4130, %v4242
    %4277 = vrot.lane.b32.xlu0 %v4259, 65
    %v4278 = vpop.permute.xlu0 %4277
    %4279 = vrot.lane.b32.xlu0 %v4260, 65
    %v4280 = vpop.permute.xlu0 %4279
    %4281 = vrot.lane.b32.xlu0 %v4261, 65
    %v4282 = vpop.permute.xlu0 %4281
    %4283 = vrot.lane.b32.xlu0 %v4262, 65
    %v4284 = vpop.permute.xlu0 %4283
    %4285 = vrot.lane.b32.xlu0 %v4263, 65
    %v4286 = vpop.permute.xlu0 %4285
    %4287 = vrot.lane.b32.xlu0 %v4264, 65
    %v4288 = vpop.permute.xlu0 %4287
    %4289 = vrot.lane.b32.xlu0 %v4265, 65
    %v4290 = vpop.permute.xlu0 %4289
    %4291 = vrot.lane.b32.xlu0 %v4266, 65
    %v4292 = vpop.permute.xlu0 %4291
    %4293 = vrot.lane.b32.xlu0 %v4267, 65
    %v4294 = vpop.permute.xlu0 %4293
    %v4295 = vsel %vm896, %v4278, %v4280
    %v4296 = vsel %vm896, %v4280, %v4282
    %v4297 = vsel %vm896, %v4282, %v4284
    %v4298 = vsel %vm896, %v4284, %v4286
    %v4299 = vsel %vm896, %v4286, %v4288
    %v4300 = vsel %vm896, %v4288, %v4290
    %v4301 = vsel %vm896, %v4290, %v4292
    %v4302 = vsel %vm896, %v4292, %v4294
    %4311 = vst [vmem:[#allocation4 + $0x540] sm:$0xff] %v4295
    %4312 = vst [vmem:[#allocation4 + $0x548] sm:$0xff] %v4296
    %4313 = vst [vmem:[#allocation4 + $0x550] sm:$0xff] %v4297
    %4314 = vst [vmem:[#allocation4 + $0x558] sm:$0xff] %v4298
    %4315 = vst [vmem:[#allocation4 + $0x560] sm:$0xff] %v4299
    %4316 = vst [vmem:[#allocation4 + $0x568] sm:$0xff] %v4300
    %4317 = vst [vmem:[#allocation4 + $0x570] sm:$0xff] %v4301
    %4318 = vst [vmem:[#allocation4 + $0x578] sm:$0xff] %v4302
    %v4319 = vld [vmem:[#allocation2 + $0x8] sm:$0xff]
    %v4320 = vld [vmem:[#allocation2 + $0x10] sm:$0xff]
    %v4321 = vld [vmem:[#allocation2 + $0x18] sm:$0xff]
    %v4322 = vld [vmem:[#allocation2 + $0x20] sm:$0xff]
    %v4323 = vld [vmem:[#allocation2 + $0x28] sm:$0xff]
    %v4324 = vld [vmem:[#allocation2 + $0x30] sm:$0xff]
    %v4325 = vld [vmem:[#allocation2 + $0x38] sm:$0xff]
    %v4326 = vld [vmem:[#allocation2 + $0x40] sm:$0xff]
    %v4327 = vld [vmem:[#allocation2 + $0x48] sm:$0xff]
    %v4328 = vld [vmem:[#allocation8 + $0x40] sm:$0x88]
    %v4329 = vld [vmem:[#allocation8 + $0x48] sm:$0x88]
    %v4330 = vld [vmem:[#allocation8 + $0x50] sm:$0x88]
    %v4331 = vld [vmem:[#allocation8 + $0x58] sm:$0x88]
    %v4336 = vunpack.c.l.b16 %v4328
    %v4337 = vunpack.c.h.b16 %v4328
    %v4338 = vunpack.c.l.b16 %v4329
    %v4339 = vunpack.c.h.b16 %v4329
    %v4340 = vunpack.c.l.b16 %v4330
    %v4341 = vunpack.c.h.b16 %v4330
    %v4342 = vunpack.c.l.b16 %v4331
    %v4343 = vunpack.c.h.b16 %v4331
    %v4344 = vpack.c.b16 %v4336, %v4336
    %v4345 = vpack.c.b16 %v4337, %v4337
    %v4346 = vpack.c.b16 %v4338, %v4338
    %v4347 = vpack.c.b16 %v4339, %v4339
    %v4348 = vpack.c.b16 %v4340, %v4340
    %v4349 = vpack.c.b16 %v4341, %v4341
    %v4350 = vpack.c.b16 %v4342, %v4342
    %v4351 = vpack.c.b16 %v4343, %v4343
    %v4353 = vpack.i.b16 %v4344, %v4344
    %v4355 = vlaneseq
    %v4356 = vshrl.u32 %v4355, 7
    %v4357 = vsub.s32 3, %v4356
    %v4358 = vrot.slane %v4353, %v4357
    %v4360 = vpack.i.b16 %v4345, %v4345
    %v4362 = vlaneseq
    %v4363 = vshrl.u32 %v4362, 7
    %v4364 = vsub.s32 3, %v4363
    %v4365 = vrot.slane %v4360, %v4364
    %v4367 = vpack.i.b16 %v4346, %v4346
    %v4369 = vlaneseq
    %v4370 = vshrl.u32 %v4369, 7
    %v4371 = vsub.s32 3, %v4370
    %v4372 = vrot.slane %v4367, %v4371
    %v4374 = vpack.i.b16 %v4347, %v4347
    %v4376 = vlaneseq
    %v4377 = vshrl.u32 %v4376, 7
    %v4378 = vsub.s32 3, %v4377
    %v4379 = vrot.slane %v4374, %v4378
    %v4381 = vpack.i.b16 %v4348, %v4348
    %v4383 = vlaneseq
    %v4384 = vshrl.u32 %v4383, 7
    %v4385 = vsub.s32 3, %v4384
    %v4386 = vrot.slane %v4381, %v4385
    %v4388 = vpack.i.b16 %v4349, %v4349
    %v4390 = vlaneseq
    %v4391 = vshrl.u32 %v4390, 7
    %v4392 = vsub.s32 3, %v4391
    %v4393 = vrot.slane %v4388, %v4392
    %v4395 = vpack.i.b16 %v4350, %v4350
    %v4397 = vlaneseq
    %v4398 = vshrl.u32 %v4397, 7
    %v4399 = vsub.s32 3, %v4398
    %v4400 = vrot.slane %v4395, %v4399
    %v4402 = vpack.i.b16 %v4351, %v4351
    %v4404 = vlaneseq
    %v4405 = vshrl.u32 %v4404, 7
    %v4406 = vsub.s32 3, %v4405
    %v4407 = vrot.slane %v4402, %v4406
    %4416 = vrot.lane.b32.xlu0 %v4358, 64
    %v4417 = vpop.permute.xlu0 %4416
    %4418 = vrot.lane.b32.xlu0 %v4365, 64
    %v4419 = vpop.permute.xlu0 %4418
    %4420 = vrot.lane.b32.xlu0 %v4372, 64
    %v4421 = vpop.permute.xlu0 %4420
    %4422 = vrot.lane.b32.xlu0 %v4379, 64
    %v4423 = vpop.permute.xlu0 %4422
    %4424 = vrot.lane.b32.xlu0 %v4386, 64
    %v4425 = vpop.permute.xlu0 %4424
    %4426 = vrot.lane.b32.xlu0 %v4393, 64
    %v4427 = vpop.permute.xlu0 %4426
    %4428 = vrot.lane.b32.xlu0 %v4400, 64
    %v4429 = vpop.permute.xlu0 %4428
    %4430 = vrot.lane.b32.xlu0 %v4407, 64
    %v4431 = vpop.permute.xlu0 %4430
    %v4432 = vsel %vm1034, %v4417, %v4419
    %v4433 = vsel %vm1034, %v4419, %v4421
    %v4434 = vsel %vm1034, %v4421, %v4423
    %v4435 = vsel %vm1034, %v4423, %v4425
    %v4436 = vsel %vm1034, %v4425, %v4427
    %v4437 = vsel %vm1034, %v4427, %v4429
    %v4438 = vsel %vm1034, %v4429, %v4431
    %v4448 = vmul.bf16 %v4319, %v4417
    %v4449 = vmul.bf16 %v4320, %v4432
    %v4450 = vmul.bf16 %v4321, %v4433
    %v4451 = vmul.bf16 %v4322, %v4434
    %v4452 = vmul.bf16 %v4323, %v4435
    %v4453 = vmul.bf16 %v4324, %v4436
    %v4454 = vmul.bf16 %v4325, %v4437
    %v4455 = vmul.bf16 %v4326, %v4438
    %v4456 = vmul.bf16 %v4327, %v4431
    %4466 = vrot.lane.b32.xlu0 %v4448, 64
    %v4467 = vpop.permute.xlu0 %4466
    %4468 = vrot.lane.b32.xlu0 %v4449, 64
    %v4469 = vpop.permute.xlu0 %4468
    %4470 = vrot.lane.b32.xlu0 %v4450, 64
    %v4471 = vpop.permute.xlu0 %4470
    %4472 = vrot.lane.b32.xlu0 %v4451, 64
    %v4473 = vpop.permute.xlu0 %4472
    %4474 = vrot.lane.b32.xlu0 %v4452, 64
    %v4475 = vpop.permute.xlu0 %4474
    %4476 = vrot.lane.b32.xlu0 %v4453, 64
    %v4477 = vpop.permute.xlu0 %4476
    %4478 = vrot.lane.b32.xlu0 %v4454, 64
    %v4479 = vpop.permute.xlu0 %4478
    %4480 = vrot.lane.b32.xlu0 %v4455, 64
    %v4481 = vpop.permute.xlu0 %4480
    %4482 = vrot.lane.b32.xlu0 %v4456, 64
    %v4483 = vpop.permute.xlu0 %4482
    %v4484 = vsel %vm1034, %v4467, %v4469
    %v4485 = vsel %vm1034, %v4469, %v4471
    %v4486 = vsel %vm1034, %v4471, %v4473
    %v4487 = vsel %vm1034, %v4473, %v4475
    %v4488 = vsel %vm1034, %v4475, %v4477
    %v4489 = vsel %vm1034, %v4477, %v4479
    %v4490 = vsel %vm1034, %v4479, %v4481
    %v4491 = vsel %vm1034, %v4481, %v4483
    %4500 = vst [vmem:[#allocation4 + $0x580] sm:$0xff] %v4484
    %4501 = vst [vmem:[#allocation4 + $0x588] sm:$0xff] %v4485
    %4502 = vst [vmem:[#allocation4 + $0x590] sm:$0xff] %v4486
    %4503 = vst [vmem:[#allocation4 + $0x598] sm:$0xff] %v4487
    %4504 = vst [vmem:[#allocation4 + $0x5a0] sm:$0xff] %v4488
    %4505 = vst [vmem:[#allocation4 + $0x5a8] sm:$0xff] %v4489
    %4506 = vst [vmem:[#allocation4 + $0x5b0] sm:$0xff] %v4490
    %4507 = vst [vmem:[#allocation4 + $0x5b8] sm:$0xff] %v4491
    %v4508 = vld [vmem:[#allocation2 + $0x8] sm:$0xff]
    %v4509 = vld [vmem:[#allocation2 + $0x10] sm:$0xff]
    %v4510 = vld [vmem:[#allocation2 + $0x18] sm:$0xff]
    %v4511 = vld [vmem:[#allocation2 + $0x20] sm:$0xff]
    %v4512 = vld [vmem:[#allocation2 + $0x28] sm:$0xff]
    %v4513 = vld [vmem:[#allocation2 + $0x30] sm:$0xff]
    %v4514 = vld [vmem:[#allocation2 + $0x38] sm:$0xff]
    %v4515 = vld [vmem:[#allocation2 + $0x40] sm:$0xff]
    %v4516 = vld [vmem:[#allocation2 + $0x48] sm:$0xff]
    %v4517 = vld [vmem:[#allocation8 + $0x40] sm:$0x88]
    %v4518 = vld [vmem:[#allocation8 + $0x48] sm:$0x88]
    %v4519 = vld [vmem:[#allocation8 + $0x50] sm:$0x88]
    %v4520 = vld [vmem:[#allocation8 + $0x58] sm:$0x88]
    %v4525 = vunpack.c.l.b16 %v4517
    %v4526 = vunpack.c.h.b16 %v4517
    %v4527 = vunpack.c.l.b16 %v4518
    %v4528 = vunpack.c.h.b16 %v4518
    %v4529 = vunpack.c.l.b16 %v4519
    %v4530 = vunpack.c.h.b16 %v4519
    %v4531 = vunpack.c.l.b16 %v4520
    %v4532 = vunpack.c.h.b16 %v4520
    %v4533 = vpack.c.b16 %v4525, %v4525
    %v4534 = vpack.c.b16 %v4526, %v4526
    %v4535 = vpack.c.b16 %v4527, %v4527
    %v4536 = vpack.c.b16 %v4528, %v4528
    %v4537 = vpack.c.b16 %v4529, %v4529
    %v4538 = vpack.c.b16 %v4530, %v4530
    %v4539 = vpack.c.b16 %v4531, %v4531
    %v4540 = vpack.c.b16 %v4532, %v4532
    %v4542 = vshrl.u32 %v4533, 16
    %v4543 = vpack.i.b16 %v4542, %v4542
    %v4545 = vlaneseq
    %v4546 = vshrl.u32 %v4545, 7
    %v4547 = vsub.s32 3, %v4546
    %v4548 = vrot.slane %v4543, %v4547
    %v4550 = vshrl.u32 %v4534, 16
    %v4551 = vpack.i.b16 %v4550, %v4550
    %v4553 = vlaneseq
    %v4554 = vshrl.u32 %v4553, 7
    %v4555 = vsub.s32 3, %v4554
    %v4556 = vrot.slane %v4551, %v4555
    %v4558 = vshrl.u32 %v4535, 16
    %v4559 = vpack.i.b16 %v4558, %v4558
    %v4561 = vlaneseq
    %v4562 = vshrl.u32 %v4561, 7
    %v4563 = vsub.s32 3, %v4562
    %v4564 = vrot.slane %v4559, %v4563
    %v4566 = vshrl.u32 %v4536, 16
    %v4567 = vpack.i.b16 %v4566, %v4566
    %v4569 = vlaneseq
    %v4570 = vshrl.u32 %v4569, 7
    %v4571 = vsub.s32 3, %v4570
    %v4572 = vrot.slane %v4567, %v4571
    %v4574 = vshrl.u32 %v4537, 16
    %v4575 = vpack.i.b16 %v4574, %v4574
    %v4577 = vlaneseq
    %v4578 = vshrl.u32 %v4577, 7
    %v4579 = vsub.s32 3, %v4578
    %v4580 = vrot.slane %v4575, %v4579
    %v4582 = vshrl.u32 %v4538, 16
    %v4583 = vpack.i.b16 %v4582, %v4582
    %v4585 = vlaneseq
    %v4586 = vshrl.u32 %v4585, 7
    %v4587 = vsub.s32 3, %v4586
    %v4588 = vrot.slane %v4583, %v4587
    %v4590 = vshrl.u32 %v4539, 16
    %v4591 = vpack.i.b16 %v4590, %v4590
    %v4593 = vlaneseq
    %v4594 = vshrl.u32 %v4593, 7
    %v4595 = vsub.s32 3, %v4594
    %v4596 = vrot.slane %v4591, %v4595
    %v4598 = vshrl.u32 %v4540, 16
    %v4599 = vpack.i.b16 %v4598, %v4598
    %v4601 = vlaneseq
    %v4602 = vshrl.u32 %v4601, 7
    %v4603 = vsub.s32 3, %v4602
    %v4604 = vrot.slane %v4599, %v4603
    %4613 = vrot.lane.b32.xlu0 %v4548, 65
    %v4614 = vpop.permute.xlu0 %4613
    %4615 = vrot.lane.b32.xlu0 %v4556, 65
    %v4616 = vpop.permute.xlu0 %4615
    %4617 = vrot.lane.b32.xlu0 %v4564, 65
    %v4618 = vpop.permute.xlu0 %4617
    %4619 = vrot.lane.b32.xlu0 %v4572, 65
    %v4620 = vpop.permute.xlu0 %4619
    %4621 = vrot.lane.b32.xlu0 %v4580, 65
    %v4622 = vpop.permute.xlu0 %4621
    %4623 = vrot.lane.b32.xlu0 %v4588, 65
    %v4624 = vpop.permute.xlu0 %4623
    %4625 = vrot.lane.b32.xlu0 %v4596, 65
    %v4626 = vpop.permute.xlu0 %4625
    %4627 = vrot.lane.b32.xlu0 %v4604, 65
    %v4628 = vpop.permute.xlu0 %4627
    %v4629 = vsel %vm896, %v4614, %v4616
    %v4630 = vsel %vm896, %v4616, %v4618
    %v4631 = vsel %vm896, %v4618, %v4620
    %v4632 = vsel %vm896, %v4620, %v4622
    %v4633 = vsel %vm896, %v4622, %v4624
    %v4634 = vsel %vm896, %v4624, %v4626
    %v4635 = vsel %vm896, %v4626, %v4628
    %v4645 = vmul.bf16 %v4508, %v4614
    %v4646 = vmul.bf16 %v4509, %v4629
    %v4647 = vmul.bf16 %v4510, %v4630
    %v4648 = vmul.bf16 %v4511, %v4631
    %v4649 = vmul.bf16 %v4512, %v4632
    %v4650 = vmul.bf16 %v4513, %v4633
    %v4651 = vmul.bf16 %v4514, %v4634
    %v4652 = vmul.bf16 %v4515, %v4635
    %v4653 = vmul.bf16 %v4516, %v4628
    %4663 = vrot.lane.b32.xlu0 %v4645, 63
    %v4664 = vpop.permute.xlu0 %4663
    %4665 = vrot.lane.b32.xlu0 %v4646, 63
    %v4666 = vpop.permute.xlu0 %4665
    %4667 = vrot.lane.b32.xlu0 %v4647, 63
    %v4668 = vpop.permute.xlu0 %4667
    %4669 = vrot.lane.b32.xlu0 %v4648, 63
    %v4670 = vpop.permute.xlu0 %4669
    %4671 = vrot.lane.b32.xlu0 %v4649, 63
    %v4672 = vpop.permute.xlu0 %4671
    %4673 = vrot.lane.b32.xlu0 %v4650, 63
    %v4674 = vpop.permute.xlu0 %4673
    %4675 = vrot.lane.b32.xlu0 %v4651, 63
    %v4676 = vpop.permute.xlu0 %4675
    %4677 = vrot.lane.b32.xlu0 %v4652, 63
    %v4678 = vpop.permute.xlu0 %4677
    %4679 = vrot.lane.b32.xlu0 %v4653, 63
    %v4680 = vpop.permute.xlu0 %4679
    %v4681 = vsel %vm843, %v4664, %v4666
    %v4682 = vsel %vm843, %v4666, %v4668
    %v4683 = vsel %vm843, %v4668, %v4670
    %v4684 = vsel %vm843, %v4670, %v4672
    %v4685 = vsel %vm843, %v4672, %v4674
    %v4686 = vsel %vm843, %v4674, %v4676
    %v4687 = vsel %vm843, %v4676, %v4678
    %v4688 = vsel %vm843, %v4678, %v4680
    %4697 = vst [vmem:[#allocation4 + $0x5c0] sm:$0xff] %v4681
    %4698 = vst [vmem:[#allocation4 + $0x5c8] sm:$0xff] %v4682
    %4699 = vst [vmem:[#allocation4 + $0x5d0] sm:$0xff] %v4683
    %4700 = vst [vmem:[#allocation4 + $0x5d8] sm:$0xff] %v4684
    %4701 = vst [vmem:[#allocation4 + $0x5e0] sm:$0xff] %v4685
    %4702 = vst [vmem:[#allocation4 + $0x5e8] sm:$0xff] %v4686
    %4703 = vst [vmem:[#allocation4 + $0x5f0] sm:$0xff] %v4687
    %4704 = vst [vmem:[#allocation4 + $0x5f8] sm:$0xff] %v4688
    %v4705 = vld [vmem:[#allocation2 + $0x8] sm:$0xff]
    %v4706 = vld [vmem:[#allocation2 + $0x10] sm:$0xff]
    %v4707 = vld [vmem:[#allocation2 + $0x18] sm:$0xff]
    %v4708 = vld [vmem:[#allocation2 + $0x20] sm:$0xff]
    %v4709 = vld [vmem:[#allocation2 + $0x28] sm:$0xff]
    %v4710 = vld [vmem:[#allocation2 + $0x30] sm:$0xff]
    %v4711 = vld [vmem:[#allocation2 + $0x38] sm:$0xff]
    %v4712 = vld [vmem:[#allocation2 + $0x40] sm:$0xff]
    %v4713 = vld [vmem:[#allocation2 + $0x48] sm:$0xff]
    %v4714 = vld [vmem:[#allocation8 + $0x60] sm:$0x11]
    %v4715 = vld [vmem:[#allocation8 + $0x68] sm:$0x11]
    %v4716 = vld [vmem:[#allocation8 + $0x70] sm:$0x11]
    %v4717 = vld [vmem:[#allocation8 + $0x78] sm:$0x11]
    %v4722 = vunpack.c.l.b16 %v4714
    %v4723 = vunpack.c.h.b16 %v4714
    %v4724 = vunpack.c.l.b16 %v4715
    %v4725 = vunpack.c.h.b16 %v4715
    %v4726 = vunpack.c.l.b16 %v4716
    %v4727 = vunpack.c.h.b16 %v4716
    %v4728 = vunpack.c.l.b16 %v4717
    %v4729 = vunpack.c.h.b16 %v4717
    %v4730 = vpack.c.b16 %v4722, %v4722
    %v4731 = vpack.c.b16 %v4723, %v4723
    %v4732 = vpack.c.b16 %v4724, %v4724
    %v4733 = vpack.c.b16 %v4725, %v4725
    %v4734 = vpack.c.b16 %v4726, %v4726
    %v4735 = vpack.c.b16 %v4727, %v4727
    %v4736 = vpack.c.b16 %v4728, %v4728
    %v4737 = vpack.c.b16 %v4729, %v4729
    %v4739 = vpack.i.b16 %v4730, %v4730
    %v4741 = vlaneseq
    %v4742 = vshrl.u32 %v4741, 7
    %v4743 = vsub.s32 0, %v4742
    %v4744 = vrot.slane %v4739, %v4743
    %v4746 = vpack.i.b16 %v4731, %v4731
    %v4748 = vlaneseq
    %v4749 = vshrl.u32 %v4748, 7
    %v4750 = vsub.s32 0, %v4749
    %v4751 = vrot.slane %v4746, %v4750
    %v4753 = vpack.i.b16 %v4732, %v4732
    %v4755 = vlaneseq
    %v4756 = vshrl.u32 %v4755, 7
    %v4757 = vsub.s32 0, %v4756
    %v4758 = vrot.slane %v4753, %v4757
    %v4760 = vpack.i.b16 %v4733, %v4733
    %v4762 = vlaneseq
    %v4763 = vshrl.u32 %v4762, 7
    %v4764 = vsub.s32 0, %v4763
    %v4765 = vrot.slane %v4760, %v4764
    %v4767 = vpack.i.b16 %v4734, %v4734
    %v4769 = vlaneseq
    %v4770 = vshrl.u32 %v4769, 7
    %v4771 = vsub.s32 0, %v4770
    %v4772 = vrot.slane %v4767, %v4771
    %v4774 = vpack.i.b16 %v4735, %v4735
    %v4776 = vlaneseq
    %v4777 = vshrl.u32 %v4776, 7
    %v4778 = vsub.s32 0, %v4777
    %v4779 = vrot.slane %v4774, %v4778
    %v4781 = vpack.i.b16 %v4736, %v4736
    %v4783 = vlaneseq
    %v4784 = vshrl.u32 %v4783, 7
    %v4785 = vsub.s32 0, %v4784
    %v4786 = vrot.slane %v4781, %v4785
    %v4788 = vpack.i.b16 %v4737, %v4737
    %v4790 = vlaneseq
    %v4791 = vshrl.u32 %v4790, 7
    %v4792 = vsub.s32 0, %v4791
    %v4793 = vrot.slane %v4788, %v4792
    %4802 = vrot.lane.b32.xlu0 %v4744, 71
    %v4803 = vpop.permute.xlu0 %4802
    %4804 = vrot.lane.b32.xlu0 %v4751, 71
    %v4805 = vpop.permute.xlu0 %4804
    %4806 = vrot.lane.b32.xlu0 %v4758, 71
    %v4807 = vpop.permute.xlu0 %4806
    %4808 = vrot.lane.b32.xlu0 %v4765, 71
    %v4809 = vpop.permute.xlu0 %4808
    %4810 = vrot.lane.b32.xlu0 %v4772, 71
    %v4811 = vpop.permute.xlu0 %4810
    %4812 = vrot.lane.b32.xlu0 %v4779, 71
    %v4813 = vpop.permute.xlu0 %4812
    %4814 = vrot.lane.b32.xlu0 %v4786, 71
    %v4815 = vpop.permute.xlu0 %4814
    %4816 = vrot.lane.b32.xlu0 %v4793, 71
    %v4817 = vpop.permute.xlu0 %4816
    %v4818 = vsel %vm697, %v4803, %v4805
    %v4819 = vsel %vm697, %v4805, %v4807
    %v4820 = vsel %vm697, %v4807, %v4809
    %v4821 = vsel %vm697, %v4809, %v4811
    %v4822 = vsel %vm697, %v4811, %v4813
    %v4823 = vsel %vm697, %v4813, %v4815
    %v4824 = vsel %vm697, %v4815, %v4817
    %v4834 = vmul.bf16 %v4705, %v4803
    %v4835 = vmul.bf16 %v4706, %v4818
    %v4836 = vmul.bf16 %v4707, %v4819
    %v4837 = vmul.bf16 %v4708, %v4820
    %v4838 = vmul.bf16 %v4709, %v4821
    %v4839 = vmul.bf16 %v4710, %v4822
    %v4840 = vmul.bf16 %v4711, %v4823
    %v4841 = vmul.bf16 %v4712, %v4824
    %v4842 = vmul.bf16 %v4713, %v4817
    %4852 = vrot.lane.b32.xlu0 %v4834, 57
    %v4853 = vpop.permute.xlu0 %4852
    %4854 = vrot.lane.b32.xlu0 %v4835, 57
    %v4855 = vpop.permute.xlu0 %4854
    %4856 = vrot.lane.b32.xlu0 %v4836, 57
    %v4857 = vpop.permute.xlu0 %4856
    %4858 = vrot.lane.b32.xlu0 %v4837, 57
    %v4859 = vpop.permute.xlu0 %4858
    %4860 = vrot.lane.b32.xlu0 %v4838, 57
    %v4861 = vpop.permute.xlu0 %4860
    %4862 = vrot.lane.b32.xlu0 %v4839, 57
    %v4863 = vpop.permute.xlu0 %4862
    %4864 = vrot.lane.b32.xlu0 %v4840, 57
    %v4865 = vpop.permute.xlu0 %4864
    %4866 = vrot.lane.b32.xlu0 %v4841, 57
    %v4867 = vpop.permute.xlu0 %4866
    %4868 = vrot.lane.b32.xlu0 %v4842, 57
    %v4869 = vpop.permute.xlu0 %4868
    %v4870 = vsel %vm644, %v4853, %v4855
    %v4871 = vsel %vm644, %v4855, %v4857
    %v4872 = vsel %vm644, %v4857, %v4859
    %v4873 = vsel %vm644, %v4859, %v4861
    %v4874 = vsel %vm644, %v4861, %v4863
    %v4875 = vsel %vm644, %v4863, %v4865
    %v4876 = vsel %vm644, %v4865, %v4867
    %v4877 = vsel %vm644, %v4867, %v4869
    %4886 = vst [vmem:[#allocation4 + $0x600] sm:$0xff] %v4870
    %4887 = vst [vmem:[#allocation4 + $0x608] sm:$0xff] %v4871
    %4888 = vst [vmem:[#allocation4 + $0x610] sm:$0xff] %v4872
    %4889 = vst [vmem:[#allocation4 + $0x618] sm:$0xff] %v4873
    %4890 = vst [vmem:[#allocation4 + $0x620] sm:$0xff] %v4874
    %4891 = vst [vmem:[#allocation4 + $0x628] sm:$0xff] %v4875
    %4892 = vst [vmem:[#allocation4 + $0x630] sm:$0xff] %v4876
    %4893 = vst [vmem:[#allocation4 + $0x638] sm:$0xff] %v4877
    %v4894 = vld [vmem:[#allocation2 + $0x8] sm:$0xff]
    %v4895 = vld [vmem:[#allocation2 + $0x10] sm:$0xff]
    %v4896 = vld [vmem:[#allocation2 + $0x18] sm:$0xff]
    %v4897 = vld [vmem:[#allocation2 + $0x20] sm:$0xff]
    %v4898 = vld [vmem:[#allocation2 + $0x28] sm:$0xff]
    %v4899 = vld [vmem:[#allocation2 + $0x30] sm:$0xff]
    %v4900 = vld [vmem:[#allocation2 + $0x38] sm:$0xff]
    %v4901 = vld [vmem:[#allocation2 + $0x40] sm:$0xff]
    %v4902 = vld [vmem:[#allocation2 + $0x48] sm:$0xff]
    %v4903 = vld [vmem:[#allocation8 + $0x60] sm:$0x11]
    %v4904 = vld [vmem:[#allocation8 + $0x68] sm:$0x11]
    %v4905 = vld [vmem:[#allocation8 + $0x70] sm:$0x11]
    %v4906 = vld [vmem:[#allocation8 + $0x78] sm:$0x11]
    %v4911 = vunpack.c.l.b16 %v4903
    %v4912 = vunpack.c.h.b16 %v4903
    %v4913 = vunpack.c.l.b16 %v4904
    %v4914 = vunpack.c.h.b16 %v4904
    %v4915 = vunpack.c.l.b16 %v4905
    %v4916 = vunpack.c.h.b16 %v4905
    %v4917 = vunpack.c.l.b16 %v4906
    %v4918 = vunpack.c.h.b16 %v4906
    %v4919 = vpack.c.b16 %v4911, %v4911
    %v4920 = vpack.c.b16 %v4912, %v4912
    %v4921 = vpack.c.b16 %v4913, %v4913
    %v4922 = vpack.c.b16 %v4914, %v4914
    %v4923 = vpack.c.b16 %v4915, %v4915
    %v4924 = vpack.c.b16 %v4916, %v4916
    %v4925 = vpack.c.b16 %v4917, %v4917
    %v4926 = vpack.c.b16 %v4918, %v4918
    %v4928 = vshrl.u32 %v4919, 16
    %v4929 = vpack.i.b16 %v4928, %v4928
    %v4931 = vlaneseq
    %v4932 = vshrl.u32 %v4931, 7
    %v4933 = vsub.s32 0, %v4932
    %v4934 = vrot.slane %v4929, %v4933
    %v4936 = vshrl.u32 %v4920, 16
    %v4937 = vpack.i.b16 %v4936, %v4936
    %v4939 = vlaneseq
    %v4940 = vshrl.u32 %v4939, 7
    %v4941 = vsub.s32 0, %v4940
    %v4942 = vrot.slane %v4937, %v4941
    %v4944 = vshrl.u32 %v4921, 16
    %v4945 = vpack.i.b16 %v4944, %v4944
    %v4947 = vlaneseq
    %v4948 = vshrl.u32 %v4947, 7
    %v4949 = vsub.s32 0, %v4948
    %v4950 = vrot.slane %v4945, %v4949
    %v4952 = vshrl.u32 %v4922, 16
    %v4953 = vpack.i.b16 %v4952, %v4952
    %v4955 = vlaneseq
    %v4956 = vshrl.u32 %v4955, 7
    %v4957 = vsub.s32 0, %v4956
    %v4958 = vrot.slane %v4953, %v4957
    %v4960 = vshrl.u32 %v4923, 16
    %v4961 = vpack.i.b16 %v4960, %v4960
    %v4963 = vlaneseq
    %v4964 = vshrl.u32 %v4963, 7
    %v4965 = vsub.s32 0, %v4964
    %v4966 = vrot.slane %v4961, %v4965
    %v4968 = vshrl.u32 %v4924, 16
    %v4969 = vpack.i.b16 %v4968, %v4968
    %v4971 = vlaneseq
    %v4972 = vshrl.u32 %v4971, 7
    %v4973 = vsub.s32 0, %v4972
    %v4974 = vrot.slane %v4969, %v4973
    %v4976 = vshrl.u32 %v4925, 16
    %v4977 = vpack.i.b16 %v4976, %v4976
    %v4979 = vlaneseq
    %v4980 = vshrl.u32 %v4979, 7
    %v4981 = vsub.s32 0, %v4980
    %v4982 = vrot.slane %v4977, %v4981
    %v4984 = vshrl.u32 %v4926, 16
    %v4985 = vpack.i.b16 %v4984, %v4984
    %v4987 = vlaneseq
    %v4988 = vshrl.u32 %v4987, 7
    %v4989 = vsub.s32 0, %v4988
    %v4990 = vrot.slane %v4985, %v4989
    %4999 = vrot.lane.b32.xlu0 %v4934, 72
    %v5000 = vpop.permute.xlu0 %4999
    %5001 = vrot.lane.b32.xlu0 %v4942, 72
    %v5002 = vpop.permute.xlu0 %5001
    %5003 = vrot.lane.b32.xlu0 %v4950, 72
    %v5004 = vpop.permute.xlu0 %5003
    %5005 = vrot.lane.b32.xlu0 %v4958, 72
    %v5006 = vpop.permute.xlu0 %5005
    %5007 = vrot.lane.b32.xlu0 %v4966, 72
    %v5008 = vpop.permute.xlu0 %5007
    %5009 = vrot.lane.b32.xlu0 %v4974, 72
    %v5010 = vpop.permute.xlu0 %5009
    %5011 = vrot.lane.b32.xlu0 %v4982, 72
    %v5012 = vpop.permute.xlu0 %5011
    %5013 = vrot.lane.b32.xlu0 %v4990, 72
    %v5014 = vpop.permute.xlu0 %5013
    %v5015 = vsel %vm506, %v5000, %v5002
    %v5016 = vsel %vm506, %v5002, %v5004
    %v5017 = vsel %vm506, %v5004, %v5006
    %v5018 = vsel %vm506, %v5006, %v5008
    %v5019 = vsel %vm506, %v5008, %v5010
    %v5020 = vsel %vm506, %v5010, %v5012
    %v5021 = vsel %vm506, %v5012, %v5014
    %v5031 = vmul.bf16 %v4894, %v5000
    %v5032 = vmul.bf16 %v4895, %v5015
    %v5033 = vmul.bf16 %v4896, %v5016
    %v5034 = vmul.bf16 %v4897, %v5017
    %v5035 = vmul.bf16 %v4898, %v5018
    %v5036 = vmul.bf16 %v4899, %v5019
    %v5037 = vmul.bf16 %v4900, %v5020
    %v5038 = vmul.bf16 %v4901, %v5021
    %v5039 = vmul.bf16 %v4902, %v5014
    %5049 = vrot.lane.b32.xlu0 %v5031, 56
    %v5050 = vpop.permute.xlu0 %5049
    %5051 = vrot.lane.b32.xlu0 %v5032, 56
    %v5052 = vpop.permute.xlu0 %5051
    %5053 = vrot.lane.b32.xlu0 %v5033, 56
    %v5054 = vpop.permute.xlu0 %5053
    %5055 = vrot.lane.b32.xlu0 %v5034, 56
    %v5056 = vpop.permute.xlu0 %5055
    %5057 = vrot.lane.b32.xlu0 %v5035, 56
    %v5058 = vpop.permute.xlu0 %5057
    %5059 = vrot.lane.b32.xlu0 %v5036, 56
    %v5060 = vpop.permute.xlu0 %5059
    %5061 = vrot.lane.b32.xlu0 %v5037, 56
    %v5062 = vpop.permute.xlu0 %5061
    %5063 = vrot.lane.b32.xlu0 %v5038, 56
    %v5064 = vpop.permute.xlu0 %5063
    %5065 = vrot.lane.b32.xlu0 %v5039, 56
    %v5066 = vpop.permute.xlu0 %5065
    %v5067 = vsel %vm453, %v5050, %v5052
    %v5068 = vsel %vm453, %v5052, %v5054
    %v5069 = vsel %vm453, %v5054, %v5056
    %v5070 = vsel %vm453, %v5056, %v5058
    %v5071 = vsel %vm453, %v5058, %v5060
    %v5072 = vsel %vm453, %v5060, %v5062
    %v5073 = vsel %vm453, %v5062, %v5064
    %v5074 = vsel %vm453, %v5064, %v5066
    %5083 = vst [vmem:[#allocation4 + $0x640] sm:$0xff] %v5067
    %5084 = vst [vmem:[#allocation4 + $0x648] sm:$0xff] %v5068
    %5085 = vst [vmem:[#allocation4 + $0x650] sm:$0xff] %v5069
    %5086 = vst [vmem:[#allocation4 + $0x658] sm:$0xff] %v5070
    %5087 = vst [vmem:[#allocation4 + $0x660] sm:$0xff] %v5071
    %5088 = vst [vmem:[#allocation4 + $0x668] sm:$0xff] %v5072
    %5089 = vst [vmem:[#allocation4 + $0x670] sm:$0xff] %v5073
    %5090 = vst [vmem:[#allocation4 + $0x678] sm:$0xff] %v5074
    %v5091 = vld [vmem:[#allocation2 + $0x8] sm:$0xff]
    %v5092 = vld [vmem:[#allocation2 + $0x10] sm:$0xff]
    %v5093 = vld [vmem:[#allocation2 + $0x18] sm:$0xff]
    %v5094 = vld [vmem:[#allocation2 + $0x20] sm:$0xff]
    %v5095 = vld [vmem:[#allocation2 + $0x28] sm:$0xff]
    %v5096 = vld [vmem:[#allocation2 + $0x30] sm:$0xff]
    %v5097 = vld [vmem:[#allocation2 + $0x38] sm:$0xff]
    %v5098 = vld [vmem:[#allocation2 + $0x40] sm:$0xff]
    %v5099 = vld [vmem:[#allocation2 + $0x48] sm:$0xff]
    %v5100 = vld [vmem:[#allocation8 + $0x60] sm:$0x22]
    %v5101 = vld [vmem:[#allocation8 + $0x68] sm:$0x22]
    %v5102 = vld [vmem:[#allocation8 + $0x70] sm:$0x22]
    %v5103 = vld [vmem:[#allocation8 + $0x78] sm:$0x22]
    %v5108 = vunpack.c.l.b16 %v5100
    %v5109 = vunpack.c.h.b16 %v5100
    %v5110 = vunpack.c.l.b16 %v5101
    %v5111 = vunpack.c.h.b16 %v5101
    %v5112 = vunpack.c.l.b16 %v5102
    %v5113 = vunpack.c.h.b16 %v5102
    %v5114 = vunpack.c.l.b16 %v5103
    %v5115 = vunpack.c.h.b16 %v5103
    %v5116 = vpack.c.b16 %v5108, %v5108
    %v5117 = vpack.c.b16 %v5109, %v5109
    %v5118 = vpack.c.b16 %v5110, %v5110
    %v5119 = vpack.c.b16 %v5111, %v5111
    %v5120 = vpack.c.b16 %v5112, %v5112
    %v5121 = vpack.c.b16 %v5113, %v5113
    %v5122 = vpack.c.b16 %v5114, %v5114
    %v5123 = vpack.c.b16 %v5115, %v5115
    %v5125 = vpack.i.b16 %v5116, %v5116
    %v5127 = vlaneseq
    %v5128 = vshrl.u32 %v5127, 7
    %v5129 = vsub.s32 1, %v5128
    %v5130 = vrot.slane %v5125, %v5129
    %v5132 = vpack.i.b16 %v5117, %v5117
    %v5134 = vlaneseq
    %v5135 = vshrl.u32 %v5134, 7
    %v5136 = vsub.s32 1, %v5135
    %v5137 = vrot.slane %v5132, %v5136
    %v5139 = vpack.i.b16 %v5118, %v5118
    %v5141 = vlaneseq
    %v5142 = vshrl.u32 %v5141, 7
    %v5143 = vsub.s32 1, %v5142
    %v5144 = vrot.slane %v5139, %v5143
    %v5146 = vpack.i.b16 %v5119, %v5119
    %v5148 = vlaneseq
    %v5149 = vshrl.u32 %v5148, 7
    %v5150 = vsub.s32 1, %v5149
    %v5151 = vrot.slane %v5146, %v5150
    %v5153 = vpack.i.b16 %v5120, %v5120
    %v5155 = vlaneseq
    %v5156 = vshrl.u32 %v5155, 7
    %v5157 = vsub.s32 1, %v5156
    %v5158 = vrot.slane %v5153, %v5157
    %v5160 = vpack.i.b16 %v5121, %v5121
    %v5162 = vlaneseq
    %v5163 = vshrl.u32 %v5162, 7
    %v5164 = vsub.s32 1, %v5163
    %v5165 = vrot.slane %v5160, %v5164
    %v5167 = vpack.i.b16 %v5122, %v5122
    %v5169 = vlaneseq
    %v5170 = vshrl.u32 %v5169, 7
    %v5171 = vsub.s32 1, %v5170
    %v5172 = vrot.slane %v5167, %v5171
    %v5174 = vpack.i.b16 %v5123, %v5123
    %v5176 = vlaneseq
    %v5177 = vshrl.u32 %v5176, 7
    %v5178 = vsub.s32 1, %v5177
    %v5179 = vrot.slane %v5174, %v5178
    %5188 = vrot.lane.b32.xlu0 %v5130, 73
    %v5189 = vpop.permute.xlu0 %5188
    %5190 = vrot.lane.b32.xlu0 %v5137, 73
    %v5191 = vpop.permute.xlu0 %5190
    %5192 = vrot.lane.b32.xlu0 %v5144, 73
    %v5193 = vpop.permute.xlu0 %5192
    %5194 = vrot.lane.b32.xlu0 %v5151, 73
    %v5195 = vpop.permute.xlu0 %5194
    %5196 = vrot.lane.b32.xlu0 %v5158, 73
    %v5197 = vpop.permute.xlu0 %5196
    %5198 = vrot.lane.b32.xlu0 %v5165, 73
    %v5199 = vpop.permute.xlu0 %5198
    %5200 = vrot.lane.b32.xlu0 %v5172, 73
    %v5201 = vpop.permute.xlu0 %5200
    %5202 = vrot.lane.b32.xlu0 %v5179, 73
    %v5203 = vpop.permute.xlu0 %5202
    %v5204 = vsel %vm307, %v5189, %v5191
    %v5205 = vsel %vm307, %v5191, %v5193
    %v5206 = vsel %vm307, %v5193, %v5195
    %v5207 = vsel %vm307, %v5195, %v5197
    %v5208 = vsel %vm307, %v5197, %v5199
    %v5209 = vsel %vm307, %v5199, %v5201
    %v5210 = vsel %vm307, %v5201, %v5203
    %v5220 = vmul.bf16 %v5091, %v5189
    %v5221 = vmul.bf16 %v5092, %v5204
    %v5222 = vmul.bf16 %v5093, %v5205
    %v5223 = vmul.bf16 %v5094, %v5206
    %v5224 = vmul.bf16 %v5095, %v5207
    %v5225 = vmul.bf16 %v5096, %v5208
    %v5226 = vmul.bf16 %v5097, %v5209
    %v5227 = vmul.bf16 %v5098, %v5210
    %v5228 = vmul.bf16 %v5099, %v5203
    %5238 = vrot.lane.b32.xlu0 %v5220, 55
    %v5239 = vpop.permute.xlu0 %5238
    %5240 = vrot.lane.b32.xlu0 %v5221, 55
    %v5241 = vpop.permute.xlu0 %5240
    %5242 = vrot.lane.b32.xlu0 %v5222, 55
    %v5243 = vpop.permute.xlu0 %5242
    %5244 = vrot.lane.b32.xlu0 %v5223, 55
    %v5245 = vpop.permute.xlu0 %5244
    %5246 = vrot.lane.b32.xlu0 %v5224, 55
    %v5247 = vpop.permute.xlu0 %5246
    %5248 = vrot.lane.b32.xlu0 %v5225, 55
    %v5249 = vpop.permute.xlu0 %5248
    %5250 = vrot.lane.b32.xlu0 %v5226, 55
    %v5251 = vpop.permute.xlu0 %5250
    %5252 = vrot.lane.b32.xlu0 %v5227, 55
    %v5253 = vpop.permute.xlu0 %5252
    %5254 = vrot.lane.b32.xlu0 %v5228, 55
    %v5255 = vpop.permute.xlu0 %5254
    %v5256 = vsel %vm254, %v5239, %v5241
    %v5257 = vsel %vm254, %v5241, %v5243
    %v5258 = vsel %vm254, %v5243, %v5245
    %v5259 = vsel %vm254, %v5245, %v5247
    %v5260 = vsel %vm254, %v5247, %v5249
    %v5261 = vsel %vm254, %v5249, %v5251
    %v5262 = vsel %vm254, %v5251, %v5253
    %v5263 = vsel %vm254, %v5253, %v5255
    %5272 = vst [vmem:[#allocation4 + $0x680] sm:$0xff] %v5256
    %5273 = vst [vmem:[#allocation4 + $0x688] sm:$0xff] %v5257
    %5274 = vst [vmem:[#allocation4 + $0x690] sm:$0xff] %v5258
    %5275 = vst [vmem:[#allocation4 + $0x698] sm:$0xff] %v5259
    %5276 = vst [vmem:[#allocation4 + $0x6a0] sm:$0xff] %v5260
    %5277 = vst [vmem:[#allocation4 + $0x6a8] sm:$0xff] %v5261
    %5278 = vst [vmem:[#allocation4 + $0x6b0] sm:$0xff] %v5262
    %5279 = vst [vmem:[#allocation4 + $0x6b8] sm:$0xff] %v5263
    %v5280 = vld [vmem:[%s3] sm:$0xff]
    %v5281 = vld [vmem:[%s3 + $0x8] sm:$0xff]
    %v5282 = vld [vmem:[%s3 + $0x10] sm:$0xff]
    %v5283 = vld [vmem:[%s3 + $0x18] sm:$0xff]
    %v5284 = vld [vmem:[#allocation4] sm:$0xff]
    %v5285 = vld [vmem:[#allocation4 + $0x8] sm:$0xff]
    %v5286 = vld [vmem:[#allocation4 + $0x10] sm:$0xff]
    %v5287 = vld [vmem:[#allocation4 + $0x18] sm:$0xff]
    %v5288 = vld [vmem:[#allocation4 + $0x20] sm:$0xff]
    %v5289 = vld [vmem:[#allocation4 + $0x28] sm:$0xff]
    %v5290 = vld [vmem:[#allocation4 + $0x30] sm:$0xff]
    %v5291 = vld [vmem:[#allocation4 + $0x38] sm:$0xff]
    %v5292 = vld [vmem:[#allocation4 + $0x40] sm:$0xff]
    %v5293 = vld [vmem:[#allocation4 + $0x48] sm:$0xff]
    %v5294 = vld [vmem:[#allocation4 + $0x50] sm:$0xff]
    %v5295 = vld [vmem:[#allocation4 + $0x58] sm:$0xff]
    %v5296 = vld [vmem:[#allocation4 + $0x60] sm:$0xff]
    %v5297 = vld [vmem:[#allocation4 + $0x68] sm:$0xff]
    %v5298 = vld [vmem:[#allocation4 + $0x70] sm:$0xff]
    %v5299 = vld [vmem:[#allocation4 + $0x78] sm:$0xff]
    %v5300 = vld [vmem:[#allocation4 + $0x80] sm:$0xff]
    %v5301 = vld [vmem:[#allocation4 + $0x88] sm:$0xff]
    %v5302 = vld [vmem:[#allocation4 + $0x90] sm:$0xff]
    %v5303 = vld [vmem:[#allocation4 + $0x98] sm:$0xff]
    %v5304 = vld [vmem:[#allocation4 + $0xa0] sm:$0xff]
    %v5305 = vld [vmem:[#allocation4 + $0xa8] sm:$0xff]
    %v5306 = vld [vmem:[#allocation4 + $0xb0] sm:$0xff]
    %v5307 = vld [vmem:[#allocation4 + $0xb8] sm:$0xff]
    %v5308 = vld [vmem:[#allocation4 + $0xc0] sm:$0xff]
    %v5309 = vld [vmem:[#allocation4 + $0xc8] sm:$0xff]
    %v5310 = vld [vmem:[#allocation4 + $0xd0] sm:$0xff]
    %v5311 = vld [vmem:[#allocation4 + $0xd8] sm:$0xff]
    %v5312 = vld [vmem:[#allocation4 + $0xe0] sm:$0xff]
    %v5313 = vld [vmem:[#allocation4 + $0xe8] sm:$0xff]
    %v5314 = vld [vmem:[#allocation4 + $0xf0] sm:$0xff]
    %v5315 = vld [vmem:[#allocation4 + $0xf8] sm:$0xff]
    %v5316 = vld [vmem:[#allocation4 + $0x100] sm:$0xff]
    %v5317 = vld [vmem:[#allocation4 + $0x108] sm:$0xff]
    %v5318 = vld [vmem:[#allocation4 + $0x110] sm:$0xff]
    %v5319 = vld [vmem:[#allocation4 + $0x118] sm:$0xff]
    %v5320 = vld [vmem:[#allocation4 + $0x120] sm:$0xff]
    %v5321 = vld [vmem:[#allocation4 + $0x128] sm:$0xff]
    %v5322 = vld [vmem:[#allocation4 + $0x130] sm:$0xff]
    %v5323 = vld [vmem:[#allocation4 + $0x138] sm:$0xff]
    %v5324 = vld [vmem:[#allocation4 + $0x140] sm:$0xff]
    %v5325 = vld [vmem:[#allocation4 + $0x148] sm:$0xff]
    %v5326 = vld [vmem:[#allocation4 + $0x150] sm:$0xff]
    %v5327 = vld [vmem:[#allocation4 + $0x158] sm:$0xff]
    %v5328 = vld [vmem:[#allocation4 + $0x160] sm:$0xff]
    %v5329 = vld [vmem:[#allocation4 + $0x168] sm:$0xff]
    %v5330 = vld [vmem:[#allocation4 + $0x170] sm:$0xff]
    %v5331 = vld [vmem:[#allocation4 + $0x178] sm:$0xff]
    %v5332 = vld [vmem:[#allocation4 + $0x180] sm:$0xff]
    %v5333 = vld [vmem:[#allocation4 + $0x188] sm:$0xff]
    %v5334 = vld [vmem:[#allocation4 + $0x190] sm:$0xff]
    %v5335 = vld [vmem:[#allocation4 + $0x198] sm:$0xff]
    %v5336 = vld [vmem:[#allocation4 + $0x1a0] sm:$0xff]
    %v5337 = vld [vmem:[#allocation4 + $0x1a8] sm:$0xff]
    %v5338 = vld [vmem:[#allocation4 + $0x1b0] sm:$0xff]
    %v5339 = vld [vmem:[#allocation4 + $0x1b8] sm:$0xff]
    %v5340 = vld [vmem:[#allocation4 + $0x1c0] sm:$0xff]
    %v5341 = vld [vmem:[#allocation4 + $0x1c8] sm:$0xff]
    %v5342 = vld [vmem:[#allocation4 + $0x1d0] sm:$0xff]
    %v5343 = vld [vmem:[#allocation4 + $0x1d8] sm:$0xff]
    %v5344 = vld [vmem:[#allocation4 + $0x1e0] sm:$0xff]
    %v5345 = vld [vmem:[#allocation4 + $0x1e8] sm:$0xff]
    %v5346 = vld [vmem:[#allocation4 + $0x1f0] sm:$0xff]
    %v5347 = vld [vmem:[#allocation4 + $0x1f8] sm:$0xff]
    %v5348 = vld [vmem:[#allocation4 + $0x200] sm:$0xff]
    %v5349 = vld [vmem:[#allocation4 + $0x208] sm:$0xff]
    %v5350 = vld [vmem:[#allocation4 + $0x210] sm:$0xff]
    %v5351 = vld [vmem:[#allocation4 + $0x218] sm:$0xff]
    %v5352 = vld [vmem:[#allocation4 + $0x220] sm:$0xff]
    %v5353 = vld [vmem:[#allocation4 + $0x228] sm:$0xff]
    %v5354 = vld [vmem:[#allocation4 + $0x230] sm:$0xff]
    %v5355 = vld [vmem:[#allocation4 + $0x238] sm:$0xff]
    %v5356 = vld [vmem:[#allocation4 + $0x240] sm:$0xff]
    %v5357 = vld [vmem:[#allocation4 + $0x248] sm:$0xff]
    %v5358 = vld [vmem:[#allocation4 + $0x250] sm:$0xff]
    %v5359 = vld [vmem:[#allocation4 + $0x258] sm:$0xff]
    %v5360 = vld [vmem:[#allocation4 + $0x260] sm:$0xff]
    %v5361 = vld [vmem:[#allocation4 + $0x268] sm:$0xff]
    %v5362 = vld [vmem:[#allocation4 + $0x270] sm:$0xff]
    %v5363 = vld [vmem:[#allocation4 + $0x278] sm:$0xff]
    %v5364 = vld [vmem:[#allocation4 + $0x280] sm:$0xff]
    %v5365 = vld [vmem:[#allocation4 + $0x288] sm:$0xff]
    %v5366 = vld [vmem:[#allocation4 + $0x290] sm:$0xff]
    %v5367 = vld [vmem:[#allocation4 + $0x298] sm:$0xff]
    %v5368 = vld [vmem:[#allocation4 + $0x2a0] sm:$0xff]
    %v5369 = vld [vmem:[#allocation4 + $0x2a8] sm:$0xff]
    %v5370 = vld [vmem:[#allocation4 + $0x2b0] sm:$0xff]
    %v5371 = vld [vmem:[#allocation4 + $0x2b8] sm:$0xff]
    %v5372 = vld [vmem:[#allocation4 + $0x2c0] sm:$0xff]
    %v5373 = vld [vmem:[#allocation4 + $0x2c8] sm:$0xff]
    %v5374 = vld [vmem:[#allocation4 + $0x2d0] sm:$0xff]
    %v5375 = vld [vmem:[#allocation4 + $0x2d8] sm:$0xff]
    %v5376 = vld [vmem:[#allocation4 + $0x2e0] sm:$0xff]
    %v5377 = vld [vmem:[#allocation4 + $0x2e8] sm:$0xff]
    %v5378 = vld [vmem:[#allocation4 + $0x2f0] sm:$0xff]
    %v5379 = vld [vmem:[#allocation4 + $0x2f8] sm:$0xff]
    %v5380 = vld [vmem:[#allocation4 + $0x300] sm:$0xff]
    %v5381 = vld [vmem:[#allocation4 + $0x308] sm:$0xff]
    %v5382 = vld [vmem:[#allocation4 + $0x310] sm:$0xff]
    %v5383 = vld [vmem:[#allocation4 + $0x318] sm:$0xff]
    %v5384 = vld [vmem:[#allocation4 + $0x320] sm:$0xff]
    %v5385 = vld [vmem:[#allocation4 + $0x328] sm:$0xff]
    %v5386 = vld [vmem:[#allocation4 + $0x330] sm:$0xff]
    %v5387 = vld [vmem:[#allocation4 + $0x338] sm:$0xff]
    %v5388 = vld [vmem:[#allocation4 + $0x340] sm:$0xff]
    %v5389 = vld [vmem:[#allocation4 + $0x348] sm:$0xff]
    %v5390 = vld [vmem:[#allocation4 + $0x350] sm:$0xff]
    %v5391 = vld [vmem:[#allocation4 + $0x358] sm:$0xff]
    %v5392 = vld [vmem:[#allocation4 + $0x360] sm:$0xff]
    %v5393 = vld [vmem:[#allocation4 + $0x368] sm:$0xff]
    %v5394 = vld [vmem:[#allocation4 + $0x370] sm:$0xff]
    %v5395 = vld [vmem:[#allocation4 + $0x378] sm:$0xff]
    %v5396 = vld [vmem:[#allocation4 + $0x380] sm:$0xff]
    %v5397 = vld [vmem:[#allocation4 + $0x388] sm:$0xff]
    %v5398 = vld [vmem:[#allocation4 + $0x390] sm:$0xff]
    %v5399 = vld [vmem:[#allocation4 + $0x398] sm:$0xff]
    %v5400 = vld [vmem:[#allocation4 + $0x3a0] sm:$0xff]
    %v5401 = vld [vmem:[#allocation4 + $0x3a8] sm:$0xff]
    %v5402 = vld [vmem:[#allocation4 + $0x3b0] sm:$0xff]
    %v5403 = vld [vmem:[#allocation4 + $0x3b8] sm:$0xff]
    %v5404 = vld [vmem:[#allocation4 + $0x3c0] sm:$0xff]
    %v5405 = vld [vmem:[#allocation4 + $0x3c8] sm:$0xff]
    %v5406 = vld [vmem:[#allocation4 + $0x3d0] sm:$0xff]
    %v5407 = vld [vmem:[#allocation4 + $0x3d8] sm:$0xff]
    %v5408 = vld [vmem:[#allocation4 + $0x3e0] sm:$0xff]
    %v5409 = vld [vmem:[#allocation4 + $0x3e8] sm:$0xff]
    %v5410 = vld [vmem:[#allocation4 + $0x3f0] sm:$0xff]
    %v5411 = vld [vmem:[#allocation4 + $0x3f8] sm:$0xff]
    %v5412 = vld [vmem:[#allocation4 + $0x400] sm:$0xff]
    %v5413 = vld [vmem:[#allocation4 + $0x408] sm:$0xff]
    %v5414 = vld [vmem:[#allocation4 + $0x410] sm:$0xff]
    %v5415 = vld [vmem:[#allocation4 + $0x418] sm:$0xff]
    %v5416 = vld [vmem:[#allocation4 + $0x420] sm:$0xff]
    %v5417 = vld [vmem:[#allocation4 + $0x428] sm:$0xff]
    %v5418 = vld [vmem:[#allocation4 + $0x430] sm:$0xff]
    %v5419 = vld [vmem:[#allocation4 + $0x438] sm:$0xff]
    %v5420 = vld [vmem:[#allocation4 + $0x440] sm:$0xff]
    %v5421 = vld [vmem:[#allocation4 + $0x448] sm:$0xff]
    %v5422 = vld [vmem:[#allocation4 + $0x450] sm:$0xff]
    %v5423 = vld [vmem:[#allocation4 + $0x458] sm:$0xff]
    %v5424 = vld [vmem:[#allocation4 + $0x460] sm:$0xff]
    %v5425 = vld [vmem:[#allocation4 + $0x468] sm:$0xff]
    %v5426 = vld [vmem:[#allocation4 + $0x470] sm:$0xff]
    %v5427 = vld [vmem:[#allocation4 + $0x478] sm:$0xff]
    %v5428 = vld [vmem:[#allocation4 + $0x480] sm:$0xff]
    %v5429 = vld [vmem:[#allocation4 + $0x488] sm:$0xff]
    %v5430 = vld [vmem:[#allocation4 + $0x490] sm:$0xff]
    %v5431 = vld [vmem:[#allocation4 + $0x498] sm:$0xff]
    %v5432 = vld [vmem:[#allocation4 + $0x4a0] sm:$0xff]
    %v5433 = vld [vmem:[#allocation4 + $0x4a8] sm:$0xff]
    %v5434 = vld [vmem:[#allocation4 + $0x4b0] sm:$0xff]
    %v5435 = vld [vmem:[#allocation4 + $0x4b8] sm:$0xff]
    %v5436 = vld [vmem:[#allocation4 + $0x4c0] sm:$0xff]
    %v5437 = vld [vmem:[#allocation4 + $0x4c8] sm:$0xff]
    %v5438 = vld [vmem:[#allocation4 + $0x4d0] sm:$0xff]
    %v5439 = vld [vmem:[#allocation4 + $0x4d8] sm:$0xff]
    %v5440 = vld [vmem:[#allocation4 + $0x4e0] sm:$0xff]
    %v5441 = vld [vmem:[#allocation4 + $0x4e8] sm:$0xff]
    %v5442 = vld [vmem:[#allocation4 + $0x4f0] sm:$0xff]
    %v5443 = vld [vmem:[#allocation4 + $0x4f8] sm:$0xff]
    %v5444 = vld [vmem:[#allocation4 + $0x500] sm:$0xff]
    %v5445 = vld [vmem:[#allocation4 + $0x508] sm:$0xff]
    %v5446 = vld [vmem:[#allocation4 + $0x510] sm:$0xff]
    %v5447 = vld [vmem:[#allocation4 + $0x518] sm:$0xff]
    %v5448 = vld [vmem:[#allocation4 + $0x520] sm:$0xff]
    %v5449 = vld [vmem:[#allocation4 + $0x528] sm:$0xff]
    %v5450 = vld [vmem:[#allocation4 + $0x530] sm:$0xff]
    %v5451 = vld [vmem:[#allocation4 + $0x538] sm:$0xff]
    %v5452 = vld [vmem:[#allocation4 + $0x540] sm:$0xff]
    %v5453 = vld [vmem:[#allocation4 + $0x548] sm:$0xff]
    %v5454 = vld [vmem:[#allocation4 + $0x550] sm:$0xff]
    %v5455 = vld [vmem:[#allocation4 + $0x558] sm:$0xff]
    %v5456 = vld [vmem:[#allocation4 + $0x560] sm:$0xff]
    %v5457 = vld [vmem:[#allocation4 + $0x568] sm:$0xff]
    %v5458 = vld [vmem:[#allocation4 + $0x570] sm:$0xff]
    %v5459 = vld [vmem:[#allocation4 + $0x578] sm:$0xff]
    %v5460 = vld [vmem:[#allocation4 + $0x580] sm:$0xff]
    %v5461 = vld [vmem:[#allocation4 + $0x588] sm:$0xff]
    %v5462 = vld [vmem:[#allocation4 + $0x590] sm:$0xff]
    %v5463 = vld [vmem:[#allocation4 + $0x598] sm:$0xff]
    %v5464 = vld [vmem:[#allocation4 + $0x5a0] sm:$0xff]
    %v5465 = vld [vmem:[#allocation4 + $0x5a8] sm:$0xff]
    %v5466 = vld [vmem:[#allocation4 + $0x5b0] sm:$0xff]
    %v5467 = vld [vmem:[#allocation4 + $0x5b8] sm:$0xff]
    %v5468 = vld [vmem:[#allocation4 + $0x5c0] sm:$0xff]
    %v5469 = vld [vmem:[#allocation4 + $0x5c8] sm:$0xff]
    %v5470 = vld [vmem:[#allocation4 + $0x5d0] sm:$0xff]
    %v5471 = vld [vmem:[#allocation4 + $0x5d8] sm:$0xff]
    %v5472 = vld [vmem:[#allocation4 + $0x5e0] sm:$0xff]
    %v5473 = vld [vmem:[#allocation4 + $0x5e8] sm:$0xff]
    %v5474 = vld [vmem:[#allocation4 + $0x5f0] sm:$0xff]
    %v5475 = vld [vmem:[#allocation4 + $0x5f8] sm:$0xff]
    %v5476 = vld [vmem:[#allocation4 + $0x600] sm:$0xff]
    %v5477 = vld [vmem:[#allocation4 + $0x608] sm:$0xff]
    %v5478 = vld [vmem:[#allocation4 + $0x610] sm:$0xff]
    %v5479 = vld [vmem:[#allocation4 + $0x618] sm:$0xff]
    %v5480 = vld [vmem:[#allocation4 + $0x620] sm:$0xff]
    %v5481 = vld [vmem:[#allocation4 + $0x628] sm:$0xff]
    %v5482 = vld [vmem:[#allocation4 + $0x630] sm:$0xff]
    %v5483 = vld [vmem:[#allocation4 + $0x638] sm:$0xff]
    %v5484 = vld [vmem:[#allocation4 + $0x640] sm:$0xff]
    %v5485 = vld [vmem:[#allocation4 + $0x648] sm:$0xff]
    %v5486 = vld [vmem:[#allocation4 + $0x650] sm:$0xff]
    %v5487 = vld [vmem:[#allocation4 + $0x658] sm:$0xff]
    %v5488 = vld [vmem:[#allocation4 + $0x660] sm:$0xff]
    %v5489 = vld [vmem:[#allocation4 + $0x668] sm:$0xff]
    %v5490 = vld [vmem:[#allocation4 + $0x670] sm:$0xff]
    %v5491 = vld [vmem:[#allocation4 + $0x678] sm:$0xff]
    %v5492 = vld [vmem:[#allocation4 + $0x680] sm:$0xff]
    %v5493 = vld [vmem:[#allocation4 + $0x688] sm:$0xff]
    %v5494 = vld [vmem:[#allocation4 + $0x690] sm:$0xff]
    %v5495 = vld [vmem:[#allocation4 + $0x698] sm:$0xff]
    %v5496 = vld [vmem:[#allocation4 + $0x6a0] sm:$0xff]
    %v5497 = vld [vmem:[#allocation4 + $0x6a8] sm:$0xff]
    %v5498 = vld [vmem:[#allocation4 + $0x6b0] sm:$0xff]
    %v5499 = vld [vmem:[#allocation4 + $0x6b8] sm:$0xff]
    %v5500 = vld [vmem:[%s4] sm:$0xff]
    %v5501 = vld [vmem:[%s4 + $0x8] sm:$0xff]
    %5503 = vset.pattern.permute.xlu0 0
    %5504 = vperm.xlu0 %5503, %v5500
    %v5505 = vpop.permute.xlu0 %5504
    %5508 = vset.pattern.permute.xlu0 0
    %5509 = vperm.xlu0 %5508, %v5501
    %v5510 = vpop.permute.xlu0 %5509
    %v5516 = vunpack.c.l.b16 %v5280
    %v5517 = vunpack.c.h.b16 %v5280
    %v5518 = vunpack.c.l.b16 %v5281
    %v5519 = vunpack.c.h.b16 %v5281
    %v5520 = vunpack.c.l.b16 %v5282
    %v5521 = vunpack.c.h.b16 %v5282
    %v5522 = vunpack.c.l.b16 %v5283
    %v5523 = vunpack.c.h.b16 %v5283
    %v5524 = vpack.c.b16 %v5520, %v5516
    %v5525 = vpack.c.b16 %v5521, %v5517
    %v5526 = vpack.c.b16 %v5522, %v5518
    %v5527 = vpack.c.b16 %v5523, %v5519
    %vm5531 = vcmask 392192
    %v5533 = vsel %vm5531, %v5527, 0
    %5535 = vmatprep.subr.bf16.mxu0 %v5285
    %5536 = vmatpush1.bf16.msra.mxu0 %v5284
    %5537 = vmatprep.subr.bf16.mxu0 %v5293
    %5538 = vmatpush1.bf16.msra.mxu0 %v5292
    %5539 = vmatprep.subr.bf16.mxu0 %v5301
    %5540 = vmatpush1.bf16.msra.mxu0 %v5300
    %5541 = vmatprep.subr.bf16.mxu0 %v5309
    %5542 = vmatpush1.bf16.msra.mxu0 %v5308
    %5543 = vmatprep.subr.bf16.mxu0 %v5317
    %5544 = vmatpush1.bf16.msra.mxu0 %v5316
    %5545 = vmatprep.subr.bf16.mxu0 %v5325
    %5546 = vmatpush1.bf16.msra.mxu0 %v5324
    %5547 = vmatprep.subr.bf16.mxu0 %v5333
    %5548 = vmatpush1.bf16.msra.mxu0 %v5332
    %5549 = vmatprep.subr.bf16.mxu0 %v5341
    %5550 = vmatpush1.bf16.msra.mxu0 %v5340
    %5551 = vmatprep.subr.bf16.mxu0 %v5349
    %5552 = vmatpush1.bf16.msra.mxu0 %v5348
    %5553 = vmatprep.subr.bf16.mxu0 %v5357
    %5554 = vmatpush1.bf16.msra.mxu0 %v5356
    %5555 = vmatprep.subr.bf16.mxu0 %v5365
    %5556 = vmatpush1.bf16.msra.mxu0 %v5364
    %5557 = vmatprep.subr.bf16.mxu0 %v5373
    %5558 = vmatpush1.bf16.msra.mxu0 %v5372
    %5559 = vmatprep.subr.bf16.mxu0 %v5381
    %5560 = vmatpush1.bf16.msra.mxu0 %v5380
    %5561 = vmatprep.subr.bf16.mxu0 %v5389
    %5562 = vmatpush1.bf16.msra.mxu0 %v5388
    %5563 = vmatprep.subr.bf16.mxu0 %v5397
    %5564 = vmatpush1.bf16.msra.mxu0 %v5396
    %5565 = vmatprep.subr.bf16.mxu0 %v5405
    %5566 = vmatpush1.bf16.msra.mxu0 %v5404
    %5567 = vmatprep.mubr.bf16.mxu0 %v5525
    %5568 = vmatmul.mubr.bf16.gmra.mrb[0].mxu0 %v5524
    %v5569 = vpop.f32.mrb[0].mxu0
    %v5570 = vadd.f32 %v5505, %v5569
    %v5571 = vpop.f32.mrb[0].mxu0
    %v5572 = vadd.f32 %v5505, %v5571
    %v5573 = vpop.f32.mrb[0].mxu0
    %v5574 = vadd.f32 %v5510, %v5573
    %v5575 = vpop.f32.mrb[0].mxu0
    %v5576 = vadd.f32 %v5510, %v5575
    %5577 = vdwg.mxu0
    %5578 = vmatprep.subr.bf16.mxu0 %v5413
    %5579 = vmatpush1.bf16.msra.mxu0 %v5412
    %5580 = vmatprep.subr.bf16.mxu0 %v5421
    %5581 = vmatpush1.bf16.msra.mxu0 %v5420
    %5582 = vmatprep.subr.bf16.mxu0 %v5429
    %5583 = vmatpush1.bf16.msra.mxu0 %v5428
    %5584 = vmatprep.subr.bf16.mxu0 %v5437
    %5585 = vmatpush1.bf16.msra.mxu0 %v5436
    %5586 = vmatprep.subr.bf16.mxu0 %v5445
    %5587 = vmatpush1.bf16.msra.mxu0 %v5444
    %5588 = vmatprep.subr.bf16.mxu0 %v5453
    %5589 = vmatpush1.bf16.msra.mxu0 %v5452
    %5590 = vmatprep.subr.bf16.mxu0 %v5461
    %5591 = vmatpush1.bf16.msra.mxu0 %v5460
    %5592 = vmatprep.subr.bf16.mxu0 %v5469
    %5593 = vmatpush1.bf16.msra.mxu0 %v5468
    %5594 = vmatprep.subr.bf16.mxu0 %v5477
    %5595 = vmatpush1.bf16.msra.mxu0 %v5476
    %5596 = vmatprep.subr.bf16.mxu0 %v5485
    %5597 = vmatpush1.bf16.msra.mxu0 %v5484
    %5598 = vmatprep.subr.bf16.mxu0 %v5493
    %5599 = vmatpush1.bf16.msra.mxu0 %v5492
    %5600 = vmatprep.subr.bf16.mxu0 0
    %5601 = vmatpush1.bf16.msra.mxu0 0
    %5602 = vmatprep.subr.bf16.mxu0 0
    %5603 = vmatpush1.bf16.msra.mxu0 0
    %5604 = vmatprep.subr.bf16.mxu0 0
    %5605 = vmatpush1.bf16.msra.mxu0 0
    %5606 = vmatprep.subr.bf16.mxu0 0
    %5607 = vmatpush1.bf16.msra.mxu0 0
    %5608 = vmatprep.subr.bf16.mxu0 0
    %5609 = vmatpush1.bf16.msra.mxu0 0
    %5610 = vmatprep.mubr.bf16.mxu0 %v5533
    %5611 = vmatmul.mubr.bf16.gmra.mrb[0].mxu0 %v5526
    %v5612 = vpop.f32.mrb[0].mxu0
    %v5613 = vadd.f32 %v5570, %v5612
    %v5614 = vpop.f32.mrb[0].mxu0
    %v5615 = vadd.f32 %v5572, %v5614
    %v5616 = vpop.f32.mrb[0].mxu0
    %v5617 = vadd.f32 %v5574, %v5616
    %v5618 = vpop.f32.mrb[0].mxu0
    %v5619 = vadd.f32 %v5576, %v5618
    %5620 = vdwg.mxu0
    %5621 = vmatprep.subr.bf16.mxu0 %v5287
    %5622 = vmatpush1.bf16.msra.mxu0 %v5286
    %5623 = vmatprep.subr.bf16.mxu0 %v5295
    %5624 = vmatpush1.bf16.msra.mxu0 %v5294
    %5625 = vmatprep.subr.bf16.mxu0 %v5303
    %5626 = vmatpush1.bf16.msra.mxu0 %v5302
    %5627 = vmatprep.subr.bf16.mxu0 %v5311
    %5628 = vmatpush1.bf16.msra.mxu0 %v5310
    %5629 = vmatprep.subr.bf16.mxu0 %v5319
    %5630 = vmatpush1.bf16.msra.mxu0 %v5318
    %5631 = vmatprep.subr.bf16.mxu0 %v5327
    %5632 = vmatpush1.bf16.msra.mxu0 %v5326
    %5633 = vmatprep.subr.bf16.mxu0 %v5335
    %5634 = vmatpush1.bf16.msra.mxu0 %v5334
    %5635 = vmatprep.subr.bf16.mxu0 %v5343
    %5636 = vmatpush1.bf16.msra.mxu0 %v5342
    %5637 = vmatprep.subr.bf16.mxu0 %v5351
    %5638 = vmatpush1.bf16.msra.mxu0 %v5350
    %5639 = vmatprep.subr.bf16.mxu0 %v5359
    %5640 = vmatpush1.bf16.msra.mxu0 %v5358
    %5641 = vmatprep.subr.bf16.mxu0 %v5367
    %5642 = vmatpush1.bf16.msra.mxu0 %v5366
    %5643 = vmatprep.subr.bf16.mxu0 %v5375
    %5644 = vmatpush1.bf16.msra.mxu0 %v5374
    %5645 = vmatprep.subr.bf16.mxu0 %v5383
    %5646 = vmatpush1.bf16.msra.mxu0 %v5382
    %5647 = vmatprep.subr.bf16.mxu0 %v5391
    %5648 = vmatpush1.bf16.msra.mxu0 %v5390
    %5649 = vmatprep.subr.bf16.mxu0 %v5399
    %5650 = vmatpush1.bf16.msra.mxu0 %v5398
    %5651 = vmatprep.subr.bf16.mxu0 %v5407
    %5652 = vmatpush1.bf16.msra.mxu0 %v5406
    %5653 = vmatprep.mubr.bf16.mxu0 %v5525
    %5654 = vmatmul.mubr.bf16.gmra.mrb[0].mxu0 %v5524
    %v5655 = vpop.f32.mrb[0].mxu0
    %v5656 = vadd.f32 %v5505, %v5655
    %v5657 = vpop.f32.mrb[0].mxu0
    %v5658 = vadd.f32 %v5505, %v5657
    %v5659 = vpop.f32.mrb[0].mxu0
    %v5660 = vadd.f32 %v5510, %v5659
    %v5661 = vpop.f32.mrb[0].mxu0
    %v5662 = vadd.f32 %v5510, %v5661
    %5663 = vdwg.mxu0
    %5664 = vmatprep.subr.bf16.mxu0 %v5415
    %5665 = vmatpush1.bf16.msra.mxu0 %v5414
    %5666 = vmatprep.subr.bf16.mxu0 %v5423
    %5667 = vmatpush1.bf16.msra.mxu0 %v5422
    %5668 = vmatprep.subr.bf16.mxu0 %v5431
    %5669 = vmatpush1.bf16.msra.mxu0 %v5430
    %5670 = vmatprep.subr.bf16.mxu0 %v5439
    %5671 = vmatpush1.bf16.msra.mxu0 %v5438
    %5672 = vmatprep.subr.bf16.mxu0 %v5447
    %5673 = vmatpush1.bf16.msra.mxu0 %v5446
    %5674 = vmatprep.subr.bf16.mxu0 %v5455
    %5675 = vmatpush1.bf16.msra.mxu0 %v5454
    %5676 = vmatprep.subr.bf16.mxu0 %v5463
    %5677 = vmatpush1.bf16.msra.mxu0 %v5462
    %5678 = vmatprep.subr.bf16.mxu0 %v5471
    %5679 = vmatpush1.bf16.msra.mxu0 %v5470
    %5680 = vmatprep.subr.bf16.mxu0 %v5479
    %5681 = vmatpush1.bf16.msra.mxu0 %v5478
    %5682 = vmatprep.subr.bf16.mxu0 %v5487
    %5683 = vmatpush1.bf16.msra.mxu0 %v5486
    %5684 = vmatprep.subr.bf16.mxu0 %v5495
    %5685 = vmatpush1.bf16.msra.mxu0 %v5494
    %5686 = vmatprep.subr.bf16.mxu0 0
    %5687 = vmatpush1.bf16.msra.mxu0 0
    %5688 = vmatprep.subr.bf16.mxu0 0
    %5689 = vmatpush1.bf16.msra.mxu0 0
    %5690 = vmatprep.subr.bf16.mxu0 0
    %5691 = vmatpush1.bf16.msra.mxu0 0
    %5692 = vmatprep.subr.bf16.mxu0 0
    %5693 = vmatpush1.bf16.msra.mxu0 0
    %5694 = vmatprep.subr.bf16.mxu0 0
    %5695 = vmatpush1.bf16.msra.mxu0 0
    %5696 = vmatprep.mubr.bf16.mxu0 %v5533
    %5697 = vmatmul.mubr.bf16.gmra.mrb[0].mxu0 %v5526
    %v5698 = vpop.f32.mrb[0].mxu0
    %v5699 = vadd.f32 %v5656, %v5698
    %v5700 = vpop.f32.mrb[0].mxu0
    %v5701 = vadd.f32 %v5658, %v5700
    %v5702 = vpop.f32.mrb[0].mxu0
    %v5703 = vadd.f32 %v5660, %v5702
    %v5704 = vpop.f32.mrb[0].mxu0
    %v5705 = vadd.f32 %v5662, %v5704
    %5706 = vdwg.mxu0
    %5707 = vmatprep.subr.bf16.mxu0 %v5289
    %5708 = vmatpush1.bf16.msra.mxu0 %v5288
    %5709 = vmatprep.subr.bf16.mxu0 %v5297
    %5710 = vmatpush1.bf16.msra.mxu0 %v5296
    %5711 = vmatprep.subr.bf16.mxu0 %v5305
    %5712 = vmatpush1.bf16.msra.mxu0 %v5304
    %5713 = vmatprep.subr.bf16.mxu0 %v5313
    %5714 = vmatpush1.bf16.msra.mxu0 %v5312
    %5715 = vmatprep.subr.bf16.mxu0 %v5321
    %5716 = vmatpush1.bf16.msra.mxu0 %v5320
    %5717 = vmatprep.subr.bf16.mxu0 %v5329
    %5718 = vmatpush1.bf16.msra.mxu0 %v5328
    %5719 = vmatprep.subr.bf16.mxu0 %v5337
    %5720 = vmatpush1.bf16.msra.mxu0 %v5336
    %5721 = vmatprep.subr.bf16.mxu0 %v5345
    %5722 = vmatpush1.bf16.msra.mxu0 %v5344
    %5723 = vmatprep.subr.bf16.mxu0 %v5353
    %5724 = vmatpush1.bf16.msra.mxu0 %v5352
    %5725 = vmatprep.subr.bf16.mxu0 %v5361
    %5726 = vmatpush1.bf16.msra.mxu0 %v5360
    %5727 = vmatprep.subr.bf16.mxu0 %v5369
    %5728 = vmatpush1.bf16.msra.mxu0 %v5368
    %5729 = vmatprep.subr.bf16.mxu0 %v5377
    %5730 = vmatpush1.bf16.msra.mxu0 %v5376
    %5731 = vmatprep.subr.bf16.mxu0 %v5385
    %5732 = vmatpush1.bf16.msra.mxu0 %v5384
    %5733 = vmatprep.subr.bf16.mxu0 %v5393
    %5734 = vmatpush1.bf16.msra.mxu0 %v5392
    %5735 = vmatprep.subr.bf16.mxu0 %v5401
    %5736 = vmatpush1.bf16.msra.mxu0 %v5400
    %5737 = vmatprep.subr.bf16.mxu0 %v5409
    %5738 = vmatpush1.bf16.msra.mxu0 %v5408
    %5739 = vmatprep.mubr.bf16.mxu0 %v5525
    %5740 = vmatmul.mubr.bf16.gmra.mrb[0].mxu0 %v5524
    %v5741 = vpop.f32.mrb[0].mxu0
    %v5742 = vadd.f32 %v5505, %v5741
    %v5743 = vpop.f32.mrb[0].mxu0
    %v5744 = vadd.f32 %v5505, %v5743
    %v5745 = vpop.f32.mrb[0].mxu0
    %v5746 = vadd.f32 %v5510, %v5745
    %v5747 = vpop.f32.mrb[0].mxu0
    %v5748 = vadd.f32 %v5510, %v5747
    %5749 = vdwg.mxu0
    %5750 = vmatprep.subr.bf16.mxu0 %v5417
    %5751 = vmatpush1.bf16.msra.mxu0 %v5416
    %5752 = vmatprep.subr.bf16.mxu0 %v5425
    %5753 = vmatpush1.bf16.msra.mxu0 %v5424
    %5754 = vmatprep.subr.bf16.mxu0 %v5433
    %5755 = vmatpush1.bf16.msra.mxu0 %v5432
    %5756 = vmatprep.subr.bf16.mxu0 %v5441
    %5757 = vmatpush1.bf16.msra.mxu0 %v5440
    %5758 = vmatprep.subr.bf16.mxu0 %v5449
    %5759 = vmatpush1.bf16.msra.mxu0 %v5448
    %5760 = vmatprep.subr.bf16.mxu0 %v5457
    %5761 = vmatpush1.bf16.msra.mxu0 %v5456
    %5762 = vmatprep.subr.bf16.mxu0 %v5465
    %5763 = vmatpush1.bf16.msra.mxu0 %v5464
    %5764 = vmatprep.subr.bf16.mxu0 %v5473
    %5765 = vmatpush1.bf16.msra.mxu0 %v5472
    %5766 = vmatprep.subr.bf16.mxu0 %v5481
    %5767 = vmatpush1.bf16.msra.mxu0 %v5480
    %5768 = vmatprep.subr.bf16.mxu0 %v5489
    %5769 = vmatpush1.bf16.msra.mxu0 %v5488
    %5770 = vmatprep.subr.bf16.mxu0 %v5497
    %5771 = vmatpush1.bf16.msra.mxu0 %v5496
    %5772 = vmatprep.subr.bf16.mxu0 0
    %5773 = vmatpush1.bf16.msra.mxu0 0
    %5774 = vmatprep.subr.bf16.mxu0 0
    %5775 = vmatpush1.bf16.msra.mxu0 0
    %5776 = vmatprep.subr.bf16.mxu0 0
    %5777 = vmatpush1.bf16.msra.mxu0 0
    %5778 = vmatprep.subr.bf16.mxu0 0
    %5779 = vmatpush1.bf16.msra.mxu0 0
    %5780 = vmatprep.subr.bf16.mxu0 0
    %5781 = vmatpush1.bf16.msra.mxu0 0
    %5782 = vmatprep.mubr.bf16.mxu0 %v5533
    %5783 = vmatmul.mubr.bf16.gmra.mrb[0].mxu0 %v5526
    %v5784 = vpop.f32.mrb[0].mxu0
    %v5785 = vadd.f32 %v5742, %v5784
    %v5786 = vpop.f32.mrb[0].mxu0
    %v5787 = vadd.f32 %v5744, %v5786
    %v5788 = vpop.f32.mrb[0].mxu0
    %v5789 = vadd.f32 %v5746, %v5788
    %v5790 = vpop.f32.mrb[0].mxu0
    %v5791 = vadd.f32 %v5748, %v5790
    %5792 = vdwg.mxu0
    %5793 = vmatprep.subr.bf16.mxu0 %v5291
    %5794 = vmatpush1.bf16.msra.mxu0 %v5290
    %5795 = vmatprep.subr.bf16.mxu0 %v5299
    %5796 = vmatpush1.bf16.msra.mxu0 %v5298
    %5797 = vmatprep.subr.bf16.mxu0 %v5307
    %5798 = vmatpush1.bf16.msra.mxu0 %v5306
    %5799 = vmatprep.subr.bf16.mxu0 %v5315
    %5800 = vmatpush1.bf16.msra.mxu0 %v5314
    %5801 = vmatprep.subr.bf16.mxu0 %v5323
    %5802 = vmatpush1.bf16.msra.mxu0 %v5322
    %5803 = vmatprep.subr.bf16.mxu0 %v5331
    %5804 = vmatpush1.bf16.msra.mxu0 %v5330
    %5805 = vmatprep.subr.bf16.mxu0 %v5339
    %5806 = vmatpush1.bf16.msra.mxu0 %v5338
    %5807 = vmatprep.subr.bf16.mxu0 %v5347
    %5808 = vmatpush1.bf16.msra.mxu0 %v5346
    %5809 = vmatprep.subr.bf16.mxu0 %v5355
    %5810 = vmatpush1.bf16.msra.mxu0 %v5354
    %5811 = vmatprep.subr.bf16.mxu0 %v5363
    %5812 = vmatpush1.bf16.msra.mxu0 %v5362
    %5813 = vmatprep.subr.bf16.mxu0 %v5371
    %5814 = vmatpush1.bf16.msra.mxu0 %v5370
    %5815 = vmatprep.subr.bf16.mxu0 %v5379
    %5816 = vmatpush1.bf16.msra.mxu0 %v5378
    %5817 = vmatprep.subr.bf16.mxu0 %v5387
    %5818 = vmatpush1.bf16.msra.mxu0 %v5386
    %5819 = vmatprep.subr.bf16.mxu0 %v5395
    %5820 = vmatpush1.bf16.msra.mxu0 %v5394
    %5821 = vmatprep.subr.bf16.mxu0 %v5403
    %5822 = vmatpush1.bf16.msra.mxu0 %v5402
    %5823 = vmatprep.subr.bf16.mxu0 %v5411
    %5824 = vmatpush1.bf16.msra.mxu0 %v5410
    %5825 = vmatprep.mubr.bf16.mxu0 %v5525
    %5826 = vmatmul.mubr.bf16.gmra.mrb[0].mxu0 %v5524
    %v5827 = vpop.f32.mrb[0].mxu0
    %v5828 = vadd.f32 %v5505, %v5827
    %v5829 = vpop.f32.mrb[0].mxu0
    %v5830 = vadd.f32 %v5505, %v5829
    %v5831 = vpop.f32.mrb[0].mxu0
    %v5832 = vadd.f32 %v5510, %v5831
    %v5833 = vpop.f32.mrb[0].mxu0
    %v5834 = vadd.f32 %v5510, %v5833
    %5835 = vdwg.mxu0
    %5836 = vmatprep.subr.bf16.mxu0 %v5419
    %5837 = vmatpush1.bf16.msra.mxu0 %v5418
    %5838 = vmatprep.subr.bf16.mxu0 %v5427
    %5839 = vmatpush1.bf16.msra.mxu0 %v5426
    %5840 = vmatprep.subr.bf16.mxu0 %v5435
    %5841 = vmatpush1.bf16.msra.mxu0 %v5434
    %5842 = vmatprep.subr.bf16.mxu0 %v5443
    %5843 = vmatpush1.bf16.msra.mxu0 %v5442
    %5844 = vmatprep.subr.bf16.mxu0 %v5451
    %5845 = vmatpush1.bf16.msra.mxu0 %v5450
    %5846 = vmatprep.subr.bf16.mxu0 %v5459
    %5847 = vmatpush1.bf16.msra.mxu0 %v5458
    %5848 = vmatprep.subr.bf16.mxu0 %v5467
    %5849 = vmatpush1.bf16.msra.mxu0 %v5466
    %5850 = vmatprep.subr.bf16.mxu0 %v5475
    %5851 = vmatpush1.bf16.msra.mxu0 %v5474
    %5852 = vmatprep.subr.bf16.mxu0 %v5483
    %5853 = vmatpush1.bf16.msra.mxu0 %v5482
    %5854 = vmatprep.subr.bf16.mxu0 %v5491
    %5855 = vmatpush1.bf16.msra.mxu0 %v5490
    %5856 = vmatprep.subr.bf16.mxu0 %v5499
    %5857 = vmatpush1.bf16.msra.mxu0 %v5498
    %5858 = vmatprep.subr.bf16.mxu0 0
    %5859 = vmatpush1.bf16.msra.mxu0 0
    %5860 = vmatprep.subr.bf16.mxu0 0
    %5861 = vmatpush1.bf16.msra.mxu0 0
    %5862 = vmatprep.subr.bf16.mxu0 0
    %5863 = vmatpush1.bf16.msra.mxu0 0
    %5864 = vmatprep.subr.bf16.mxu0 0
    %5865 = vmatpush1.bf16.msra.mxu0 0
    %5866 = vmatprep.subr.bf16.mxu0 0
    %5867 = vmatpush1.bf16.msra.mxu0 0
    %5868 = vmatprep.mubr.bf16.mxu0 %v5533
    %5869 = vmatmul.mubr.bf16.gmra.mrb[0].mxu0 %v5526
    %v5870 = vpop.f32.mrb[0].mxu0
    %v5871 = vadd.f32 %v5828, %v5870
    %v5872 = vpop.f32.mrb[0].mxu0
    %v5873 = vadd.f32 %v5830, %v5872
    %v5874 = vpop.f32.mrb[0].mxu0
    %v5875 = vadd.f32 %v5832, %v5874
    %v5876 = vpop.f32.mrb[0].mxu0
    %v5877 = vadd.f32 %v5834, %v5876
    %5878 = vdwg.mxu0
    %v5879 = vmax.f32 %v5613, 0.0
    %v5880 = vmax.f32 %v5615, 0.0
    %v5881 = vmax.f32 %v5699, 0.0
    %v5882 = vmax.f32 %v5701, 0.0
    %v5883 = vmax.f32 %v5785, 0.0
    %v5884 = vmax.f32 %v5787, 0.0
    %v5885 = vmax.f32 %v5871, 0.0
    %v5886 = vmax.f32 %v5873, 0.0
    %v5887 = vmax.f32 %v5617, 0.0
    %v5888 = vmax.f32 %v5619, 0.0
    %v5889 = vmax.f32 %v5703, 0.0
    %v5890 = vmax.f32 %v5705, 0.0
    %v5891 = vmax.f32 %v5789, 0.0
    %v5892 = vmax.f32 %v5791, 0.0
    %v5893 = vmax.f32 %v5875, 0.0
    %v5894 = vmax.f32 %v5877, 0.0
    %v5895 = vpack.c.bf16 %v5887, %v5879
    %v5896 = vpack.c.bf16 %v5888, %v5880
    %v5897 = vpack.c.bf16 %v5889, %v5881
    %v5898 = vpack.c.bf16 %v5890, %v5882
    %v5899 = vpack.c.bf16 %v5891, %v5883
    %v5900 = vpack.c.bf16 %v5892, %v5884
    %v5901 = vpack.c.bf16 %v5893, %v5885
    %v5902 = vpack.c.bf16 %v5894, %v5886
    %5903 = vst [vmem:[#allocation3 + $0x8] sm:$0xff] %v5895
    %5904 = vst [vmem:[#allocation3 + $0x10] sm:$0xff] %v5896
    %5905 = vst [vmem:[#allocation3 + $0x18] sm:$0xff] %v5897
    %5906 = vst [vmem:[#allocation3 + $0x20] sm:$0xff] %v5898
    %5907 = vst [vmem:[#allocation3 + $0x28] sm:$0xff] %v5899
    %5908 = vst [vmem:[#allocation3 + $0x30] sm:$0xff] %v5900
    %5909 = vst [vmem:[#allocation3 + $0x38] sm:$0xff] %v5901
    %5910 = vst [vmem:[#allocation3 + $0x40] sm:$0xff] %v5902
    %v5911 = vld [vmem:[#allocation3] sm:$0xff]
    %v5912 = vld [vmem:[#allocation3 + $0x8] sm:$0xff]
    %v5913 = vld [vmem:[#allocation3 + $0x10] sm:$0xff]
    %v5914 = vld [vmem:[#allocation3 + $0x18] sm:$0xff]
    %v5915 = vld [vmem:[#allocation3 + $0x20] sm:$0xff]
    %v5916 = vld [vmem:[#allocation3 + $0x28] sm:$0xff]
    %v5917 = vld [vmem:[#allocation3 + $0x30] sm:$0xff]
    %v5918 = vld [vmem:[#allocation3 + $0x38] sm:$0xff]
    %v5919 = vld [vmem:[#allocation3 + $0x40] sm:$0xff]
    %v5920 = vld [vmem:[#allocation8] sm:$0x11]
    %v5921 = vld [vmem:[#allocation8 + $0x8] sm:$0x11]
    %v5922 = vld [vmem:[#allocation8 + $0x10] sm:$0x11]
    %v5923 = vld [vmem:[#allocation8 + $0x18] sm:$0x11]
    %v5928 = vunpack.c.l.b16 %v5920
    %v5929 = vunpack.c.h.b16 %v5920
    %v5930 = vunpack.c.l.b16 %v5921
    %v5931 = vunpack.c.h.b16 %v5921
    %v5932 = vunpack.c.l.b16 %v5922
    %v5933 = vunpack.c.h.b16 %v5922
    %v5934 = vunpack.c.l.b16 %v5923
    %v5935 = vunpack.c.h.b16 %v5923
    %v5936 = vpack.c.b16 %v5928, %v5928
    %v5937 = vpack.c.b16 %v5929, %v5929
    %v5938 = vpack.c.b16 %v5930, %v5930
    %v5939 = vpack.c.b16 %v5931, %v5931
    %v5940 = vpack.c.b16 %v5932, %v5932
    %v5941 = vpack.c.b16 %v5933, %v5933
    %v5942 = vpack.c.b16 %v5934, %v5934
    %v5943 = vpack.c.b16 %v5935, %v5935
    %v5945 = vpack.i.b16 %v5936, %v5936
    %v5947 = vlaneseq
    %v5948 = vshrl.u32 %v5947, 7
    %v5949 = vsub.s32 0, %v5948
    %v5950 = vrot.slane %v5945, %v5949
    %v5952 = vpack.i.b16 %v5937, %v5937
    %v5954 = vlaneseq
    %v5955 = vshrl.u32 %v5954, 7
    %v5956 = vsub.s32 0, %v5955
    %v5957 = vrot.slane %v5952, %v5956
    %v5959 = vpack.i.b16 %v5938, %v5938
    %v5961 = vlaneseq
    %v5962 = vshrl.u32 %v5961, 7
    %v5963 = vsub.s32 0, %v5962
    %v5964 = vrot.slane %v5959, %v5963
    %v5966 = vpack.i.b16 %v5939, %v5939
    %v5968 = vlaneseq
    %v5969 = vshrl.u32 %v5968, 7
    %v5970 = vsub.s32 0, %v5969
    %v5971 = vrot.slane %v5966, %v5970
    %v5973 = vpack.i.b16 %v5940, %v5940
    %v5975 = vlaneseq
    %v5976 = vshrl.u32 %v5975, 7
    %v5977 = vsub.s32 0, %v5976
    %v5978 = vrot.slane %v5973, %v5977
    %v5980 = vpack.i.b16 %v5941, %v5941
    %v5982 = vlaneseq
    %v5983 = vshrl.u32 %v5982, 7
    %v5984 = vsub.s32 0, %v5983
    %v5985 = vrot.slane %v5980, %v5984
    %v5987 = vpack.i.b16 %v5942, %v5942
    %v5989 = vlaneseq
    %v5990 = vshrl.u32 %v5989, 7
    %v5991 = vsub.s32 0, %v5990
    %v5992 = vrot.slane %v5987, %v5991
    %v5994 = vpack.i.b16 %v5943, %v5943
    %v5996 = vlaneseq
    %v5997 = vshrl.u32 %v5996, 7
    %v5998 = vsub.s32 0, %v5997
    %v5999 = vrot.slane %v5994, %v5998
    %6008 = vrot.lane.b32.xlu0 %v5950, 55
    %v6009 = vpop.permute.xlu0 %6008
    %6010 = vrot.lane.b32.xlu0 %v5957, 55
    %v6011 = vpop.permute.xlu0 %6010
    %6012 = vrot.lane.b32.xlu0 %v5964, 55
    %v6013 = vpop.permute.xlu0 %6012
    %6014 = vrot.lane.b32.xlu0 %v5971, 55
    %v6015 = vpop.permute.xlu0 %6014
    %6016 = vrot.lane.b32.xlu0 %v5978, 55
    %v6017 = vpop.permute.xlu0 %6016
    %6018 = vrot.lane.b32.xlu0 %v5985, 55
    %v6019 = vpop.permute.xlu0 %6018
    %6020 = vrot.lane.b32.xlu0 %v5992, 55
    %v6021 = vpop.permute.xlu0 %6020
    %6022 = vrot.lane.b32.xlu0 %v5999, 55
    %v6023 = vpop.permute.xlu0 %6022
    %v6024 = vsel %vm254, %v6009, %v6011
    %v6025 = vsel %vm254, %v6011, %v6013
    %v6026 = vsel %vm254, %v6013, %v6015
    %v6027 = vsel %vm254, %v6015, %v6017
    %v6028 = vsel %vm254, %v6017, %v6019
    %v6029 = vsel %vm254, %v6019, %v6021
    %v6030 = vsel %vm254, %v6021, %v6023
    %v6040 = vmul.bf16 %v5911, %v6009
    %v6041 = vmul.bf16 %v5912, %v6024
    %v6042 = vmul.bf16 %v5913, %v6025
    %v6043 = vmul.bf16 %v5914, %v6026
    %v6044 = vmul.bf16 %v5915, %v6027
    %v6045 = vmul.bf16 %v5916, %v6028
    %v6046 = vmul.bf16 %v5917, %v6029
    %v6047 = vmul.bf16 %v5918, %v6030
    %v6048 = vmul.bf16 %v5919, %v6023
    %6058 = vrot.lane.b32.xlu0 %v6040, 73
    %v6059 = vpop.permute.xlu0 %6058
    %6060 = vrot.lane.b32.xlu0 %v6041, 73
    %v6061 = vpop.permute.xlu0 %6060
    %6062 = vrot.lane.b32.xlu0 %v6042, 73
    %v6063 = vpop.permute.xlu0 %6062
    %6064 = vrot.lane.b32.xlu0 %v6043, 73
    %v6065 = vpop.permute.xlu0 %6064
    %6066 = vrot.lane.b32.xlu0 %v6044, 73
    %v6067 = vpop.permute.xlu0 %6066
    %6068 = vrot.lane.b32.xlu0 %v6045, 73
    %v6069 = vpop.permute.xlu0 %6068
    %6070 = vrot.lane.b32.xlu0 %v6046, 73
    %v6071 = vpop.permute.xlu0 %6070
    %6072 = vrot.lane.b32.xlu0 %v6047, 73
    %v6073 = vpop.permute.xlu0 %6072
    %6074 = vrot.lane.b32.xlu0 %v6048, 73
    %v6075 = vpop.permute.xlu0 %6074
    %v6076 = vsel %vm307, %v6059, %v6061
    %v6077 = vsel %vm307, %v6061, %v6063
    %v6078 = vsel %vm307, %v6063, %v6065
    %v6079 = vsel %vm307, %v6065, %v6067
    %v6080 = vsel %vm307, %v6067, %v6069
    %v6081 = vsel %vm307, %v6069, %v6071
    %v6082 = vsel %vm307, %v6071, %v6073
    %v6083 = vsel %vm307, %v6073, %v6075
    %6092 = vst [vmem:[#allocation4] sm:$0xff] %v6076
    %6093 = vst [vmem:[#allocation4 + $0x8] sm:$0xff] %v6077
    %6094 = vst [vmem:[#allocation4 + $0x10] sm:$0xff] %v6078
    %6095 = vst [vmem:[#allocation4 + $0x18] sm:$0xff] %v6079
    %6096 = vst [vmem:[#allocation4 + $0x20] sm:$0xff] %v6080
    %6097 = vst [vmem:[#allocation4 + $0x28] sm:$0xff] %v6081
    %6098 = vst [vmem:[#allocation4 + $0x30] sm:$0xff] %v6082
    %6099 = vst [vmem:[#allocation4 + $0x38] sm:$0xff] %v6083
    %v6100 = vld [vmem:[#allocation3] sm:$0xff]
    %v6101 = vld [vmem:[#allocation3 + $0x8] sm:$0xff]
    %v6102 = vld [vmem:[#allocation3 + $0x10] sm:$0xff]
    %v6103 = vld [vmem:[#allocation3 + $0x18] sm:$0xff]
    %v6104 = vld [vmem:[#allocation3 + $0x20] sm:$0xff]
    %v6105 = vld [vmem:[#allocation3 + $0x28] sm:$0xff]
    %v6106 = vld [vmem:[#allocation3 + $0x30] sm:$0xff]
    %v6107 = vld [vmem:[#allocation3 + $0x38] sm:$0xff]
    %v6108 = vld [vmem:[#allocation3 + $0x40] sm:$0xff]
    %v6109 = vld [vmem:[#allocation8] sm:$0x11]
    %v6110 = vld [vmem:[#allocation8 + $0x8] sm:$0x11]
    %v6111 = vld [vmem:[#allocation8 + $0x10] sm:$0x11]
    %v6112 = vld [vmem:[#allocation8 + $0x18] sm:$0x11]
    %v6117 = vunpack.c.l.b16 %v6109
    %v6118 = vunpack.c.h.b16 %v6109
    %v6119 = vunpack.c.l.b16 %v6110
    %v6120 = vunpack.c.h.b16 %v6110
    %v6121 = vunpack.c.l.b16 %v6111
    %v6122 = vunpack.c.h.b16 %v6111
    %v6123 = vunpack.c.l.b16 %v6112
    %v6124 = vunpack.c.h.b16 %v6112
    %v6125 = vpack.c.b16 %v6117, %v6117
    %v6126 = vpack.c.b16 %v6118, %v6118
    %v6127 = vpack.c.b16 %v6119, %v6119
    %v6128 = vpack.c.b16 %v6120, %v6120
    %v6129 = vpack.c.b16 %v6121, %v6121
    %v6130 = vpack.c.b16 %v6122, %v6122
    %v6131 = vpack.c.b16 %v6123, %v6123
    %v6132 = vpack.c.b16 %v6124, %v6124
    %v6134 = vshrl.u32 %v6125, 16
    %v6135 = vpack.i.b16 %v6134, %v6134
    %v6137 = vlaneseq
    %v6138 = vshrl.u32 %v6137, 7
    %v6139 = vsub.s32 0, %v6138
    %v6140 = vrot.slane %v6135, %v6139
    %v6142 = vshrl.u32 %v6126, 16
    %v6143 = vpack.i.b16 %v6142, %v6142
    %v6145 = vlaneseq
    %v6146 = vshrl.u32 %v6145, 7
    %v6147 = vsub.s32 0, %v6146
    %v6148 = vrot.slane %v6143, %v6147
    %v6150 = vshrl.u32 %v6127, 16
    %v6151 = vpack.i.b16 %v6150, %v6150
    %v6153 = vlaneseq
    %v6154 = vshrl.u32 %v6153, 7
    %v6155 = vsub.s32 0, %v6154
    %v6156 = vrot.slane %v6151, %v6155
    %v6158 = vshrl.u32 %v6128, 16
    %v6159 = vpack.i.b16 %v6158, %v6158
    %v6161 = vlaneseq
    %v6162 = vshrl.u32 %v6161, 7
    %v6163 = vsub.s32 0, %v6162
    %v6164 = vrot.slane %v6159, %v6163
    %v6166 = vshrl.u32 %v6129, 16
    %v6167 = vpack.i.b16 %v6166, %v6166
    %v6169 = vlaneseq
    %v6170 = vshrl.u32 %v6169, 7
    %v6171 = vsub.s32 0, %v6170
    %v6172 = vrot.slane %v6167, %v6171
    %v6174 = vshrl.u32 %v6130, 16
    %v6175 = vpack.i.b16 %v6174, %v6174
    %v6177 = vlaneseq
    %v6178 = vshrl.u32 %v6177, 7
    %v6179 = vsub.s32 0, %v6178
    %v6180 = vrot.slane %v6175, %v6179
    %v6182 = vshrl.u32 %v6131, 16
    %v6183 = vpack.i.b16 %v6182, %v6182
    %v6185 = vlaneseq
    %v6186 = vshrl.u32 %v6185, 7
    %v6187 = vsub.s32 0, %v6186
    %v6188 = vrot.slane %v6183, %v6187
    %v6190 = vshrl.u32 %v6132, 16
    %v6191 = vpack.i.b16 %v6190, %v6190
    %v6193 = vlaneseq
    %v6194 = vshrl.u32 %v6193, 7
    %v6195 = vsub.s32 0, %v6194
    %v6196 = vrot.slane %v6191, %v6195
    %6205 = vrot.lane.b32.xlu0 %v6140, 56
    %v6206 = vpop.permute.xlu0 %6205
    %6207 = vrot.lane.b32.xlu0 %v6148, 56
    %v6208 = vpop.permute.xlu0 %6207
    %6209 = vrot.lane.b32.xlu0 %v6156, 56
    %v6210 = vpop.permute.xlu0 %6209
    %6211 = vrot.lane.b32.xlu0 %v6164, 56
    %v6212 = vpop.permute.xlu0 %6211
    %6213 = vrot.lane.b32.xlu0 %v6172, 56
    %v6214 = vpop.permute.xlu0 %6213
    %6215 = vrot.lane.b32.xlu0 %v6180, 56
    %v6216 = vpop.permute.xlu0 %6215
    %6217 = vrot.lane.b32.xlu0 %v6188, 56
    %v6218 = vpop.permute.xlu0 %6217
    %6219 = vrot.lane.b32.xlu0 %v6196, 56
    %v6220 = vpop.permute.xlu0 %6219
    %v6221 = vsel %vm453, %v6206, %v6208
    %v6222 = vsel %vm453, %v6208, %v6210
    %v6223 = vsel %vm453, %v6210, %v6212
    %v6224 = vsel %vm453, %v6212, %v6214
    %v6225 = vsel %vm453, %v6214, %v6216
    %v6226 = vsel %vm453, %v6216, %v6218
    %v6227 = vsel %vm453, %v6218, %v6220
    %v6237 = vmul.bf16 %v6100, %v6206
    %v6238 = vmul.bf16 %v6101, %v6221
    %v6239 = vmul.bf16 %v6102, %v6222
    %v6240 = vmul.bf16 %v6103, %v6223
    %v6241 = vmul.bf16 %v6104, %v6224
    %v6242 = vmul.bf16 %v6105, %v6225
    %v6243 = vmul.bf16 %v6106, %v6226
    %v6244 = vmul.bf16 %v6107, %v6227
    %v6245 = vmul.bf16 %v6108, %v6220
    %6255 = vrot.lane.b32.xlu0 %v6237, 72
    %v6256 = vpop.permute.xlu0 %6255
    %6257 = vrot.lane.b32.xlu0 %v6238, 72
    %v6258 = vpop.permute.xlu0 %6257
    %6259 = vrot.lane.b32.xlu0 %v6239, 72
    %v6260 = vpop.permute.xlu0 %6259
    %6261 = vrot.lane.b32.xlu0 %v6240, 72
    %v6262 = vpop.permute.xlu0 %6261
    %6263 = vrot.lane.b32.xlu0 %v6241, 72
    %v6264 = vpop.permute.xlu0 %6263
    %6265 = vrot.lane.b32.xlu0 %v6242, 72
    %v6266 = vpop.permute.xlu0 %6265
    %6267 = vrot.lane.b32.xlu0 %v6243, 72
    %v6268 = vpop.permute.xlu0 %6267
    %6269 = vrot.lane.b32.xlu0 %v6244, 72
    %v6270 = vpop.permute.xlu0 %6269
    %6271 = vrot.lane.b32.xlu0 %v6245, 72
    %v6272 = vpop.permute.xlu0 %6271
    %v6273 = vsel %vm506, %v6256, %v6258
    %v6274 = vsel %vm506, %v6258, %v6260
    %v6275 = vsel %vm506, %v6260, %v6262
    %v6276 = vsel %vm506, %v6262, %v6264
    %v6277 = vsel %vm506, %v6264, %v6266
    %v6278 = vsel %vm506, %v6266, %v6268
    %v6279 = vsel %vm506, %v6268, %v6270
    %v6280 = vsel %vm506, %v6270, %v6272
    %6289 = vst [vmem:[#allocation4 + $0x40] sm:$0xff] %v6273
    %6290 = vst [vmem:[#allocation4 + $0x48] sm:$0xff] %v6274
    %6291 = vst [vmem:[#allocation4 + $0x50] sm:$0xff] %v6275
    %6292 = vst [vmem:[#allocation4 + $0x58] sm:$0xff] %v6276
    %6293 = vst [vmem:[#allocation4 + $0x60] sm:$0xff] %v6277
    %6294 = vst [vmem:[#allocation4 + $0x68] sm:$0xff] %v6278
    %6295 = vst [vmem:[#allocation4 + $0x70] sm:$0xff] %v6279
    %6296 = vst [vmem:[#allocation4 + $0x78] sm:$0xff] %v6280
    %v6297 = vld [vmem:[#allocation3] sm:$0xff]
    %v6298 = vld [vmem:[#allocation3 + $0x8] sm:$0xff]
    %v6299 = vld [vmem:[#allocation3 + $0x10] sm:$0xff]
    %v6300 = vld [vmem:[#allocation3 + $0x18] sm:$0xff]
    %v6301 = vld [vmem:[#allocation3 + $0x20] sm:$0xff]
    %v6302 = vld [vmem:[#allocation3 + $0x28] sm:$0xff]
    %v6303 = vld [vmem:[#allocation3 + $0x30] sm:$0xff]
    %v6304 = vld [vmem:[#allocation3 + $0x38] sm:$0xff]
    %v6305 = vld [vmem:[#allocation3 + $0x40] sm:$0xff]
    %v6306 = vld [vmem:[#allocation8] sm:$0x22]
    %v6307 = vld [vmem:[#allocation8 + $0x8] sm:$0x22]
    %v6308 = vld [vmem:[#allocation8 + $0x10] sm:$0x22]
    %v6309 = vld [vmem:[#allocation8 + $0x18] sm:$0x22]
    %v6314 = vunpack.c.l.b16 %v6306
    %v6315 = vunpack.c.h.b16 %v6306
    %v6316 = vunpack.c.l.b16 %v6307
    %v6317 = vunpack.c.h.b16 %v6307
    %v6318 = vunpack.c.l.b16 %v6308
    %v6319 = vunpack.c.h.b16 %v6308
    %v6320 = vunpack.c.l.b16 %v6309
    %v6321 = vunpack.c.h.b16 %v6309
    %v6322 = vpack.c.b16 %v6314, %v6314
    %v6323 = vpack.c.b16 %v6315, %v6315
    %v6324 = vpack.c.b16 %v6316, %v6316
    %v6325 = vpack.c.b16 %v6317, %v6317
    %v6326 = vpack.c.b16 %v6318, %v6318
    %v6327 = vpack.c.b16 %v6319, %v6319
    %v6328 = vpack.c.b16 %v6320, %v6320
    %v6329 = vpack.c.b16 %v6321, %v6321
    %v6331 = vpack.i.b16 %v6322, %v6322
    %v6333 = vlaneseq
    %v6334 = vshrl.u32 %v6333, 7
    %v6335 = vsub.s32 1, %v6334
    %v6336 = vrot.slane %v6331, %v6335
    %v6338 = vpack.i.b16 %v6323, %v6323
    %v6340 = vlaneseq
    %v6341 = vshrl.u32 %v6340, 7
    %v6342 = vsub.s32 1, %v6341
    %v6343 = vrot.slane %v6338, %v6342
    %v6345 = vpack.i.b16 %v6324, %v6324
    %v6347 = vlaneseq
    %v6348 = vshrl.u32 %v6347, 7
    %v6349 = vsub.s32 1, %v6348
    %v6350 = vrot.slane %v6345, %v6349
    %v6352 = vpack.i.b16 %v6325, %v6325
    %v6354 = vlaneseq
    %v6355 = vshrl.u32 %v6354, 7
    %v6356 = vsub.s32 1, %v6355
    %v6357 = vrot.slane %v6352, %v6356
    %v6359 = vpack.i.b16 %v6326, %v6326
    %v6361 = vlaneseq
    %v6362 = vshrl.u32 %v6361, 7
    %v6363 = vsub.s32 1, %v6362
    %v6364 = vrot.slane %v6359, %v6363
    %v6366 = vpack.i.b16 %v6327, %v6327
    %v6368 = vlaneseq
    %v6369 = vshrl.u32 %v6368, 7
    %v6370 = vsub.s32 1, %v6369
    %v6371 = vrot.slane %v6366, %v6370
    %v6373 = vpack.i.b16 %v6328, %v6328
    %v6375 = vlaneseq
    %v6376 = vshrl.u32 %v6375, 7
    %v6377 = vsub.s32 1, %v6376
    %v6378 = vrot.slane %v6373, %v6377
    %v6380 = vpack.i.b16 %v6329, %v6329
    %v6382 = vlaneseq
    %v6383 = vshrl.u32 %v6382, 7
    %v6384 = vsub.s32 1, %v6383
    %v6385 = vrot.slane %v6380, %v6384
    %6394 = vrot.lane.b32.xlu0 %v6336, 57
    %v6395 = vpop.permute.xlu0 %6394
    %6396 = vrot.lane.b32.xlu0 %v6343, 57
    %v6397 = vpop.permute.xlu0 %6396
    %6398 = vrot.lane.b32.xlu0 %v6350, 57
    %v6399 = vpop.permute.xlu0 %6398
    %6400 = vrot.lane.b32.xlu0 %v6357, 57
    %v6401 = vpop.permute.xlu0 %6400
    %6402 = vrot.lane.b32.xlu0 %v6364, 57
    %v6403 = vpop.permute.xlu0 %6402
    %6404 = vrot.lane.b32.xlu0 %v6371, 57
    %v6405 = vpop.permute.xlu0 %6404
    %6406 = vrot.lane.b32.xlu0 %v6378, 57
    %v6407 = vpop.permute.xlu0 %6406
    %6408 = vrot.lane.b32.xlu0 %v6385, 57
    %v6409 = vpop.permute.xlu0 %6408
    %v6410 = vsel %vm644, %v6395, %v6397
    %v6411 = vsel %vm644, %v6397, %v6399
    %v6412 = vsel %vm644, %v6399, %v6401
    %v6413 = vsel %vm644, %v6401, %v6403
    %v6414 = vsel %vm644, %v6403, %v6405
    %v6415 = vsel %vm644, %v6405, %v6407
    %v6416 = vsel %vm644, %v6407, %v6409
    %v6426 = vmul.bf16 %v6297, %v6395
    %v6427 = vmul.bf16 %v6298, %v6410
    %v6428 = vmul.bf16 %v6299, %v6411
    %v6429 = vmul.bf16 %v6300, %v6412
    %v6430 = vmul.bf16 %v6301, %v6413
    %v6431 = vmul.bf16 %v6302, %v6414
    %v6432 = vmul.bf16 %v6303, %v6415
    %v6433 = vmul.bf16 %v6304, %v6416
    %v6434 = vmul.bf16 %v6305, %v6409
    %6444 = vrot.lane.b32.xlu0 %v6426, 71
    %v6445 = vpop.permute.xlu0 %6444
    %6446 = vrot.lane.b32.xlu0 %v6427, 71
    %v6447 = vpop.permute.xlu0 %6446
    %6448 = vrot.lane.b32.xlu0 %v6428, 71
    %v6449 = vpop.permute.xlu0 %6448
    %6450 = vrot.lane.b32.xlu0 %v6429, 71
    %v6451 = vpop.permute.xlu0 %6450
    %6452 = vrot.lane.b32.xlu0 %v6430, 71
    %v6453 = vpop.permute.xlu0 %6452
    %6454 = vrot.lane.b32.xlu0 %v6431, 71
    %v6455 = vpop.permute.xlu0 %6454
    %6456 = vrot.lane.b32.xlu0 %v6432, 71
    %v6457 = vpop.permute.xlu0 %6456
    %6458 = vrot.lane.b32.xlu0 %v6433, 71
    %v6459 = vpop.permute.xlu0 %6458
    %6460 = vrot.lane.b32.xlu0 %v6434, 71
    %v6461 = vpop.permute.xlu0 %6460
    %v6462 = vsel %vm697, %v6445, %v6447
    %v6463 = vsel %vm697, %v6447, %v6449
    %v6464 = vsel %vm697, %v6449, %v6451
    %v6465 = vsel %vm697, %v6451, %v6453
    %v6466 = vsel %vm697, %v6453, %v6455
    %v6467 = vsel %vm697, %v6455, %v6457
    %v6468 = vsel %vm697, %v6457, %v6459
    %v6469 = vsel %vm697, %v6459, %v6461
    %6478 = vst [vmem:[#allocation4 + $0x80] sm:$0xff] %v6462
    %6479 = vst [vmem:[#allocation4 + $0x88] sm:$0xff] %v6463
    %6480 = vst [vmem:[#allocation4 + $0x90] sm:$0xff] %v6464
    %6481 = vst [vmem:[#allocation4 + $0x98] sm:$0xff] %v6465
    %6482 = vst [vmem:[#allocation4 + $0xa0] sm:$0xff] %v6466
    %6483 = vst [vmem:[#allocation4 + $0xa8] sm:$0xff] %v6467
    %6484 = vst [vmem:[#allocation4 + $0xb0] sm:$0xff] %v6468
    %6485 = vst [vmem:[#allocation4 + $0xb8] sm:$0xff] %v6469
    %v6486 = vld [vmem:[#allocation3] sm:$0xff]
    %v6487 = vld [vmem:[#allocation3 + $0x8] sm:$0xff]
    %v6488 = vld [vmem:[#allocation3 + $0x10] sm:$0xff]
    %v6489 = vld [vmem:[#allocation3 + $0x18] sm:$0xff]
    %v6490 = vld [vmem:[#allocation3 + $0x20] sm:$0xff]
    %v6491 = vld [vmem:[#allocation3 + $0x28] sm:$0xff]
    %v6492 = vld [vmem:[#allocation3 + $0x30] sm:$0xff]
    %v6493 = vld [vmem:[#allocation3 + $0x38] sm:$0xff]
    %v6494 = vld [vmem:[#allocation3 + $0x40] sm:$0xff]
    %v6495 = vld [vmem:[#allocation8] sm:$0x22]
    %v6496 = vld [vmem:[#allocation8 + $0x8] sm:$0x22]
    %v6497 = vld [vmem:[#allocation8 + $0x10] sm:$0x22]
    %v6498 = vld [vmem:[#allocation8 + $0x18] sm:$0x22]
    %v6503 = vunpack.c.l.b16 %v6495
    %v6504 = vunpack.c.h.b16 %v6495
    %v6505 = vunpack.c.l.b16 %v6496
    %v6506 = vunpack.c.h.b16 %v6496
    %v6507 = vunpack.c.l.b16 %v6497
    %v6508 = vunpack.c.h.b16 %v6497
    %v6509 = vunpack.c.l.b16 %v6498
    %v6510 = vunpack.c.h.b16 %v6498
    %v6511 = vpack.c.b16 %v6503, %v6503
    %v6512 = vpack.c.b16 %v6504, %v6504
    %v6513 = vpack.c.b16 %v6505, %v6505
    %v6514 = vpack.c.b16 %v6506, %v6506
    %v6515 = vpack.c.b16 %v6507, %v6507
    %v6516 = vpack.c.b16 %v6508, %v6508
    %v6517 = vpack.c.b16 %v6509, %v6509
    %v6518 = vpack.c.b16 %v6510, %v6510
    %v6520 = vshrl.u32 %v6511, 16
    %v6521 = vpack.i.b16 %v6520, %v6520
    %v6523 = vlaneseq
    %v6524 = vshrl.u32 %v6523, 7
    %v6525 = vsub.s32 1, %v6524
    %v6526 = vrot.slane %v6521, %v6525
    %v6528 = vshrl.u32 %v6512, 16
    %v6529 = vpack.i.b16 %v6528, %v6528
    %v6531 = vlaneseq
    %v6532 = vshrl.u32 %v6531, 7
    %v6533 = vsub.s32 1, %v6532
    %v6534 = vrot.slane %v6529, %v6533
    %v6536 = vshrl.u32 %v6513, 16
    %v6537 = vpack.i.b16 %v6536, %v6536
    %v6539 = vlaneseq
    %v6540 = vshrl.u32 %v6539, 7
    %v6541 = vsub.s32 1, %v6540
    %v6542 = vrot.slane %v6537, %v6541
    %v6544 = vshrl.u32 %v6514, 16
    %v6545 = vpack.i.b16 %v6544, %v6544
    %v6547 = vlaneseq
    %v6548 = vshrl.u32 %v6547, 7
    %v6549 = vsub.s32 1, %v6548
    %v6550 = vrot.slane %v6545, %v6549
    %v6552 = vshrl.u32 %v6515, 16
    %v6553 = vpack.i.b16 %v6552, %v6552
    %v6555 = vlaneseq
    %v6556 = vshrl.u32 %v6555, 7
    %v6557 = vsub.s32 1, %v6556
    %v6558 = vrot.slane %v6553, %v6557
    %v6560 = vshrl.u32 %v6516, 16
    %v6561 = vpack.i.b16 %v6560, %v6560
    %v6563 = vlaneseq
    %v6564 = vshrl.u32 %v6563, 7
    %v6565 = vsub.s32 1, %v6564
    %v6566 = vrot.slane %v6561, %v6565
    %v6568 = vshrl.u32 %v6517, 16
    %v6569 = vpack.i.b16 %v6568, %v6568
    %v6571 = vlaneseq
    %v6572 = vshrl.u32 %v6571, 7
    %v6573 = vsub.s32 1, %v6572
    %v6574 = vrot.slane %v6569, %v6573
    %v6576 = vshrl.u32 %v6518, 16
    %v6577 = vpack.i.b16 %v6576, %v6576
    %v6579 = vlaneseq
    %v6580 = vshrl.u32 %v6579, 7
    %v6581 = vsub.s32 1, %v6580
    %v6582 = vrot.slane %v6577, %v6581
    %6591 = vrot.lane.b32.xlu0 %v6526, 63
    %v6592 = vpop.permute.xlu0 %6591
    %6593 = vrot.lane.b32.xlu0 %v6534, 63
    %v6594 = vpop.permute.xlu0 %6593
    %6595 = vrot.lane.b32.xlu0 %v6542, 63
    %v6596 = vpop.permute.xlu0 %6595
    %6597 = vrot.lane.b32.xlu0 %v6550, 63
    %v6598 = vpop.permute.xlu0 %6597
    %6599 = vrot.lane.b32.xlu0 %v6558, 63
    %v6600 = vpop.permute.xlu0 %6599
    %6601 = vrot.lane.b32.xlu0 %v6566, 63
    %v6602 = vpop.permute.xlu0 %6601
    %6603 = vrot.lane.b32.xlu0 %v6574, 63
    %v6604 = vpop.permute.xlu0 %6603
    %6605 = vrot.lane.b32.xlu0 %v6582, 63
    %v6606 = vpop.permute.xlu0 %6605
    %v6607 = vsel %vm843, %v6592, %v6594
    %v6608 = vsel %vm843, %v6594, %v6596
    %v6609 = vsel %vm843, %v6596, %v6598
    %v6610 = vsel %vm843, %v6598, %v6600
    %v6611 = vsel %vm843, %v6600, %v6602
    %v6612 = vsel %vm843, %v6602, %v6604
    %v6613 = vsel %vm843, %v6604, %v6606
    %v6623 = vmul.bf16 %v6486, %v6592
    %v6624 = vmul.bf16 %v6487, %v6607
    %v6625 = vmul.bf16 %v6488, %v6608
    %v6626 = vmul.bf16 %v6489, %v6609
    %v6627 = vmul.bf16 %v6490, %v6610
    %v6628 = vmul.bf16 %v6491, %v6611
    %v6629 = vmul.bf16 %v6492, %v6612
    %v6630 = vmul.bf16 %v6493, %v6613
    %v6631 = vmul.bf16 %v6494, %v6606
    %6641 = vrot.lane.b32.xlu0 %v6623, 65
    %v6642 = vpop.permute.xlu0 %6641
    %6643 = vrot.lane.b32.xlu0 %v6624, 65
    %v6644 = vpop.permute.xlu0 %6643
    %6645 = vrot.lane.b32.xlu0 %v6625, 65
    %v6646 = vpop.permute.xlu0 %6645
    %6647 = vrot.lane.b32.xlu0 %v6626, 65
    %v6648 = vpop.permute.xlu0 %6647
    %6649 = vrot.lane.b32.xlu0 %v6627, 65
    %v6650 = vpop.permute.xlu0 %6649
    %6651 = vrot.lane.b32.xlu0 %v6628, 65
    %v6652 = vpop.permute.xlu0 %6651
    %6653 = vrot.lane.b32.xlu0 %v6629, 65
    %v6654 = vpop.permute.xlu0 %6653
    %6655 = vrot.lane.b32.xlu0 %v6630, 65
    %v6656 = vpop.permute.xlu0 %6655
    %6657 = vrot.lane.b32.xlu0 %v6631, 65
    %v6658 = vpop.permute.xlu0 %6657
    %v6659 = vsel %vm896, %v6642, %v6644
    %v6660 = vsel %vm896, %v6644, %v6646
    %v6661 = vsel %vm896, %v6646, %v6648
    %v6662 = vsel %vm896, %v6648, %v6650
    %v6663 = vsel %vm896, %v6650, %v6652
    %v6664 = vsel %vm896, %v6652, %v6654
    %v6665 = vsel %vm896, %v6654, %v6656
    %v6666 = vsel %vm896, %v6656, %v6658
    %6675 = vst [vmem:[#allocation4 + $0xc0] sm:$0xff] %v6659
    %6676 = vst [vmem:[#allocation4 + $0xc8] sm:$0xff] %v6660
    %6677 = vst [vmem:[#allocation4 + $0xd0] sm:$0xff] %v6661
    %6678 = vst [vmem:[#allocation4 + $0xd8] sm:$0xff] %v6662
    %6679 = vst [vmem:[#allocation4 + $0xe0] sm:$0xff] %v6663
    %6680 = vst [vmem:[#allocation4 + $0xe8] sm:$0xff] %v6664
    %6681 = vst [vmem:[#allocation4 + $0xf0] sm:$0xff] %v6665
    %6682 = vst [vmem:[#allocation4 + $0xf8] sm:$0xff] %v6666
    %v6683 = vld [vmem:[#allocation3] sm:$0xff]
    %v6684 = vld [vmem:[#allocation3 + $0x8] sm:$0xff]
    %v6685 = vld [vmem:[#allocation3 + $0x10] sm:$0xff]
    %v6686 = vld [vmem:[#allocation3 + $0x18] sm:$0xff]
    %v6687 = vld [vmem:[#allocation3 + $0x20] sm:$0xff]
    %v6688 = vld [vmem:[#allocation3 + $0x28] sm:$0xff]
    %v6689 = vld [vmem:[#allocation3 + $0x30] sm:$0xff]
    %v6690 = vld [vmem:[#allocation3 + $0x38] sm:$0xff]
    %v6691 = vld [vmem:[#allocation3 + $0x40] sm:$0xff]
    %v6692 = vld [vmem:[#allocation8] sm:$0x44]
    %v6693 = vld [vmem:[#allocation8 + $0x8] sm:$0x44]
    %v6694 = vld [vmem:[#allocation8 + $0x10] sm:$0x44]
    %v6695 = vld [vmem:[#allocation8 + $0x18] sm:$0x44]
    %v6700 = vunpack.c.l.b16 %v6692
    %v6701 = vunpack.c.h.b16 %v6692
    %v6702 = vunpack.c.l.b16 %v6693
    %v6703 = vunpack.c.h.b16 %v6693
    %v6704 = vunpack.c.l.b16 %v6694
    %v6705 = vunpack.c.h.b16 %v6694
    %v6706 = vunpack.c.l.b16 %v6695
    %v6707 = vunpack.c.h.b16 %v6695
    %v6708 = vpack.c.b16 %v6700, %v6700
    %v6709 = vpack.c.b16 %v6701, %v6701
    %v6710 = vpack.c.b16 %v6702, %v6702
    %v6711 = vpack.c.b16 %v6703, %v6703
    %v6712 = vpack.c.b16 %v6704, %v6704
    %v6713 = vpack.c.b16 %v6705, %v6705
    %v6714 = vpack.c.b16 %v6706, %v6706
    %v6715 = vpack.c.b16 %v6707, %v6707
    %v6717 = vpack.i.b16 %v6708, %v6708
    %v6719 = vlaneseq
    %v6720 = vshrl.u32 %v6719, 7
    %v6721 = vsub.s32 2, %v6720
    %v6722 = vrot.slane %v6717, %v6721
    %v6724 = vpack.i.b16 %v6709, %v6709
    %v6726 = vlaneseq
    %v6727 = vshrl.u32 %v6726, 7
    %v6728 = vsub.s32 2, %v6727
    %v6729 = vrot.slane %v6724, %v6728
    %v6731 = vpack.i.b16 %v6710, %v6710
    %v6733 = vlaneseq
    %v6734 = vshrl.u32 %v6733, 7
    %v6735 = vsub.s32 2, %v6734
    %v6736 = vrot.slane %v6731, %v6735
    %v6738 = vpack.i.b16 %v6711, %v6711
    %v6740 = vlaneseq
    %v6741 = vshrl.u32 %v6740, 7
    %v6742 = vsub.s32 2, %v6741
    %v6743 = vrot.slane %v6738, %v6742
    %v6745 = vpack.i.b16 %v6712, %v6712
    %v6747 = vlaneseq
    %v6748 = vshrl.u32 %v6747, 7
    %v6749 = vsub.s32 2, %v6748
    %v6750 = vrot.slane %v6745, %v6749
    %v6752 = vpack.i.b16 %v6713, %v6713
    %v6754 = vlaneseq
    %v6755 = vshrl.u32 %v6754, 7
    %v6756 = vsub.s32 2, %v6755
    %v6757 = vrot.slane %v6752, %v6756
    %v6759 = vpack.i.b16 %v6714, %v6714
    %v6761 = vlaneseq
    %v6762 = vshrl.u32 %v6761, 7
    %v6763 = vsub.s32 2, %v6762
    %v6764 = vrot.slane %v6759, %v6763
    %v6766 = vpack.i.b16 %v6715, %v6715
    %v6768 = vlaneseq
    %v6769 = vshrl.u32 %v6768, 7
    %v6770 = vsub.s32 2, %v6769
    %v6771 = vrot.slane %v6766, %v6770
    %6780 = vrot.lane.b32.xlu0 %v6722, 64
    %v6781 = vpop.permute.xlu0 %6780
    %6782 = vrot.lane.b32.xlu0 %v6729, 64
    %v6783 = vpop.permute.xlu0 %6782
    %6784 = vrot.lane.b32.xlu0 %v6736, 64
    %v6785 = vpop.permute.xlu0 %6784
    %6786 = vrot.lane.b32.xlu0 %v6743, 64
    %v6787 = vpop.permute.xlu0 %6786
    %6788 = vrot.lane.b32.xlu0 %v6750, 64
    %v6789 = vpop.permute.xlu0 %6788
    %6790 = vrot.lane.b32.xlu0 %v6757, 64
    %v6791 = vpop.permute.xlu0 %6790
    %6792 = vrot.lane.b32.xlu0 %v6764, 64
    %v6793 = vpop.permute.xlu0 %6792
    %6794 = vrot.lane.b32.xlu0 %v6771, 64
    %v6795 = vpop.permute.xlu0 %6794
    %v6796 = vsel %vm1034, %v6781, %v6783
    %v6797 = vsel %vm1034, %v6783, %v6785
    %v6798 = vsel %vm1034, %v6785, %v6787
    %v6799 = vsel %vm1034, %v6787, %v6789
    %v6800 = vsel %vm1034, %v6789, %v6791
    %v6801 = vsel %vm1034, %v6791, %v6793
    %v6802 = vsel %vm1034, %v6793, %v6795
    %v6812 = vmul.bf16 %v6683, %v6781
    %v6813 = vmul.bf16 %v6684, %v6796
    %v6814 = vmul.bf16 %v6685, %v6797
    %v6815 = vmul.bf16 %v6686, %v6798
    %v6816 = vmul.bf16 %v6687, %v6799
    %v6817 = vmul.bf16 %v6688, %v6800
    %v6818 = vmul.bf16 %v6689, %v6801
    %v6819 = vmul.bf16 %v6690, %v6802
    %v6820 = vmul.bf16 %v6691, %v6795
    %6830 = vrot.lane.b32.xlu0 %v6812, 64
    %v6831 = vpop.permute.xlu0 %6830
    %6832 = vrot.lane.b32.xlu0 %v6813, 64
    %v6833 = vpop.permute.xlu0 %6832
    %6834 = vrot.lane.b32.xlu0 %v6814, 64
    %v6835 = vpop.permute.xlu0 %6834
    %6836 = vrot.lane.b32.xlu0 %v6815, 64
    %v6837 = vpop.permute.xlu0 %6836
    %6838 = vrot.lane.b32.xlu0 %v6816, 64
    %v6839 = vpop.permute.xlu0 %6838
    %6840 = vrot.lane.b32.xlu0 %v6817, 64
    %v6841 = vpop.permute.xlu0 %6840
    %6842 = vrot.lane.b32.xlu0 %v6818, 64
    %v6843 = vpop.permute.xlu0 %6842
    %6844 = vrot.lane.b32.xlu0 %v6819, 64
    %v6845 = vpop.permute.xlu0 %6844
    %6846 = vrot.lane.b32.xlu0 %v6820, 64
    %v6847 = vpop.permute.xlu0 %6846
    %v6848 = vsel %vm1034, %v6831, %v6833
    %v6849 = vsel %vm1034, %v6833, %v6835
    %v6850 = vsel %vm1034, %v6835, %v6837
    %v6851 = vsel %vm1034, %v6837, %v6839
    %v6852 = vsel %vm1034, %v6839, %v6841
    %v6853 = vsel %vm1034, %v6841, %v6843
    %v6854 = vsel %vm1034, %v6843, %v6845
    %v6855 = vsel %vm1034, %v6845, %v6847
    %6864 = vst [vmem:[#allocation4 + $0x100] sm:$0xff] %v6848
    %6865 = vst [vmem:[#allocation4 + $0x108] sm:$0xff] %v6849
    %6866 = vst [vmem:[#allocation4 + $0x110] sm:$0xff] %v6850
    %6867 = vst [vmem:[#allocation4 + $0x118] sm:$0xff] %v6851
    %6868 = vst [vmem:[#allocation4 + $0x120] sm:$0xff] %v6852
    %6869 = vst [vmem:[#allocation4 + $0x128] sm:$0xff] %v6853
    %6870 = vst [vmem:[#allocation4 + $0x130] sm:$0xff] %v6854
    %6871 = vst [vmem:[#allocation4 + $0x138] sm:$0xff] %v6855
    %v6872 = vld [vmem:[#allocation3] sm:$0xff]
    %v6873 = vld [vmem:[#allocation3 + $0x8] sm:$0xff]
    %v6874 = vld [vmem:[#allocation3 + $0x10] sm:$0xff]
    %v6875 = vld [vmem:[#allocation3 + $0x18] sm:$0xff]
    %v6876 = vld [vmem:[#allocation3 + $0x20] sm:$0xff]
    %v6877 = vld [vmem:[#allocation3 + $0x28] sm:$0xff]
    %v6878 = vld [vmem:[#allocation3 + $0x30] sm:$0xff]
    %v6879 = vld [vmem:[#allocation3 + $0x38] sm:$0xff]
    %v6880 = vld [vmem:[#allocation3 + $0x40] sm:$0xff]
    %v6881 = vld [vmem:[#allocation8] sm:$0x44]
    %v6882 = vld [vmem:[#allocation8 + $0x8] sm:$0x44]
    %v6883 = vld [vmem:[#allocation8 + $0x10] sm:$0x44]
    %v6884 = vld [vmem:[#allocation8 + $0x18] sm:$0x44]
    %v6889 = vunpack.c.l.b16 %v6881
    %v6890 = vunpack.c.h.b16 %v6881
    %v6891 = vunpack.c.l.b16 %v6882
    %v6892 = vunpack.c.h.b16 %v6882
    %v6893 = vunpack.c.l.b16 %v6883
    %v6894 = vunpack.c.h.b16 %v6883
    %v6895 = vunpack.c.l.b16 %v6884
    %v6896 = vunpack.c.h.b16 %v6884
    %v6897 = vpack.c.b16 %v6889, %v6889
    %v6898 = vpack.c.b16 %v6890, %v6890
    %v6899 = vpack.c.b16 %v6891, %v6891
    %v6900 = vpack.c.b16 %v6892, %v6892
    %v6901 = vpack.c.b16 %v6893, %v6893
    %v6902 = vpack.c.b16 %v6894, %v6894
    %v6903 = vpack.c.b16 %v6895, %v6895
    %v6904 = vpack.c.b16 %v6896, %v6896
    %v6906 = vshrl.u32 %v6897, 16
    %v6907 = vpack.i.b16 %v6906, %v6906
    %v6909 = vlaneseq
    %v6910 = vshrl.u32 %v6909, 7
    %v6911 = vsub.s32 2, %v6910
    %v6912 = vrot.slane %v6907, %v6911
    %v6914 = vshrl.u32 %v6898, 16
    %v6915 = vpack.i.b16 %v6914, %v6914
    %v6917 = vlaneseq
    %v6918 = vshrl.u32 %v6917, 7
    %v6919 = vsub.s32 2, %v6918
    %v6920 = vrot.slane %v6915, %v6919
    %v6922 = vshrl.u32 %v6899, 16
    %v6923 = vpack.i.b16 %v6922, %v6922
    %v6925 = vlaneseq
    %v6926 = vshrl.u32 %v6925, 7
    %v6927 = vsub.s32 2, %v6926
    %v6928 = vrot.slane %v6923, %v6927
    %v6930 = vshrl.u32 %v6900, 16
    %v6931 = vpack.i.b16 %v6930, %v6930
    %v6933 = vlaneseq
    %v6934 = vshrl.u32 %v6933, 7
    %v6935 = vsub.s32 2, %v6934
    %v6936 = vrot.slane %v6931, %v6935
    %v6938 = vshrl.u32 %v6901, 16
    %v6939 = vpack.i.b16 %v6938, %v6938
    %v6941 = vlaneseq
    %v6942 = vshrl.u32 %v6941, 7
    %v6943 = vsub.s32 2, %v6942
    %v6944 = vrot.slane %v6939, %v6943
    %v6946 = vshrl.u32 %v6902, 16
    %v6947 = vpack.i.b16 %v6946, %v6946
    %v6949 = vlaneseq
    %v6950 = vshrl.u32 %v6949, 7
    %v6951 = vsub.s32 2, %v6950
    %v6952 = vrot.slane %v6947, %v6951
    %v6954 = vshrl.u32 %v6903, 16
    %v6955 = vpack.i.b16 %v6954, %v6954
    %v6957 = vlaneseq
    %v6958 = vshrl.u32 %v6957, 7
    %v6959 = vsub.s32 2, %v6958
    %v6960 = vrot.slane %v6955, %v6959
    %v6962 = vshrl.u32 %v6904, 16
    %v6963 = vpack.i.b16 %v6962, %v6962
    %v6965 = vlaneseq
    %v6966 = vshrl.u32 %v6965, 7
    %v6967 = vsub.s32 2, %v6966
    %v6968 = vrot.slane %v6963, %v6967
    %6977 = vrot.lane.b32.xlu0 %v6912, 65
    %v6978 = vpop.permute.xlu0 %6977
    %6979 = vrot.lane.b32.xlu0 %v6920, 65
    %v6980 = vpop.permute.xlu0 %6979
    %6981 = vrot.lane.b32.xlu0 %v6928, 65
    %v6982 = vpop.permute.xlu0 %6981
    %6983 = vrot.lane.b32.xlu0 %v6936, 65
    %v6984 = vpop.permute.xlu0 %6983
    %6985 = vrot.lane.b32.xlu0 %v6944, 65
    %v6986 = vpop.permute.xlu0 %6985
    %6987 = vrot.lane.b32.xlu0 %v6952, 65
    %v6988 = vpop.permute.xlu0 %6987
    %6989 = vrot.lane.b32.xlu0 %v6960, 65
    %v6990 = vpop.permute.xlu0 %6989
    %6991 = vrot.lane.b32.xlu0 %v6968, 65
    %v6992 = vpop.permute.xlu0 %6991
    %v6993 = vsel %vm896, %v6978, %v6980
    %v6994 = vsel %vm896, %v6980, %v6982
    %v6995 = vsel %vm896, %v6982, %v6984
    %v6996 = vsel %vm896, %v6984, %v6986
    %v6997 = vsel %vm896, %v6986, %v6988
    %v6998 = vsel %vm896, %v6988, %v6990
    %v6999 = vsel %vm896, %v6990, %v6992
    %v7009 = vmul.bf16 %v6872, %v6978
    %v7010 = vmul.bf16 %v6873, %v6993
    %v7011 = vmul.bf16 %v6874, %v6994
    %v7012 = vmul.bf16 %v6875, %v6995
    %v7013 = vmul.bf16 %v6876, %v6996
    %v7014 = vmul.bf16 %v6877, %v6997
    %v7015 = vmul.bf16 %v6878, %v6998
    %v7016 = vmul.bf16 %v6879, %v6999
    %v7017 = vmul.bf16 %v6880, %v6992
    %7027 = vrot.lane.b32.xlu0 %v7009, 63
    %v7028 = vpop.permute.xlu0 %7027
    %7029 = vrot.lane.b32.xlu0 %v7010, 63
    %v7030 = vpop.permute.xlu0 %7029
    %7031 = vrot.lane.b32.xlu0 %v7011, 63
    %v7032 = vpop.permute.xlu0 %7031
    %7033 = vrot.lane.b32.xlu0 %v7012, 63
    %v7034 = vpop.permute.xlu0 %7033
    %7035 = vrot.lane.b32.xlu0 %v7013, 63
    %v7036 = vpop.permute.xlu0 %7035
    %7037 = vrot.lane.b32.xlu0 %v7014, 63
    %v7038 = vpop.permute.xlu0 %7037
    %7039 = vrot.lane.b32.xlu0 %v7015, 63
    %v7040 = vpop.permute.xlu0 %7039
    %7041 = vrot.lane.b32.xlu0 %v7016, 63
    %v7042 = vpop.permute.xlu0 %7041
    %7043 = vrot.lane.b32.xlu0 %v7017, 63
    %v7044 = vpop.permute.xlu0 %7043
    %v7045 = vsel %vm843, %v7028, %v7030
    %v7046 = vsel %vm843, %v7030, %v7032
    %v7047 = vsel %vm843, %v7032, %v7034
    %v7048 = vsel %vm843, %v7034, %v7036
    %v7049 = vsel %vm843, %v7036, %v7038
    %v7050 = vsel %vm843, %v7038, %v7040
    %v7051 = vsel %vm843, %v7040, %v7042
    %v7052 = vsel %vm843, %v7042, %v7044
    %7061 = vst [vmem:[#allocation4 + $0x140] sm:$0xff] %v7045
    %7062 = vst [vmem:[#allocation4 + $0x148] sm:$0xff] %v7046
    %7063 = vst [vmem:[#allocation4 + $0x150] sm:$0xff] %v7047
    %7064 = vst [vmem:[#allocation4 + $0x158] sm:$0xff] %v7048
    %7065 = vst [vmem:[#allocation4 + $0x160] sm:$0xff] %v7049
    %7066 = vst [vmem:[#allocation4 + $0x168] sm:$0xff] %v7050
    %7067 = vst [vmem:[#allocation4 + $0x170] sm:$0xff] %v7051
    %7068 = vst [vmem:[#allocation4 + $0x178] sm:$0xff] %v7052
    %v7069 = vld [vmem:[#allocation3] sm:$0xff]
    %v7070 = vld [vmem:[#allocation3 + $0x8] sm:$0xff]
    %v7071 = vld [vmem:[#allocation3 + $0x10] sm:$0xff]
    %v7072 = vld [vmem:[#allocation3 + $0x18] sm:$0xff]
    %v7073 = vld [vmem:[#allocation3 + $0x20] sm:$0xff]
    %v7074 = vld [vmem:[#allocation3 + $0x28] sm:$0xff]
    %v7075 = vld [vmem:[#allocation3 + $0x30] sm:$0xff]
    %v7076 = vld [vmem:[#allocation3 + $0x38] sm:$0xff]
    %v7077 = vld [vmem:[#allocation3 + $0x40] sm:$0xff]
    %v7078 = vld [vmem:[#allocation8] sm:$0x88]
    %v7079 = vld [vmem:[#allocation8 + $0x8] sm:$0x88]
    %v7080 = vld [vmem:[#allocation8 + $0x10] sm:$0x88]
    %v7081 = vld [vmem:[#allocation8 + $0x18] sm:$0x88]
    %v7086 = vunpack.c.l.b16 %v7078
    %v7087 = vunpack.c.h.b16 %v7078
    %v7088 = vunpack.c.l.b16 %v7079
    %v7089 = vunpack.c.h.b16 %v7079
    %v7090 = vunpack.c.l.b16 %v7080
    %v7091 = vunpack.c.h.b16 %v7080
    %v7092 = vunpack.c.l.b16 %v7081
    %v7093 = vunpack.c.h.b16 %v7081
    %v7094 = vpack.c.b16 %v7086, %v7086
    %v7095 = vpack.c.b16 %v7087, %v7087
    %v7096 = vpack.c.b16 %v7088, %v7088
    %v7097 = vpack.c.b16 %v7089, %v7089
    %v7098 = vpack.c.b16 %v7090, %v7090
    %v7099 = vpack.c.b16 %v7091, %v7091
    %v7100 = vpack.c.b16 %v7092, %v7092
    %v7101 = vpack.c.b16 %v7093, %v7093
    %v7103 = vpack.i.b16 %v7094, %v7094
    %v7105 = vlaneseq
    %v7106 = vshrl.u32 %v7105, 7
    %v7107 = vsub.s32 3, %v7106
    %v7108 = vrot.slane %v7103, %v7107
    %v7110 = vpack.i.b16 %v7095, %v7095
    %v7112 = vlaneseq
    %v7113 = vshrl.u32 %v7112, 7
    %v7114 = vsub.s32 3, %v7113
    %v7115 = vrot.slane %v7110, %v7114
    %v7117 = vpack.i.b16 %v7096, %v7096
    %v7119 = vlaneseq
    %v7120 = vshrl.u32 %v7119, 7
    %v7121 = vsub.s32 3, %v7120
    %v7122 = vrot.slane %v7117, %v7121
    %v7124 = vpack.i.b16 %v7097, %v7097
    %v7126 = vlaneseq
    %v7127 = vshrl.u32 %v7126, 7
    %v7128 = vsub.s32 3, %v7127
    %v7129 = vrot.slane %v7124, %v7128
    %v7131 = vpack.i.b16 %v7098, %v7098
    %v7133 = vlaneseq
    %v7134 = vshrl.u32 %v7133, 7
    %v7135 = vsub.s32 3, %v7134
    %v7136 = vrot.slane %v7131, %v7135
    %v7138 = vpack.i.b16 %v7099, %v7099
    %v7140 = vlaneseq
    %v7141 = vshrl.u32 %v7140, 7
    %v7142 = vsub.s32 3, %v7141
    %v7143 = vrot.slane %v7138, %v7142
    %v7145 = vpack.i.b16 %v7100, %v7100
    %v7147 = vlaneseq
    %v7148 = vshrl.u32 %v7147, 7
    %v7149 = vsub.s32 3, %v7148
    %v7150 = vrot.slane %v7145, %v7149
    %v7152 = vpack.i.b16 %v7101, %v7101
    %v7154 = vlaneseq
    %v7155 = vshrl.u32 %v7154, 7
    %v7156 = vsub.s32 3, %v7155
    %v7157 = vrot.slane %v7152, %v7156
    %7166 = vrot.lane.b32.xlu0 %v7108, 71
    %v7167 = vpop.permute.xlu0 %7166
    %7168 = vrot.lane.b32.xlu0 %v7115, 71
    %v7169 = vpop.permute.xlu0 %7168
    %7170 = vrot.lane.b32.xlu0 %v7122, 71
    %v7171 = vpop.permute.xlu0 %7170
    %7172 = vrot.lane.b32.xlu0 %v7129, 71
    %v7173 = vpop.permute.xlu0 %7172
    %7174 = vrot.lane.b32.xlu0 %v7136, 71
    %v7175 = vpop.permute.xlu0 %7174
    %7176 = vrot.lane.b32.xlu0 %v7143, 71
    %v7177 = vpop.permute.xlu0 %7176
    %7178 = vrot.lane.b32.xlu0 %v7150, 71
    %v7179 = vpop.permute.xlu0 %7178
    %7180 = vrot.lane.b32.xlu0 %v7157, 71
    %v7181 = vpop.permute.xlu0 %7180
    %v7182 = vsel %vm697, %v7167, %v7169
    %v7183 = vsel %vm697, %v7169, %v7171
    %v7184 = vsel %vm697, %v7171, %v7173
    %v7185 = vsel %vm697, %v7173, %v7175
    %v7186 = vsel %vm697, %v7175, %v7177
    %v7187 = vsel %vm697, %v7177, %v7179
    %v7188 = vsel %vm697, %v7179, %v7181
    %v7198 = vmul.bf16 %v7069, %v7167
    %v7199 = vmul.bf16 %v7070, %v7182
    %v7200 = vmul.bf16 %v7071, %v7183
    %v7201 = vmul.bf16 %v7072, %v7184
    %v7202 = vmul.bf16 %v7073, %v7185
    %v7203 = vmul.bf16 %v7074, %v7186
    %v7204 = vmul.bf16 %v7075, %v7187
    %v7205 = vmul.bf16 %v7076, %v7188
    %v7206 = vmul.bf16 %v7077, %v7181
    %7216 = vrot.lane.b32.xlu0 %v7198, 57
    %v7217 = vpop.permute.xlu0 %7216
    %7218 = vrot.lane.b32.xlu0 %v7199, 57
    %v7219 = vpop.permute.xlu0 %7218
    %7220 = vrot.lane.b32.xlu0 %v7200, 57
    %v7221 = vpop.permute.xlu0 %7220
    %7222 = vrot.lane.b32.xlu0 %v7201, 57
    %v7223 = vpop.permute.xlu0 %7222
    %7224 = vrot.lane.b32.xlu0 %v7202, 57
    %v7225 = vpop.permute.xlu0 %7224
    %7226 = vrot.lane.b32.xlu0 %v7203, 57
    %v7227 = vpop.permute.xlu0 %7226
    %7228 = vrot.lane.b32.xlu0 %v7204, 57
    %v7229 = vpop.permute.xlu0 %7228
    %7230 = vrot.lane.b32.xlu0 %v7205, 57
    %v7231 = vpop.permute.xlu0 %7230
    %7232 = vrot.lane.b32.xlu0 %v7206, 57
    %v7233 = vpop.permute.xlu0 %7232
    %v7234 = vsel %vm644, %v7217, %v7219
    %v7235 = vsel %vm644, %v7219, %v7221
    %v7236 = vsel %vm644, %v7221, %v7223
    %v7237 = vsel %vm644, %v7223, %v7225
    %v7238 = vsel %vm644, %v7225, %v7227
    %v7239 = vsel %vm644, %v7227, %v7229
    %v7240 = vsel %vm644, %v7229, %v7231
    %v7241 = vsel %vm644, %v7231, %v7233
    %7250 = vst [vmem:[#allocation4 + $0x180] sm:$0xff] %v7234
    %7251 = vst [vmem:[#allocation4 + $0x188] sm:$0xff] %v7235
    %7252 = vst [vmem:[#allocation4 + $0x190] sm:$0xff] %v7236
    %7253 = vst [vmem:[#allocation4 + $0x198] sm:$0xff] %v7237
    %7254 = vst [vmem:[#allocation4 + $0x1a0] sm:$0xff] %v7238
    %7255 = vst [vmem:[#allocation4 + $0x1a8] sm:$0xff] %v7239
    %7256 = vst [vmem:[#allocation4 + $0x1b0] sm:$0xff] %v7240
    %7257 = vst [vmem:[#allocation4 + $0x1b8] sm:$0xff] %v7241
    %v7258 = vld [vmem:[#allocation3] sm:$0xff]
    %v7259 = vld [vmem:[#allocation3 + $0x8] sm:$0xff]
    %v7260 = vld [vmem:[#allocation3 + $0x10] sm:$0xff]
    %v7261 = vld [vmem:[#allocation3 + $0x18] sm:$0xff]
    %v7262 = vld [vmem:[#allocation3 + $0x20] sm:$0xff]
    %v7263 = vld [vmem:[#allocation3 + $0x28] sm:$0xff]
    %v7264 = vld [vmem:[#allocation3 + $0x30] sm:$0xff]
    %v7265 = vld [vmem:[#allocation3 + $0x38] sm:$0xff]
    %v7266 = vld [vmem:[#allocation3 + $0x40] sm:$0xff]
    %v7267 = vld [vmem:[#allocation8] sm:$0x88]
    %v7268 = vld [vmem:[#allocation8 + $0x8] sm:$0x88]
    %v7269 = vld [vmem:[#allocation8 + $0x10] sm:$0x88]
    %v7270 = vld [vmem:[#allocation8 + $0x18] sm:$0x88]
    %v7275 = vunpack.c.l.b16 %v7267
    %v7276 = vunpack.c.h.b16 %v7267
    %v7277 = vunpack.c.l.b16 %v7268
    %v7278 = vunpack.c.h.b16 %v7268
    %v7279 = vunpack.c.l.b16 %v7269
    %v7280 = vunpack.c.h.b16 %v7269
    %v7281 = vunpack.c.l.b16 %v7270
    %v7282 = vunpack.c.h.b16 %v7270
    %v7283 = vpack.c.b16 %v7275, %v7275
    %v7284 = vpack.c.b16 %v7276, %v7276
    %v7285 = vpack.c.b16 %v7277, %v7277
    %v7286 = vpack.c.b16 %v7278, %v7278
    %v7287 = vpack.c.b16 %v7279, %v7279
    %v7288 = vpack.c.b16 %v7280, %v7280
    %v7289 = vpack.c.b16 %v7281, %v7281
    %v7290 = vpack.c.b16 %v7282, %v7282
    %v7292 = vshrl.u32 %v7283, 16
    %v7293 = vpack.i.b16 %v7292, %v7292
    %v7295 = vlaneseq
    %v7296 = vshrl.u32 %v7295, 7
    %v7297 = vsub.s32 3, %v7296
    %v7298 = vrot.slane %v7293, %v7297
    %v7300 = vshrl.u32 %v7284, 16
    %v7301 = vpack.i.b16 %v7300, %v7300
    %v7303 = vlaneseq
    %v7304 = vshrl.u32 %v7303, 7
    %v7305 = vsub.s32 3, %v7304
    %v7306 = vrot.slane %v7301, %v7305
    %v7308 = vshrl.u32 %v7285, 16
    %v7309 = vpack.i.b16 %v7308, %v7308
    %v7311 = vlaneseq
    %v7312 = vshrl.u32 %v7311, 7
    %v7313 = vsub.s32 3, %v7312
    %v7314 = vrot.slane %v7309, %v7313
    %v7316 = vshrl.u32 %v7286, 16
    %v7317 = vpack.i.b16 %v7316, %v7316
    %v7319 = vlaneseq
    %v7320 = vshrl.u32 %v7319, 7
    %v7321 = vsub.s32 3, %v7320
    %v7322 = vrot.slane %v7317, %v7321
    %v7324 = vshrl.u32 %v7287, 16
    %v7325 = vpack.i.b16 %v7324, %v7324
    %v7327 = vlaneseq
    %v7328 = vshrl.u32 %v7327, 7
    %v7329 = vsub.s32 3, %v7328
    %v7330 = vrot.slane %v7325, %v7329
    %v7332 = vshrl.u32 %v7288, 16
    %v7333 = vpack.i.b16 %v7332, %v7332
    %v7335 = vlaneseq
    %v7336 = vshrl.u32 %v7335, 7
    %v7337 = vsub.s32 3, %v7336
    %v7338 = vrot.slane %v7333, %v7337
    %v7340 = vshrl.u32 %v7289, 16
    %v7341 = vpack.i.b16 %v7340, %v7340
    %v7343 = vlaneseq
    %v7344 = vshrl.u32 %v7343, 7
    %v7345 = vsub.s32 3, %v7344
    %v7346 = vrot.slane %v7341, %v7345
    %v7348 = vshrl.u32 %v7290, 16
    %v7349 = vpack.i.b16 %v7348, %v7348
    %v7351 = vlaneseq
    %v7352 = vshrl.u32 %v7351, 7
    %v7353 = vsub.s32 3, %v7352
    %v7354 = vrot.slane %v7349, %v7353
    %7363 = vrot.lane.b32.xlu0 %v7298, 72
    %v7364 = vpop.permute.xlu0 %7363
    %7365 = vrot.lane.b32.xlu0 %v7306, 72
    %v7366 = vpop.permute.xlu0 %7365
    %7367 = vrot.lane.b32.xlu0 %v7314, 72
    %v7368 = vpop.permute.xlu0 %7367
    %7369 = vrot.lane.b32.xlu0 %v7322, 72
    %v7370 = vpop.permute.xlu0 %7369
    %7371 = vrot.lane.b32.xlu0 %v7330, 72
    %v7372 = vpop.permute.xlu0 %7371
    %7373 = vrot.lane.b32.xlu0 %v7338, 72
    %v7374 = vpop.permute.xlu0 %7373
    %7375 = vrot.lane.b32.xlu0 %v7346, 72
    %v7376 = vpop.permute.xlu0 %7375
    %7377 = vrot.lane.b32.xlu0 %v7354, 72
    %v7378 = vpop.permute.xlu0 %7377
    %v7379 = vsel %vm506, %v7364, %v7366
    %v7380 = vsel %vm506, %v7366, %v7368
    %v7381 = vsel %vm506, %v7368, %v7370
    %v7382 = vsel %vm506, %v7370, %v7372
    %v7383 = vsel %vm506, %v7372, %v7374
    %v7384 = vsel %vm506, %v7374, %v7376
    %v7385 = vsel %vm506, %v7376, %v7378
    %v7395 = vmul.bf16 %v7258, %v7364
    %v7396 = vmul.bf16 %v7259, %v7379
    %v7397 = vmul.bf16 %v7260, %v7380
    %v7398 = vmul.bf16 %v7261, %v7381
    %v7399 = vmul.bf16 %v7262, %v7382
    %v7400 = vmul.bf16 %v7263, %v7383
    %v7401 = vmul.bf16 %v7264, %v7384
    %v7402 = vmul.bf16 %v7265, %v7385
    %v7403 = vmul.bf16 %v7266, %v7378
    %7413 = vrot.lane.b32.xlu0 %v7395, 56
    %v7414 = vpop.permute.xlu0 %7413
    %7415 = vrot.lane.b32.xlu0 %v7396, 56
    %v7416 = vpop.permute.xlu0 %7415
    %7417 = vrot.lane.b32.xlu0 %v7397, 56
    %v7418 = vpop.permute.xlu0 %7417
    %7419 = vrot.lane.b32.xlu0 %v7398, 56
    %v7420 = vpop.permute.xlu0 %7419
    %7421 = vrot.lane.b32.xlu0 %v7399, 56
    %v7422 = vpop.permute.xlu0 %7421
    %7423 = vrot.lane.b32.xlu0 %v7400, 56
    %v7424 = vpop.permute.xlu0 %7423
    %7425 = vrot.lane.b32.xlu0 %v7401, 56
    %v7426 = vpop.permute.xlu0 %7425
    %7427 = vrot.lane.b32.xlu0 %v7402, 56
    %v7428 = vpop.permute.xlu0 %7427
    %7429 = vrot.lane.b32.xlu0 %v7403, 56
    %v7430 = vpop.permute.xlu0 %7429
    %v7431 = vsel %vm453, %v7414, %v7416
    %v7432 = vsel %vm453, %v7416, %v7418
    %v7433 = vsel %vm453, %v7418, %v7420
    %v7434 = vsel %vm453, %v7420, %v7422
    %v7435 = vsel %vm453, %v7422, %v7424
    %v7436 = vsel %vm453, %v7424, %v7426
    %v7437 = vsel %vm453, %v7426, %v7428
    %v7438 = vsel %vm453, %v7428, %v7430
    %7447 = vst [vmem:[#allocation4 + $0x1c0] sm:$0xff] %v7431
    %7448 = vst [vmem:[#allocation4 + $0x1c8] sm:$0xff] %v7432
    %7449 = vst [vmem:[#allocation4 + $0x1d0] sm:$0xff] %v7433
    %7450 = vst [vmem:[#allocation4 + $0x1d8] sm:$0xff] %v7434
    %7451 = vst [vmem:[#allocation4 + $0x1e0] sm:$0xff] %v7435
    %7452 = vst [vmem:[#allocation4 + $0x1e8] sm:$0xff] %v7436
    %7453 = vst [vmem:[#allocation4 + $0x1f0] sm:$0xff] %v7437
    %7454 = vst [vmem:[#allocation4 + $0x1f8] sm:$0xff] %v7438
    %v7455 = vld [vmem:[#allocation3] sm:$0xff]
    %v7456 = vld [vmem:[#allocation3 + $0x8] sm:$0xff]
    %v7457 = vld [vmem:[#allocation3 + $0x10] sm:$0xff]
    %v7458 = vld [vmem:[#allocation3 + $0x18] sm:$0xff]
    %v7459 = vld [vmem:[#allocation3 + $0x20] sm:$0xff]
    %v7460 = vld [vmem:[#allocation3 + $0x28] sm:$0xff]
    %v7461 = vld [vmem:[#allocation3 + $0x30] sm:$0xff]
    %v7462 = vld [vmem:[#allocation3 + $0x38] sm:$0xff]
    %v7463 = vld [vmem:[#allocation3 + $0x40] sm:$0xff]
    %v7464 = vld [vmem:[#allocation8 + $0x20] sm:$0x11]
    %v7465 = vld [vmem:[#allocation8 + $0x28] sm:$0x11]
    %v7466 = vld [vmem:[#allocation8 + $0x30] sm:$0x11]
    %v7467 = vld [vmem:[#allocation8 + $0x38] sm:$0x11]
    %v7472 = vunpack.c.l.b16 %v7464
    %v7473 = vunpack.c.h.b16 %v7464
    %v7474 = vunpack.c.l.b16 %v7465
    %v7475 = vunpack.c.h.b16 %v7465
    %v7476 = vunpack.c.l.b16 %v7466
    %v7477 = vunpack.c.h.b16 %v7466
    %v7478 = vunpack.c.l.b16 %v7467
    %v7479 = vunpack.c.h.b16 %v7467
    %v7480 = vpack.c.b16 %v7472, %v7472
    %v7481 = vpack.c.b16 %v7473, %v7473
    %v7482 = vpack.c.b16 %v7474, %v7474
    %v7483 = vpack.c.b16 %v7475, %v7475
    %v7484 = vpack.c.b16 %v7476, %v7476
    %v7485 = vpack.c.b16 %v7477, %v7477
    %v7486 = vpack.c.b16 %v7478, %v7478
    %v7487 = vpack.c.b16 %v7479, %v7479
    %v7489 = vpack.i.b16 %v7480, %v7480
    %v7491 = vlaneseq
    %v7492 = vshrl.u32 %v7491, 7
    %v7493 = vsub.s32 0, %v7492
    %v7494 = vrot.slane %v7489, %v7493
    %v7496 = vpack.i.b16 %v7481, %v7481
    %v7498 = vlaneseq
    %v7499 = vshrl.u32 %v7498, 7
    %v7500 = vsub.s32 0, %v7499
    %v7501 = vrot.slane %v7496, %v7500
    %v7503 = vpack.i.b16 %v7482, %v7482
    %v7505 = vlaneseq
    %v7506 = vshrl.u32 %v7505, 7
    %v7507 = vsub.s32 0, %v7506
    %v7508 = vrot.slane %v7503, %v7507
    %v7510 = vpack.i.b16 %v7483, %v7483
    %v7512 = vlaneseq
    %v7513 = vshrl.u32 %v7512, 7
    %v7514 = vsub.s32 0, %v7513
    %v7515 = vrot.slane %v7510, %v7514
    %v7517 = vpack.i.b16 %v7484, %v7484
    %v7519 = vlaneseq
    %v7520 = vshrl.u32 %v7519, 7
    %v7521 = vsub.s32 0, %v7520
    %v7522 = vrot.slane %v7517, %v7521
    %v7524 = vpack.i.b16 %v7485, %v7485
    %v7526 = vlaneseq
    %v7527 = vshrl.u32 %v7526, 7
    %v7528 = vsub.s32 0, %v7527
    %v7529 = vrot.slane %v7524, %v7528
    %v7531 = vpack.i.b16 %v7486, %v7486
    %v7533 = vlaneseq
    %v7534 = vshrl.u32 %v7533, 7
    %v7535 = vsub.s32 0, %v7534
    %v7536 = vrot.slane %v7531, %v7535
    %v7538 = vpack.i.b16 %v7487, %v7487
    %v7540 = vlaneseq
    %v7541 = vshrl.u32 %v7540, 7
    %v7542 = vsub.s32 0, %v7541
    %v7543 = vrot.slane %v7538, %v7542
    %7552 = vrot.lane.b32.xlu0 %v7494, 73
    %v7553 = vpop.permute.xlu0 %7552
    %7554 = vrot.lane.b32.xlu0 %v7501, 73
    %v7555 = vpop.permute.xlu0 %7554
    %7556 = vrot.lane.b32.xlu0 %v7508, 73
    %v7557 = vpop.permute.xlu0 %7556
    %7558 = vrot.lane.b32.xlu0 %v7515, 73
    %v7559 = vpop.permute.xlu0 %7558
    %7560 = vrot.lane.b32.xlu0 %v7522, 73
    %v7561 = vpop.permute.xlu0 %7560
    %7562 = vrot.lane.b32.xlu0 %v7529, 73
    %v7563 = vpop.permute.xlu0 %7562
    %7564 = vrot.lane.b32.xlu0 %v7536, 73
    %v7565 = vpop.permute.xlu0 %7564
    %7566 = vrot.lane.b32.xlu0 %v7543, 73
    %v7567 = vpop.permute.xlu0 %7566
    %v7568 = vsel %vm307, %v7553, %v7555
    %v7569 = vsel %vm307, %v7555, %v7557
    %v7570 = vsel %vm307, %v7557, %v7559
    %v7571 = vsel %vm307, %v7559, %v7561
    %v7572 = vsel %vm307, %v7561, %v7563
    %v7573 = vsel %vm307, %v7563, %v7565
    %v7574 = vsel %vm307, %v7565, %v7567
    %v7584 = vmul.bf16 %v7455, %v7553
    %v7585 = vmul.bf16 %v7456, %v7568
    %v7586 = vmul.bf16 %v7457, %v7569
    %v7587 = vmul.bf16 %v7458, %v7570
    %v7588 = vmul.bf16 %v7459, %v7571
    %v7589 = vmul.bf16 %v7460, %v7572
    %v7590 = vmul.bf16 %v7461, %v7573
    %v7591 = vmul.bf16 %v7462, %v7574
    %v7592 = vmul.bf16 %v7463, %v7567
    %7602 = vrot.lane.b32.xlu0 %v7584, 55
    %v7603 = vpop.permute.xlu0 %7602
    %7604 = vrot.lane.b32.xlu0 %v7585, 55
    %v7605 = vpop.permute.xlu0 %7604
    %7606 = vrot.lane.b32.xlu0 %v7586, 55
    %v7607 = vpop.permute.xlu0 %7606
    %7608 = vrot.lane.b32.xlu0 %v7587, 55
    %v7609 = vpop.permute.xlu0 %7608
    %7610 = vrot.lane.b32.xlu0 %v7588, 55
    %v7611 = vpop.permute.xlu0 %7610
    %7612 = vrot.lane.b32.xlu0 %v7589, 55
    %v7613 = vpop.permute.xlu0 %7612
    %7614 = vrot.lane.b32.xlu0 %v7590, 55
    %v7615 = vpop.permute.xlu0 %7614
    %7616 = vrot.lane.b32.xlu0 %v7591, 55
    %v7617 = vpop.permute.xlu0 %7616
    %7618 = vrot.lane.b32.xlu0 %v7592, 55
    %v7619 = vpop.permute.xlu0 %7618
    %v7620 = vsel %vm254, %v7603, %v7605
    %v7621 = vsel %vm254, %v7605, %v7607
    %v7622 = vsel %vm254, %v7607, %v7609
    %v7623 = vsel %vm254, %v7609, %v7611
    %v7624 = vsel %vm254, %v7611, %v7613
    %v7625 = vsel %vm254, %v7613, %v7615
    %v7626 = vsel %vm254, %v7615, %v7617
    %v7627 = vsel %vm254, %v7617, %v7619
    %7636 = vst [vmem:[#allocation4 + $0x200] sm:$0xff] %v7620
    %7637 = vst [vmem:[#allocation4 + $0x208] sm:$0xff] %v7621
    %7638 = vst [vmem:[#allocation4 + $0x210] sm:$0xff] %v7622
    %7639 = vst [vmem:[#allocation4 + $0x218] sm:$0xff] %v7623
    %7640 = vst [vmem:[#allocation4 + $0x220] sm:$0xff] %v7624
    %7641 = vst [vmem:[#allocation4 + $0x228] sm:$0xff] %v7625
    %7642 = vst [vmem:[#allocation4 + $0x230] sm:$0xff] %v7626
    %7643 = vst [vmem:[#allocation4 + $0x238] sm:$0xff] %v7627
    %v7644 = vld [vmem:[#allocation3] sm:$0xff]
    %v7645 = vld [vmem:[#allocation3 + $0x8] sm:$0xff]
    %v7646 = vld [vmem:[#allocation3 + $0x10] sm:$0xff]
    %v7647 = vld [vmem:[#allocation3 + $0x18] sm:$0xff]
    %v7648 = vld [vmem:[#allocation3 + $0x20] sm:$0xff]
    %v7649 = vld [vmem:[#allocation3 + $0x28] sm:$0xff]
    %v7650 = vld [vmem:[#allocation3 + $0x30] sm:$0xff]
    %v7651 = vld [vmem:[#allocation3 + $0x38] sm:$0xff]
    %v7652 = vld [vmem:[#allocation3 + $0x40] sm:$0xff]
    %v7653 = vld [vmem:[#allocation8 + $0x20] sm:$0x11]
    %v7654 = vld [vmem:[#allocation8 + $0x28] sm:$0x11]
    %v7655 = vld [vmem:[#allocation8 + $0x30] sm:$0x11]
    %v7656 = vld [vmem:[#allocation8 + $0x38] sm:$0x11]
    %v7661 = vunpack.c.l.b16 %v7653
    %v7662 = vunpack.c.h.b16 %v7653
    %v7663 = vunpack.c.l.b16 %v7654
    %v7664 = vunpack.c.h.b16 %v7654
    %v7665 = vunpack.c.l.b16 %v7655
    %v7666 = vunpack.c.h.b16 %v7655
    %v7667 = vunpack.c.l.b16 %v7656
    %v7668 = vunpack.c.h.b16 %v7656
    %v7669 = vpack.c.b16 %v7661, %v7661
    %v7670 = vpack.c.b16 %v7662, %v7662
    %v7671 = vpack.c.b16 %v7663, %v7663
    %v7672 = vpack.c.b16 %v7664, %v7664
    %v7673 = vpack.c.b16 %v7665, %v7665
    %v7674 = vpack.c.b16 %v7666, %v7666
    %v7675 = vpack.c.b16 %v7667, %v7667
    %v7676 = vpack.c.b16 %v7668, %v7668
    %v7678 = vshrl.u32 %v7669, 16
    %v7679 = vpack.i.b16 %v7678, %v7678
    %v7681 = vlaneseq
    %v7682 = vshrl.u32 %v7681, 7
    %v7683 = vsub.s32 0, %v7682
    %v7684 = vrot.slane %v7679, %v7683
    %v7686 = vshrl.u32 %v7670, 16
    %v7687 = vpack.i.b16 %v7686, %v7686
    %v7689 = vlaneseq
    %v7690 = vshrl.u32 %v7689, 7
    %v7691 = vsub.s32 0, %v7690
    %v7692 = vrot.slane %v7687, %v7691
    %v7694 = vshrl.u32 %v7671, 16
    %v7695 = vpack.i.b16 %v7694, %v7694
    %v7697 = vlaneseq
    %v7698 = vshrl.u32 %v7697, 7
    %v7699 = vsub.s32 0, %v7698
    %v7700 = vrot.slane %v7695, %v7699
    %v7702 = vshrl.u32 %v7672, 16
    %v7703 = vpack.i.b16 %v7702, %v7702
    %v7705 = vlaneseq
    %v7706 = vshrl.u32 %v7705, 7
    %v7707 = vsub.s32 0, %v7706
    %v7708 = vrot.slane %v7703, %v7707
    %v7710 = vshrl.u32 %v7673, 16
    %v7711 = vpack.i.b16 %v7710, %v7710
    %v7713 = vlaneseq
    %v7714 = vshrl.u32 %v7713, 7
    %v7715 = vsub.s32 0, %v7714
    %v7716 = vrot.slane %v7711, %v7715
    %v7718 = vshrl.u32 %v7674, 16
    %v7719 = vpack.i.b16 %v7718, %v7718
    %v7721 = vlaneseq
    %v7722 = vshrl.u32 %v7721, 7
    %v7723 = vsub.s32 0, %v7722
    %v7724 = vrot.slane %v7719, %v7723
    %v7726 = vshrl.u32 %v7675, 16
    %v7727 = vpack.i.b16 %v7726, %v7726
    %v7729 = vlaneseq
    %v7730 = vshrl.u32 %v7729, 7
    %v7731 = vsub.s32 0, %v7730
    %v7732 = vrot.slane %v7727, %v7731
    %v7734 = vshrl.u32 %v7676, 16
    %v7735 = vpack.i.b16 %v7734, %v7734
    %v7737 = vlaneseq
    %v7738 = vshrl.u32 %v7737, 7
    %v7739 = vsub.s32 0, %v7738
    %v7740 = vrot.slane %v7735, %v7739
    %7749 = vrot.lane.b32.xlu0 %v7684, 119
    %v7750 = vpop.permute.xlu0 %7749
    %7751 = vrot.lane.b32.xlu0 %v7692, 119
    %v7752 = vpop.permute.xlu0 %7751
    %7753 = vrot.lane.b32.xlu0 %v7700, 119
    %v7754 = vpop.permute.xlu0 %7753
    %7755 = vrot.lane.b32.xlu0 %v7708, 119
    %v7756 = vpop.permute.xlu0 %7755
    %7757 = vrot.lane.b32.xlu0 %v7716, 119
    %v7758 = vpop.permute.xlu0 %7757
    %7759 = vrot.lane.b32.xlu0 %v7724, 119
    %v7760 = vpop.permute.xlu0 %7759
    %7761 = vrot.lane.b32.xlu0 %v7732, 119
    %v7762 = vpop.permute.xlu0 %7761
    %7763 = vrot.lane.b32.xlu0 %v7740, 119
    %v7764 = vpop.permute.xlu0 %7763
    %v7765 = vsel %vm2004, %v7750, %v7752
    %v7766 = vsel %vm2004, %v7752, %v7754
    %v7767 = vsel %vm2004, %v7754, %v7756
    %v7768 = vsel %vm2004, %v7756, %v7758
    %v7769 = vsel %vm2004, %v7758, %v7760
    %v7770 = vsel %vm2004, %v7760, %v7762
    %v7771 = vsel %vm2004, %v7762, %v7764
    %v7781 = vmul.bf16 %v7644, %v7750
    %v7782 = vmul.bf16 %v7645, %v7765
    %v7783 = vmul.bf16 %v7646, %v7766
    %v7784 = vmul.bf16 %v7647, %v7767
    %v7785 = vmul.bf16 %v7648, %v7768
    %v7786 = vmul.bf16 %v7649, %v7769
    %v7787 = vmul.bf16 %v7650, %v7770
    %v7788 = vmul.bf16 %v7651, %v7771
    %v7789 = vmul.bf16 %v7652, %v7764
    %7799 = vrot.lane.b32.xlu0 %v7781, 9
    %v7800 = vpop.permute.xlu0 %7799
    %7801 = vrot.lane.b32.xlu0 %v7782, 9
    %v7802 = vpop.permute.xlu0 %7801
    %7803 = vrot.lane.b32.xlu0 %v7783, 9
    %v7804 = vpop.permute.xlu0 %7803
    %7805 = vrot.lane.b32.xlu0 %v7784, 9
    %v7806 = vpop.permute.xlu0 %7805
    %7807 = vrot.lane.b32.xlu0 %v7785, 9
    %v7808 = vpop.permute.xlu0 %7807
    %7809 = vrot.lane.b32.xlu0 %v7786, 9
    %v7810 = vpop.permute.xlu0 %7809
    %7811 = vrot.lane.b32.xlu0 %v7787, 9
    %v7812 = vpop.permute.xlu0 %7811
    %7813 = vrot.lane.b32.xlu0 %v7788, 9
    %v7814 = vpop.permute.xlu0 %7813
    %7815 = vrot.lane.b32.xlu0 %v7789, 9
    %v7816 = vpop.permute.xlu0 %7815
    %v7817 = vsel %vm2057, %v7800, %v7802
    %v7818 = vsel %vm2057, %v7802, %v7804
    %v7819 = vsel %vm2057, %v7804, %v7806
    %v7820 = vsel %vm2057, %v7806, %v7808
    %v7821 = vsel %vm2057, %v7808, %v7810
    %v7822 = vsel %vm2057, %v7810, %v7812
    %v7823 = vsel %vm2057, %v7812, %v7814
    %v7824 = vsel %vm2057, %v7814, %v7816
    %7833 = vst [vmem:[#allocation4 + $0x240] sm:$0xff] %v7817
    %7834 = vst [vmem:[#allocation4 + $0x248] sm:$0xff] %v7818
    %7835 = vst [vmem:[#allocation4 + $0x250] sm:$0xff] %v7819
    %7836 = vst [vmem:[#allocation4 + $0x258] sm:$0xff] %v7820
    %7837 = vst [vmem:[#allocation4 + $0x260] sm:$0xff] %v7821
    %7838 = vst [vmem:[#allocation4 + $0x268] sm:$0xff] %v7822
    %7839 = vst [vmem:[#allocation4 + $0x270] sm:$0xff] %v7823
    %7840 = vst [vmem:[#allocation4 + $0x278] sm:$0xff] %v7824
    %v7841 = vld [vmem:[#allocation3] sm:$0xff]
    %v7842 = vld [vmem:[#allocation3 + $0x8] sm:$0xff]
    %v7843 = vld [vmem:[#allocation3 + $0x10] sm:$0xff]
    %v7844 = vld [vmem:[#allocation3 + $0x18] sm:$0xff]
    %v7845 = vld [vmem:[#allocation3 + $0x20] sm:$0xff]
    %v7846 = vld [vmem:[#allocation3 + $0x28] sm:$0xff]
    %v7847 = vld [vmem:[#allocation3 + $0x30] sm:$0xff]
    %v7848 = vld [vmem:[#allocation3 + $0x38] sm:$0xff]
    %v7849 = vld [vmem:[#allocation3 + $0x40] sm:$0xff]
    %v7850 = vld [vmem:[#allocation8 + $0x20] sm:$0x22]
    %v7851 = vld [vmem:[#allocation8 + $0x28] sm:$0x22]
    %v7852 = vld [vmem:[#allocation8 + $0x30] sm:$0x22]
    %v7853 = vld [vmem:[#allocation8 + $0x38] sm:$0x22]
    %v7858 = vunpack.c.l.b16 %v7850
    %v7859 = vunpack.c.h.b16 %v7850
    %v7860 = vunpack.c.l.b16 %v7851
    %v7861 = vunpack.c.h.b16 %v7851
    %v7862 = vunpack.c.l.b16 %v7852
    %v7863 = vunpack.c.h.b16 %v7852
    %v7864 = vunpack.c.l.b16 %v7853
    %v7865 = vunpack.c.h.b16 %v7853
    %v7866 = vpack.c.b16 %v7858, %v7858
    %v7867 = vpack.c.b16 %v7859, %v7859
    %v7868 = vpack.c.b16 %v7860, %v7860
    %v7869 = vpack.c.b16 %v7861, %v7861
    %v7870 = vpack.c.b16 %v7862, %v7862
    %v7871 = vpack.c.b16 %v7863, %v7863
    %v7872 = vpack.c.b16 %v7864, %v7864
    %v7873 = vpack.c.b16 %v7865, %v7865
    %v7875 = vpack.i.b16 %v7866, %v7866
    %v7877 = vlaneseq
    %v7878 = vshrl.u32 %v7877, 7
    %v7879 = vsub.s32 1, %v7878
    %v7880 = vrot.slane %v7875, %v7879
    %v7882 = vpack.i.b16 %v7867, %v7867
    %v7884 = vlaneseq
    %v7885 = vshrl.u32 %v7884, 7
    %v7886 = vsub.s32 1, %v7885
    %v7887 = vrot.slane %v7882, %v7886
    %v7889 = vpack.i.b16 %v7868, %v7868
    %v7891 = vlaneseq
    %v7892 = vshrl.u32 %v7891, 7
    %v7893 = vsub.s32 1, %v7892
    %v7894 = vrot.slane %v7889, %v7893
    %v7896 = vpack.i.b16 %v7869, %v7869
    %v7898 = vlaneseq
    %v7899 = vshrl.u32 %v7898, 7
    %v7900 = vsub.s32 1, %v7899
    %v7901 = vrot.slane %v7896, %v7900
    %v7903 = vpack.i.b16 %v7870, %v7870
    %v7905 = vlaneseq
    %v7906 = vshrl.u32 %v7905, 7
    %v7907 = vsub.s32 1, %v7906
    %v7908 = vrot.slane %v7903, %v7907
    %v7910 = vpack.i.b16 %v7871, %v7871
    %v7912 = vlaneseq
    %v7913 = vshrl.u32 %v7912, 7
    %v7914 = vsub.s32 1, %v7913
    %v7915 = vrot.slane %v7910, %v7914
    %v7917 = vpack.i.b16 %v7872, %v7872
    %v7919 = vlaneseq
    %v7920 = vshrl.u32 %v7919, 7
    %v7921 = vsub.s32 1, %v7920
    %v7922 = vrot.slane %v7917, %v7921
    %v7924 = vpack.i.b16 %v7873, %v7873
    %v7926 = vlaneseq
    %v7927 = vshrl.u32 %v7926, 7
    %v7928 = vsub.s32 1, %v7927
    %v7929 = vrot.slane %v7924, %v7928
    %7938 = vrot.lane.b32.xlu0 %v7880, 120
    %v7939 = vpop.permute.xlu0 %7938
    %7940 = vrot.lane.b32.xlu0 %v7887, 120
    %v7941 = vpop.permute.xlu0 %7940
    %7942 = vrot.lane.b32.xlu0 %v7894, 120
    %v7943 = vpop.permute.xlu0 %7942
    %7944 = vrot.lane.b32.xlu0 %v7901, 120
    %v7945 = vpop.permute.xlu0 %7944
    %7946 = vrot.lane.b32.xlu0 %v7908, 120
    %v7947 = vpop.permute.xlu0 %7946
    %7948 = vrot.lane.b32.xlu0 %v7915, 120
    %v7949 = vpop.permute.xlu0 %7948
    %7950 = vrot.lane.b32.xlu0 %v7922, 120
    %v7951 = vpop.permute.xlu0 %7950
    %7952 = vrot.lane.b32.xlu0 %v7929, 120
    %v7953 = vpop.permute.xlu0 %7952
    %v7954 = vsel %vm2195, %v7939, %v7941
    %v7955 = vsel %vm2195, %v7941, %v7943
    %v7956 = vsel %vm2195, %v7943, %v7945
    %v7957 = vsel %vm2195, %v7945, %v7947
    %v7958 = vsel %vm2195, %v7947, %v7949
    %v7959 = vsel %vm2195, %v7949, %v7951
    %v7960 = vsel %vm2195, %v7951, %v7953
    %v7970 = vmul.bf16 %v7841, %v7939
    %v7971 = vmul.bf16 %v7842, %v7954
    %v7972 = vmul.bf16 %v7843, %v7955
    %v7973 = vmul.bf16 %v7844, %v7956
    %v7974 = vmul.bf16 %v7845, %v7957
    %v7975 = vmul.bf16 %v7846, %v7958
    %v7976 = vmul.bf16 %v7847, %v7959
    %v7977 = vmul.bf16 %v7848, %v7960
    %v7978 = vmul.bf16 %v7849, %v7953
    %7988 = vrot.lane.b32.xlu0 %v7970, 8
    %v7989 = vpop.permute.xlu0 %7988
    %7990 = vrot.lane.b32.xlu0 %v7971, 8
    %v7991 = vpop.permute.xlu0 %7990
    %7992 = vrot.lane.b32.xlu0 %v7972, 8
    %v7993 = vpop.permute.xlu0 %7992
    %7994 = vrot.lane.b32.xlu0 %v7973, 8
    %v7995 = vpop.permute.xlu0 %7994
    %7996 = vrot.lane.b32.xlu0 %v7974, 8
    %v7997 = vpop.permute.xlu0 %7996
    %7998 = vrot.lane.b32.xlu0 %v7975, 8
    %v7999 = vpop.permute.xlu0 %7998
    %8000 = vrot.lane.b32.xlu0 %v7976, 8
    %v8001 = vpop.permute.xlu0 %8000
    %8002 = vrot.lane.b32.xlu0 %v7977, 8
    %v8003 = vpop.permute.xlu0 %8002
    %8004 = vrot.lane.b32.xlu0 %v7978, 8
    %v8005 = vpop.permute.xlu0 %8004
    %v8006 = vsel %vm2248, %v7989, %v7991
    %v8007 = vsel %vm2248, %v7991, %v7993
    %v8008 = vsel %vm2248, %v7993, %v7995
    %v8009 = vsel %vm2248, %v7995, %v7997
    %v8010 = vsel %vm2248, %v7997, %v7999
    %v8011 = vsel %vm2248, %v7999, %v8001
    %v8012 = vsel %vm2248, %v8001, %v8003
    %v8013 = vsel %vm2248, %v8003, %v8005
    %8022 = vst [vmem:[#allocation4 + $0x280] sm:$0xff] %v8006
    %8023 = vst [vmem:[#allocation4 + $0x288] sm:$0xff] %v8007
    %8024 = vst [vmem:[#allocation4 + $0x290] sm:$0xff] %v8008
    %8025 = vst [vmem:[#allocation4 + $0x298] sm:$0xff] %v8009
    %8026 = vst [vmem:[#allocation4 + $0x2a0] sm:$0xff] %v8010
    %8027 = vst [vmem:[#allocation4 + $0x2a8] sm:$0xff] %v8011
    %8028 = vst [vmem:[#allocation4 + $0x2b0] sm:$0xff] %v8012
    %8029 = vst [vmem:[#allocation4 + $0x2b8] sm:$0xff] %v8013
    %v8030 = vld [vmem:[#allocation3] sm:$0xff]
    %v8031 = vld [vmem:[#allocation3 + $0x8] sm:$0xff]
    %v8032 = vld [vmem:[#allocation3 + $0x10] sm:$0xff]
    %v8033 = vld [vmem:[#allocation3 + $0x18] sm:$0xff]
    %v8034 = vld [vmem:[#allocation3 + $0x20] sm:$0xff]
    %v8035 = vld [vmem:[#allocation3 + $0x28] sm:$0xff]
    %v8036 = vld [vmem:[#allocation3 + $0x30] sm:$0xff]
    %v8037 = vld [vmem:[#allocation3 + $0x38] sm:$0xff]
    %v8038 = vld [vmem:[#allocation3 + $0x40] sm:$0xff]
    %v8039 = vld [vmem:[#allocation8 + $0x20] sm:$0x22]
    %v8040 = vld [vmem:[#allocation8 + $0x28] sm:$0x22]
    %v8041 = vld [vmem:[#allocation8 + $0x30] sm:$0x22]
    %v8042 = vld [vmem:[#allocation8 + $0x38] sm:$0x22]
    %v8047 = vunpack.c.l.b16 %v8039
    %v8048 = vunpack.c.h.b16 %v8039
    %v8049 = vunpack.c.l.b16 %v8040
    %v8050 = vunpack.c.h.b16 %v8040
    %v8051 = vunpack.c.l.b16 %v8041
    %v8052 = vunpack.c.h.b16 %v8041
    %v8053 = vunpack.c.l.b16 %v8042
    %v8054 = vunpack.c.h.b16 %v8042
    %v8055 = vpack.c.b16 %v8047, %v8047
    %v8056 = vpack.c.b16 %v8048, %v8048
    %v8057 = vpack.c.b16 %v8049, %v8049
    %v8058 = vpack.c.b16 %v8050, %v8050
    %v8059 = vpack.c.b16 %v8051, %v8051
    %v8060 = vpack.c.b16 %v8052, %v8052
    %v8061 = vpack.c.b16 %v8053, %v8053
    %v8062 = vpack.c.b16 %v8054, %v8054
    %v8064 = vshrl.u32 %v8055, 16
    %v8065 = vpack.i.b16 %v8064, %v8064
    %v8067 = vlaneseq
    %v8068 = vshrl.u32 %v8067, 7
    %v8069 = vsub.s32 1, %v8068
    %v8070 = vrot.slane %v8065, %v8069
    %v8072 = vshrl.u32 %v8056, 16
    %v8073 = vpack.i.b16 %v8072, %v8072
    %v8075 = vlaneseq
    %v8076 = vshrl.u32 %v8075, 7
    %v8077 = vsub.s32 1, %v8076
    %v8078 = vrot.slane %v8073, %v8077
    %v8080 = vshrl.u32 %v8057, 16
    %v8081 = vpack.i.b16 %v8080, %v8080
    %v8083 = vlaneseq
    %v8084 = vshrl.u32 %v8083, 7
    %v8085 = vsub.s32 1, %v8084
    %v8086 = vrot.slane %v8081, %v8085
    %v8088 = vshrl.u32 %v8058, 16
    %v8089 = vpack.i.b16 %v8088, %v8088
    %v8091 = vlaneseq
    %v8092 = vshrl.u32 %v8091, 7
    %v8093 = vsub.s32 1, %v8092
    %v8094 = vrot.slane %v8089, %v8093
    %v8096 = vshrl.u32 %v8059, 16
    %v8097 = vpack.i.b16 %v8096, %v8096
    %v8099 = vlaneseq
    %v8100 = vshrl.u32 %v8099, 7
    %v8101 = vsub.s32 1, %v8100
    %v8102 = vrot.slane %v8097, %v8101
    %v8104 = vshrl.u32 %v8060, 16
    %v8105 = vpack.i.b16 %v8104, %v8104
    %v8107 = vlaneseq
    %v8108 = vshrl.u32 %v8107, 7
    %v8109 = vsub.s32 1, %v8108
    %v8110 = vrot.slane %v8105, %v8109
    %v8112 = vshrl.u32 %v8061, 16
    %v8113 = vpack.i.b16 %v8112, %v8112
    %v8115 = vlaneseq
    %v8116 = vshrl.u32 %v8115, 7
    %v8117 = vsub.s32 1, %v8116
    %v8118 = vrot.slane %v8113, %v8117
    %v8120 = vshrl.u32 %v8062, 16
    %v8121 = vpack.i.b16 %v8120, %v8120
    %v8123 = vlaneseq
    %v8124 = vshrl.u32 %v8123, 7
    %v8125 = vsub.s32 1, %v8124
    %v8126 = vrot.slane %v8121, %v8125
    %8135 = vrot.lane.b32.xlu0 %v8070, 121
    %v8136 = vpop.permute.xlu0 %8135
    %8137 = vrot.lane.b32.xlu0 %v8078, 121
    %v8138 = vpop.permute.xlu0 %8137
    %8139 = vrot.lane.b32.xlu0 %v8086, 121
    %v8140 = vpop.permute.xlu0 %8139
    %8141 = vrot.lane.b32.xlu0 %v8094, 121
    %v8142 = vpop.permute.xlu0 %8141
    %8143 = vrot.lane.b32.xlu0 %v8102, 121
    %v8144 = vpop.permute.xlu0 %8143
    %8145 = vrot.lane.b32.xlu0 %v8110, 121
    %v8146 = vpop.permute.xlu0 %8145
    %8147 = vrot.lane.b32.xlu0 %v8118, 121
    %v8148 = vpop.permute.xlu0 %8147
    %8149 = vrot.lane.b32.xlu0 %v8126, 121
    %v8150 = vpop.permute.xlu0 %8149
    %v8151 = vsel %vm2394, %v8136, %v8138
    %v8152 = vsel %vm2394, %v8138, %v8140
    %v8153 = vsel %vm2394, %v8140, %v8142
    %v8154 = vsel %vm2394, %v8142, %v8144
    %v8155 = vsel %vm2394, %v8144, %v8146
    %v8156 = vsel %vm2394, %v8146, %v8148
    %v8157 = vsel %vm2394, %v8148, %v8150
    %v8167 = vmul.bf16 %v8030, %v8136
    %v8168 = vmul.bf16 %v8031, %v8151
    %v8169 = vmul.bf16 %v8032, %v8152
    %v8170 = vmul.bf16 %v8033, %v8153
    %v8171 = vmul.bf16 %v8034, %v8154
    %v8172 = vmul.bf16 %v8035, %v8155
    %v8173 = vmul.bf16 %v8036, %v8156
    %v8174 = vmul.bf16 %v8037, %v8157
    %v8175 = vmul.bf16 %v8038, %v8150
    %8185 = vrot.lane.b32.xlu0 %v8167, 7
    %v8186 = vpop.permute.xlu0 %8185
    %8187 = vrot.lane.b32.xlu0 %v8168, 7
    %v8188 = vpop.permute.xlu0 %8187
    %8189 = vrot.lane.b32.xlu0 %v8169, 7
    %v8190 = vpop.permute.xlu0 %8189
    %8191 = vrot.lane.b32.xlu0 %v8170, 7
    %v8192 = vpop.permute.xlu0 %8191
    %8193 = vrot.lane.b32.xlu0 %v8171, 7
    %v8194 = vpop.permute.xlu0 %8193
    %8195 = vrot.lane.b32.xlu0 %v8172, 7
    %v8196 = vpop.permute.xlu0 %8195
    %8197 = vrot.lane.b32.xlu0 %v8173, 7
    %v8198 = vpop.permute.xlu0 %8197
    %8199 = vrot.lane.b32.xlu0 %v8174, 7
    %v8200 = vpop.permute.xlu0 %8199
    %8201 = vrot.lane.b32.xlu0 %v8175, 7
    %v8202 = vpop.permute.xlu0 %8201
    %v8203 = vsel %vm2447, %v8186, %v8188
    %v8204 = vsel %vm2447, %v8188, %v8190
    %v8205 = vsel %vm2447, %v8190, %v8192
    %v8206 = vsel %vm2447, %v8192, %v8194
    %v8207 = vsel %vm2447, %v8194, %v8196
    %v8208 = vsel %vm2447, %v8196, %v8198
    %v8209 = vsel %vm2447, %v8198, %v8200
    %v8210 = vsel %vm2447, %v8200, %v8202
    %8219 = vst [vmem:[#allocation4 + $0x2c0] sm:$0xff] %v8203
    %8220 = vst [vmem:[#allocation4 + $0x2c8] sm:$0xff] %v8204
    %8221 = vst [vmem:[#allocation4 + $0x2d0] sm:$0xff] %v8205
    %8222 = vst [vmem:[#allocation4 + $0x2d8] sm:$0xff] %v8206
    %8223 = vst [vmem:[#allocation4 + $0x2e0] sm:$0xff] %v8207
    %8224 = vst [vmem:[#allocation4 + $0x2e8] sm:$0xff] %v8208
    %8225 = vst [vmem:[#allocation4 + $0x2f0] sm:$0xff] %v8209
    %8226 = vst [vmem:[#allocation4 + $0x2f8] sm:$0xff] %v8210
    %v8227 = vld [vmem:[#allocation3] sm:$0xff]
    %v8228 = vld [vmem:[#allocation3 + $0x8] sm:$0xff]
    %v8229 = vld [vmem:[#allocation3 + $0x10] sm:$0xff]
    %v8230 = vld [vmem:[#allocation3 + $0x18] sm:$0xff]
    %v8231 = vld [vmem:[#allocation3 + $0x20] sm:$0xff]
    %v8232 = vld [vmem:[#allocation3 + $0x28] sm:$0xff]
    %v8233 = vld [vmem:[#allocation3 + $0x30] sm:$0xff]
    %v8234 = vld [vmem:[#allocation3 + $0x38] sm:$0xff]
    %v8235 = vld [vmem:[#allocation3 + $0x40] sm:$0xff]
    %v8236 = vld [vmem:[#allocation8 + $0x20] sm:$0x44]
    %v8237 = vld [vmem:[#allocation8 + $0x28] sm:$0x44]
    %v8238 = vld [vmem:[#allocation8 + $0x30] sm:$0x44]
    %v8239 = vld [vmem:[#allocation8 + $0x38] sm:$0x44]
    %v8244 = vunpack.c.l.b16 %v8236
    %v8245 = vunpack.c.h.b16 %v8236
    %v8246 = vunpack.c.l.b16 %v8237
    %v8247 = vunpack.c.h.b16 %v8237
    %v8248 = vunpack.c.l.b16 %v8238
    %v8249 = vunpack.c.h.b16 %v8238
    %v8250 = vunpack.c.l.b16 %v8239
    %v8251 = vunpack.c.h.b16 %v8239
    %v8252 = vpack.c.b16 %v8244, %v8244
    %v8253 = vpack.c.b16 %v8245, %v8245
    %v8254 = vpack.c.b16 %v8246, %v8246
    %v8255 = vpack.c.b16 %v8247, %v8247
    %v8256 = vpack.c.b16 %v8248, %v8248
    %v8257 = vpack.c.b16 %v8249, %v8249
    %v8258 = vpack.c.b16 %v8250, %v8250
    %v8259 = vpack.c.b16 %v8251, %v8251
    %v8261 = vpack.i.b16 %v8252, %v8252
    %v8263 = vlaneseq
    %v8264 = vshrl.u32 %v8263, 7
    %v8265 = vsub.s32 2, %v8264
    %v8266 = vrot.slane %v8261, %v8265
    %v8268 = vpack.i.b16 %v8253, %v8253
    %v8270 = vlaneseq
    %v8271 = vshrl.u32 %v8270, 7
    %v8272 = vsub.s32 2, %v8271
    %v8273 = vrot.slane %v8268, %v8272
    %v8275 = vpack.i.b16 %v8254, %v8254
    %v8277 = vlaneseq
    %v8278 = vshrl.u32 %v8277, 7
    %v8279 = vsub.s32 2, %v8278
    %v8280 = vrot.slane %v8275, %v8279
    %v8282 = vpack.i.b16 %v8255, %v8255
    %v8284 = vlaneseq
    %v8285 = vshrl.u32 %v8284, 7
    %v8286 = vsub.s32 2, %v8285
    %v8287 = vrot.slane %v8282, %v8286
    %v8289 = vpack.i.b16 %v8256, %v8256
    %v8291 = vlaneseq
    %v8292 = vshrl.u32 %v8291, 7
    %v8293 = vsub.s32 2, %v8292
    %v8294 = vrot.slane %v8289, %v8293
    %v8296 = vpack.i.b16 %v8257, %v8257
    %v8298 = vlaneseq
    %v8299 = vshrl.u32 %v8298, 7
    %v8300 = vsub.s32 2, %v8299
    %v8301 = vrot.slane %v8296, %v8300
    %v8303 = vpack.i.b16 %v8258, %v8258
    %v8305 = vlaneseq
    %v8306 = vshrl.u32 %v8305, 7
    %v8307 = vsub.s32 2, %v8306
    %v8308 = vrot.slane %v8303, %v8307
    %v8310 = vpack.i.b16 %v8259, %v8259
    %v8312 = vlaneseq
    %v8313 = vshrl.u32 %v8312, 7
    %v8314 = vsub.s32 2, %v8313
    %v8315 = vrot.slane %v8310, %v8314
    %8324 = vrot.lane.b32.xlu0 %v8266, 127
    %v8325 = vpop.permute.xlu0 %8324
    %8326 = vrot.lane.b32.xlu0 %v8273, 127
    %v8327 = vpop.permute.xlu0 %8326
    %8328 = vrot.lane.b32.xlu0 %v8280, 127
    %v8329 = vpop.permute.xlu0 %8328
    %8330 = vrot.lane.b32.xlu0 %v8287, 127
    %v8331 = vpop.permute.xlu0 %8330
    %8332 = vrot.lane.b32.xlu0 %v8294, 127
    %v8333 = vpop.permute.xlu0 %8332
    %8334 = vrot.lane.b32.xlu0 %v8301, 127
    %v8335 = vpop.permute.xlu0 %8334
    %8336 = vrot.lane.b32.xlu0 %v8308, 127
    %v8337 = vpop.permute.xlu0 %8336
    %8338 = vrot.lane.b32.xlu0 %v8315, 127
    %v8339 = vpop.permute.xlu0 %8338
    %v8340 = vsel %vm2585, %v8325, %v8327
    %v8341 = vsel %vm2585, %v8327, %v8329
    %v8342 = vsel %vm2585, %v8329, %v8331
    %v8343 = vsel %vm2585, %v8331, %v8333
    %v8344 = vsel %vm2585, %v8333, %v8335
    %v8345 = vsel %vm2585, %v8335, %v8337
    %v8346 = vsel %vm2585, %v8337, %v8339
    %v8356 = vmul.bf16 %v8227, %v8325
    %v8357 = vmul.bf16 %v8228, %v8340
    %v8358 = vmul.bf16 %v8229, %v8341
    %v8359 = vmul.bf16 %v8230, %v8342
    %v8360 = vmul.bf16 %v8231, %v8343
    %v8361 = vmul.bf16 %v8232, %v8344
    %v8362 = vmul.bf16 %v8233, %v8345
    %v8363 = vmul.bf16 %v8234, %v8346
    %v8364 = vmul.bf16 %v8235, %v8339
    %8374 = vrot.lane.b32.xlu0 %v8356, 1
    %v8375 = vpop.permute.xlu0 %8374
    %8376 = vrot.lane.b32.xlu0 %v8357, 1
    %v8377 = vpop.permute.xlu0 %8376
    %8378 = vrot.lane.b32.xlu0 %v8358, 1
    %v8379 = vpop.permute.xlu0 %8378
    %8380 = vrot.lane.b32.xlu0 %v8359, 1
    %v8381 = vpop.permute.xlu0 %8380
    %8382 = vrot.lane.b32.xlu0 %v8360, 1
    %v8383 = vpop.permute.xlu0 %8382
    %8384 = vrot.lane.b32.xlu0 %v8361, 1
    %v8385 = vpop.permute.xlu0 %8384
    %8386 = vrot.lane.b32.xlu0 %v8362, 1
    %v8387 = vpop.permute.xlu0 %8386
    %8388 = vrot.lane.b32.xlu0 %v8363, 1
    %v8389 = vpop.permute.xlu0 %8388
    %8390 = vrot.lane.b32.xlu0 %v8364, 1
    %v8391 = vpop.permute.xlu0 %8390
    %v8392 = vsel %vm2638, %v8375, %v8377
    %v8393 = vsel %vm2638, %v8377, %v8379
    %v8394 = vsel %vm2638, %v8379, %v8381
    %v8395 = vsel %vm2638, %v8381, %v8383
    %v8396 = vsel %vm2638, %v8383, %v8385
    %v8397 = vsel %vm2638, %v8385, %v8387
    %v8398 = vsel %vm2638, %v8387, %v8389
    %v8399 = vsel %vm2638, %v8389, %v8391
    %8408 = vst [vmem:[#allocation4 + $0x300] sm:$0xff] %v8392
    %8409 = vst [vmem:[#allocation4 + $0x308] sm:$0xff] %v8393
    %8410 = vst [vmem:[#allocation4 + $0x310] sm:$0xff] %v8394
    %8411 = vst [vmem:[#allocation4 + $0x318] sm:$0xff] %v8395
    %8412 = vst [vmem:[#allocation4 + $0x320] sm:$0xff] %v8396
    %8413 = vst [vmem:[#allocation4 + $0x328] sm:$0xff] %v8397
    %8414 = vst [vmem:[#allocation4 + $0x330] sm:$0xff] %v8398
    %8415 = vst [vmem:[#allocation4 + $0x338] sm:$0xff] %v8399
    %v8416 = vld [vmem:[#allocation3 + $0x8] sm:$0xff]
    %v8417 = vld [vmem:[#allocation3 + $0x10] sm:$0xff]
    %v8418 = vld [vmem:[#allocation3 + $0x18] sm:$0xff]
    %v8419 = vld [vmem:[#allocation3 + $0x20] sm:$0xff]
    %v8420 = vld [vmem:[#allocation3 + $0x28] sm:$0xff]
    %v8421 = vld [vmem:[#allocation3 + $0x30] sm:$0xff]
    %v8422 = vld [vmem:[#allocation3 + $0x38] sm:$0xff]
    %v8423 = vld [vmem:[#allocation3 + $0x40] sm:$0xff]
    %v8424 = vld [vmem:[#allocation8 + $0x20] sm:$0x44]
    %v8425 = vld [vmem:[#allocation8 + $0x28] sm:$0x44]
    %v8426 = vld [vmem:[#allocation8 + $0x30] sm:$0x44]
    %v8427 = vld [vmem:[#allocation8 + $0x38] sm:$0x44]
    %v8432 = vunpack.c.l.b16 %v8424
    %v8433 = vunpack.c.h.b16 %v8424
    %v8434 = vunpack.c.l.b16 %v8425
    %v8435 = vunpack.c.h.b16 %v8425
    %v8436 = vunpack.c.l.b16 %v8426
    %v8437 = vunpack.c.h.b16 %v8426
    %v8438 = vunpack.c.l.b16 %v8427
    %v8439 = vunpack.c.h.b16 %v8427
    %v8440 = vpack.c.b16 %v8432, %v8432
    %v8441 = vpack.c.b16 %v8433, %v8433
    %v8442 = vpack.c.b16 %v8434, %v8434
    %v8443 = vpack.c.b16 %v8435, %v8435
    %v8444 = vpack.c.b16 %v8436, %v8436
    %v8445 = vpack.c.b16 %v8437, %v8437
    %v8446 = vpack.c.b16 %v8438, %v8438
    %v8447 = vpack.c.b16 %v8439, %v8439
    %v8449 = vshrl.u32 %v8440, 16
    %v8450 = vpack.i.b16 %v8449, %v8449
    %v8452 = vlaneseq
    %v8453 = vshrl.u32 %v8452, 7
    %v8454 = vsub.s32 2, %v8453
    %v8455 = vrot.slane %v8450, %v8454
    %v8457 = vshrl.u32 %v8441, 16
    %v8458 = vpack.i.b16 %v8457, %v8457
    %v8460 = vlaneseq
    %v8461 = vshrl.u32 %v8460, 7
    %v8462 = vsub.s32 2, %v8461
    %v8463 = vrot.slane %v8458, %v8462
    %v8465 = vshrl.u32 %v8442, 16
    %v8466 = vpack.i.b16 %v8465, %v8465
    %v8468 = vlaneseq
    %v8469 = vshrl.u32 %v8468, 7
    %v8470 = vsub.s32 2, %v8469
    %v8471 = vrot.slane %v8466, %v8470
    %v8473 = vshrl.u32 %v8443, 16
    %v8474 = vpack.i.b16 %v8473, %v8473
    %v8476 = vlaneseq
    %v8477 = vshrl.u32 %v8476, 7
    %v8478 = vsub.s32 2, %v8477
    %v8479 = vrot.slane %v8474, %v8478
    %v8481 = vshrl.u32 %v8444, 16
    %v8482 = vpack.i.b16 %v8481, %v8481
    %v8484 = vlaneseq
    %v8485 = vshrl.u32 %v8484, 7
    %v8486 = vsub.s32 2, %v8485
    %v8487 = vrot.slane %v8482, %v8486
    %v8489 = vshrl.u32 %v8445, 16
    %v8490 = vpack.i.b16 %v8489, %v8489
    %v8492 = vlaneseq
    %v8493 = vshrl.u32 %v8492, 7
    %v8494 = vsub.s32 2, %v8493
    %v8495 = vrot.slane %v8490, %v8494
    %v8497 = vshrl.u32 %v8446, 16
    %v8498 = vpack.i.b16 %v8497, %v8497
    %v8500 = vlaneseq
    %v8501 = vshrl.u32 %v8500, 7
    %v8502 = vsub.s32 2, %v8501
    %v8503 = vrot.slane %v8498, %v8502
    %v8505 = vshrl.u32 %v8447, 16
    %v8506 = vpack.i.b16 %v8505, %v8505
    %v8508 = vlaneseq
    %v8509 = vshrl.u32 %v8508, 7
    %v8510 = vsub.s32 2, %v8509
    %v8511 = vrot.slane %v8506, %v8510
    %v8512 = vmul.bf16 %v8416, %v8455
    %v8513 = vmul.bf16 %v8417, %v8463
    %v8514 = vmul.bf16 %v8418, %v8471
    %v8515 = vmul.bf16 %v8419, %v8479
    %v8516 = vmul.bf16 %v8420, %v8487
    %v8517 = vmul.bf16 %v8421, %v8495
    %v8518 = vmul.bf16 %v8422, %v8503
    %v8519 = vmul.bf16 %v8423, %v8511
    %8520 = vst [vmem:[#allocation4 + $0x340] sm:$0xff] %v8512
    %8521 = vst [vmem:[#allocation4 + $0x348] sm:$0xff] %v8513
    %8522 = vst [vmem:[#allocation4 + $0x350] sm:$0xff] %v8514
    %8523 = vst [vmem:[#allocation4 + $0x358] sm:$0xff] %v8515
    %8524 = vst [vmem:[#allocation4 + $0x360] sm:$0xff] %v8516
    %8525 = vst [vmem:[#allocation4 + $0x368] sm:$0xff] %v8517
    %8526 = vst [vmem:[#allocation4 + $0x370] sm:$0xff] %v8518
    %8527 = vst [vmem:[#allocation4 + $0x378] sm:$0xff] %v8519
    %v8528 = vld [vmem:[#allocation3 + $0x8] sm:$0xff]
    %v8529 = vld [vmem:[#allocation3 + $0x10] sm:$0xff]
    %v8530 = vld [vmem:[#allocation3 + $0x18] sm:$0xff]
    %v8531 = vld [vmem:[#allocation3 + $0x20] sm:$0xff]
    %v8532 = vld [vmem:[#allocation3 + $0x28] sm:$0xff]
    %v8533 = vld [vmem:[#allocation3 + $0x30] sm:$0xff]
    %v8534 = vld [vmem:[#allocation3 + $0x38] sm:$0xff]
    %v8535 = vld [vmem:[#allocation3 + $0x40] sm:$0xff]
    %v8536 = vld [vmem:[#allocation3 + $0x48] sm:$0xff]
    %v8537 = vld [vmem:[#allocation8 + $0x20] sm:$0x88]
    %v8538 = vld [vmem:[#allocation8 + $0x28] sm:$0x88]
    %v8539 = vld [vmem:[#allocation8 + $0x30] sm:$0x88]
    %v8540 = vld [vmem:[#allocation8 + $0x38] sm:$0x88]
    %v8545 = vunpack.c.l.b16 %v8537
    %v8546 = vunpack.c.h.b16 %v8537
    %v8547 = vunpack.c.l.b16 %v8538
    %v8548 = vunpack.c.h.b16 %v8538
    %v8549 = vunpack.c.l.b16 %v8539
    %v8550 = vunpack.c.h.b16 %v8539
    %v8551 = vunpack.c.l.b16 %v8540
    %v8552 = vunpack.c.h.b16 %v8540
    %v8553 = vpack.c.b16 %v8545, %v8545
    %v8554 = vpack.c.b16 %v8546, %v8546
    %v8555 = vpack.c.b16 %v8547, %v8547
    %v8556 = vpack.c.b16 %v8548, %v8548
    %v8557 = vpack.c.b16 %v8549, %v8549
    %v8558 = vpack.c.b16 %v8550, %v8550
    %v8559 = vpack.c.b16 %v8551, %v8551
    %v8560 = vpack.c.b16 %v8552, %v8552
    %v8562 = vpack.i.b16 %v8553, %v8553
    %v8564 = vlaneseq
    %v8565 = vshrl.u32 %v8564, 7
    %v8566 = vsub.s32 3, %v8565
    %v8567 = vrot.slane %v8562, %v8566
    %v8569 = vpack.i.b16 %v8554, %v8554
    %v8571 = vlaneseq
    %v8572 = vshrl.u32 %v8571, 7
    %v8573 = vsub.s32 3, %v8572
    %v8574 = vrot.slane %v8569, %v8573
    %v8576 = vpack.i.b16 %v8555, %v8555
    %v8578 = vlaneseq
    %v8579 = vshrl.u32 %v8578, 7
    %v8580 = vsub.s32 3, %v8579
    %v8581 = vrot.slane %v8576, %v8580
    %v8583 = vpack.i.b16 %v8556, %v8556
    %v8585 = vlaneseq
    %v8586 = vshrl.u32 %v8585, 7
    %v8587 = vsub.s32 3, %v8586
    %v8588 = vrot.slane %v8583, %v8587
    %v8590 = vpack.i.b16 %v8557, %v8557
    %v8592 = vlaneseq
    %v8593 = vshrl.u32 %v8592, 7
    %v8594 = vsub.s32 3, %v8593
    %v8595 = vrot.slane %v8590, %v8594
    %v8597 = vpack.i.b16 %v8558, %v8558
    %v8599 = vlaneseq
    %v8600 = vshrl.u32 %v8599, 7
    %v8601 = vsub.s32 3, %v8600
    %v8602 = vrot.slane %v8597, %v8601
    %v8604 = vpack.i.b16 %v8559, %v8559
    %v8606 = vlaneseq
    %v8607 = vshrl.u32 %v8606, 7
    %v8608 = vsub.s32 3, %v8607
    %v8609 = vrot.slane %v8604, %v8608
    %v8611 = vpack.i.b16 %v8560, %v8560
    %v8613 = vlaneseq
    %v8614 = vshrl.u32 %v8613, 7
    %v8615 = vsub.s32 3, %v8614
    %v8616 = vrot.slane %v8611, %v8615
    %8625 = vrot.lane.b32.xlu0 %v8567, 1
    %v8626 = vpop.permute.xlu0 %8625
    %8627 = vrot.lane.b32.xlu0 %v8574, 1
    %v8628 = vpop.permute.xlu0 %8627
    %8629 = vrot.lane.b32.xlu0 %v8581, 1
    %v8630 = vpop.permute.xlu0 %8629
    %8631 = vrot.lane.b32.xlu0 %v8588, 1
    %v8632 = vpop.permute.xlu0 %8631
    %8633 = vrot.lane.b32.xlu0 %v8595, 1
    %v8634 = vpop.permute.xlu0 %8633
    %8635 = vrot.lane.b32.xlu0 %v8602, 1
    %v8636 = vpop.permute.xlu0 %8635
    %8637 = vrot.lane.b32.xlu0 %v8609, 1
    %v8638 = vpop.permute.xlu0 %8637
    %8639 = vrot.lane.b32.xlu0 %v8616, 1
    %v8640 = vpop.permute.xlu0 %8639
    %v8641 = vsel %vm2638, %v8626, %v8628
    %v8642 = vsel %vm2638, %v8628, %v8630
    %v8643 = vsel %vm2638, %v8630, %v8632
    %v8644 = vsel %vm2638, %v8632, %v8634
    %v8645 = vsel %vm2638, %v8634, %v8636
    %v8646 = vsel %vm2638, %v8636, %v8638
    %v8647 = vsel %vm2638, %v8638, %v8640
    %v8657 = vmul.bf16 %v8528, %v8626
    %v8658 = vmul.bf16 %v8529, %v8641
    %v8659 = vmul.bf16 %v8530, %v8642
    %v8660 = vmul.bf16 %v8531, %v8643
    %v8661 = vmul.bf16 %v8532, %v8644
    %v8662 = vmul.bf16 %v8533, %v8645
    %v8663 = vmul.bf16 %v8534, %v8646
    %v8664 = vmul.bf16 %v8535, %v8647
    %v8665 = vmul.bf16 %v8536, %v8640
    %8675 = vrot.lane.b32.xlu0 %v8657, 127
    %v8676 = vpop.permute.xlu0 %8675
    %8677 = vrot.lane.b32.xlu0 %v8658, 127
    %v8678 = vpop.permute.xlu0 %8677
    %8679 = vrot.lane.b32.xlu0 %v8659, 127
    %v8680 = vpop.permute.xlu0 %8679
    %8681 = vrot.lane.b32.xlu0 %v8660, 127
    %v8682 = vpop.permute.xlu0 %8681
    %8683 = vrot.lane.b32.xlu0 %v8661, 127
    %v8684 = vpop.permute.xlu0 %8683
    %8685 = vrot.lane.b32.xlu0 %v8662, 127
    %v8686 = vpop.permute.xlu0 %8685
    %8687 = vrot.lane.b32.xlu0 %v8663, 127
    %v8688 = vpop.permute.xlu0 %8687
    %8689 = vrot.lane.b32.xlu0 %v8664, 127
    %v8690 = vpop.permute.xlu0 %8689
    %8691 = vrot.lane.b32.xlu0 %v8665, 127
    %v8692 = vpop.permute.xlu0 %8691
    %v8693 = vsel %vm2585, %v8676, %v8678
    %v8694 = vsel %vm2585, %v8678, %v8680
    %v8695 = vsel %vm2585, %v8680, %v8682
    %v8696 = vsel %vm2585, %v8682, %v8684
    %v8697 = vsel %vm2585, %v8684, %v8686
    %v8698 = vsel %vm2585, %v8686, %v8688
    %v8699 = vsel %vm2585, %v8688, %v8690
    %v8700 = vsel %vm2585, %v8690, %v8692
    %8709 = vst [vmem:[#allocation4 + $0x380] sm:$0xff] %v8693
    %8710 = vst [vmem:[#allocation4 + $0x388] sm:$0xff] %v8694
    %8711 = vst [vmem:[#allocation4 + $0x390] sm:$0xff] %v8695
    %8712 = vst [vmem:[#allocation4 + $0x398] sm:$0xff] %v8696
    %8713 = vst [vmem:[#allocation4 + $0x3a0] sm:$0xff] %v8697
    %8714 = vst [vmem:[#allocation4 + $0x3a8] sm:$0xff] %v8698
    %8715 = vst [vmem:[#allocation4 + $0x3b0] sm:$0xff] %v8699
    %8716 = vst [vmem:[#allocation4 + $0x3b8] sm:$0xff] %v8700
    %v8717 = vld [vmem:[#allocation3 + $0x8] sm:$0xff]
    %v8718 = vld [vmem:[#allocation3 + $0x10] sm:$0xff]
    %v8719 = vld [vmem:[#allocation3 + $0x18] sm:$0xff]
    %v8720 = vld [vmem:[#allocation3 + $0x20] sm:$0xff]
    %v8721 = vld [vmem:[#allocation3 + $0x28] sm:$0xff]
    %v8722 = vld [vmem:[#allocation3 + $0x30] sm:$0xff]
    %v8723 = vld [vmem:[#allocation3 + $0x38] sm:$0xff]
    %v8724 = vld [vmem:[#allocation3 + $0x40] sm:$0xff]
    %v8725 = vld [vmem:[#allocation3 + $0x48] sm:$0xff]
    %v8726 = vld [vmem:[#allocation8 + $0x20] sm:$0x88]
    %v8727 = vld [vmem:[#allocation8 + $0x28] sm:$0x88]
    %v8728 = vld [vmem:[#allocation8 + $0x30] sm:$0x88]
    %v8729 = vld [vmem:[#allocation8 + $0x38] sm:$0x88]
    %v8734 = vunpack.c.l.b16 %v8726
    %v8735 = vunpack.c.h.b16 %v8726
    %v8736 = vunpack.c.l.b16 %v8727
    %v8737 = vunpack.c.h.b16 %v8727
    %v8738 = vunpack.c.l.b16 %v8728
    %v8739 = vunpack.c.h.b16 %v8728
    %v8740 = vunpack.c.l.b16 %v8729
    %v8741 = vunpack.c.h.b16 %v8729
    %v8742 = vpack.c.b16 %v8734, %v8734
    %v8743 = vpack.c.b16 %v8735, %v8735
    %v8744 = vpack.c.b16 %v8736, %v8736
    %v8745 = vpack.c.b16 %v8737, %v8737
    %v8746 = vpack.c.b16 %v8738, %v8738
    %v8747 = vpack.c.b16 %v8739, %v8739
    %v8748 = vpack.c.b16 %v8740, %v8740
    %v8749 = vpack.c.b16 %v8741, %v8741
    %v8751 = vshrl.u32 %v8742, 16
    %v8752 = vpack.i.b16 %v8751, %v8751
    %v8754 = vlaneseq
    %v8755 = vshrl.u32 %v8754, 7
    %v8756 = vsub.s32 3, %v8755
    %v8757 = vrot.slane %v8752, %v8756
    %v8759 = vshrl.u32 %v8743, 16
    %v8760 = vpack.i.b16 %v8759, %v8759
    %v8762 = vlaneseq
    %v8763 = vshrl.u32 %v8762, 7
    %v8764 = vsub.s32 3, %v8763
    %v8765 = vrot.slane %v8760, %v8764
    %v8767 = vshrl.u32 %v8744, 16
    %v8768 = vpack.i.b16 %v8767, %v8767
    %v8770 = vlaneseq
    %v8771 = vshrl.u32 %v8770, 7
    %v8772 = vsub.s32 3, %v8771
    %v8773 = vrot.slane %v8768, %v8772
    %v8775 = vshrl.u32 %v8745, 16
    %v8776 = vpack.i.b16 %v8775, %v8775
    %v8778 = vlaneseq
    %v8779 = vshrl.u32 %v8778, 7
    %v8780 = vsub.s32 3, %v8779
    %v8781 = vrot.slane %v8776, %v8780
    %v8783 = vshrl.u32 %v8746, 16
    %v8784 = vpack.i.b16 %v8783, %v8783
    %v8786 = vlaneseq
    %v8787 = vshrl.u32 %v8786, 7
    %v8788 = vsub.s32 3, %v8787
    %v8789 = vrot.slane %v8784, %v8788
    %v8791 = vshrl.u32 %v8747, 16
    %v8792 = vpack.i.b16 %v8791, %v8791
    %v8794 = vlaneseq
    %v8795 = vshrl.u32 %v8794, 7
    %v8796 = vsub.s32 3, %v8795
    %v8797 = vrot.slane %v8792, %v8796
    %v8799 = vshrl.u32 %v8748, 16
    %v8800 = vpack.i.b16 %v8799, %v8799
    %v8802 = vlaneseq
    %v8803 = vshrl.u32 %v8802, 7
    %v8804 = vsub.s32 3, %v8803
    %v8805 = vrot.slane %v8800, %v8804
    %v8807 = vshrl.u32 %v8749, 16
    %v8808 = vpack.i.b16 %v8807, %v8807
    %v8810 = vlaneseq
    %v8811 = vshrl.u32 %v8810, 7
    %v8812 = vsub.s32 3, %v8811
    %v8813 = vrot.slane %v8808, %v8812
    %8822 = vrot.lane.b32.xlu0 %v8757, 7
    %v8823 = vpop.permute.xlu0 %8822
    %8824 = vrot.lane.b32.xlu0 %v8765, 7
    %v8825 = vpop.permute.xlu0 %8824
    %8826 = vrot.lane.b32.xlu0 %v8773, 7
    %v8827 = vpop.permute.xlu0 %8826
    %8828 = vrot.lane.b32.xlu0 %v8781, 7
    %v8829 = vpop.permute.xlu0 %8828
    %8830 = vrot.lane.b32.xlu0 %v8789, 7
    %v8831 = vpop.permute.xlu0 %8830
    %8832 = vrot.lane.b32.xlu0 %v8797, 7
    %v8833 = vpop.permute.xlu0 %8832
    %8834 = vrot.lane.b32.xlu0 %v8805, 7
    %v8835 = vpop.permute.xlu0 %8834
    %8836 = vrot.lane.b32.xlu0 %v8813, 7
    %v8837 = vpop.permute.xlu0 %8836
    %v8838 = vsel %vm2447, %v8823, %v8825
    %v8839 = vsel %vm2447, %v8825, %v8827
    %v8840 = vsel %vm2447, %v8827, %v8829
    %v8841 = vsel %vm2447, %v8829, %v8831
    %v8842 = vsel %vm2447, %v8831, %v8833
    %v8843 = vsel %vm2447, %v8833, %v8835
    %v8844 = vsel %vm2447, %v8835, %v8837
    %v8854 = vmul.bf16 %v8717, %v8823
    %v8855 = vmul.bf16 %v8718, %v8838
    %v8856 = vmul.bf16 %v8719, %v8839
    %v8857 = vmul.bf16 %v8720, %v8840
    %v8858 = vmul.bf16 %v8721, %v8841
    %v8859 = vmul.bf16 %v8722, %v8842
    %v8860 = vmul.bf16 %v8723, %v8843
    %v8861 = vmul.bf16 %v8724, %v8844
    %v8862 = vmul.bf16 %v8725, %v8837
    %8872 = vrot.lane.b32.xlu0 %v8854, 121
    %v8873 = vpop.permute.xlu0 %8872
    %8874 = vrot.lane.b32.xlu0 %v8855, 121
    %v8875 = vpop.permute.xlu0 %8874
    %8876 = vrot.lane.b32.xlu0 %v8856, 121
    %v8877 = vpop.permute.xlu0 %8876
    %8878 = vrot.lane.b32.xlu0 %v8857, 121
    %v8879 = vpop.permute.xlu0 %8878
    %8880 = vrot.lane.b32.xlu0 %v8858, 121
    %v8881 = vpop.permute.xlu0 %8880
    %8882 = vrot.lane.b32.xlu0 %v8859, 121
    %v8883 = vpop.permute.xlu0 %8882
    %8884 = vrot.lane.b32.xlu0 %v8860, 121
    %v8885 = vpop.permute.xlu0 %8884
    %8886 = vrot.lane.b32.xlu0 %v8861, 121
    %v8887 = vpop.permute.xlu0 %8886
    %8888 = vrot.lane.b32.xlu0 %v8862, 121
    %v8889 = vpop.permute.xlu0 %8888
    %v8890 = vsel %vm2394, %v8873, %v8875
    %v8891 = vsel %vm2394, %v8875, %v8877
    %v8892 = vsel %vm2394, %v8877, %v8879
    %v8893 = vsel %vm2394, %v8879, %v8881
    %v8894 = vsel %vm2394, %v8881, %v8883
    %v8895 = vsel %vm2394, %v8883, %v8885
    %v8896 = vsel %vm2394, %v8885, %v8887
    %v8897 = vsel %vm2394, %v8887, %v8889
    %8906 = vst [vmem:[#allocation4 + $0x3c0] sm:$0xff] %v8890
    %8907 = vst [vmem:[#allocation4 + $0x3c8] sm:$0xff] %v8891
    %8908 = vst [vmem:[#allocation4 + $0x3d0] sm:$0xff] %v8892
    %8909 = vst [vmem:[#allocation4 + $0x3d8] sm:$0xff] %v8893
    %8910 = vst [vmem:[#allocation4 + $0x3e0] sm:$0xff] %v8894
    %8911 = vst [vmem:[#allocation4 + $0x3e8] sm:$0xff] %v8895
    %8912 = vst [vmem:[#allocation4 + $0x3f0] sm:$0xff] %v8896
    %8913 = vst [vmem:[#allocation4 + $0x3f8] sm:$0xff] %v8897
    %v8914 = vld [vmem:[#allocation3 + $0x8] sm:$0xff]
    %v8915 = vld [vmem:[#allocation3 + $0x10] sm:$0xff]
    %v8916 = vld [vmem:[#allocation3 + $0x18] sm:$0xff]
    %v8917 = vld [vmem:[#allocation3 + $0x20] sm:$0xff]
    %v8918 = vld [vmem:[#allocation3 + $0x28] sm:$0xff]
    %v8919 = vld [vmem:[#allocation3 + $0x30] sm:$0xff]
    %v8920 = vld [vmem:[#allocation3 + $0x38] sm:$0xff]
    %v8921 = vld [vmem:[#allocation3 + $0x40] sm:$0xff]
    %v8922 = vld [vmem:[#allocation3 + $0x48] sm:$0xff]
    %v8923 = vld [vmem:[#allocation8 + $0x40] sm:$0x11]
    %v8924 = vld [vmem:[#allocation8 + $0x48] sm:$0x11]
    %v8925 = vld [vmem:[#allocation8 + $0x50] sm:$0x11]
    %v8926 = vld [vmem:[#allocation8 + $0x58] sm:$0x11]
    %v8931 = vunpack.c.l.b16 %v8923
    %v8932 = vunpack.c.h.b16 %v8923
    %v8933 = vunpack.c.l.b16 %v8924
    %v8934 = vunpack.c.h.b16 %v8924
    %v8935 = vunpack.c.l.b16 %v8925
    %v8936 = vunpack.c.h.b16 %v8925
    %v8937 = vunpack.c.l.b16 %v8926
    %v8938 = vunpack.c.h.b16 %v8926
    %v8939 = vpack.c.b16 %v8931, %v8931
    %v8940 = vpack.c.b16 %v8932, %v8932
    %v8941 = vpack.c.b16 %v8933, %v8933
    %v8942 = vpack.c.b16 %v8934, %v8934
    %v8943 = vpack.c.b16 %v8935, %v8935
    %v8944 = vpack.c.b16 %v8936, %v8936
    %v8945 = vpack.c.b16 %v8937, %v8937
    %v8946 = vpack.c.b16 %v8938, %v8938
    %v8948 = vpack.i.b16 %v8939, %v8939
    %v8950 = vlaneseq
    %v8951 = vshrl.u32 %v8950, 7
    %v8952 = vsub.s32 0, %v8951
    %v8953 = vrot.slane %v8948, %v8952
    %v8955 = vpack.i.b16 %v8940, %v8940
    %v8957 = vlaneseq
    %v8958 = vshrl.u32 %v8957, 7
    %v8959 = vsub.s32 0, %v8958
    %v8960 = vrot.slane %v8955, %v8959
    %v8962 = vpack.i.b16 %v8941, %v8941
    %v8964 = vlaneseq
    %v8965 = vshrl.u32 %v8964, 7
    %v8966 = vsub.s32 0, %v8965
    %v8967 = vrot.slane %v8962, %v8966
    %v8969 = vpack.i.b16 %v8942, %v8942
    %v8971 = vlaneseq
    %v8972 = vshrl.u32 %v8971, 7
    %v8973 = vsub.s32 0, %v8972
    %v8974 = vrot.slane %v8969, %v8973
    %v8976 = vpack.i.b16 %v8943, %v8943
    %v8978 = vlaneseq
    %v8979 = vshrl.u32 %v8978, 7
    %v8980 = vsub.s32 0, %v8979
    %v8981 = vrot.slane %v8976, %v8980
    %v8983 = vpack.i.b16 %v8944, %v8944
    %v8985 = vlaneseq
    %v8986 = vshrl.u32 %v8985, 7
    %v8987 = vsub.s32 0, %v8986
    %v8988 = vrot.slane %v8983, %v8987
    %v8990 = vpack.i.b16 %v8945, %v8945
    %v8992 = vlaneseq
    %v8993 = vshrl.u32 %v8992, 7
    %v8994 = vsub.s32 0, %v8993
    %v8995 = vrot.slane %v8990, %v8994
    %v8997 = vpack.i.b16 %v8946, %v8946
    %v8999 = vlaneseq
    %v9000 = vshrl.u32 %v8999, 7
    %v9001 = vsub.s32 0, %v9000
    %v9002 = vrot.slane %v8997, %v9001
    %9011 = vrot.lane.b32.xlu0 %v8953, 8
    %v9012 = vpop.permute.xlu0 %9011
    %9013 = vrot.lane.b32.xlu0 %v8960, 8
    %v9014 = vpop.permute.xlu0 %9013
    %9015 = vrot.lane.b32.xlu0 %v8967, 8
    %v9016 = vpop.permute.xlu0 %9015
    %9017 = vrot.lane.b32.xlu0 %v8974, 8
    %v9018 = vpop.permute.xlu0 %9017
    %9019 = vrot.lane.b32.xlu0 %v8981, 8
    %v9020 = vpop.permute.xlu0 %9019
    %9021 = vrot.lane.b32.xlu0 %v8988, 8
    %v9022 = vpop.permute.xlu0 %9021
    %9023 = vrot.lane.b32.xlu0 %v8995, 8
    %v9024 = vpop.permute.xlu0 %9023
    %9025 = vrot.lane.b32.xlu0 %v9002, 8
    %v9026 = vpop.permute.xlu0 %9025
    %v9027 = vsel %vm2248, %v9012, %v9014
    %v9028 = vsel %vm2248, %v9014, %v9016
    %v9029 = vsel %vm2248, %v9016, %v9018
    %v9030 = vsel %vm2248, %v9018, %v9020
    %v9031 = vsel %vm2248, %v9020, %v9022
    %v9032 = vsel %vm2248, %v9022, %v9024
    %v9033 = vsel %vm2248, %v9024, %v9026
    %v9043 = vmul.bf16 %v8914, %v9012
    %v9044 = vmul.bf16 %v8915, %v9027
    %v9045 = vmul.bf16 %v8916, %v9028
    %v9046 = vmul.bf16 %v8917, %v9029
    %v9047 = vmul.bf16 %v8918, %v9030
    %v9048 = vmul.bf16 %v8919, %v9031
    %v9049 = vmul.bf16 %v8920, %v9032
    %v9050 = vmul.bf16 %v8921, %v9033
    %v9051 = vmul.bf16 %v8922, %v9026
    %9061 = vrot.lane.b32.xlu0 %v9043, 120
    %v9062 = vpop.permute.xlu0 %9061
    %9063 = vrot.lane.b32.xlu0 %v9044, 120
    %v9064 = vpop.permute.xlu0 %9063
    %9065 = vrot.lane.b32.xlu0 %v9045, 120
    %v9066 = vpop.permute.xlu0 %9065
    %9067 = vrot.lane.b32.xlu0 %v9046, 120
    %v9068 = vpop.permute.xlu0 %9067
    %9069 = vrot.lane.b32.xlu0 %v9047, 120
    %v9070 = vpop.permute.xlu0 %9069
    %9071 = vrot.lane.b32.xlu0 %v9048, 120
    %v9072 = vpop.permute.xlu0 %9071
    %9073 = vrot.lane.b32.xlu0 %v9049, 120
    %v9074 = vpop.permute.xlu0 %9073
    %9075 = vrot.lane.b32.xlu0 %v9050, 120
    %v9076 = vpop.permute.xlu0 %9075
    %9077 = vrot.lane.b32.xlu0 %v9051, 120
    %v9078 = vpop.permute.xlu0 %9077
    %v9079 = vsel %vm2195, %v9062, %v9064
    %v9080 = vsel %vm2195, %v9064, %v9066
    %v9081 = vsel %vm2195, %v9066, %v9068
    %v9082 = vsel %vm2195, %v9068, %v9070
    %v9083 = vsel %vm2195, %v9070, %v9072
    %v9084 = vsel %vm2195, %v9072, %v9074
    %v9085 = vsel %vm2195, %v9074, %v9076
    %v9086 = vsel %vm2195, %v9076, %v9078
    %9095 = vst [vmem:[#allocation4 + $0x400] sm:$0xff] %v9079
    %9096 = vst [vmem:[#allocation4 + $0x408] sm:$0xff] %v9080
    %9097 = vst [vmem:[#allocation4 + $0x410] sm:$0xff] %v9081
    %9098 = vst [vmem:[#allocation4 + $0x418] sm:$0xff] %v9082
    %9099 = vst [vmem:[#allocation4 + $0x420] sm:$0xff] %v9083
    %9100 = vst [vmem:[#allocation4 + $0x428] sm:$0xff] %v9084
    %9101 = vst [vmem:[#allocation4 + $0x430] sm:$0xff] %v9085
    %9102 = vst [vmem:[#allocation4 + $0x438] sm:$0xff] %v9086
    %v9103 = vld [vmem:[#allocation3 + $0x8] sm:$0xff]
    %v9104 = vld [vmem:[#allocation3 + $0x10] sm:$0xff]
    %v9105 = vld [vmem:[#allocation3 + $0x18] sm:$0xff]
    %v9106 = vld [vmem:[#allocation3 + $0x20] sm:$0xff]
    %v9107 = vld [vmem:[#allocation3 + $0x28] sm:$0xff]
    %v9108 = vld [vmem:[#allocation3 + $0x30] sm:$0xff]
    %v9109 = vld [vmem:[#allocation3 + $0x38] sm:$0xff]
    %v9110 = vld [vmem:[#allocation3 + $0x40] sm:$0xff]
    %v9111 = vld [vmem:[#allocation3 + $0x48] sm:$0xff]
    %v9112 = vld [vmem:[#allocation8 + $0x40] sm:$0x11]
    %v9113 = vld [vmem:[#allocation8 + $0x48] sm:$0x11]
    %v9114 = vld [vmem:[#allocation8 + $0x50] sm:$0x11]
    %v9115 = vld [vmem:[#allocation8 + $0x58] sm:$0x11]
    %v9120 = vunpack.c.l.b16 %v9112
    %v9121 = vunpack.c.h.b16 %v9112
    %v9122 = vunpack.c.l.b16 %v9113
    %v9123 = vunpack.c.h.b16 %v9113
    %v9124 = vunpack.c.l.b16 %v9114
    %v9125 = vunpack.c.h.b16 %v9114
    %v9126 = vunpack.c.l.b16 %v9115
    %v9127 = vunpack.c.h.b16 %v9115
    %v9128 = vpack.c.b16 %v9120, %v9120
    %v9129 = vpack.c.b16 %v9121, %v9121
    %v9130 = vpack.c.b16 %v9122, %v9122
    %v9131 = vpack.c.b16 %v9123, %v9123
    %v9132 = vpack.c.b16 %v9124, %v9124
    %v9133 = vpack.c.b16 %v9125, %v9125
    %v9134 = vpack.c.b16 %v9126, %v9126
    %v9135 = vpack.c.b16 %v9127, %v9127
    %v9137 = vshrl.u32 %v9128, 16
    %v9138 = vpack.i.b16 %v9137, %v9137
    %v9140 = vlaneseq
    %v9141 = vshrl.u32 %v9140, 7
    %v9142 = vsub.s32 0, %v9141
    %v9143 = vrot.slane %v9138, %v9142
    %v9145 = vshrl.u32 %v9129, 16
    %v9146 = vpack.i.b16 %v9145, %v9145
    %v9148 = vlaneseq
    %v9149 = vshrl.u32 %v9148, 7
    %v9150 = vsub.s32 0, %v9149
    %v9151 = vrot.slane %v9146, %v9150
    %v9153 = vshrl.u32 %v9130, 16
    %v9154 = vpack.i.b16 %v9153, %v9153
    %v9156 = vlaneseq
    %v9157 = vshrl.u32 %v9156, 7
    %v9158 = vsub.s32 0, %v9157
    %v9159 = vrot.slane %v9154, %v9158
    %v9161 = vshrl.u32 %v9131, 16
    %v9162 = vpack.i.b16 %v9161, %v9161
    %v9164 = vlaneseq
    %v9165 = vshrl.u32 %v9164, 7
    %v9166 = vsub.s32 0, %v9165
    %v9167 = vrot.slane %v9162, %v9166
    %v9169 = vshrl.u32 %v9132, 16
    %v9170 = vpack.i.b16 %v9169, %v9169
    %v9172 = vlaneseq
    %v9173 = vshrl.u32 %v9172, 7
    %v9174 = vsub.s32 0, %v9173
    %v9175 = vrot.slane %v9170, %v9174
    %v9177 = vshrl.u32 %v9133, 16
    %v9178 = vpack.i.b16 %v9177, %v9177
    %v9180 = vlaneseq
    %v9181 = vshrl.u32 %v9180, 7
    %v9182 = vsub.s32 0, %v9181
    %v9183 = vrot.slane %v9178, %v9182
    %v9185 = vshrl.u32 %v9134, 16
    %v9186 = vpack.i.b16 %v9185, %v9185
    %v9188 = vlaneseq
    %v9189 = vshrl.u32 %v9188, 7
    %v9190 = vsub.s32 0, %v9189
    %v9191 = vrot.slane %v9186, %v9190
    %v9193 = vshrl.u32 %v9135, 16
    %v9194 = vpack.i.b16 %v9193, %v9193
    %v9196 = vlaneseq
    %v9197 = vshrl.u32 %v9196, 7
    %v9198 = vsub.s32 0, %v9197
    %v9199 = vrot.slane %v9194, %v9198
    %9208 = vrot.lane.b32.xlu0 %v9143, 9
    %v9209 = vpop.permute.xlu0 %9208
    %9210 = vrot.lane.b32.xlu0 %v9151, 9
    %v9211 = vpop.permute.xlu0 %9210
    %9212 = vrot.lane.b32.xlu0 %v9159, 9
    %v9213 = vpop.permute.xlu0 %9212
    %9214 = vrot.lane.b32.xlu0 %v9167, 9
    %v9215 = vpop.permute.xlu0 %9214
    %9216 = vrot.lane.b32.xlu0 %v9175, 9
    %v9217 = vpop.permute.xlu0 %9216
    %9218 = vrot.lane.b32.xlu0 %v9183, 9
    %v9219 = vpop.permute.xlu0 %9218
    %9220 = vrot.lane.b32.xlu0 %v9191, 9
    %v9221 = vpop.permute.xlu0 %9220
    %9222 = vrot.lane.b32.xlu0 %v9199, 9
    %v9223 = vpop.permute.xlu0 %9222
    %v9224 = vsel %vm2057, %v9209, %v9211
    %v9225 = vsel %vm2057, %v9211, %v9213
    %v9226 = vsel %vm2057, %v9213, %v9215
    %v9227 = vsel %vm2057, %v9215, %v9217
    %v9228 = vsel %vm2057, %v9217, %v9219
    %v9229 = vsel %vm2057, %v9219, %v9221
    %v9230 = vsel %vm2057, %v9221, %v9223
    %v9240 = vmul.bf16 %v9103, %v9209
    %v9241 = vmul.bf16 %v9104, %v9224
    %v9242 = vmul.bf16 %v9105, %v9225
    %v9243 = vmul.bf16 %v9106, %v9226
    %v9244 = vmul.bf16 %v9107, %v9227
    %v9245 = vmul.bf16 %v9108, %v9228
    %v9246 = vmul.bf16 %v9109, %v9229
    %v9247 = vmul.bf16 %v9110, %v9230
    %v9248 = vmul.bf16 %v9111, %v9223
    %9258 = vrot.lane.b32.xlu0 %v9240, 119
    %v9259 = vpop.permute.xlu0 %9258
    %9260 = vrot.lane.b32.xlu0 %v9241, 119
    %v9261 = vpop.permute.xlu0 %9260
    %9262 = vrot.lane.b32.xlu0 %v9242, 119
    %v9263 = vpop.permute.xlu0 %9262
    %9264 = vrot.lane.b32.xlu0 %v9243, 119
    %v9265 = vpop.permute.xlu0 %9264
    %9266 = vrot.lane.b32.xlu0 %v9244, 119
    %v9267 = vpop.permute.xlu0 %9266
    %9268 = vrot.lane.b32.xlu0 %v9245, 119
    %v9269 = vpop.permute.xlu0 %9268
    %9270 = vrot.lane.b32.xlu0 %v9246, 119
    %v9271 = vpop.permute.xlu0 %9270
    %9272 = vrot.lane.b32.xlu0 %v9247, 119
    %v9273 = vpop.permute.xlu0 %9272
    %9274 = vrot.lane.b32.xlu0 %v9248, 119
    %v9275 = vpop.permute.xlu0 %9274
    %v9276 = vsel %vm2004, %v9259, %v9261
    %v9277 = vsel %vm2004, %v9261, %v9263
    %v9278 = vsel %vm2004, %v9263, %v9265
    %v9279 = vsel %vm2004, %v9265, %v9267
    %v9280 = vsel %vm2004, %v9267, %v9269
    %v9281 = vsel %vm2004, %v9269, %v9271
    %v9282 = vsel %vm2004, %v9271, %v9273
    %v9283 = vsel %vm2004, %v9273, %v9275
    %9292 = vst [vmem:[#allocation4 + $0x440] sm:$0xff] %v9276
    %9293 = vst [vmem:[#allocation4 + $0x448] sm:$0xff] %v9277
    %9294 = vst [vmem:[#allocation4 + $0x450] sm:$0xff] %v9278
    %9295 = vst [vmem:[#allocation4 + $0x458] sm:$0xff] %v9279
    %9296 = vst [vmem:[#allocation4 + $0x460] sm:$0xff] %v9280
    %9297 = vst [vmem:[#allocation4 + $0x468] sm:$0xff] %v9281
    %9298 = vst [vmem:[#allocation4 + $0x470] sm:$0xff] %v9282
    %9299 = vst [vmem:[#allocation4 + $0x478] sm:$0xff] %v9283
    %v9300 = vld [vmem:[#allocation3 + $0x8] sm:$0xff]
    %v9301 = vld [vmem:[#allocation3 + $0x10] sm:$0xff]
    %v9302 = vld [vmem:[#allocation3 + $0x18] sm:$0xff]
    %v9303 = vld [vmem:[#allocation3 + $0x20] sm:$0xff]
    %v9304 = vld [vmem:[#allocation3 + $0x28] sm:$0xff]
    %v9305 = vld [vmem:[#allocation3 + $0x30] sm:$0xff]
    %v9306 = vld [vmem:[#allocation3 + $0x38] sm:$0xff]
    %v9307 = vld [vmem:[#allocation3 + $0x40] sm:$0xff]
    %v9308 = vld [vmem:[#allocation3 + $0x48] sm:$0xff]
    %v9309 = vld [vmem:[#allocation8 + $0x40] sm:$0x22]
    %v9310 = vld [vmem:[#allocation8 + $0x48] sm:$0x22]
    %v9311 = vld [vmem:[#allocation8 + $0x50] sm:$0x22]
    %v9312 = vld [vmem:[#allocation8 + $0x58] sm:$0x22]
    %v9317 = vunpack.c.l.b16 %v9309
    %v9318 = vunpack.c.h.b16 %v9309
    %v9319 = vunpack.c.l.b16 %v9310
    %v9320 = vunpack.c.h.b16 %v9310
    %v9321 = vunpack.c.l.b16 %v9311
    %v9322 = vunpack.c.h.b16 %v9311
    %v9323 = vunpack.c.l.b16 %v9312
    %v9324 = vunpack.c.h.b16 %v9312
    %v9325 = vpack.c.b16 %v9317, %v9317
    %v9326 = vpack.c.b16 %v9318, %v9318
    %v9327 = vpack.c.b16 %v9319, %v9319
    %v9328 = vpack.c.b16 %v9320, %v9320
    %v9329 = vpack.c.b16 %v9321, %v9321
    %v9330 = vpack.c.b16 %v9322, %v9322
    %v9331 = vpack.c.b16 %v9323, %v9323
    %v9332 = vpack.c.b16 %v9324, %v9324
    %v9334 = vpack.i.b16 %v9325, %v9325
    %v9336 = vlaneseq
    %v9337 = vshrl.u32 %v9336, 7
    %v9338 = vsub.s32 1, %v9337
    %v9339 = vrot.slane %v9334, %v9338
    %v9341 = vpack.i.b16 %v9326, %v9326
    %v9343 = vlaneseq
    %v9344 = vshrl.u32 %v9343, 7
    %v9345 = vsub.s32 1, %v9344
    %v9346 = vrot.slane %v9341, %v9345
    %v9348 = vpack.i.b16 %v9327, %v9327
    %v9350 = vlaneseq
    %v9351 = vshrl.u32 %v9350, 7
    %v9352 = vsub.s32 1, %v9351
    %v9353 = vrot.slane %v9348, %v9352
    %v9355 = vpack.i.b16 %v9328, %v9328
    %v9357 = vlaneseq
    %v9358 = vshrl.u32 %v9357, 7
    %v9359 = vsub.s32 1, %v9358
    %v9360 = vrot.slane %v9355, %v9359
    %v9362 = vpack.i.b16 %v9329, %v9329
    %v9364 = vlaneseq
    %v9365 = vshrl.u32 %v9364, 7
    %v9366 = vsub.s32 1, %v9365
    %v9367 = vrot.slane %v9362, %v9366
    %v9369 = vpack.i.b16 %v9330, %v9330
    %v9371 = vlaneseq
    %v9372 = vshrl.u32 %v9371, 7
    %v9373 = vsub.s32 1, %v9372
    %v9374 = vrot.slane %v9369, %v9373
    %v9376 = vpack.i.b16 %v9331, %v9331
    %v9378 = vlaneseq
    %v9379 = vshrl.u32 %v9378, 7
    %v9380 = vsub.s32 1, %v9379
    %v9381 = vrot.slane %v9376, %v9380
    %v9383 = vpack.i.b16 %v9332, %v9332
    %v9385 = vlaneseq
    %v9386 = vshrl.u32 %v9385, 7
    %v9387 = vsub.s32 1, %v9386
    %v9388 = vrot.slane %v9383, %v9387
    %9397 = vrot.lane.b32.xlu0 %v9339, 55
    %v9398 = vpop.permute.xlu0 %9397
    %9399 = vrot.lane.b32.xlu0 %v9346, 55
    %v9400 = vpop.permute.xlu0 %9399
    %9401 = vrot.lane.b32.xlu0 %v9353, 55
    %v9402 = vpop.permute.xlu0 %9401
    %9403 = vrot.lane.b32.xlu0 %v9360, 55
    %v9404 = vpop.permute.xlu0 %9403
    %9405 = vrot.lane.b32.xlu0 %v9367, 55
    %v9406 = vpop.permute.xlu0 %9405
    %9407 = vrot.lane.b32.xlu0 %v9374, 55
    %v9408 = vpop.permute.xlu0 %9407
    %9409 = vrot.lane.b32.xlu0 %v9381, 55
    %v9410 = vpop.permute.xlu0 %9409
    %9411 = vrot.lane.b32.xlu0 %v9388, 55
    %v9412 = vpop.permute.xlu0 %9411
    %v9413 = vsel %vm254, %v9398, %v9400
    %v9414 = vsel %vm254, %v9400, %v9402
    %v9415 = vsel %vm254, %v9402, %v9404
    %v9416 = vsel %vm254, %v9404, %v9406
    %v9417 = vsel %vm254, %v9406, %v9408
    %v9418 = vsel %vm254, %v9408, %v9410
    %v9419 = vsel %vm254, %v9410, %v9412
    %v9429 = vmul.bf16 %v9300, %v9398
    %v9430 = vmul.bf16 %v9301, %v9413
    %v9431 = vmul.bf16 %v9302, %v9414
    %v9432 = vmul.bf16 %v9303, %v9415
    %v9433 = vmul.bf16 %v9304, %v9416
    %v9434 = vmul.bf16 %v9305, %v9417
    %v9435 = vmul.bf16 %v9306, %v9418
    %v9436 = vmul.bf16 %v9307, %v9419
    %v9437 = vmul.bf16 %v9308, %v9412
    %9447 = vrot.lane.b32.xlu0 %v9429, 73
    %v9448 = vpop.permute.xlu0 %9447
    %9449 = vrot.lane.b32.xlu0 %v9430, 73
    %v9450 = vpop.permute.xlu0 %9449
    %9451 = vrot.lane.b32.xlu0 %v9431, 73
    %v9452 = vpop.permute.xlu0 %9451
    %9453 = vrot.lane.b32.xlu0 %v9432, 73
    %v9454 = vpop.permute.xlu0 %9453
    %9455 = vrot.lane.b32.xlu0 %v9433, 73
    %v9456 = vpop.permute.xlu0 %9455
    %9457 = vrot.lane.b32.xlu0 %v9434, 73
    %v9458 = vpop.permute.xlu0 %9457
    %9459 = vrot.lane.b32.xlu0 %v9435, 73
    %v9460 = vpop.permute.xlu0 %9459
    %9461 = vrot.lane.b32.xlu0 %v9436, 73
    %v9462 = vpop.permute.xlu0 %9461
    %9463 = vrot.lane.b32.xlu0 %v9437, 73
    %v9464 = vpop.permute.xlu0 %9463
    %v9465 = vsel %vm307, %v9448, %v9450
    %v9466 = vsel %vm307, %v9450, %v9452
    %v9467 = vsel %vm307, %v9452, %v9454
    %v9468 = vsel %vm307, %v9454, %v9456
    %v9469 = vsel %vm307, %v9456, %v9458
    %v9470 = vsel %vm307, %v9458, %v9460
    %v9471 = vsel %vm307, %v9460, %v9462
    %v9472 = vsel %vm307, %v9462, %v9464
    %9481 = vst [vmem:[#allocation4 + $0x480] sm:$0xff] %v9465
    %9482 = vst [vmem:[#allocation4 + $0x488] sm:$0xff] %v9466
    %9483 = vst [vmem:[#allocation4 + $0x490] sm:$0xff] %v9467
    %9484 = vst [vmem:[#allocation4 + $0x498] sm:$0xff] %v9468
    %9485 = vst [vmem:[#allocation4 + $0x4a0] sm:$0xff] %v9469
    %9486 = vst [vmem:[#allocation4 + $0x4a8] sm:$0xff] %v9470
    %9487 = vst [vmem:[#allocation4 + $0x4b0] sm:$0xff] %v9471
    %9488 = vst [vmem:[#allocation4 + $0x4b8] sm:$0xff] %v9472
    %v9489 = vld [vmem:[#allocation3 + $0x8] sm:$0xff]
    %v9490 = vld [vmem:[#allocation3 + $0x10] sm:$0xff]
    %v9491 = vld [vmem:[#allocation3 + $0x18] sm:$0xff]
    %v9492 = vld [vmem:[#allocation3 + $0x20] sm:$0xff]
    %v9493 = vld [vmem:[#allocation3 + $0x28] sm:$0xff]
    %v9494 = vld [vmem:[#allocation3 + $0x30] sm:$0xff]
    %v9495 = vld [vmem:[#allocation3 + $0x38] sm:$0xff]
    %v9496 = vld [vmem:[#allocation3 + $0x40] sm:$0xff]
    %v9497 = vld [vmem:[#allocation3 + $0x48] sm:$0xff]
    %v9498 = vld [vmem:[#allocation8 + $0x40] sm:$0x22]
    %v9499 = vld [vmem:[#allocation8 + $0x48] sm:$0x22]
    %v9500 = vld [vmem:[#allocation8 + $0x50] sm:$0x22]
    %v9501 = vld [vmem:[#allocation8 + $0x58] sm:$0x22]
    %v9506 = vunpack.c.l.b16 %v9498
    %v9507 = vunpack.c.h.b16 %v9498
    %v9508 = vunpack.c.l.b16 %v9499
    %v9509 = vunpack.c.h.b16 %v9499
    %v9510 = vunpack.c.l.b16 %v9500
    %v9511 = vunpack.c.h.b16 %v9500
    %v9512 = vunpack.c.l.b16 %v9501
    %v9513 = vunpack.c.h.b16 %v9501
    %v9514 = vpack.c.b16 %v9506, %v9506
    %v9515 = vpack.c.b16 %v9507, %v9507
    %v9516 = vpack.c.b16 %v9508, %v9508
    %v9517 = vpack.c.b16 %v9509, %v9509
    %v9518 = vpack.c.b16 %v9510, %v9510
    %v9519 = vpack.c.b16 %v9511, %v9511
    %v9520 = vpack.c.b16 %v9512, %v9512
    %v9521 = vpack.c.b16 %v9513, %v9513
    %v9523 = vshrl.u32 %v9514, 16
    %v9524 = vpack.i.b16 %v9523, %v9523
    %v9526 = vlaneseq
    %v9527 = vshrl.u32 %v9526, 7
    %v9528 = vsub.s32 1, %v9527
    %v9529 = vrot.slane %v9524, %v9528
    %v9531 = vshrl.u32 %v9515, 16
    %v9532 = vpack.i.b16 %v9531, %v9531
    %v9534 = vlaneseq
    %v9535 = vshrl.u32 %v9534, 7
    %v9536 = vsub.s32 1, %v9535
    %v9537 = vrot.slane %v9532, %v9536
    %v9539 = vshrl.u32 %v9516, 16
    %v9540 = vpack.i.b16 %v9539, %v9539
    %v9542 = vlaneseq
    %v9543 = vshrl.u32 %v9542, 7
    %v9544 = vsub.s32 1, %v9543
    %v9545 = vrot.slane %v9540, %v9544
    %v9547 = vshrl.u32 %v9517, 16
    %v9548 = vpack.i.b16 %v9547, %v9547
    %v9550 = vlaneseq
    %v9551 = vshrl.u32 %v9550, 7
    %v9552 = vsub.s32 1, %v9551
    %v9553 = vrot.slane %v9548, %v9552
    %v9555 = vshrl.u32 %v9518, 16
    %v9556 = vpack.i.b16 %v9555, %v9555
    %v9558 = vlaneseq
    %v9559 = vshrl.u32 %v9558, 7
    %v9560 = vsub.s32 1, %v9559
    %v9561 = vrot.slane %v9556, %v9560
    %v9563 = vshrl.u32 %v9519, 16
    %v9564 = vpack.i.b16 %v9563, %v9563
    %v9566 = vlaneseq
    %v9567 = vshrl.u32 %v9566, 7
    %v9568 = vsub.s32 1, %v9567
    %v9569 = vrot.slane %v9564, %v9568
    %v9571 = vshrl.u32 %v9520, 16
    %v9572 = vpack.i.b16 %v9571, %v9571
    %v9574 = vlaneseq
    %v9575 = vshrl.u32 %v9574, 7
    %v9576 = vsub.s32 1, %v9575
    %v9577 = vrot.slane %v9572, %v9576
    %v9579 = vshrl.u32 %v9521, 16
    %v9580 = vpack.i.b16 %v9579, %v9579
    %v9582 = vlaneseq
    %v9583 = vshrl.u32 %v9582, 7
    %v9584 = vsub.s32 1, %v9583
    %v9585 = vrot.slane %v9580, %v9584
    %9594 = vrot.lane.b32.xlu0 %v9529, 56
    %v9595 = vpop.permute.xlu0 %9594
    %9596 = vrot.lane.b32.xlu0 %v9537, 56
    %v9597 = vpop.permute.xlu0 %9596
    %9598 = vrot.lane.b32.xlu0 %v9545, 56
    %v9599 = vpop.permute.xlu0 %9598
    %9600 = vrot.lane.b32.xlu0 %v9553, 56
    %v9601 = vpop.permute.xlu0 %9600
    %9602 = vrot.lane.b32.xlu0 %v9561, 56
    %v9603 = vpop.permute.xlu0 %9602
    %9604 = vrot.lane.b32.xlu0 %v9569, 56
    %v9605 = vpop.permute.xlu0 %9604
    %9606 = vrot.lane.b32.xlu0 %v9577, 56
    %v9607 = vpop.permute.xlu0 %9606
    %9608 = vrot.lane.b32.xlu0 %v9585, 56
    %v9609 = vpop.permute.xlu0 %9608
    %v9610 = vsel %vm453, %v9595, %v9597
    %v9611 = vsel %vm453, %v9597, %v9599
    %v9612 = vsel %vm453, %v9599, %v9601
    %v9613 = vsel %vm453, %v9601, %v9603
    %v9614 = vsel %vm453, %v9603, %v9605
    %v9615 = vsel %vm453, %v9605, %v9607
    %v9616 = vsel %vm453, %v9607, %v9609
    %v9626 = vmul.bf16 %v9489, %v9595
    %v9627 = vmul.bf16 %v9490, %v9610
    %v9628 = vmul.bf16 %v9491, %v9611
    %v9629 = vmul.bf16 %v9492, %v9612
    %v9630 = vmul.bf16 %v9493, %v9613
    %v9631 = vmul.bf16 %v9494, %v9614
    %v9632 = vmul.bf16 %v9495, %v9615
    %v9633 = vmul.bf16 %v9496, %v9616
    %v9634 = vmul.bf16 %v9497, %v9609
    %9644 = vrot.lane.b32.xlu0 %v9626, 72
    %v9645 = vpop.permute.xlu0 %9644
    %9646 = vrot.lane.b32.xlu0 %v9627, 72
    %v9647 = vpop.permute.xlu0 %9646
    %9648 = vrot.lane.b32.xlu0 %v9628, 72
    %v9649 = vpop.permute.xlu0 %9648
    %9650 = vrot.lane.b32.xlu0 %v9629, 72
    %v9651 = vpop.permute.xlu0 %9650
    %9652 = vrot.lane.b32.xlu0 %v9630, 72
    %v9653 = vpop.permute.xlu0 %9652
    %9654 = vrot.lane.b32.xlu0 %v9631, 72
    %v9655 = vpop.permute.xlu0 %9654
    %9656 = vrot.lane.b32.xlu0 %v9632, 72
    %v9657 = vpop.permute.xlu0 %9656
    %9658 = vrot.lane.b32.xlu0 %v9633, 72
    %v9659 = vpop.permute.xlu0 %9658
    %9660 = vrot.lane.b32.xlu0 %v9634, 72
    %v9661 = vpop.permute.xlu0 %9660
    %v9662 = vsel %vm506, %v9645, %v9647
    %v9663 = vsel %vm506, %v9647, %v9649
    %v9664 = vsel %vm506, %v9649, %v9651
    %v9665 = vsel %vm506, %v9651, %v9653
    %v9666 = vsel %vm506, %v9653, %v9655
    %v9667 = vsel %vm506, %v9655, %v9657
    %v9668 = vsel %vm506, %v9657, %v9659
    %v9669 = vsel %vm506, %v9659, %v9661
    %9678 = vst [vmem:[#allocation4 + $0x4c0] sm:$0xff] %v9662
    %9679 = vst [vmem:[#allocation4 + $0x4c8] sm:$0xff] %v9663
    %9680 = vst [vmem:[#allocation4 + $0x4d0] sm:$0xff] %v9664
    %9681 = vst [vmem:[#allocation4 + $0x4d8] sm:$0xff] %v9665
    %9682 = vst [vmem:[#allocation4 + $0x4e0] sm:$0xff] %v9666
    %9683 = vst [vmem:[#allocation4 + $0x4e8] sm:$0xff] %v9667
    %9684 = vst [vmem:[#allocation4 + $0x4f0] sm:$0xff] %v9668
    %9685 = vst [vmem:[#allocation4 + $0x4f8] sm:$0xff] %v9669
    %v9686 = vld [vmem:[#allocation3 + $0x8] sm:$0xff]
    %v9687 = vld [vmem:[#allocation3 + $0x10] sm:$0xff]
    %v9688 = vld [vmem:[#allocation3 + $0x18] sm:$0xff]
    %v9689 = vld [vmem:[#allocation3 + $0x20] sm:$0xff]
    %v9690 = vld [vmem:[#allocation3 + $0x28] sm:$0xff]
    %v9691 = vld [vmem:[#allocation3 + $0x30] sm:$0xff]
    %v9692 = vld [vmem:[#allocation3 + $0x38] sm:$0xff]
    %v9693 = vld [vmem:[#allocation3 + $0x40] sm:$0xff]
    %v9694 = vld [vmem:[#allocation3 + $0x48] sm:$0xff]
    %v9695 = vld [vmem:[#allocation8 + $0x40] sm:$0x44]
    %v9696 = vld [vmem:[#allocation8 + $0x48] sm:$0x44]
    %v9697 = vld [vmem:[#allocation8 + $0x50] sm:$0x44]
    %v9698 = vld [vmem:[#allocation8 + $0x58] sm:$0x44]
    %v9703 = vunpack.c.l.b16 %v9695
    %v9704 = vunpack.c.h.b16 %v9695
    %v9705 = vunpack.c.l.b16 %v9696
    %v9706 = vunpack.c.h.b16 %v9696
    %v9707 = vunpack.c.l.b16 %v9697
    %v9708 = vunpack.c.h.b16 %v9697
    %v9709 = vunpack.c.l.b16 %v9698
    %v9710 = vunpack.c.h.b16 %v9698
    %v9711 = vpack.c.b16 %v9703, %v9703
    %v9712 = vpack.c.b16 %v9704, %v9704
    %v9713 = vpack.c.b16 %v9705, %v9705
    %v9714 = vpack.c.b16 %v9706, %v9706
    %v9715 = vpack.c.b16 %v9707, %v9707
    %v9716 = vpack.c.b16 %v9708, %v9708
    %v9717 = vpack.c.b16 %v9709, %v9709
    %v9718 = vpack.c.b16 %v9710, %v9710
    %v9720 = vpack.i.b16 %v9711, %v9711
    %v9722 = vlaneseq
    %v9723 = vshrl.u32 %v9722, 7
    %v9724 = vsub.s32 2, %v9723
    %v9725 = vrot.slane %v9720, %v9724
    %v9727 = vpack.i.b16 %v9712, %v9712
    %v9729 = vlaneseq
    %v9730 = vshrl.u32 %v9729, 7
    %v9731 = vsub.s32 2, %v9730
    %v9732 = vrot.slane %v9727, %v9731
    %v9734 = vpack.i.b16 %v9713, %v9713
    %v9736 = vlaneseq
    %v9737 = vshrl.u32 %v9736, 7
    %v9738 = vsub.s32 2, %v9737
    %v9739 = vrot.slane %v9734, %v9738
    %v9741 = vpack.i.b16 %v9714, %v9714
    %v9743 = vlaneseq
    %v9744 = vshrl.u32 %v9743, 7
    %v9745 = vsub.s32 2, %v9744
    %v9746 = vrot.slane %v9741, %v9745
    %v9748 = vpack.i.b16 %v9715, %v9715
    %v9750 = vlaneseq
    %v9751 = vshrl.u32 %v9750, 7
    %v9752 = vsub.s32 2, %v9751
    %v9753 = vrot.slane %v9748, %v9752
    %v9755 = vpack.i.b16 %v9716, %v9716
    %v9757 = vlaneseq
    %v9758 = vshrl.u32 %v9757, 7
    %v9759 = vsub.s32 2, %v9758
    %v9760 = vrot.slane %v9755, %v9759
    %v9762 = vpack.i.b16 %v9717, %v9717
    %v9764 = vlaneseq
    %v9765 = vshrl.u32 %v9764, 7
    %v9766 = vsub.s32 2, %v9765
    %v9767 = vrot.slane %v9762, %v9766
    %v9769 = vpack.i.b16 %v9718, %v9718
    %v9771 = vlaneseq
    %v9772 = vshrl.u32 %v9771, 7
    %v9773 = vsub.s32 2, %v9772
    %v9774 = vrot.slane %v9769, %v9773
    %9783 = vrot.lane.b32.xlu0 %v9725, 57
    %v9784 = vpop.permute.xlu0 %9783
    %9785 = vrot.lane.b32.xlu0 %v9732, 57
    %v9786 = vpop.permute.xlu0 %9785
    %9787 = vrot.lane.b32.xlu0 %v9739, 57
    %v9788 = vpop.permute.xlu0 %9787
    %9789 = vrot.lane.b32.xlu0 %v9746, 57
    %v9790 = vpop.permute.xlu0 %9789
    %9791 = vrot.lane.b32.xlu0 %v9753, 57
    %v9792 = vpop.permute.xlu0 %9791
    %9793 = vrot.lane.b32.xlu0 %v9760, 57
    %v9794 = vpop.permute.xlu0 %9793
    %9795 = vrot.lane.b32.xlu0 %v9767, 57
    %v9796 = vpop.permute.xlu0 %9795
    %9797 = vrot.lane.b32.xlu0 %v9774, 57
    %v9798 = vpop.permute.xlu0 %9797
    %v9799 = vsel %vm644, %v9784, %v9786
    %v9800 = vsel %vm644, %v9786, %v9788
    %v9801 = vsel %vm644, %v9788, %v9790
    %v9802 = vsel %vm644, %v9790, %v9792
    %v9803 = vsel %vm644, %v9792, %v9794
    %v9804 = vsel %vm644, %v9794, %v9796
    %v9805 = vsel %vm644, %v9796, %v9798
    %v9815 = vmul.bf16 %v9686, %v9784
    %v9816 = vmul.bf16 %v9687, %v9799
    %v9817 = vmul.bf16 %v9688, %v9800
    %v9818 = vmul.bf16 %v9689, %v9801
    %v9819 = vmul.bf16 %v9690, %v9802
    %v9820 = vmul.bf16 %v9691, %v9803
    %v9821 = vmul.bf16 %v9692, %v9804
    %v9822 = vmul.bf16 %v9693, %v9805
    %v9823 = vmul.bf16 %v9694, %v9798
    %9833 = vrot.lane.b32.xlu0 %v9815, 71
    %v9834 = vpop.permute.xlu0 %9833
    %9835 = vrot.lane.b32.xlu0 %v9816, 71
    %v9836 = vpop.permute.xlu0 %9835
    %9837 = vrot.lane.b32.xlu0 %v9817, 71
    %v9838 = vpop.permute.xlu0 %9837
    %9839 = vrot.lane.b32.xlu0 %v9818, 71
    %v9840 = vpop.permute.xlu0 %9839
    %9841 = vrot.lane.b32.xlu0 %v9819, 71
    %v9842 = vpop.permute.xlu0 %9841
    %9843 = vrot.lane.b32.xlu0 %v9820, 71
    %v9844 = vpop.permute.xlu0 %9843
    %9845 = vrot.lane.b32.xlu0 %v9821, 71
    %v9846 = vpop.permute.xlu0 %9845
    %9847 = vrot.lane.b32.xlu0 %v9822, 71
    %v9848 = vpop.permute.xlu0 %9847
    %9849 = vrot.lane.b32.xlu0 %v9823, 71
    %v9850 = vpop.permute.xlu0 %9849
    %v9851 = vsel %vm697, %v9834, %v9836
    %v9852 = vsel %vm697, %v9836, %v9838
    %v9853 = vsel %vm697, %v9838, %v9840
    %v9854 = vsel %vm697, %v9840, %v9842
    %v9855 = vsel %vm697, %v9842, %v9844
    %v9856 = vsel %vm697, %v9844, %v9846
    %v9857 = vsel %vm697, %v9846, %v9848
    %v9858 = vsel %vm697, %v9848, %v9850
    %9867 = vst [vmem:[#allocation4 + $0x500] sm:$0xff] %v9851
    %9868 = vst [vmem:[#allocation4 + $0x508] sm:$0xff] %v9852
    %9869 = vst [vmem:[#allocation4 + $0x510] sm:$0xff] %v9853
    %9870 = vst [vmem:[#allocation4 + $0x518] sm:$0xff] %v9854
    %9871 = vst [vmem:[#allocation4 + $0x520] sm:$0xff] %v9855
    %9872 = vst [vmem:[#allocation4 + $0x528] sm:$0xff] %v9856
    %9873 = vst [vmem:[#allocation4 + $0x530] sm:$0xff] %v9857
    %9874 = vst [vmem:[#allocation4 + $0x538] sm:$0xff] %v9858
    %v9875 = vld [vmem:[#allocation3 + $0x8] sm:$0xff]
    %v9876 = vld [vmem:[#allocation3 + $0x10] sm:$0xff]
    %v9877 = vld [vmem:[#allocation3 + $0x18] sm:$0xff]
    %v9878 = vld [vmem:[#allocation3 + $0x20] sm:$0xff]
    %v9879 = vld [vmem:[#allocation3 + $0x28] sm:$0xff]
    %v9880 = vld [vmem:[#allocation3 + $0x30] sm:$0xff]
    %v9881 = vld [vmem:[#allocation3 + $0x38] sm:$0xff]
    %v9882 = vld [vmem:[#allocation3 + $0x40] sm:$0xff]
    %v9883 = vld [vmem:[#allocation3 + $0x48] sm:$0xff]
    %v9884 = vld [vmem:[#allocation8 + $0x40] sm:$0x44]
    %v9885 = vld [vmem:[#allocation8 + $0x48] sm:$0x44]
    %v9886 = vld [vmem:[#allocation8 + $0x50] sm:$0x44]
    %v9887 = vld [vmem:[#allocation8 + $0x58] sm:$0x44]
    %v9892 = vunpack.c.l.b16 %v9884
    %v9893 = vunpack.c.h.b16 %v9884
    %v9894 = vunpack.c.l.b16 %v9885
    %v9895 = vunpack.c.h.b16 %v9885
    %v9896 = vunpack.c.l.b16 %v9886
    %v9897 = vunpack.c.h.b16 %v9886
    %v9898 = vunpack.c.l.b16 %v9887
    %v9899 = vunpack.c.h.b16 %v9887
    %v9900 = vpack.c.b16 %v9892, %v9892
    %v9901 = vpack.c.b16 %v9893, %v9893
    %v9902 = vpack.c.b16 %v9894, %v9894
    %v9903 = vpack.c.b16 %v9895, %v9895
    %v9904 = vpack.c.b16 %v9896, %v9896
    %v9905 = vpack.c.b16 %v9897, %v9897
    %v9906 = vpack.c.b16 %v9898, %v9898
    %v9907 = vpack.c.b16 %v9899, %v9899
    %v9909 = vshrl.u32 %v9900, 16
    %v9910 = vpack.i.b16 %v9909, %v9909
    %v9912 = vlaneseq
    %v9913 = vshrl.u32 %v9912, 7
    %v9914 = vsub.s32 2, %v9913
    %v9915 = vrot.slane %v9910, %v9914
    %v9917 = vshrl.u32 %v9901, 16
    %v9918 = vpack.i.b16 %v9917, %v9917
    %v9920 = vlaneseq
    %v9921 = vshrl.u32 %v9920, 7
    %v9922 = vsub.s32 2, %v9921
    %v9923 = vrot.slane %v9918, %v9922
    %v9925 = vshrl.u32 %v9902, 16
    %v9926 = vpack.i.b16 %v9925, %v9925
    %v9928 = vlaneseq
    %v9929 = vshrl.u32 %v9928, 7
    %v9930 = vsub.s32 2, %v9929
    %v9931 = vrot.slane %v9926, %v9930
    %v9933 = vshrl.u32 %v9903, 16
    %v9934 = vpack.i.b16 %v9933, %v9933
    %v9936 = vlaneseq
    %v9937 = vshrl.u32 %v9936, 7
    %v9938 = vsub.s32 2, %v9937
    %v9939 = vrot.slane %v9934, %v9938
    %v9941 = vshrl.u32 %v9904, 16
    %v9942 = vpack.i.b16 %v9941, %v9941
    %v9944 = vlaneseq
    %v9945 = vshrl.u32 %v9944, 7
    %v9946 = vsub.s32 2, %v9945
    %v9947 = vrot.slane %v9942, %v9946
    %v9949 = vshrl.u32 %v9905, 16
    %v9950 = vpack.i.b16 %v9949, %v9949
    %v9952 = vlaneseq
    %v9953 = vshrl.u32 %v9952, 7
    %v9954 = vsub.s32 2, %v9953
    %v9955 = vrot.slane %v9950, %v9954
    %v9957 = vshrl.u32 %v9906, 16
    %v9958 = vpack.i.b16 %v9957, %v9957
    %v9960 = vlaneseq
    %v9961 = vshrl.u32 %v9960, 7
    %v9962 = vsub.s32 2, %v9961
    %v9963 = vrot.slane %v9958, %v9962
    %v9965 = vshrl.u32 %v9907, 16
    %v9966 = vpack.i.b16 %v9965, %v9965
    %v9968 = vlaneseq
    %v9969 = vshrl.u32 %v9968, 7
    %v9970 = vsub.s32 2, %v9969
    %v9971 = vrot.slane %v9966, %v9970
    %9980 = vrot.lane.b32.xlu0 %v9915, 63
    %v9981 = vpop.permute.xlu0 %9980
    %9982 = vrot.lane.b32.xlu0 %v9923, 63
    %v9983 = vpop.permute.xlu0 %9982
    %9984 = vrot.lane.b32.xlu0 %v9931, 63
    %v9985 = vpop.permute.xlu0 %9984
    %9986 = vrot.lane.b32.xlu0 %v9939, 63
    %v9987 = vpop.permute.xlu0 %9986
    %9988 = vrot.lane.b32.xlu0 %v9947, 63
    %v9989 = vpop.permute.xlu0 %9988
    %9990 = vrot.lane.b32.xlu0 %v9955, 63
    %v9991 = vpop.permute.xlu0 %9990
    %9992 = vrot.lane.b32.xlu0 %v9963, 63
    %v9993 = vpop.permute.xlu0 %9992
    %9994 = vrot.lane.b32.xlu0 %v9971, 63
    %v9995 = vpop.permute.xlu0 %9994
    %v9996 = vsel %vm843, %v9981, %v9983
    %v9997 = vsel %vm843, %v9983, %v9985
    %v9998 = vsel %vm843, %v9985, %v9987
    %v9999 = vsel %vm843, %v9987, %v9989
    %v10000 = vsel %vm843, %v9989, %v9991
    %v10001 = vsel %vm843, %v9991, %v9993
    %v10002 = vsel %vm843, %v9993, %v9995
    %v10012 = vmul.bf16 %v9875, %v9981
    %v10013 = vmul.bf16 %v9876, %v9996
    %v10014 = vmul.bf16 %v9877, %v9997
    %v10015 = vmul.bf16 %v9878, %v9998
    %v10016 = vmul.bf16 %v9879, %v9999
    %v10017 = vmul.bf16 %v9880, %v10000
    %v10018 = vmul.bf16 %v9881, %v10001
    %v10019 = vmul.bf16 %v9882, %v10002
    %v10020 = vmul.bf16 %v9883, %v9995
    %10030 = vrot.lane.b32.xlu0 %v10012, 65
    %v10031 = vpop.permute.xlu0 %10030
    %10032 = vrot.lane.b32.xlu0 %v10013, 65
    %v10033 = vpop.permute.xlu0 %10032
    %10034 = vrot.lane.b32.xlu0 %v10014, 65
    %v10035 = vpop.permute.xlu0 %10034
    %10036 = vrot.lane.b32.xlu0 %v10015, 65
    %v10037 = vpop.permute.xlu0 %10036
    %10038 = vrot.lane.b32.xlu0 %v10016, 65
    %v10039 = vpop.permute.xlu0 %10038
    %10040 = vrot.lane.b32.xlu0 %v10017, 65
    %v10041 = vpop.permute.xlu0 %10040
    %10042 = vrot.lane.b32.xlu0 %v10018, 65
    %v10043 = vpop.permute.xlu0 %10042
    %10044 = vrot.lane.b32.xlu0 %v10019, 65
    %v10045 = vpop.permute.xlu0 %10044
    %10046 = vrot.lane.b32.xlu0 %v10020, 65
    %v10047 = vpop.permute.xlu0 %10046
    %v10048 = vsel %vm896, %v10031, %v10033
    %v10049 = vsel %vm896, %v10033, %v10035
    %v10050 = vsel %vm896, %v10035, %v10037
    %v10051 = vsel %vm896, %v10037, %v10039
    %v10052 = vsel %vm896, %v10039, %v10041
    %v10053 = vsel %vm896, %v10041, %v10043
    %v10054 = vsel %vm896, %v10043, %v10045
    %v10055 = vsel %vm896, %v10045, %v10047
    %10064 = vst [vmem:[#allocation4 + $0x540] sm:$0xff] %v10048
    %10065 = vst [vmem:[#allocation4 + $0x548] sm:$0xff] %v10049
    %10066 = vst [vmem:[#allocation4 + $0x550] sm:$0xff] %v10050
    %10067 = vst [vmem:[#allocation4 + $0x558] sm:$0xff] %v10051
    %10068 = vst [vmem:[#allocation4 + $0x560] sm:$0xff] %v10052
    %10069 = vst [vmem:[#allocation4 + $0x568] sm:$0xff] %v10053
    %10070 = vst [vmem:[#allocation4 + $0x570] sm:$0xff] %v10054
    %10071 = vst [vmem:[#allocation4 + $0x578] sm:$0xff] %v10055
    %v10072 = vld [vmem:[#allocation3 + $0x8] sm:$0xff]
    %v10073 = vld [vmem:[#allocation3 + $0x10] sm:$0xff]
    %v10074 = vld [vmem:[#allocation3 + $0x18] sm:$0xff]
    %v10075 = vld [vmem:[#allocation3 + $0x20] sm:$0xff]
    %v10076 = vld [vmem:[#allocation3 + $0x28] sm:$0xff]
    %v10077 = vld [vmem:[#allocation3 + $0x30] sm:$0xff]
    %v10078 = vld [vmem:[#allocation3 + $0x38] sm:$0xff]
    %v10079 = vld [vmem:[#allocation3 + $0x40] sm:$0xff]
    %v10080 = vld [vmem:[#allocation3 + $0x48] sm:$0xff]
    %v10081 = vld [vmem:[#allocation8 + $0x40] sm:$0x88]
    %v10082 = vld [vmem:[#allocation8 + $0x48] sm:$0x88]
    %v10083 = vld [vmem:[#allocation8 + $0x50] sm:$0x88]
    %v10084 = vld [vmem:[#allocation8 + $0x58] sm:$0x88]
    %v10089 = vunpack.c.l.b16 %v10081
    %v10090 = vunpack.c.h.b16 %v10081
    %v10091 = vunpack.c.l.b16 %v10082
    %v10092 = vunpack.c.h.b16 %v10082
    %v10093 = vunpack.c.l.b16 %v10083
    %v10094 = vunpack.c.h.b16 %v10083
    %v10095 = vunpack.c.l.b16 %v10084
    %v10096 = vunpack.c.h.b16 %v10084
    %v10097 = vpack.c.b16 %v10089, %v10089
    %v10098 = vpack.c.b16 %v10090, %v10090
    %v10099 = vpack.c.b16 %v10091, %v10091
    %v10100 = vpack.c.b16 %v10092, %v10092
    %v10101 = vpack.c.b16 %v10093, %v10093
    %v10102 = vpack.c.b16 %v10094, %v10094
    %v10103 = vpack.c.b16 %v10095, %v10095
    %v10104 = vpack.c.b16 %v10096, %v10096
    %v10106 = vpack.i.b16 %v10097, %v10097
    %v10108 = vlaneseq
    %v10109 = vshrl.u32 %v10108, 7
    %v10110 = vsub.s32 3, %v10109
    %v10111 = vrot.slane %v10106, %v10110
    %v10113 = vpack.i.b16 %v10098, %v10098
    %v10115 = vlaneseq
    %v10116 = vshrl.u32 %v10115, 7
    %v10117 = vsub.s32 3, %v10116
    %v10118 = vrot.slane %v10113, %v10117
    %v10120 = vpack.i.b16 %v10099, %v10099
    %v10122 = vlaneseq
    %v10123 = vshrl.u32 %v10122, 7
    %v10124 = vsub.s32 3, %v10123
    %v10125 = vrot.slane %v10120, %v10124
    %v10127 = vpack.i.b16 %v10100, %v10100
    %v10129 = vlaneseq
    %v10130 = vshrl.u32 %v10129, 7
    %v10131 = vsub.s32 3, %v10130
    %v10132 = vrot.slane %v10127, %v10131
    %v10134 = vpack.i.b16 %v10101, %v10101
    %v10136 = vlaneseq
    %v10137 = vshrl.u32 %v10136, 7
    %v10138 = vsub.s32 3, %v10137
    %v10139 = vrot.slane %v10134, %v10138
    %v10141 = vpack.i.b16 %v10102, %v10102
    %v10143 = vlaneseq
    %v10144 = vshrl.u32 %v10143, 7
    %v10145 = vsub.s32 3, %v10144
    %v10146 = vrot.slane %v10141, %v10145
    %v10148 = vpack.i.b16 %v10103, %v10103
    %v10150 = vlaneseq
    %v10151 = vshrl.u32 %v10150, 7
    %v10152 = vsub.s32 3, %v10151
    %v10153 = vrot.slane %v10148, %v10152
    %v10155 = vpack.i.b16 %v10104, %v10104
    %v10157 = vlaneseq
    %v10158 = vshrl.u32 %v10157, 7
    %v10159 = vsub.s32 3, %v10158
    %v10160 = vrot.slane %v10155, %v10159
    %10169 = vrot.lane.b32.xlu0 %v10111, 64
    %v10170 = vpop.permute.xlu0 %10169
    %10171 = vrot.lane.b32.xlu0 %v10118, 64
    %v10172 = vpop.permute.xlu0 %10171
    %10173 = vrot.lane.b32.xlu0 %v10125, 64
    %v10174 = vpop.permute.xlu0 %10173
    %10175 = vrot.lane.b32.xlu0 %v10132, 64
    %v10176 = vpop.permute.xlu0 %10175
    %10177 = vrot.lane.b32.xlu0 %v10139, 64
    %v10178 = vpop.permute.xlu0 %10177
    %10179 = vrot.lane.b32.xlu0 %v10146, 64
    %v10180 = vpop.permute.xlu0 %10179
    %10181 = vrot.lane.b32.xlu0 %v10153, 64
    %v10182 = vpop.permute.xlu0 %10181
    %10183 = vrot.lane.b32.xlu0 %v10160, 64
    %v10184 = vpop.permute.xlu0 %10183
    %v10185 = vsel %vm1034, %v10170, %v10172
    %v10186 = vsel %vm1034, %v10172, %v10174
    %v10187 = vsel %vm1034, %v10174, %v10176
    %v10188 = vsel %vm1034, %v10176, %v10178
    %v10189 = vsel %vm1034, %v10178, %v10180
    %v10190 = vsel %vm1034, %v10180, %v10182
    %v10191 = vsel %vm1034, %v10182, %v10184
    %v10201 = vmul.bf16 %v10072, %v10170
    %v10202 = vmul.bf16 %v10073, %v10185
    %v10203 = vmul.bf16 %v10074, %v10186
    %v10204 = vmul.bf16 %v10075, %v10187
    %v10205 = vmul.bf16 %v10076, %v10188
    %v10206 = vmul.bf16 %v10077, %v10189
    %v10207 = vmul.bf16 %v10078, %v10190
    %v10208 = vmul.bf16 %v10079, %v10191
    %v10209 = vmul.bf16 %v10080, %v10184
    %10219 = vrot.lane.b32.xlu0 %v10201, 64
    %v10220 = vpop.permute.xlu0 %10219
    %10221 = vrot.lane.b32.xlu0 %v10202, 64
    %v10222 = vpop.permute.xlu0 %10221
    %10223 = vrot.lane.b32.xlu0 %v10203, 64
    %v10224 = vpop.permute.xlu0 %10223
    %10225 = vrot.lane.b32.xlu0 %v10204, 64
    %v10226 = vpop.permute.xlu0 %10225
    %10227 = vrot.lane.b32.xlu0 %v10205, 64
    %v10228 = vpop.permute.xlu0 %10227
    %10229 = vrot.lane.b32.xlu0 %v10206, 64
    %v10230 = vpop.permute.xlu0 %10229
    %10231 = vrot.lane.b32.xlu0 %v10207, 64
    %v10232 = vpop.permute.xlu0 %10231
    %10233 = vrot.lane.b32.xlu0 %v10208, 64
    %v10234 = vpop.permute.xlu0 %10233
    %10235 = vrot.lane.b32.xlu0 %v10209, 64
    %v10236 = vpop.permute.xlu0 %10235
    %v10237 = vsel %vm1034, %v10220, %v10222
    %v10238 = vsel %vm1034, %v10222, %v10224
    %v10239 = vsel %vm1034, %v10224, %v10226
    %v10240 = vsel %vm1034, %v10226, %v10228
    %v10241 = vsel %vm1034, %v10228, %v10230
    %v10242 = vsel %vm1034, %v10230, %v10232
    %v10243 = vsel %vm1034, %v10232, %v10234
    %v10244 = vsel %vm1034, %v10234, %v10236
    %10253 = vst [vmem:[#allocation4 + $0x580] sm:$0xff] %v10237
    %10254 = vst [vmem:[#allocation4 + $0x588] sm:$0xff] %v10238
    %10255 = vst [vmem:[#allocation4 + $0x590] sm:$0xff] %v10239
    %10256 = vst [vmem:[#allocation4 + $0x598] sm:$0xff] %v10240
    %10257 = vst [vmem:[#allocation4 + $0x5a0] sm:$0xff] %v10241
    %10258 = vst [vmem:[#allocation4 + $0x5a8] sm:$0xff] %v10242
    %10259 = vst [vmem:[#allocation4 + $0x5b0] sm:$0xff] %v10243
    %10260 = vst [vmem:[#allocation4 + $0x5b8] sm:$0xff] %v10244
    %v10261 = vld [vmem:[#allocation3 + $0x8] sm:$0xff]
    %v10262 = vld [vmem:[#allocation3 + $0x10] sm:$0xff]
    %v10263 = vld [vmem:[#allocation3 + $0x18] sm:$0xff]
    %v10264 = vld [vmem:[#allocation3 + $0x20] sm:$0xff]
    %v10265 = vld [vmem:[#allocation3 + $0x28] sm:$0xff]
    %v10266 = vld [vmem:[#allocation3 + $0x30] sm:$0xff]
    %v10267 = vld [vmem:[#allocation3 + $0x38] sm:$0xff]
    %v10268 = vld [vmem:[#allocation3 + $0x40] sm:$0xff]
    %v10269 = vld [vmem:[#allocation3 + $0x48] sm:$0xff]
    %v10270 = vld [vmem:[#allocation8 + $0x40] sm:$0x88]
    %v10271 = vld [vmem:[#allocation8 + $0x48] sm:$0x88]
    %v10272 = vld [vmem:[#allocation8 + $0x50] sm:$0x88]
    %v10273 = vld [vmem:[#allocation8 + $0x58] sm:$0x88]
    %v10278 = vunpack.c.l.b16 %v10270
    %v10279 = vunpack.c.h.b16 %v10270
    %v10280 = vunpack.c.l.b16 %v10271
    %v10281 = vunpack.c.h.b16 %v10271
    %v10282 = vunpack.c.l.b16 %v10272
    %v10283 = vunpack.c.h.b16 %v10272
    %v10284 = vunpack.c.l.b16 %v10273
    %v10285 = vunpack.c.h.b16 %v10273
    %v10286 = vpack.c.b16 %v10278, %v10278
    %v10287 = vpack.c.b16 %v10279, %v10279
    %v10288 = vpack.c.b16 %v10280, %v10280
    %v10289 = vpack.c.b16 %v10281, %v10281
    %v10290 = vpack.c.b16 %v10282, %v10282
    %v10291 = vpack.c.b16 %v10283, %v10283
    %v10292 = vpack.c.b16 %v10284, %v10284
    %v10293 = vpack.c.b16 %v10285, %v10285
    %v10295 = vshrl.u32 %v10286, 16
    %v10296 = vpack.i.b16 %v10295, %v10295
    %v10298 = vlaneseq
    %v10299 = vshrl.u32 %v10298, 7
    %v10300 = vsub.s32 3, %v10299
    %v10301 = vrot.slane %v10296, %v10300
    %v10303 = vshrl.u32 %v10287, 16
    %v10304 = vpack.i.b16 %v10303, %v10303
    %v10306 = vlaneseq
    %v10307 = vshrl.u32 %v10306, 7
    %v10308 = vsub.s32 3, %v10307
    %v10309 = vrot.slane %v10304, %v10308
    %v10311 = vshrl.u32 %v10288, 16
    %v10312 = vpack.i.b16 %v10311, %v10311
    %v10314 = vlaneseq
    %v10315 = vshrl.u32 %v10314, 7
    %v10316 = vsub.s32 3, %v10315
    %v10317 = vrot.slane %v10312, %v10316
    %v10319 = vshrl.u32 %v10289, 16
    %v10320 = vpack.i.b16 %v10319, %v10319
    %v10322 = vlaneseq
    %v10323 = vshrl.u32 %v10322, 7
    %v10324 = vsub.s32 3, %v10323
    %v10325 = vrot.slane %v10320, %v10324
    %v10327 = vshrl.u32 %v10290, 16
    %v10328 = vpack.i.b16 %v10327, %v10327
    %v10330 = vlaneseq
    %v10331 = vshrl.u32 %v10330, 7
    %v10332 = vsub.s32 3, %v10331
    %v10333 = vrot.slane %v10328, %v10332
    %v10335 = vshrl.u32 %v10291, 16
    %v10336 = vpack.i.b16 %v10335, %v10335
    %v10338 = vlaneseq
    %v10339 = vshrl.u32 %v10338, 7
    %v10340 = vsub.s32 3, %v10339
    %v10341 = vrot.slane %v10336, %v10340
    %v10343 = vshrl.u32 %v10292, 16
    %v10344 = vpack.i.b16 %v10343, %v10343
    %v10346 = vlaneseq
    %v10347 = vshrl.u32 %v10346, 7
    %v10348 = vsub.s32 3, %v10347
    %v10349 = vrot.slane %v10344, %v10348
    %v10351 = vshrl.u32 %v10293, 16
    %v10352 = vpack.i.b16 %v10351, %v10351
    %v10354 = vlaneseq
    %v10355 = vshrl.u32 %v10354, 7
    %v10356 = vsub.s32 3, %v10355
    %v10357 = vrot.slane %v10352, %v10356
    %10366 = vrot.lane.b32.xlu0 %v10301, 65
    %v10367 = vpop.permute.xlu0 %10366
    %10368 = vrot.lane.b32.xlu0 %v10309, 65
    %v10369 = vpop.permute.xlu0 %10368
    %10370 = vrot.lane.b32.xlu0 %v10317, 65
    %v10371 = vpop.permute.xlu0 %10370
    %10372 = vrot.lane.b32.xlu0 %v10325, 65
    %v10373 = vpop.permute.xlu0 %10372
    %10374 = vrot.lane.b32.xlu0 %v10333, 65
    %v10375 = vpop.permute.xlu0 %10374
    %10376 = vrot.lane.b32.xlu0 %v10341, 65
    %v10377 = vpop.permute.xlu0 %10376
    %10378 = vrot.lane.b32.xlu0 %v10349, 65
    %v10379 = vpop.permute.xlu0 %10378
    %10380 = vrot.lane.b32.xlu0 %v10357, 65
    %v10381 = vpop.permute.xlu0 %10380
    %v10382 = vsel %vm896, %v10367, %v10369
    %v10383 = vsel %vm896, %v10369, %v10371
    %v10384 = vsel %vm896, %v10371, %v10373
    %v10385 = vsel %vm896, %v10373, %v10375
    %v10386 = vsel %vm896, %v10375, %v10377
    %v10387 = vsel %vm896, %v10377, %v10379
    %v10388 = vsel %vm896, %v10379, %v10381
    %v10398 = vmul.bf16 %v10261, %v10367
    %v10399 = vmul.bf16 %v10262, %v10382
    %v10400 = vmul.bf16 %v10263, %v10383
    %v10401 = vmul.bf16 %v10264, %v10384
    %v10402 = vmul.bf16 %v10265, %v10385
    %v10403 = vmul.bf16 %v10266, %v10386
    %v10404 = vmul.bf16 %v10267, %v10387
    %v10405 = vmul.bf16 %v10268, %v10388
    %v10406 = vmul.bf16 %v10269, %v10381
    %10416 = vrot.lane.b32.xlu0 %v10398, 63
    %v10417 = vpop.permute.xlu0 %10416
    %10418 = vrot.lane.b32.xlu0 %v10399, 63
    %v10419 = vpop.permute.xlu0 %10418
    %10420 = vrot.lane.b32.xlu0 %v10400, 63
    %v10421 = vpop.permute.xlu0 %10420
    %10422 = vrot.lane.b32.xlu0 %v10401, 63
    %v10423 = vpop.permute.xlu0 %10422
    %10424 = vrot.lane.b32.xlu0 %v10402, 63
    %v10425 = vpop.permute.xlu0 %10424
    %10426 = vrot.lane.b32.xlu0 %v10403, 63
    %v10427 = vpop.permute.xlu0 %10426
    %10428 = vrot.lane.b32.xlu0 %v10404, 63
    %v10429 = vpop.permute.xlu0 %10428
    %10430 = vrot.lane.b32.xlu0 %v10405, 63
    %v10431 = vpop.permute.xlu0 %10430
    %10432 = vrot.lane.b32.xlu0 %v10406, 63
    %v10433 = vpop.permute.xlu0 %10432
    %v10434 = vsel %vm843, %v10417, %v10419
    %v10435 = vsel %vm843, %v10419, %v10421
    %v10436 = vsel %vm843, %v10421, %v10423
    %v10437 = vsel %vm843, %v10423, %v10425
    %v10438 = vsel %vm843, %v10425, %v10427
    %v10439 = vsel %vm843, %v10427, %v10429
    %v10440 = vsel %vm843, %v10429, %v10431
    %v10441 = vsel %vm843, %v10431, %v10433
    %10450 = vst [vmem:[#allocation4 + $0x5c0] sm:$0xff] %v10434
    %10451 = vst [vmem:[#allocation4 + $0x5c8] sm:$0xff] %v10435
    %10452 = vst [vmem:[#allocation4 + $0x5d0] sm:$0xff] %v10436
    %10453 = vst [vmem:[#allocation4 + $0x5d8] sm:$0xff] %v10437
    %10454 = vst [vmem:[#allocation4 + $0x5e0] sm:$0xff] %v10438
    %10455 = vst [vmem:[#allocation4 + $0x5e8] sm:$0xff] %v10439
    %10456 = vst [vmem:[#allocation4 + $0x5f0] sm:$0xff] %v10440
    %10457 = vst [vmem:[#allocation4 + $0x5f8] sm:$0xff] %v10441
    %v10458 = vld [vmem:[#allocation3 + $0x8] sm:$0xff]
    %v10459 = vld [vmem:[#allocation3 + $0x10] sm:$0xff]
    %v10460 = vld [vmem:[#allocation3 + $0x18] sm:$0xff]
    %v10461 = vld [vmem:[#allocation3 + $0x20] sm:$0xff]
    %v10462 = vld [vmem:[#allocation3 + $0x28] sm:$0xff]
    %v10463 = vld [vmem:[#allocation3 + $0x30] sm:$0xff]
    %v10464 = vld [vmem:[#allocation3 + $0x38] sm:$0xff]
    %v10465 = vld [vmem:[#allocation3 + $0x40] sm:$0xff]
    %v10466 = vld [vmem:[#allocation3 + $0x48] sm:$0xff]
    %v10467 = vld [vmem:[#allocation8 + $0x60] sm:$0x11]
    %v10468 = vld [vmem:[#allocation8 + $0x68] sm:$0x11]
    %v10469 = vld [vmem:[#allocation8 + $0x70] sm:$0x11]
    %v10470 = vld [vmem:[#allocation8 + $0x78] sm:$0x11]
    %v10475 = vunpack.c.l.b16 %v10467
    %v10476 = vunpack.c.h.b16 %v10467
    %v10477 = vunpack.c.l.b16 %v10468
    %v10478 = vunpack.c.h.b16 %v10468
    %v10479 = vunpack.c.l.b16 %v10469
    %v10480 = vunpack.c.h.b16 %v10469
    %v10481 = vunpack.c.l.b16 %v10470
    %v10482 = vunpack.c.h.b16 %v10470
    %v10483 = vpack.c.b16 %v10475, %v10475
    %v10484 = vpack.c.b16 %v10476, %v10476
    %v10485 = vpack.c.b16 %v10477, %v10477
    %v10486 = vpack.c.b16 %v10478, %v10478
    %v10487 = vpack.c.b16 %v10479, %v10479
    %v10488 = vpack.c.b16 %v10480, %v10480
    %v10489 = vpack.c.b16 %v10481, %v10481
    %v10490 = vpack.c.b16 %v10482, %v10482
    %v10492 = vpack.i.b16 %v10483, %v10483
    %v10494 = vlaneseq
    %v10495 = vshrl.u32 %v10494, 7
    %v10496 = vsub.s32 0, %v10495
    %v10497 = vrot.slane %v10492, %v10496
    %v10499 = vpack.i.b16 %v10484, %v10484
    %v10501 = vlaneseq
    %v10502 = vshrl.u32 %v10501, 7
    %v10503 = vsub.s32 0, %v10502
    %v10504 = vrot.slane %v10499, %v10503
    %v10506 = vpack.i.b16 %v10485, %v10485
    %v10508 = vlaneseq
    %v10509 = vshrl.u32 %v10508, 7
    %v10510 = vsub.s32 0, %v10509
    %v10511 = vrot.slane %v10506, %v10510
    %v10513 = vpack.i.b16 %v10486, %v10486
    %v10515 = vlaneseq
    %v10516 = vshrl.u32 %v10515, 7
    %v10517 = vsub.s32 0, %v10516
    %v10518 = vrot.slane %v10513, %v10517
    %v10520 = vpack.i.b16 %v10487, %v10487
    %v10522 = vlaneseq
    %v10523 = vshrl.u32 %v10522, 7
    %v10524 = vsub.s32 0, %v10523
    %v10525 = vrot.slane %v10520, %v10524
    %v10527 = vpack.i.b16 %v10488, %v10488
    %v10529 = vlaneseq
    %v10530 = vshrl.u32 %v10529, 7
    %v10531 = vsub.s32 0, %v10530
    %v10532 = vrot.slane %v10527, %v10531
    %v10534 = vpack.i.b16 %v10489, %v10489
    %v10536 = vlaneseq
    %v10537 = vshrl.u32 %v10536, 7
    %v10538 = vsub.s32 0, %v10537
    %v10539 = vrot.slane %v10534, %v10538
    %v10541 = vpack.i.b16 %v10490, %v10490
    %v10543 = vlaneseq
    %v10544 = vshrl.u32 %v10543, 7
    %v10545 = vsub.s32 0, %v10544
    %v10546 = vrot.slane %v10541, %v10545
    %10555 = vrot.lane.b32.xlu0 %v10497, 71
    %v10556 = vpop.permute.xlu0 %10555
    %10557 = vrot.lane.b32.xlu0 %v10504, 71
    %v10558 = vpop.permute.xlu0 %10557
    %10559 = vrot.lane.b32.xlu0 %v10511, 71
    %v10560 = vpop.permute.xlu0 %10559
    %10561 = vrot.lane.b32.xlu0 %v10518, 71
    %v10562 = vpop.permute.xlu0 %10561
    %10563 = vrot.lane.b32.xlu0 %v10525, 71
    %v10564 = vpop.permute.xlu0 %10563
    %10565 = vrot.lane.b32.xlu0 %v10532, 71
    %v10566 = vpop.permute.xlu0 %10565
    %10567 = vrot.lane.b32.xlu0 %v10539, 71
    %v10568 = vpop.permute.xlu0 %10567
    %10569 = vrot.lane.b32.xlu0 %v10546, 71
    %v10570 = vpop.permute.xlu0 %10569
    %v10571 = vsel %vm697, %v10556, %v10558
    %v10572 = vsel %vm697, %v10558, %v10560
    %v10573 = vsel %vm697, %v10560, %v10562
    %v10574 = vsel %vm697, %v10562, %v10564
    %v10575 = vsel %vm697, %v10564, %v10566
    %v10576 = vsel %vm697, %v10566, %v10568
    %v10577 = vsel %vm697, %v10568, %v10570
    %v10587 = vmul.bf16 %v10458, %v10556
    %v10588 = vmul.bf16 %v10459, %v10571
    %v10589 = vmul.bf16 %v10460, %v10572
    %v10590 = vmul.bf16 %v10461, %v10573
    %v10591 = vmul.bf16 %v10462, %v10574
    %v10592 = vmul.bf16 %v10463, %v10575
    %v10593 = vmul.bf16 %v10464, %v10576
    %v10594 = vmul.bf16 %v10465, %v10577
    %v10595 = vmul.bf16 %v10466, %v10570
    %10605 = vrot.lane.b32.xlu0 %v10587, 57
    %v10606 = vpop.permute.xlu0 %10605
    %10607 = vrot.lane.b32.xlu0 %v10588, 57
    %v10608 = vpop.permute.xlu0 %10607
    %10609 = vrot.lane.b32.xlu0 %v10589, 57
    %v10610 = vpop.permute.xlu0 %10609
    %10611 = vrot.lane.b32.xlu0 %v10590, 57
    %v10612 = vpop.permute.xlu0 %10611
    %10613 = vrot.lane.b32.xlu0 %v10591, 57
    %v10614 = vpop.permute.xlu0 %10613
    %10615 = vrot.lane.b32.xlu0 %v10592, 57
    %v10616 = vpop.permute.xlu0 %10615
    %10617 = vrot.lane.b32.xlu0 %v10593, 57
    %v10618 = vpop.permute.xlu0 %10617
    %10619 = vrot.lane.b32.xlu0 %v10594, 57
    %v10620 = vpop.permute.xlu0 %10619
    %10621 = vrot.lane.b32.xlu0 %v10595, 57
    %v10622 = vpop.permute.xlu0 %10621
    %v10623 = vsel %vm644, %v10606, %v10608
    %v10624 = vsel %vm644, %v10608, %v10610
    %v10625 = vsel %vm644, %v10610, %v10612
    %v10626 = vsel %vm644, %v10612, %v10614
    %v10627 = vsel %vm644, %v10614, %v10616
    %v10628 = vsel %vm644, %v10616, %v10618
    %v10629 = vsel %vm644, %v10618, %v10620
    %v10630 = vsel %vm644, %v10620, %v10622
    %10639 = vst [vmem:[#allocation4 + $0x600] sm:$0xff] %v10623
    %10640 = vst [vmem:[#allocation4 + $0x608] sm:$0xff] %v10624
    %10641 = vst [vmem:[#allocation4 + $0x610] sm:$0xff] %v10625
    %10642 = vst [vmem:[#allocation4 + $0x618] sm:$0xff] %v10626
    %10643 = vst [vmem:[#allocation4 + $0x620] sm:$0xff] %v10627
    %10644 = vst [vmem:[#allocation4 + $0x628] sm:$0xff] %v10628
    %10645 = vst [vmem:[#allocation4 + $0x630] sm:$0xff] %v10629
    %10646 = vst [vmem:[#allocation4 + $0x638] sm:$0xff] %v10630
    %v10647 = vld [vmem:[#allocation3 + $0x8] sm:$0xff]
    %v10648 = vld [vmem:[#allocation3 + $0x10] sm:$0xff]
    %v10649 = vld [vmem:[#allocation3 + $0x18] sm:$0xff]
    %v10650 = vld [vmem:[#allocation3 + $0x20] sm:$0xff]
    %v10651 = vld [vmem:[#allocation3 + $0x28] sm:$0xff]
    %v10652 = vld [vmem:[#allocation3 + $0x30] sm:$0xff]
    %v10653 = vld [vmem:[#allocation3 + $0x38] sm:$0xff]
    %v10654 = vld [vmem:[#allocation3 + $0x40] sm:$0xff]
    %v10655 = vld [vmem:[#allocation3 + $0x48] sm:$0xff]
    %v10656 = vld [vmem:[#allocation8 + $0x60] sm:$0x11]
    %v10657 = vld [vmem:[#allocation8 + $0x68] sm:$0x11]
    %v10658 = vld [vmem:[#allocation8 + $0x70] sm:$0x11]
    %v10659 = vld [vmem:[#allocation8 + $0x78] sm:$0x11]
    %v10664 = vunpack.c.l.b16 %v10656
    %v10665 = vunpack.c.h.b16 %v10656
    %v10666 = vunpack.c.l.b16 %v10657
    %v10667 = vunpack.c.h.b16 %v10657
    %v10668 = vunpack.c.l.b16 %v10658
    %v10669 = vunpack.c.h.b16 %v10658
    %v10670 = vunpack.c.l.b16 %v10659
    %v10671 = vunpack.c.h.b16 %v10659
    %v10672 = vpack.c.b16 %v10664, %v10664
    %v10673 = vpack.c.b16 %v10665, %v10665
    %v10674 = vpack.c.b16 %v10666, %v10666
    %v10675 = vpack.c.b16 %v10667, %v10667
    %v10676 = vpack.c.b16 %v10668, %v10668
    %v10677 = vpack.c.b16 %v10669, %v10669
    %v10678 = vpack.c.b16 %v10670, %v10670
    %v10679 = vpack.c.b16 %v10671, %v10671
    %v10681 = vshrl.u32 %v10672, 16
    %v10682 = vpack.i.b16 %v10681, %v10681
    %v10684 = vlaneseq
    %v10685 = vshrl.u32 %v10684, 7
    %v10686 = vsub.s32 0, %v10685
    %v10687 = vrot.slane %v10682, %v10686
    %v10689 = vshrl.u32 %v10673, 16
    %v10690 = vpack.i.b16 %v10689, %v10689
    %v10692 = vlaneseq
    %v10693 = vshrl.u32 %v10692, 7
    %v10694 = vsub.s32 0, %v10693
    %v10695 = vrot.slane %v10690, %v10694
    %v10697 = vshrl.u32 %v10674, 16
    %v10698 = vpack.i.b16 %v10697, %v10697
    %v10700 = vlaneseq
    %v10701 = vshrl.u32 %v10700, 7
    %v10702 = vsub.s32 0, %v10701
    %v10703 = vrot.slane %v10698, %v10702
    %v10705 = vshrl.u32 %v10675, 16
    %v10706 = vpack.i.b16 %v10705, %v10705
    %v10708 = vlaneseq
    %v10709 = vshrl.u32 %v10708, 7
    %v10710 = vsub.s32 0, %v10709
    %v10711 = vrot.slane %v10706, %v10710
    %v10713 = vshrl.u32 %v10676, 16
    %v10714 = vpack.i.b16 %v10713, %v10713
    %v10716 = vlaneseq
    %v10717 = vshrl.u32 %v10716, 7
    %v10718 = vsub.s32 0, %v10717
    %v10719 = vrot.slane %v10714, %v10718
    %v10721 = vshrl.u32 %v10677, 16
    %v10722 = vpack.i.b16 %v10721, %v10721
    %v10724 = vlaneseq
    %v10725 = vshrl.u32 %v10724, 7
    %v10726 = vsub.s32 0, %v10725
    %v10727 = vrot.slane %v10722, %v10726
    %v10729 = vshrl.u32 %v10678, 16
    %v10730 = vpack.i.b16 %v10729, %v10729
    %v10732 = vlaneseq
    %v10733 = vshrl.u32 %v10732, 7
    %v10734 = vsub.s32 0, %v10733
    %v10735 = vrot.slane %v10730, %v10734
    %v10737 = vshrl.u32 %v10679, 16
    %v10738 = vpack.i.b16 %v10737, %v10737
    %v10740 = vlaneseq
    %v10741 = vshrl.u32 %v10740, 7
    %v10742 = vsub.s32 0, %v10741
    %v10743 = vrot.slane %v10738, %v10742
    %10752 = vrot.lane.b32.xlu0 %v10687, 72
    %v10753 = vpop.permute.xlu0 %10752
    %10754 = vrot.lane.b32.xlu0 %v10695, 72
    %v10755 = vpop.permute.xlu0 %10754
    %10756 = vrot.lane.b32.xlu0 %v10703, 72
    %v10757 = vpop.permute.xlu0 %10756
    %10758 = vrot.lane.b32.xlu0 %v10711, 72
    %v10759 = vpop.permute.xlu0 %10758
    %10760 = vrot.lane.b32.xlu0 %v10719, 72
    %v10761 = vpop.permute.xlu0 %10760
    %10762 = vrot.lane.b32.xlu0 %v10727, 72
    %v10763 = vpop.permute.xlu0 %10762
    %10764 = vrot.lane.b32.xlu0 %v10735, 72
    %v10765 = vpop.permute.xlu0 %10764
    %10766 = vrot.lane.b32.xlu0 %v10743, 72
    %v10767 = vpop.permute.xlu0 %10766
    %v10768 = vsel %vm506, %v10753, %v10755
    %v10769 = vsel %vm506, %v10755, %v10757
    %v10770 = vsel %vm506, %v10757, %v10759
    %v10771 = vsel %vm506, %v10759, %v10761
    %v10772 = vsel %vm506, %v10761, %v10763
    %v10773 = vsel %vm506, %v10763, %v10765
    %v10774 = vsel %vm506, %v10765, %v10767
    %v10784 = vmul.bf16 %v10647, %v10753
    %v10785 = vmul.bf16 %v10648, %v10768
    %v10786 = vmul.bf16 %v10649, %v10769
    %v10787 = vmul.bf16 %v10650, %v10770
    %v10788 = vmul.bf16 %v10651, %v10771
    %v10789 = vmul.bf16 %v10652, %v10772
    %v10790 = vmul.bf16 %v10653, %v10773
    %v10791 = vmul.bf16 %v10654, %v10774
    %v10792 = vmul.bf16 %v10655, %v10767
    %10802 = vrot.lane.b32.xlu0 %v10784, 56
    %v10803 = vpop.permute.xlu0 %10802
    %10804 = vrot.lane.b32.xlu0 %v10785, 56
    %v10805 = vpop.permute.xlu0 %10804
    %10806 = vrot.lane.b32.xlu0 %v10786, 56
    %v10807 = vpop.permute.xlu0 %10806
    %10808 = vrot.lane.b32.xlu0 %v10787, 56
    %v10809 = vpop.permute.xlu0 %10808
    %10810 = vrot.lane.b32.xlu0 %v10788, 56
    %v10811 = vpop.permute.xlu0 %10810
    %10812 = vrot.lane.b32.xlu0 %v10789, 56
    %v10813 = vpop.permute.xlu0 %10812
    %10814 = vrot.lane.b32.xlu0 %v10790, 56
    %v10815 = vpop.permute.xlu0 %10814
    %10816 = vrot.lane.b32.xlu0 %v10791, 56
    %v10817 = vpop.permute.xlu0 %10816
    %10818 = vrot.lane.b32.xlu0 %v10792, 56
    %v10819 = vpop.permute.xlu0 %10818
    %v10820 = vsel %vm453, %v10803, %v10805
    %v10821 = vsel %vm453, %v10805, %v10807
    %v10822 = vsel %vm453, %v10807, %v10809
    %v10823 = vsel %vm453, %v10809, %v10811
    %v10824 = vsel %vm453, %v10811, %v10813
    %v10825 = vsel %vm453, %v10813, %v10815
    %v10826 = vsel %vm453, %v10815, %v10817
    %v10827 = vsel %vm453, %v10817, %v10819
    %10836 = vst [vmem:[#allocation4 + $0x640] sm:$0xff] %v10820
    %10837 = vst [vmem:[#allocation4 + $0x648] sm:$0xff] %v10821
    %10838 = vst [vmem:[#allocation4 + $0x650] sm:$0xff] %v10822
    %10839 = vst [vmem:[#allocation4 + $0x658] sm:$0xff] %v10823
    %10840 = vst [vmem:[#allocation4 + $0x660] sm:$0xff] %v10824
    %10841 = vst [vmem:[#allocation4 + $0x668] sm:$0xff] %v10825
    %10842 = vst [vmem:[#allocation4 + $0x670] sm:$0xff] %v10826
    %10843 = vst [vmem:[#allocation4 + $0x678] sm:$0xff] %v10827
    %v10844 = vld [vmem:[#allocation3 + $0x8] sm:$0xff]
    %v10845 = vld [vmem:[#allocation3 + $0x10] sm:$0xff]
    %v10846 = vld [vmem:[#allocation3 + $0x18] sm:$0xff]
    %v10847 = vld [vmem:[#allocation3 + $0x20] sm:$0xff]
    %v10848 = vld [vmem:[#allocation3 + $0x28] sm:$0xff]
    %v10849 = vld [vmem:[#allocation3 + $0x30] sm:$0xff]
    %v10850 = vld [vmem:[#allocation3 + $0x38] sm:$0xff]
    %v10851 = vld [vmem:[#allocation3 + $0x40] sm:$0xff]
    %v10852 = vld [vmem:[#allocation3 + $0x48] sm:$0xff]
    %v10853 = vld [vmem:[#allocation8 + $0x60] sm:$0x22]
    %v10854 = vld [vmem:[#allocation8 + $0x68] sm:$0x22]
    %v10855 = vld [vmem:[#allocation8 + $0x70] sm:$0x22]
    %v10856 = vld [vmem:[#allocation8 + $0x78] sm:$0x22]
    %v10861 = vunpack.c.l.b16 %v10853
    %v10862 = vunpack.c.h.b16 %v10853
    %v10863 = vunpack.c.l.b16 %v10854
    %v10864 = vunpack.c.h.b16 %v10854
    %v10865 = vunpack.c.l.b16 %v10855
    %v10866 = vunpack.c.h.b16 %v10855
    %v10867 = vunpack.c.l.b16 %v10856
    %v10868 = vunpack.c.h.b16 %v10856
    %v10869 = vpack.c.b16 %v10861, %v10861
    %v10870 = vpack.c.b16 %v10862, %v10862
    %v10871 = vpack.c.b16 %v10863, %v10863
    %v10872 = vpack.c.b16 %v10864, %v10864
    %v10873 = vpack.c.b16 %v10865, %v10865
    %v10874 = vpack.c.b16 %v10866, %v10866
    %v10875 = vpack.c.b16 %v10867, %v10867
    %v10876 = vpack.c.b16 %v10868, %v10868
    %v10878 = vpack.i.b16 %v10869, %v10869
    %v10880 = vlaneseq
    %v10881 = vshrl.u32 %v10880, 7
    %v10882 = vsub.s32 1, %v10881
    %v10883 = vrot.slane %v10878, %v10882
    %v10885 = vpack.i.b16 %v10870, %v10870
    %v10887 = vlaneseq
    %v10888 = vshrl.u32 %v10887, 7
    %v10889 = vsub.s32 1, %v10888
    %v10890 = vrot.slane %v10885, %v10889
    %v10892 = vpack.i.b16 %v10871, %v10871
    %v10894 = vlaneseq
    %v10895 = vshrl.u32 %v10894, 7
    %v10896 = vsub.s32 1, %v10895
    %v10897 = vrot.slane %v10892, %v10896
    %v10899 = vpack.i.b16 %v10872, %v10872
    %v10901 = vlaneseq
    %v10902 = vshrl.u32 %v10901, 7
    %v10903 = vsub.s32 1, %v10902
    %v10904 = vrot.slane %v10899, %v10903
    %v10906 = vpack.i.b16 %v10873, %v10873
    %v10908 = vlaneseq
    %v10909 = vshrl.u32 %v10908, 7
    %v10910 = vsub.s32 1, %v10909
    %v10911 = vrot.slane %v10906, %v10910
    %v10913 = vpack.i.b16 %v10874, %v10874
    %v10915 = vlaneseq
    %v10916 = vshrl.u32 %v10915, 7
    %v10917 = vsub.s32 1, %v10916
    %v10918 = vrot.slane %v10913, %v10917
    %v10920 = vpack.i.b16 %v10875, %v10875
    %v10922 = vlaneseq
    %v10923 = vshrl.u32 %v10922, 7
    %v10924 = vsub.s32 1, %v10923
    %v10925 = vrot.slane %v10920, %v10924
    %v10927 = vpack.i.b16 %v10876, %v10876
    %v10929 = vlaneseq
    %v10930 = vshrl.u32 %v10929, 7
    %v10931 = vsub.s32 1, %v10930
    %v10932 = vrot.slane %v10927, %v10931
    %10941 = vrot.lane.b32.xlu0 %v10883, 73
    %v10942 = vpop.permute.xlu0 %10941
    %10943 = vrot.lane.b32.xlu0 %v10890, 73
    %v10944 = vpop.permute.xlu0 %10943
    %10945 = vrot.lane.b32.xlu0 %v10897, 73
    %v10946 = vpop.permute.xlu0 %10945
    %10947 = vrot.lane.b32.xlu0 %v10904, 73
    %v10948 = vpop.permute.xlu0 %10947
    %10949 = vrot.lane.b32.xlu0 %v10911, 73
    %v10950 = vpop.permute.xlu0 %10949
    %10951 = vrot.lane.b32.xlu0 %v10918, 73
    %v10952 = vpop.permute.xlu0 %10951
    %10953 = vrot.lane.b32.xlu0 %v10925, 73
    %v10954 = vpop.permute.xlu0 %10953
    %10955 = vrot.lane.b32.xlu0 %v10932, 73
    %v10956 = vpop.permute.xlu0 %10955
    %v10957 = vsel %vm307, %v10942, %v10944
    %v10958 = vsel %vm307, %v10944, %v10946
    %v10959 = vsel %vm307, %v10946, %v10948
    %v10960 = vsel %vm307, %v10948, %v10950
    %v10961 = vsel %vm307, %v10950, %v10952
    %v10962 = vsel %vm307, %v10952, %v10954
    %v10963 = vsel %vm307, %v10954, %v10956
    %v10973 = vmul.bf16 %v10844, %v10942
    %v10974 = vmul.bf16 %v10845, %v10957
    %v10975 = vmul.bf16 %v10846, %v10958
    %v10976 = vmul.bf16 %v10847, %v10959
    %v10977 = vmul.bf16 %v10848, %v10960
    %v10978 = vmul.bf16 %v10849, %v10961
    %v10979 = vmul.bf16 %v10850, %v10962
    %v10980 = vmul.bf16 %v10851, %v10963
    %v10981 = vmul.bf16 %v10852, %v10956
    %10991 = vrot.lane.b32.xlu0 %v10973, 55
    %v10992 = vpop.permute.xlu0 %10991
    %10993 = vrot.lane.b32.xlu0 %v10974, 55
    %v10994 = vpop.permute.xlu0 %10993
    %10995 = vrot.lane.b32.xlu0 %v10975, 55
    %v10996 = vpop.permute.xlu0 %10995
    %10997 = vrot.lane.b32.xlu0 %v10976, 55
    %v10998 = vpop.permute.xlu0 %10997
    %10999 = vrot.lane.b32.xlu0 %v10977, 55
    %v11000 = vpop.permute.xlu0 %10999
    %11001 = vrot.lane.b32.xlu0 %v10978, 55
    %v11002 = vpop.permute.xlu0 %11001
    %11003 = vrot.lane.b32.xlu0 %v10979, 55
    %v11004 = vpop.permute.xlu0 %11003
    %11005 = vrot.lane.b32.xlu0 %v10980, 55
    %v11006 = vpop.permute.xlu0 %11005
    %11007 = vrot.lane.b32.xlu0 %v10981, 55
    %v11008 = vpop.permute.xlu0 %11007
    %v11009 = vsel %vm254, %v10992, %v10994
    %v11010 = vsel %vm254, %v10994, %v10996
    %v11011 = vsel %vm254, %v10996, %v10998
    %v11012 = vsel %vm254, %v10998, %v11000
    %v11013 = vsel %vm254, %v11000, %v11002
    %v11014 = vsel %vm254, %v11002, %v11004
    %v11015 = vsel %vm254, %v11004, %v11006
    %v11016 = vsel %vm254, %v11006, %v11008
    %11025 = vst [vmem:[#allocation4 + $0x680] sm:$0xff] %v11009
    %11026 = vst [vmem:[#allocation4 + $0x688] sm:$0xff] %v11010
    %11027 = vst [vmem:[#allocation4 + $0x690] sm:$0xff] %v11011
    %11028 = vst [vmem:[#allocation4 + $0x698] sm:$0xff] %v11012
    %11029 = vst [vmem:[#allocation4 + $0x6a0] sm:$0xff] %v11013
    %11030 = vst [vmem:[#allocation4 + $0x6a8] sm:$0xff] %v11014
    %11031 = vst [vmem:[#allocation4 + $0x6b0] sm:$0xff] %v11015
    %11032 = vst [vmem:[#allocation4 + $0x6b8] sm:$0xff] %v11016
    %v11033 = vld [vmem:[#allocation11] sm:$0xff]
    %v11034 = vld [vmem:[#allocation11 + $0x8] sm:$0xff]
    %v11035 = vld [vmem:[#allocation4] sm:$0xff]
    %v11036 = vld [vmem:[#allocation4 + $0x8] sm:$0xff]
    %v11037 = vld [vmem:[#allocation4 + $0x10] sm:$0xff]
    %v11038 = vld [vmem:[#allocation4 + $0x18] sm:$0xff]
    %v11039 = vld [vmem:[#allocation4 + $0x20] sm:$0xff]
    %v11040 = vld [vmem:[#allocation4 + $0x28] sm:$0xff]
    %v11041 = vld [vmem:[#allocation4 + $0x30] sm:$0xff]
    %v11042 = vld [vmem:[#allocation4 + $0x38] sm:$0xff]
    %v11043 = vld [vmem:[#allocation4 + $0x40] sm:$0xff]
    %v11044 = vld [vmem:[#allocation4 + $0x48] sm:$0xff]
    %v11045 = vld [vmem:[#allocation4 + $0x50] sm:$0xff]
    %v11046 = vld [vmem:[#allocation4 + $0x58] sm:$0xff]
    %v11047 = vld [vmem:[#allocation4 + $0x60] sm:$0xff]
    %v11048 = vld [vmem:[#allocation4 + $0x68] sm:$0xff]
    %v11049 = vld [vmem:[#allocation4 + $0x70] sm:$0xff]
    %v11050 = vld [vmem:[#allocation4 + $0x78] sm:$0xff]
    %v11051 = vld [vmem:[#allocation4 + $0x80] sm:$0xff]
    %v11052 = vld [vmem:[#allocation4 + $0x88] sm:$0xff]
    %v11053 = vld [vmem:[#allocation4 + $0x90] sm:$0xff]
    %v11054 = vld [vmem:[#allocation4 + $0x98] sm:$0xff]
    %v11055 = vld [vmem:[#allocation4 + $0xa0] sm:$0xff]
    %v11056 = vld [vmem:[#allocation4 + $0xa8] sm:$0xff]
    %v11057 = vld [vmem:[#allocation4 + $0xb0] sm:$0xff]
    %v11058 = vld [vmem:[#allocation4 + $0xb8] sm:$0xff]
    %v11059 = vld [vmem:[#allocation4 + $0xc0] sm:$0xff]
    %v11060 = vld [vmem:[#allocation4 + $0xc8] sm:$0xff]
    %v11061 = vld [vmem:[#allocation4 + $0xd0] sm:$0xff]
    %v11062 = vld [vmem:[#allocation4 + $0xd8] sm:$0xff]
    %v11063 = vld [vmem:[#allocation4 + $0xe0] sm:$0xff]
    %v11064 = vld [vmem:[#allocation4 + $0xe8] sm:$0xff]
    %v11065 = vld [vmem:[#allocation4 + $0xf0] sm:$0xff]
    %v11066 = vld [vmem:[#allocation4 + $0xf8] sm:$0xff]
    %v11067 = vld [vmem:[#allocation4 + $0x100] sm:$0xff]
    %v11068 = vld [vmem:[#allocation4 + $0x108] sm:$0xff]
    %v11069 = vld [vmem:[#allocation4 + $0x110] sm:$0xff]
    %v11070 = vld [vmem:[#allocation4 + $0x118] sm:$0xff]
    %v11071 = vld [vmem:[#allocation4 + $0x120] sm:$0xff]
    %v11072 = vld [vmem:[#allocation4 + $0x128] sm:$0xff]
    %v11073 = vld [vmem:[#allocation4 + $0x130] sm:$0xff]
    %v11074 = vld [vmem:[#allocation4 + $0x138] sm:$0xff]
    %v11075 = vld [vmem:[#allocation4 + $0x140] sm:$0xff]
    %v11076 = vld [vmem:[#allocation4 + $0x148] sm:$0xff]
    %v11077 = vld [vmem:[#allocation4 + $0x150] sm:$0xff]
    %v11078 = vld [vmem:[#allocation4 + $0x158] sm:$0xff]
    %v11079 = vld [vmem:[#allocation4 + $0x160] sm:$0xff]
    %v11080 = vld [vmem:[#allocation4 + $0x168] sm:$0xff]
    %v11081 = vld [vmem:[#allocation4 + $0x170] sm:$0xff]
    %v11082 = vld [vmem:[#allocation4 + $0x178] sm:$0xff]
    %v11083 = vld [vmem:[#allocation4 + $0x180] sm:$0xff]
    %v11084 = vld [vmem:[#allocation4 + $0x188] sm:$0xff]
    %v11085 = vld [vmem:[#allocation4 + $0x190] sm:$0xff]
    %v11086 = vld [vmem:[#allocation4 + $0x198] sm:$0xff]
    %v11087 = vld [vmem:[#allocation4 + $0x1a0] sm:$0xff]
    %v11088 = vld [vmem:[#allocation4 + $0x1a8] sm:$0xff]
    %v11089 = vld [vmem:[#allocation4 + $0x1b0] sm:$0xff]
    %v11090 = vld [vmem:[#allocation4 + $0x1b8] sm:$0xff]
    %v11091 = vld [vmem:[#allocation4 + $0x1c0] sm:$0xff]
    %v11092 = vld [vmem:[#allocation4 + $0x1c8] sm:$0xff]
    %v11093 = vld [vmem:[#allocation4 + $0x1d0] sm:$0xff]
    %v11094 = vld [vmem:[#allocation4 + $0x1d8] sm:$0xff]
    %v11095 = vld [vmem:[#allocation4 + $0x1e0] sm:$0xff]
    %v11096 = vld [vmem:[#allocation4 + $0x1e8] sm:$0xff]
    %v11097 = vld [vmem:[#allocation4 + $0x1f0] sm:$0xff]
    %v11098 = vld [vmem:[#allocation4 + $0x1f8] sm:$0xff]
    %v11099 = vld [vmem:[#allocation4 + $0x200] sm:$0xff]
    %v11100 = vld [vmem:[#allocation4 + $0x208] sm:$0xff]
    %v11101 = vld [vmem:[#allocation4 + $0x210] sm:$0xff]
    %v11102 = vld [vmem:[#allocation4 + $0x218] sm:$0xff]
    %v11103 = vld [vmem:[#allocation4 + $0x220] sm:$0xff]
    %v11104 = vld [vmem:[#allocation4 + $0x228] sm:$0xff]
    %v11105 = vld [vmem:[#allocation4 + $0x230] sm:$0xff]
    %v11106 = vld [vmem:[#allocation4 + $0x238] sm:$0xff]
    %v11107 = vld [vmem:[#allocation4 + $0x240] sm:$0xff]
    %v11108 = vld [vmem:[#allocation4 + $0x248] sm:$0xff]
    %v11109 = vld [vmem:[#allocation4 + $0x250] sm:$0xff]
    %v11110 = vld [vmem:[#allocation4 + $0x258] sm:$0xff]
    %v11111 = vld [vmem:[#allocation4 + $0x260] sm:$0xff]
    %v11112 = vld [vmem:[#allocation4 + $0x268] sm:$0xff]
    %v11113 = vld [vmem:[#allocation4 + $0x270] sm:$0xff]
    %v11114 = vld [vmem:[#allocation4 + $0x278] sm:$0xff]
    %v11115 = vld [vmem:[#allocation4 + $0x280] sm:$0xff]
    %v11116 = vld [vmem:[#allocation4 + $0x288] sm:$0xff]
    %v11117 = vld [vmem:[#allocation4 + $0x290] sm:$0xff]
    %v11118 = vld [vmem:[#allocation4 + $0x298] sm:$0xff]
    %v11119 = vld [vmem:[#allocation4 + $0x2a0] sm:$0xff]
    %v11120 = vld [vmem:[#allocation4 + $0x2a8] sm:$0xff]
    %v11121 = vld [vmem:[#allocation4 + $0x2b0] sm:$0xff]
    %v11122 = vld [vmem:[#allocation4 + $0x2b8] sm:$0xff]
    %v11123 = vld [vmem:[#allocation4 + $0x2c0] sm:$0xff]
    %v11124 = vld [vmem:[#allocation4 + $0x2c8] sm:$0xff]
    %v11125 = vld [vmem:[#allocation4 + $0x2d0] sm:$0xff]
    %v11126 = vld [vmem:[#allocation4 + $0x2d8] sm:$0xff]
    %v11127 = vld [vmem:[#allocation4 + $0x2e0] sm:$0xff]
    %v11128 = vld [vmem:[#allocation4 + $0x2e8] sm:$0xff]
    %v11129 = vld [vmem:[#allocation4 + $0x2f0] sm:$0xff]
    %v11130 = vld [vmem:[#allocation4 + $0x2f8] sm:$0xff]
    %v11131 = vld [vmem:[#allocation4 + $0x300] sm:$0xff]
    %v11132 = vld [vmem:[#allocation4 + $0x308] sm:$0xff]
    %v11133 = vld [vmem:[#allocation4 + $0x310] sm:$0xff]
    %v11134 = vld [vmem:[#allocation4 + $0x318] sm:$0xff]
    %v11135 = vld [vmem:[#allocation4 + $0x320] sm:$0xff]
    %v11136 = vld [vmem:[#allocation4 + $0x328] sm:$0xff]
    %v11137 = vld [vmem:[#allocation4 + $0x330] sm:$0xff]
    %v11138 = vld [vmem:[#allocation4 + $0x338] sm:$0xff]
    %v11139 = vld [vmem:[#allocation4 + $0x340] sm:$0xff]
    %v11140 = vld [vmem:[#allocation4 + $0x348] sm:$0xff]
    %v11141 = vld [vmem:[#allocation4 + $0x350] sm:$0xff]
    %v11142 = vld [vmem:[#allocation4 + $0x358] sm:$0xff]
    %v11143 = vld [vmem:[#allocation4 + $0x360] sm:$0xff]
    %v11144 = vld [vmem:[#allocation4 + $0x368] sm:$0xff]
    %v11145 = vld [vmem:[#allocation4 + $0x370] sm:$0xff]
    %v11146 = vld [vmem:[#allocation4 + $0x378] sm:$0xff]
    %v11147 = vld [vmem:[#allocation4 + $0x380] sm:$0xff]
    %v11148 = vld [vmem:[#allocation4 + $0x388] sm:$0xff]
    %v11149 = vld [vmem:[#allocation4 + $0x390] sm:$0xff]
    %v11150 = vld [vmem:[#allocation4 + $0x398] sm:$0xff]
    %v11151 = vld [vmem:[#allocation4 + $0x3a0] sm:$0xff]
    %v11152 = vld [vmem:[#allocation4 + $0x3a8] sm:$0xff]
    %v11153 = vld [vmem:[#allocation4 + $0x3b0] sm:$0xff]
    %v11154 = vld [vmem:[#allocation4 + $0x3b8] sm:$0xff]
    %v11155 = vld [vmem:[#allocation4 + $0x3c0] sm:$0xff]
    %v11156 = vld [vmem:[#allocation4 + $0x3c8] sm:$0xff]
    %v11157 = vld [vmem:[#allocation4 + $0x3d0] sm:$0xff]
    %v11158 = vld [vmem:[#allocation4 + $0x3d8] sm:$0xff]
    %v11159 = vld [vmem:[#allocation4 + $0x3e0] sm:$0xff]
    %v11160 = vld [vmem:[#allocation4 + $0x3e8] sm:$0xff]
    %v11161 = vld [vmem:[#allocation4 + $0x3f0] sm:$0xff]
    %v11162 = vld [vmem:[#allocation4 + $0x3f8] sm:$0xff]
    %v11163 = vld [vmem:[#allocation4 + $0x400] sm:$0xff]
    %v11164 = vld [vmem:[#allocation4 + $0x408] sm:$0xff]
    %v11165 = vld [vmem:[#allocation4 + $0x410] sm:$0xff]
    %v11166 = vld [vmem:[#allocation4 + $0x418] sm:$0xff]
    %v11167 = vld [vmem:[#allocation4 + $0x420] sm:$0xff]
    %v11168 = vld [vmem:[#allocation4 + $0x428] sm:$0xff]
    %v11169 = vld [vmem:[#allocation4 + $0x430] sm:$0xff]
    %v11170 = vld [vmem:[#allocation4 + $0x438] sm:$0xff]
    %v11171 = vld [vmem:[#allocation4 + $0x440] sm:$0xff]
    %v11172 = vld [vmem:[#allocation4 + $0x448] sm:$0xff]
    %v11173 = vld [vmem:[#allocation4 + $0x450] sm:$0xff]
    %v11174 = vld [vmem:[#allocation4 + $0x458] sm:$0xff]
    %v11175 = vld [vmem:[#allocation4 + $0x460] sm:$0xff]
    %v11176 = vld [vmem:[#allocation4 + $0x468] sm:$0xff]
    %v11177 = vld [vmem:[#allocation4 + $0x470] sm:$0xff]
    %v11178 = vld [vmem:[#allocation4 + $0x478] sm:$0xff]
    %v11179 = vld [vmem:[#allocation4 + $0x480] sm:$0xff]
    %v11180 = vld [vmem:[#allocation4 + $0x488] sm:$0xff]
    %v11181 = vld [vmem:[#allocation4 + $0x490] sm:$0xff]
    %v11182 = vld [vmem:[#allocation4 + $0x498] sm:$0xff]
    %v11183 = vld [vmem:[#allocation4 + $0x4a0] sm:$0xff]
    %v11184 = vld [vmem:[#allocation4 + $0x4a8] sm:$0xff]
    %v11185 = vld [vmem:[#allocation4 + $0x4b0] sm:$0xff]
    %v11186 = vld [vmem:[#allocation4 + $0x4b8] sm:$0xff]
    %v11187 = vld [vmem:[#allocation4 + $0x4c0] sm:$0xff]
    %v11188 = vld [vmem:[#allocation4 + $0x4c8] sm:$0xff]
    %v11189 = vld [vmem:[#allocation4 + $0x4d0] sm:$0xff]
    %v11190 = vld [vmem:[#allocation4 + $0x4d8] sm:$0xff]
    %v11191 = vld [vmem:[#allocation4 + $0x4e0] sm:$0xff]
    %v11192 = vld [vmem:[#allocation4 + $0x4e8] sm:$0xff]
    %v11193 = vld [vmem:[#allocation4 + $0x4f0] sm:$0xff]
    %v11194 = vld [vmem:[#allocation4 + $0x4f8] sm:$0xff]
    %v11195 = vld [vmem:[#allocation4 + $0x500] sm:$0xff]
    %v11196 = vld [vmem:[#allocation4 + $0x508] sm:$0xff]
    %v11197 = vld [vmem:[#allocation4 + $0x510] sm:$0xff]
    %v11198 = vld [vmem:[#allocation4 + $0x518] sm:$0xff]
    %v11199 = vld [vmem:[#allocation4 + $0x520] sm:$0xff]
    %v11200 = vld [vmem:[#allocation4 + $0x528] sm:$0xff]
    %v11201 = vld [vmem:[#allocation4 + $0x530] sm:$0xff]
    %v11202 = vld [vmem:[#allocation4 + $0x538] sm:$0xff]
    %v11203 = vld [vmem:[#allocation4 + $0x540] sm:$0xff]
    %v11204 = vld [vmem:[#allocation4 + $0x548] sm:$0xff]
    %v11205 = vld [vmem:[#allocation4 + $0x550] sm:$0xff]
    %v11206 = vld [vmem:[#allocation4 + $0x558] sm:$0xff]
    %v11207 = vld [vmem:[#allocation4 + $0x560] sm:$0xff]
    %v11208 = vld [vmem:[#allocation4 + $0x568] sm:$0xff]
    %v11209 = vld [vmem:[#allocation4 + $0x570] sm:$0xff]
    %v11210 = vld [vmem:[#allocation4 + $0x578] sm:$0xff]
    %v11211 = vld [vmem:[#allocation4 + $0x580] sm:$0xff]
    %v11212 = vld [vmem:[#allocation4 + $0x588] sm:$0xff]
    %v11213 = vld [vmem:[#allocation4 + $0x590] sm:$0xff]
    %v11214 = vld [vmem:[#allocation4 + $0x598] sm:$0xff]
    %v11215 = vld [vmem:[#allocation4 + $0x5a0] sm:$0xff]
    %v11216 = vld [vmem:[#allocation4 + $0x5a8] sm:$0xff]
    %v11217 = vld [vmem:[#allocation4 + $0x5b0] sm:$0xff]
    %v11218 = vld [vmem:[#allocation4 + $0x5b8] sm:$0xff]
    %v11219 = vld [vmem:[#allocation4 + $0x5c0] sm:$0xff]
    %v11220 = vld [vmem:[#allocation4 + $0x5c8] sm:$0xff]
    %v11221 = vld [vmem:[#allocation4 + $0x5d0] sm:$0xff]
    %v11222 = vld [vmem:[#allocation4 + $0x5d8] sm:$0xff]
    %v11223 = vld [vmem:[#allocation4 + $0x5e0] sm:$0xff]
    %v11224 = vld [vmem:[#allocation4 + $0x5e8] sm:$0xff]
    %v11225 = vld [vmem:[#allocation4 + $0x5f0] sm:$0xff]
    %v11226 = vld [vmem:[#allocation4 + $0x5f8] sm:$0xff]
    %v11227 = vld [vmem:[#allocation4 + $0x600] sm:$0xff]
    %v11228 = vld [vmem:[#allocation4 + $0x608] sm:$0xff]
    %v11229 = vld [vmem:[#allocation4 + $0x610] sm:$0xff]
    %v11230 = vld [vmem:[#allocation4 + $0x618] sm:$0xff]
    %v11231 = vld [vmem:[#allocation4 + $0x620] sm:$0xff]
    %v11232 = vld [vmem:[#allocation4 + $0x628] sm:$0xff]
    %v11233 = vld [vmem:[#allocation4 + $0x630] sm:$0xff]
    %v11234 = vld [vmem:[#allocation4 + $0x638] sm:$0xff]
    %v11235 = vld [vmem:[#allocation4 + $0x640] sm:$0xff]
    %v11236 = vld [vmem:[#allocation4 + $0x648] sm:$0xff]
    %v11237 = vld [vmem:[#allocation4 + $0x650] sm:$0xff]
    %v11238 = vld [vmem:[#allocation4 + $0x658] sm:$0xff]
    %v11239 = vld [vmem:[#allocation4 + $0x660] sm:$0xff]
    %v11240 = vld [vmem:[#allocation4 + $0x668] sm:$0xff]
    %v11241 = vld [vmem:[#allocation4 + $0x670] sm:$0xff]
    %v11242 = vld [vmem:[#allocation4 + $0x678] sm:$0xff]
    %v11243 = vld [vmem:[#allocation4 + $0x680] sm:$0xff]
    %v11244 = vld [vmem:[#allocation4 + $0x688] sm:$0xff]
    %v11245 = vld [vmem:[#allocation4 + $0x690] sm:$0xff]
    %v11246 = vld [vmem:[#allocation4 + $0x698] sm:$0xff]
    %v11247 = vld [vmem:[#allocation4 + $0x6a0] sm:$0xff]
    %v11248 = vld [vmem:[#allocation4 + $0x6a8] sm:$0xff]
    %v11249 = vld [vmem:[#allocation4 + $0x6b0] sm:$0xff]
    %v11250 = vld [vmem:[#allocation4 + $0x6b8] sm:$0xff]
    %v11251 = vld [vmem:[%s6] sm:$0xff]
    %11253 = vset.pattern.permute.xlu0 0
    %11254 = vperm.xlu0 %11253, %v11251
    %v11255 = vpop.permute.xlu0 %11254
    %v11259 = vunpack.c.l.b16 %v11033
    %v11260 = vunpack.c.h.b16 %v11033
    %v11261 = vunpack.c.l.b16 %v11034
    %v11262 = vunpack.c.h.b16 %v11034
    %v11263 = vpack.c.b16 %v11259, %v11259
    %v11264 = vpack.c.b16 %v11260, %v11260
    %v11265 = vpack.c.b16 %v11261, %v11261
    %v11266 = vpack.c.b16 %v11262, %v11262
    %v11271 = vsel %vm5531, %v11266, 0
    %11273 = vmatprep.subr.bf16.mxu0 %v11036
    %11274 = vmatpush1.bf16.msra.mxu0 %v11035
    %11275 = vmatprep.subr.bf16.mxu0 %v11044
    %11276 = vmatpush1.bf16.msra.mxu0 %v11043
    %11277 = vmatprep.subr.bf16.mxu0 %v11052
    %11278 = vmatpush1.bf16.msra.mxu0 %v11051
    %11279 = vmatprep.subr.bf16.mxu0 %v11060
    %11280 = vmatpush1.bf16.msra.mxu0 %v11059
    %11281 = vmatprep.subr.bf16.mxu0 %v11068
    %11282 = vmatpush1.bf16.msra.mxu0 %v11067
    %11283 = vmatprep.subr.bf16.mxu0 %v11076
    %11284 = vmatpush1.bf16.msra.mxu0 %v11075
    %11285 = vmatprep.subr.bf16.mxu0 %v11084
    %11286 = vmatpush1.bf16.msra.mxu0 %v11083
    %11287 = vmatprep.subr.bf16.mxu0 %v11092
    %11288 = vmatpush1.bf16.msra.mxu0 %v11091
    %11289 = vmatprep.subr.bf16.mxu0 %v11100
    %11290 = vmatpush1.bf16.msra.mxu0 %v11099
    %11291 = vmatprep.subr.bf16.mxu0 %v11108
    %11292 = vmatpush1.bf16.msra.mxu0 %v11107
    %11293 = vmatprep.subr.bf16.mxu0 %v11116
    %11294 = vmatpush1.bf16.msra.mxu0 %v11115
    %11295 = vmatprep.subr.bf16.mxu0 %v11124
    %11296 = vmatpush1.bf16.msra.mxu0 %v11123
    %11297 = vmatprep.subr.bf16.mxu0 %v11132
    %11298 = vmatpush1.bf16.msra.mxu0 %v11131
    %11299 = vmatprep.subr.bf16.mxu0 %v11140
    %11300 = vmatpush1.bf16.msra.mxu0 %v11139
    %11301 = vmatprep.subr.bf16.mxu0 %v11148
    %11302 = vmatpush1.bf16.msra.mxu0 %v11147
    %11303 = vmatprep.subr.bf16.mxu0 %v11156
    %11304 = vmatpush1.bf16.msra.mxu0 %v11155
    %11305 = vmatprep.mubr.bf16.mxu0 %v11264
    %11306 = vmatmul.mubr.bf16.gmra.mrb[0].mxu0 %v11263
    %v11307 = vpop.f32.mrb[0].mxu0
    %v11308 = vadd.f32 %v11255, %v11307
    %v11309 = vpop.f32.mrb[0].mxu0
    %v11310 = vadd.f32 %v11255, %v11309
    %v11311 = vpop.f32.mrb[0].mxu0
    %v11312 = vpop.f32.mrb[0].mxu0
    %11313 = vdwg.mxu0
    %11314 = vmatprep.subr.bf16.mxu0 %v11164
    %11315 = vmatpush1.bf16.msra.mxu0 %v11163
    %11316 = vmatprep.subr.bf16.mxu0 %v11172
    %11317 = vmatpush1.bf16.msra.mxu0 %v11171
    %11318 = vmatprep.subr.bf16.mxu0 %v11180
    %11319 = vmatpush1.bf16.msra.mxu0 %v11179
    %11320 = vmatprep.subr.bf16.mxu0 %v11188
    %11321 = vmatpush1.bf16.msra.mxu0 %v11187
    %11322 = vmatprep.subr.bf16.mxu0 %v11196
    %11323 = vmatpush1.bf16.msra.mxu0 %v11195
    %11324 = vmatprep.subr.bf16.mxu0 %v11204
    %11325 = vmatpush1.bf16.msra.mxu0 %v11203
    %11326 = vmatprep.subr.bf16.mxu0 %v11212
    %11327 = vmatpush1.bf16.msra.mxu0 %v11211
    %11328 = vmatprep.subr.bf16.mxu0 %v11220
    %11329 = vmatpush1.bf16.msra.mxu0 %v11219
    %11330 = vmatprep.subr.bf16.mxu0 %v11228
    %11331 = vmatpush1.bf16.msra.mxu0 %v11227
    %11332 = vmatprep.subr.bf16.mxu0 %v11236
    %11333 = vmatpush1.bf16.msra.mxu0 %v11235
    %11334 = vmatprep.subr.bf16.mxu0 %v11244
    %11335 = vmatpush1.bf16.msra.mxu0 %v11243
    %11336 = vmatprep.subr.bf16.mxu0 0
    %11337 = vmatpush1.bf16.msra.mxu0 0
    %11338 = vmatprep.subr.bf16.mxu0 0
    %11339 = vmatpush1.bf16.msra.mxu0 0
    %11340 = vmatprep.subr.bf16.mxu0 0
    %11341 = vmatpush1.bf16.msra.mxu0 0
    %11342 = vmatprep.subr.bf16.mxu0 0
    %11343 = vmatpush1.bf16.msra.mxu0 0
    %11344 = vmatprep.subr.bf16.mxu0 0
    %11345 = vmatpush1.bf16.msra.mxu0 0
    %11346 = vmatprep.mubr.bf16.mxu0 %v11271
    %11347 = vmatmul.mubr.bf16.gmra.mrb[0].mxu0 %v11265
    %v11348 = vpop.f32.mrb[0].mxu0
    %v11349 = vadd.f32 %v11308, %v11348
    %v11350 = vpop.f32.mrb[0].mxu0
    %v11351 = vadd.f32 %v11310, %v11350
    %v11352 = vpop.f32.mrb[0].mxu0
    %v11353 = vpop.f32.mrb[0].mxu0
    %11354 = vdwg.mxu0
    %11355 = vmatprep.subr.bf16.mxu0 %v11038
    %11356 = vmatpush1.bf16.msra.mxu0 %v11037
    %11357 = vmatprep.subr.bf16.mxu0 %v11046
    %11358 = vmatpush1.bf16.msra.mxu0 %v11045
    %11359 = vmatprep.subr.bf16.mxu0 %v11054
    %11360 = vmatpush1.bf16.msra.mxu0 %v11053
    %11361 = vmatprep.subr.bf16.mxu0 %v11062
    %11362 = vmatpush1.bf16.msra.mxu0 %v11061
    %11363 = vmatprep.subr.bf16.mxu0 %v11070
    %11364 = vmatpush1.bf16.msra.mxu0 %v11069
    %11365 = vmatprep.subr.bf16.mxu0 %v11078
    %11366 = vmatpush1.bf16.msra.mxu0 %v11077
    %11367 = vmatprep.subr.bf16.mxu0 %v11086
    %11368 = vmatpush1.bf16.msra.mxu0 %v11085
    %11369 = vmatprep.subr.bf16.mxu0 %v11094
    %11370 = vmatpush1.bf16.msra.mxu0 %v11093
    %11371 = vmatprep.subr.bf16.mxu0 %v11102
    %11372 = vmatpush1.bf16.msra.mxu0 %v11101
    %11373 = vmatprep.subr.bf16.mxu0 %v11110
    %11374 = vmatpush1.bf16.msra.mxu0 %v11109
    %11375 = vmatprep.subr.bf16.mxu0 %v11118
    %11376 = vmatpush1.bf16.msra.mxu0 %v11117
    %11377 = vmatprep.subr.bf16.mxu0 %v11126
    %11378 = vmatpush1.bf16.msra.mxu0 %v11125
    %11379 = vmatprep.subr.bf16.mxu0 %v11134
    %11380 = vmatpush1.bf16.msra.mxu0 %v11133
    %11381 = vmatprep.subr.bf16.mxu0 %v11142
    %11382 = vmatpush1.bf16.msra.mxu0 %v11141
    %11383 = vmatprep.subr.bf16.mxu0 %v11150
    %11384 = vmatpush1.bf16.msra.mxu0 %v11149
    %11385 = vmatprep.subr.bf16.mxu0 %v11158
    %11386 = vmatpush1.bf16.msra.mxu0 %v11157
    %11387 = vmatprep.mubr.bf16.mxu0 %v11264
    %11388 = vmatmul.mubr.bf16.gmra.mrb[0].mxu0 %v11263
    %v11389 = vpop.f32.mrb[0].mxu0
    %v11390 = vadd.f32 %v11255, %v11389
    %v11391 = vpop.f32.mrb[0].mxu0
    %v11392 = vadd.f32 %v11255, %v11391
    %v11393 = vpop.f32.mrb[0].mxu0
    %v11394 = vpop.f32.mrb[0].mxu0
    %11395 = vdwg.mxu0
    %11396 = vmatprep.subr.bf16.mxu0 %v11166
    %11397 = vmatpush1.bf16.msra.mxu0 %v11165
    %11398 = vmatprep.subr.bf16.mxu0 %v11174
    %11399 = vmatpush1.bf16.msra.mxu0 %v11173
    %11400 = vmatprep.subr.bf16.mxu0 %v11182
    %11401 = vmatpush1.bf16.msra.mxu0 %v11181
    %11402 = vmatprep.subr.bf16.mxu0 %v11190
    %11403 = vmatpush1.bf16.msra.mxu0 %v11189
    %11404 = vmatprep.subr.bf16.mxu0 %v11198
    %11405 = vmatpush1.bf16.msra.mxu0 %v11197
    %11406 = vmatprep.subr.bf16.mxu0 %v11206
    %11407 = vmatpush1.bf16.msra.mxu0 %v11205
    %11408 = vmatprep.subr.bf16.mxu0 %v11214
    %11409 = vmatpush1.bf16.msra.mxu0 %v11213
    %11410 = vmatprep.subr.bf16.mxu0 %v11222
    %11411 = vmatpush1.bf16.msra.mxu0 %v11221
    %11412 = vmatprep.subr.bf16.mxu0 %v11230
    %11413 = vmatpush1.bf16.msra.mxu0 %v11229
    %11414 = vmatprep.subr.bf16.mxu0 %v11238
    %11415 = vmatpush1.bf16.msra.mxu0 %v11237
    %11416 = vmatprep.subr.bf16.mxu0 %v11246
    %11417 = vmatpush1.bf16.msra.mxu0 %v11245
    %11418 = vmatprep.subr.bf16.mxu0 0
    %11419 = vmatpush1.bf16.msra.mxu0 0
    %11420 = vmatprep.subr.bf16.mxu0 0
    %11421 = vmatpush1.bf16.msra.mxu0 0
    %11422 = vmatprep.subr.bf16.mxu0 0
    %11423 = vmatpush1.bf16.msra.mxu0 0
    %11424 = vmatprep.subr.bf16.mxu0 0
    %11425 = vmatpush1.bf16.msra.mxu0 0
    %11426 = vmatprep.subr.bf16.mxu0 0
    %11427 = vmatpush1.bf16.msra.mxu0 0
    %11428 = vmatprep.mubr.bf16.mxu0 %v11271
    %11429 = vmatmul.mubr.bf16.gmra.mrb[0].mxu0 %v11265
    %v11430 = vpop.f32.mrb[0].mxu0
    %v11431 = vadd.f32 %v11390, %v11430
    %v11432 = vpop.f32.mrb[0].mxu0
    %v11433 = vadd.f32 %v11392, %v11432
    %v11434 = vpop.f32.mrb[0].mxu0
    %v11435 = vpop.f32.mrb[0].mxu0
    %11436 = vdwg.mxu0
    %11437 = vmatprep.subr.bf16.mxu0 %v11040
    %11438 = vmatpush1.bf16.msra.mxu0 %v11039
    %11439 = vmatprep.subr.bf16.mxu0 %v11048
    %11440 = vmatpush1.bf16.msra.mxu0 %v11047
    %11441 = vmatprep.subr.bf16.mxu0 %v11056
    %11442 = vmatpush1.bf16.msra.mxu0 %v11055
    %11443 = vmatprep.subr.bf16.mxu0 %v11064
    %11444 = vmatpush1.bf16.msra.mxu0 %v11063
    %11445 = vmatprep.subr.bf16.mxu0 %v11072
    %11446 = vmatpush1.bf16.msra.mxu0 %v11071
    %11447 = vmatprep.subr.bf16.mxu0 %v11080
    %11448 = vmatpush1.bf16.msra.mxu0 %v11079
    %11449 = vmatprep.subr.bf16.mxu0 %v11088
    %11450 = vmatpush1.bf16.msra.mxu0 %v11087
    %11451 = vmatprep.subr.bf16.mxu0 %v11096
    %11452 = vmatpush1.bf16.msra.mxu0 %v11095
    %11453 = vmatprep.subr.bf16.mxu0 %v11104
    %11454 = vmatpush1.bf16.msra.mxu0 %v11103
    %11455 = vmatprep.subr.bf16.mxu0 %v11112
    %11456 = vmatpush1.bf16.msra.mxu0 %v11111
    %11457 = vmatprep.subr.bf16.mxu0 %v11120
    %11458 = vmatpush1.bf16.msra.mxu0 %v11119
    %11459 = vmatprep.subr.bf16.mxu0 %v11128
    %11460 = vmatpush1.bf16.msra.mxu0 %v11127
    %11461 = vmatprep.subr.bf16.mxu0 %v11136
    %11462 = vmatpush1.bf16.msra.mxu0 %v11135
    %11463 = vmatprep.subr.bf16.mxu0 %v11144
    %11464 = vmatpush1.bf16.msra.mxu0 %v11143
    %11465 = vmatprep.subr.bf16.mxu0 %v11152
    %11466 = vmatpush1.bf16.msra.mxu0 %v11151
    %11467 = vmatprep.subr.bf16.mxu0 %v11160
    %11468 = vmatpush1.bf16.msra.mxu0 %v11159
    %11469 = vmatprep.mubr.bf16.mxu0 %v11264
    %11470 = vmatmul.mubr.bf16.gmra.mrb[0].mxu0 %v11263
    %v11471 = vpop.f32.mrb[0].mxu0
    %v11472 = vadd.f32 %v11255, %v11471
    %v11473 = vpop.f32.mrb[0].mxu0
    %v11474 = vadd.f32 %v11255, %v11473
    %v11475 = vpop.f32.mrb[0].mxu0
    %v11476 = vpop.f32.mrb[0].mxu0
    %11477 = vdwg.mxu0
    %11478 = vmatprep.subr.bf16.mxu0 %v11168
    %11479 = vmatpush1.bf16.msra.mxu0 %v11167
    %11480 = vmatprep.subr.bf16.mxu0 %v11176
    %11481 = vmatpush1.bf16.msra.mxu0 %v11175
    %11482 = vmatprep.subr.bf16.mxu0 %v11184
    %11483 = vmatpush1.bf16.msra.mxu0 %v11183
    %11484 = vmatprep.subr.bf16.mxu0 %v11192
    %11485 = vmatpush1.bf16.msra.mxu0 %v11191
    %11486 = vmatprep.subr.bf16.mxu0 %v11200
    %11487 = vmatpush1.bf16.msra.mxu0 %v11199
    %11488 = vmatprep.subr.bf16.mxu0 %v11208
    %11489 = vmatpush1.bf16.msra.mxu0 %v11207
    %11490 = vmatprep.subr.bf16.mxu0 %v11216
    %11491 = vmatpush1.bf16.msra.mxu0 %v11215
    %11492 = vmatprep.subr.bf16.mxu0 %v11224
    %11493 = vmatpush1.bf16.msra.mxu0 %v11223
    %11494 = vmatprep.subr.bf16.mxu0 %v11232
    %11495 = vmatpush1.bf16.msra.mxu0 %v11231
    %11496 = vmatprep.subr.bf16.mxu0 %v11240
    %11497 = vmatpush1.bf16.msra.mxu0 %v11239
    %11498 = vmatprep.subr.bf16.mxu0 %v11248
    %11499 = vmatpush1.bf16.msra.mxu0 %v11247
    %11500 = vmatprep.subr.bf16.mxu0 0
    %11501 = vmatpush1.bf16.msra.mxu0 0
    %11502 = vmatprep.subr.bf16.mxu0 0
    %11503 = vmatpush1.bf16.msra.mxu0 0
    %11504 = vmatprep.subr.bf16.mxu0 0
    %11505 = vmatpush1.bf16.msra.mxu0 0
    %11506 = vmatprep.subr.bf16.mxu0 0
    %11507 = vmatpush1.bf16.msra.mxu0 0
    %11508 = vmatprep.subr.bf16.mxu0 0
    %11509 = vmatpush1.bf16.msra.mxu0 0
    %11510 = vmatprep.mubr.bf16.mxu0 %v11271
    %11511 = vmatmul.mubr.bf16.gmra.mrb[0].mxu0 %v11265
    %v11512 = vpop.f32.mrb[0].mxu0
    %v11513 = vadd.f32 %v11472, %v11512
    %v11514 = vpop.f32.mrb[0].mxu0
    %v11515 = vadd.f32 %v11474, %v11514
    %v11516 = vpop.f32.mrb[0].mxu0
    %v11517 = vpop.f32.mrb[0].mxu0
    %11518 = vdwg.mxu0
    %11519 = vmatprep.subr.bf16.mxu0 %v11042
    %11520 = vmatpush1.bf16.msra.mxu0 %v11041
    %11521 = vmatprep.subr.bf16.mxu0 %v11050
    %11522 = vmatpush1.bf16.msra.mxu0 %v11049
    %11523 = vmatprep.subr.bf16.mxu0 %v11058
    %11524 = vmatpush1.bf16.msra.mxu0 %v11057
    %11525 = vmatprep.subr.bf16.mxu0 %v11066
    %11526 = vmatpush1.bf16.msra.mxu0 %v11065
    %11527 = vmatprep.subr.bf16.mxu0 %v11074
    %11528 = vmatpush1.bf16.msra.mxu0 %v11073
    %11529 = vmatprep.subr.bf16.mxu0 %v11082
    %11530 = vmatpush1.bf16.msra.mxu0 %v11081
    %11531 = vmatprep.subr.bf16.mxu0 %v11090
    %11532 = vmatpush1.bf16.msra.mxu0 %v11089
    %11533 = vmatprep.subr.bf16.mxu0 %v11098
    %11534 = vmatpush1.bf16.msra.mxu0 %v11097
    %11535 = vmatprep.subr.bf16.mxu0 %v11106
    %11536 = vmatpush1.bf16.msra.mxu0 %v11105
    %11537 = vmatprep.subr.bf16.mxu0 %v11114
    %11538 = vmatpush1.bf16.msra.mxu0 %v11113
    %11539 = vmatprep.subr.bf16.mxu0 %v11122
    %11540 = vmatpush1.bf16.msra.mxu0 %v11121
    %11541 = vmatprep.subr.bf16.mxu0 %v11130
    %11542 = vmatpush1.bf16.msra.mxu0 %v11129
    %11543 = vmatprep.subr.bf16.mxu0 %v11138
    %11544 = vmatpush1.bf16.msra.mxu0 %v11137
    %11545 = vmatprep.subr.bf16.mxu0 %v11146
    %11546 = vmatpush1.bf16.msra.mxu0 %v11145
    %11547 = vmatprep.subr.bf16.mxu0 %v11154
    %11548 = vmatpush1.bf16.msra.mxu0 %v11153
    %11549 = vmatprep.subr.bf16.mxu0 %v11162
    %11550 = vmatpush1.bf16.msra.mxu0 %v11161
    %11551 = vmatprep.mubr.bf16.mxu0 %v11264
    %11552 = vmatmul.mubr.bf16.gmra.mrb[0].mxu0 %v11263
    %v11553 = vpop.f32.mrb[0].mxu0
    %v11554 = vadd.f32 %v11255, %v11553
    %v11555 = vpop.f32.mrb[0].mxu0
    %v11556 = vadd.f32 %v11255, %v11555
    %v11557 = vpop.f32.mrb[0].mxu0
    %v11558 = vpop.f32.mrb[0].mxu0
    %11559 = vdwg.mxu0
    %11560 = vmatprep.subr.bf16.mxu0 %v11170
    %11561 = vmatpush1.bf16.msra.mxu0 %v11169
    %11562 = vmatprep.subr.bf16.mxu0 %v11178
    %11563 = vmatpush1.bf16.msra.mxu0 %v11177
    %11564 = vmatprep.subr.bf16.mxu0 %v11186
    %11565 = vmatpush1.bf16.msra.mxu0 %v11185
    %11566 = vmatprep.subr.bf16.mxu0 %v11194
    %11567 = vmatpush1.bf16.msra.mxu0 %v11193
    %11568 = vmatprep.subr.bf16.mxu0 %v11202
    %11569 = vmatpush1.bf16.msra.mxu0 %v11201
    %11570 = vmatprep.subr.bf16.mxu0 %v11210
    %11571 = vmatpush1.bf16.msra.mxu0 %v11209
    %11572 = vmatprep.subr.bf16.mxu0 %v11218
    %11573 = vmatpush1.bf16.msra.mxu0 %v11217
    %11574 = vmatprep.subr.bf16.mxu0 %v11226
    %11575 = vmatpush1.bf16.msra.mxu0 %v11225
    %11576 = vmatprep.subr.bf16.mxu0 %v11234
    %11577 = vmatpush1.bf16.msra.mxu0 %v11233
    %11578 = vmatprep.subr.bf16.mxu0 %v11242
    %11579 = vmatpush1.bf16.msra.mxu0 %v11241
    %11580 = vmatprep.subr.bf16.mxu0 %v11250
    %11581 = vmatpush1.bf16.msra.mxu0 %v11249
    %11582 = vmatprep.subr.bf16.mxu0 0
    %11583 = vmatpush1.bf16.msra.mxu0 0
    %11584 = vmatprep.subr.bf16.mxu0 0
    %11585 = vmatpush1.bf16.msra.mxu0 0
    %11586 = vmatprep.subr.bf16.mxu0 0
    %11587 = vmatpush1.bf16.msra.mxu0 0
    %11588 = vmatprep.subr.bf16.mxu0 0
    %11589 = vmatpush1.bf16.msra.mxu0 0
    %11590 = vmatprep.subr.bf16.mxu0 0
    %11591 = vmatpush1.bf16.msra.mxu0 0
    %11592 = vmatprep.mubr.bf16.mxu0 %v11271
    %11593 = vmatmul.mubr.bf16.gmra.mrb[0].mxu0 %v11265
    %v11594 = vpop.f32.mrb[0].mxu0
    %v11595 = vadd.f32 %v11554, %v11594
    %v11596 = vpop.f32.mrb[0].mxu0
    %v11597 = vadd.f32 %v11556, %v11596
    %v11598 = vpop.f32.mrb[0].mxu0
    %v11599 = vpop.f32.mrb[0].mxu0
    %11600 = vdwg.mxu0
    %v11601 = vmax.f32 %v11349, 0.0
    %v11602 = vmax.f32 %v11351, 0.0
    %v11603 = vmax.f32 %v11431, 0.0
    %v11604 = vmax.f32 %v11433, 0.0
    %v11605 = vmax.f32 %v11513, 0.0
    %v11606 = vmax.f32 %v11515, 0.0
    %v11607 = vmax.f32 %v11595, 0.0
    %v11608 = vmax.f32 %v11597, 0.0
    %v11609 = vld [vmem:[#allocation10] sm:$0xff]
    %v11610 = vld [vmem:[#allocation10 + $0x8] sm:$0xff]
    %v11611 = vld [vmem:[#allocation10 + $0x10] sm:$0xff]
    %v11612 = vld [vmem:[#allocation10 + $0x18] sm:$0xff]
    %v11613 = vld [vmem:[#allocation10 + $0x20] sm:$0xff]
    %v11614 = vld [vmem:[#allocation10 + $0x28] sm:$0xff]
    %v11615 = vld [vmem:[#allocation10 + $0x30] sm:$0xff]
    %v11616 = vld [vmem:[#allocation10 + $0x38] sm:$0xff]
    %v11617 = vld [vmem:[#allocation10 + $0x40] sm:$0xff]
    %v11618 = vld [vmem:[#allocation10 + $0x48] sm:$0xff]
    %v11619 = vld [vmem:[#allocation10 + $0x50] sm:$0xff]
    %v11620 = vld [vmem:[#allocation10 + $0x58] sm:$0xff]
    %v11621 = vld [vmem:[#allocation10 + $0x60] sm:$0xff]
    %v11622 = vld [vmem:[#allocation10 + $0x68] sm:$0xff]
    %v11623 = vld [vmem:[#allocation10 + $0x70] sm:$0xff]
    %v11624 = vld [vmem:[#allocation10 + $0x78] sm:$0xff]
    %v11625 = vld [vmem:[#allocation10 + $0x80] sm:$0xff]
    %v11626 = vld [vmem:[#allocation10 + $0x88] sm:$0xff]
    %v11627 = vld [vmem:[#allocation10 + $0x90] sm:$0xff]
    %v11628 = vld [vmem:[#allocation10 + $0x98] sm:$0xff]
    %v11629 = vld [vmem:[#allocation10 + $0xa0] sm:$0xff]
    %v11630 = vld [vmem:[#allocation10 + $0xa8] sm:$0xff]
    %v11631 = vld [vmem:[#allocation10 + $0xb0] sm:$0xff]
    %v11632 = vld [vmem:[#allocation10 + $0xb8] sm:$0xff]
    %v11633 = vld [vmem:[#allocation10 + $0xc0] sm:$0xff]
    %v11634 = vld [vmem:[#allocation10 + $0xc8] sm:$0xff]
    %v11635 = vld [vmem:[#allocation10 + $0xd0] sm:$0xff]
    %v11636 = vld [vmem:[#allocation10 + $0xd8] sm:$0xff]
    %v11637 = vld [vmem:[#allocation10 + $0xe0] sm:$0xff]
    %v11638 = vld [vmem:[#allocation10 + $0xe8] sm:$0xff]
    %v11639 = vld [vmem:[#allocation10 + $0xf0] sm:$0xff]
    %v11640 = vld [vmem:[#allocation10 + $0xf8] sm:$0xff]
    %v11641 = vld [vmem:[#allocation10 + $0x100] sm:$0xff]
    %v11642 = vld [vmem:[#allocation10 + $0x108] sm:$0xff]
    %v11643 = vld [vmem:[#allocation10 + $0x110] sm:$0xff]
    %v11644 = vld [vmem:[#allocation10 + $0x118] sm:$0xff]
    %v11645 = vld [vmem:[#allocation10 + $0x120] sm:$0xff]
    %v11646 = vld [vmem:[#allocation10 + $0x128] sm:$0xff]
    %v11647 = vld [vmem:[#allocation10 + $0x130] sm:$0xff]
    %v11648 = vld [vmem:[#allocation10 + $0x138] sm:$0xff]
    %v11649 = vld [vmem:[#allocation10 + $0x140] sm:$0xff]
    %v11650 = vld [vmem:[#allocation10 + $0x148] sm:$0xff]
    %v11651 = vld [vmem:[#allocation10 + $0x150] sm:$0xff]
    %v11652 = vld [vmem:[#allocation10 + $0x158] sm:$0xff]
    %v11653 = vld [vmem:[#allocation10 + $0x160] sm:$0xff]
    %v11654 = vld [vmem:[#allocation10 + $0x168] sm:$0xff]
    %v11655 = vld [vmem:[#allocation10 + $0x170] sm:$0xff]
    %v11656 = vld [vmem:[#allocation10 + $0x178] sm:$0xff]
    %v11657 = vld [vmem:[#allocation10 + $0x180] sm:$0xff]
    %v11658 = vld [vmem:[#allocation10 + $0x188] sm:$0xff]
    %v11659 = vld [vmem:[#allocation10 + $0x190] sm:$0xff]
    %v11660 = vld [vmem:[#allocation10 + $0x198] sm:$0xff]
    %v11661 = vld [vmem:[#allocation10 + $0x1a0] sm:$0xff]
    %v11662 = vld [vmem:[#allocation10 + $0x1a8] sm:$0xff]
    %v11663 = vld [vmem:[#allocation10 + $0x1b0] sm:$0xff]
    %v11664 = vld [vmem:[#allocation10 + $0x1b8] sm:$0xff]
    %v11665 = vld [vmem:[#allocation10 + $0x1c0] sm:$0xff]
    %v11666 = vld [vmem:[#allocation10 + $0x1c8] sm:$0xff]
    %v11667 = vld [vmem:[#allocation10 + $0x1d0] sm:$0xff]
    %v11668 = vld [vmem:[#allocation10 + $0x1d8] sm:$0xff]
    %v11669 = vld [vmem:[#allocation10 + $0x1e0] sm:$0xff]
    %v11670 = vld [vmem:[#allocation10 + $0x1e8] sm:$0xff]
    %v11671 = vld [vmem:[#allocation10 + $0x1f0] sm:$0xff]
    %v11672 = vld [vmem:[#allocation10 + $0x1f8] sm:$0xff]
    %v11673 = vld [vmem:[#allocation10 + $0x200] sm:$0xff]
    %v11674 = vld [vmem:[#allocation10 + $0x208] sm:$0xff]
    %v11675 = vld [vmem:[#allocation10 + $0x210] sm:$0xff]
    %v11676 = vld [vmem:[#allocation10 + $0x218] sm:$0xff]
    %v11677 = vld [vmem:[#allocation10 + $0x220] sm:$0xff]
    %v11678 = vld [vmem:[#allocation10 + $0x228] sm:$0xff]
    %v11679 = vld [vmem:[#allocation10 + $0x230] sm:$0xff]
    %v11680 = vld [vmem:[#allocation10 + $0x238] sm:$0xff]
    %v11681 = vld [vmem:[#allocation10 + $0x240] sm:$0xff]
    %v11682 = vld [vmem:[#allocation10 + $0x248] sm:$0xff]
    %v11683 = vld [vmem:[#allocation10 + $0x250] sm:$0xff]
    %v11684 = vld [vmem:[#allocation10 + $0x258] sm:$0xff]
    %v11685 = vld [vmem:[#allocation10 + $0x260] sm:$0xff]
    %v11686 = vld [vmem:[#allocation10 + $0x268] sm:$0xff]
    %v11687 = vld [vmem:[#allocation10 + $0x270] sm:$0xff]
    %v11688 = vld [vmem:[#allocation10 + $0x278] sm:$0xff]
    %v11689 = vld [vmem:[#allocation10 + $0x280] sm:$0xff]
    %v11690 = vld [vmem:[#allocation10 + $0x288] sm:$0xff]
    %v11691 = vld [vmem:[#allocation10 + $0x290] sm:$0xff]
    %v11692 = vld [vmem:[#allocation10 + $0x298] sm:$0xff]
    %v11693 = vld [vmem:[#allocation10 + $0x2a0] sm:$0xff]
    %v11694 = vld [vmem:[#allocation10 + $0x2a8] sm:$0xff]
    %v11695 = vld [vmem:[#allocation10 + $0x2b0] sm:$0xff]
    %v11696 = vld [vmem:[#allocation10 + $0x2b8] sm:$0xff]
    %v11697 = vld [vmem:[#allocation10 + $0x2c0] sm:$0xff]
    %v11698 = vld [vmem:[#allocation10 + $0x2c8] sm:$0xff]
    %v11699 = vld [vmem:[#allocation10 + $0x2d0] sm:$0xff]
    %v11700 = vld [vmem:[#allocation10 + $0x2d8] sm:$0xff]
    %v11701 = vld [vmem:[#allocation10 + $0x2e0] sm:$0xff]
    %v11702 = vld [vmem:[#allocation10 + $0x2e8] sm:$0xff]
    %v11703 = vld [vmem:[#allocation10 + $0x2f0] sm:$0xff]
    %v11704 = vld [vmem:[#allocation10 + $0x2f8] sm:$0xff]
    %v11705 = vld [vmem:[#allocation10 + $0x300] sm:$0xff]
    %v11706 = vld [vmem:[#allocation10 + $0x308] sm:$0xff]
    %v11707 = vld [vmem:[#allocation10 + $0x310] sm:$0xff]
    %v11708 = vld [vmem:[#allocation10 + $0x318] sm:$0xff]
    %v11709 = vld [vmem:[#allocation10 + $0x320] sm:$0xff]
    %v11710 = vld [vmem:[#allocation10 + $0x328] sm:$0xff]
    %v11711 = vld [vmem:[#allocation10 + $0x330] sm:$0xff]
    %v11712 = vld [vmem:[#allocation10 + $0x338] sm:$0xff]
    %v11713 = vld [vmem:[#allocation10 + $0x340] sm:$0xff]
    %v11714 = vld [vmem:[#allocation10 + $0x348] sm:$0xff]
    %v11715 = vld [vmem:[#allocation10 + $0x350] sm:$0xff]
    %v11716 = vld [vmem:[#allocation10 + $0x358] sm:$0xff]
    %v11717 = vld [vmem:[#allocation10 + $0x360] sm:$0xff]
    %v11718 = vld [vmem:[#allocation10 + $0x368] sm:$0xff]
    %v11719 = vld [vmem:[#allocation10 + $0x370] sm:$0xff]
    %v11720 = vld [vmem:[#allocation10 + $0x378] sm:$0xff]
    %v11721 = vld [vmem:[#allocation10 + $0x380] sm:$0xff]
    %v11722 = vld [vmem:[#allocation10 + $0x388] sm:$0xff]
    %v11723 = vld [vmem:[#allocation10 + $0x390] sm:$0xff]
    %v11724 = vld [vmem:[#allocation10 + $0x398] sm:$0xff]
    %v11725 = vld [vmem:[#allocation10 + $0x3a0] sm:$0xff]
    %v11726 = vld [vmem:[#allocation10 + $0x3a8] sm:$0xff]
    %v11727 = vld [vmem:[#allocation10 + $0x3b0] sm:$0xff]
    %v11728 = vld [vmem:[#allocation10 + $0x3b8] sm:$0xff]
    %v11729 = vld [vmem:[#allocation10 + $0x3c0] sm:$0xff]
    %v11730 = vld [vmem:[#allocation10 + $0x3c8] sm:$0xff]
    %v11731 = vld [vmem:[#allocation10 + $0x3d0] sm:$0xff]
    %v11732 = vld [vmem:[#allocation10 + $0x3d8] sm:$0xff]
    %v11733 = vld [vmem:[#allocation10 + $0x3e0] sm:$0xff]
    %v11734 = vld [vmem:[#allocation10 + $0x3e8] sm:$0xff]
    %v11735 = vld [vmem:[#allocation10 + $0x3f0] sm:$0xff]
    %v11736 = vld [vmem:[#allocation10 + $0x3f8] sm:$0xff]
    %11737 = vmatprep.subr.mxu0 0.0
    %11738 = vmatpush1.msra.mxu0 %v11609
    %11739 = vmatprep.subr.mxu0 0.0
    %11740 = vmatpush1.msra.mxu0 %v11610
    %11741 = vmatprep.subr.mxu0 0.0
    %11742 = vmatpush1.msra.mxu0 %v11611
    %11743 = vmatprep.subr.mxu0 0.0
    %11744 = vmatpush1.msra.mxu0 %v11612
    %11745 = vmatprep.subr.mxu0 0.0
    %11746 = vmatpush1.msra.mxu0 %v11613
    %11747 = vmatprep.subr.mxu0 0.0
    %11748 = vmatpush1.msra.mxu0 %v11614
    %11749 = vmatprep.subr.mxu0 0.0
    %11750 = vmatpush1.msra.mxu0 %v11615
    %11751 = vmatprep.subr.mxu0 0.0
    %11752 = vmatpush1.msra.mxu0 %v11616
    %11753 = vmatprep.subr.mxu0 0.0
    %11754 = vmatpush1.msra.mxu0 %v11617
    %11755 = vmatprep.subr.mxu0 0.0
    %11756 = vmatpush1.msra.mxu0 %v11618
    %11757 = vmatprep.subr.mxu0 0.0
    %11758 = vmatpush1.msra.mxu0 %v11619
    %11759 = vmatprep.subr.mxu0 0.0
    %11760 = vmatpush1.msra.mxu0 %v11620
    %11761 = vmatprep.subr.mxu0 0.0
    %11762 = vmatpush1.msra.mxu0 %v11621
    %11763 = vmatprep.subr.mxu0 0.0
    %11764 = vmatpush1.msra.mxu0 %v11622
    %11765 = vmatprep.subr.mxu0 0.0
    %11766 = vmatpush1.msra.mxu0 %v11623
    %11767 = vmatprep.subr.mxu0 0.0
    %11768 = vmatpush1.msra.mxu0 %v11624
    %11769 = vmatprep.subr.mxu0 0.0
    %11770 = vmatpush1.msra.mxu0 %v11625
    %11771 = vmatprep.subr.mxu0 0.0
    %11772 = vmatpush1.msra.mxu0 %v11626
    %11773 = vmatprep.subr.mxu0 0.0
    %11774 = vmatpush1.msra.mxu0 %v11627
    %11775 = vmatprep.subr.mxu0 0.0
    %11776 = vmatpush1.msra.mxu0 %v11628
    %11777 = vmatprep.subr.mxu0 0.0
    %11778 = vmatpush1.msra.mxu0 %v11629
    %11779 = vmatprep.subr.mxu0 0.0
    %11780 = vmatpush1.msra.mxu0 %v11630
    %11781 = vmatprep.subr.mxu0 0.0
    %11782 = vmatpush1.msra.mxu0 %v11631
    %11783 = vmatprep.subr.mxu0 0.0
    %11784 = vmatpush1.msra.mxu0 %v11632
    %11785 = vmatprep.subr.mxu0 0.0
    %11786 = vmatpush1.msra.mxu0 %v11633
    %11787 = vmatprep.subr.mxu0 0.0
    %11788 = vmatpush1.msra.mxu0 %v11634
    %11789 = vmatprep.subr.mxu0 0.0
    %11790 = vmatpush1.msra.mxu0 %v11635
    %11791 = vmatprep.subr.mxu0 0.0
    %11792 = vmatpush1.msra.mxu0 %v11636
    %11793 = vmatprep.subr.mxu0 0.0
    %11794 = vmatpush1.msra.mxu0 %v11637
    %11795 = vmatprep.subr.mxu0 0.0
    %11796 = vmatpush1.msra.mxu0 %v11638
    %11797 = vmatprep.subr.mxu0 0.0
    %11798 = vmatpush1.msra.mxu0 %v11639
    %11799 = vmatprep.subr.mxu0 0.0
    %11800 = vmatpush1.msra.mxu0 %v11640
    %11801 = vmatprep.mubr.f32.mxu0 %v11602
    %11802 = vmatmul.mubr.f32.gmra.mrb[0].mxu0 %v11601
    %v11803 = vpop.f32.mrb[0].mxu0
    %v11804 = vadd.f32 0.0, %v11803
    %v11805 = vpop.f32.mrb[0].mxu0
    %11806 = vdwg.mxu0
    %11807 = vmatprep.subr.mxu0 0.0
    %11808 = vmatpush1.msra.mxu0 %v11641
    %11809 = vmatprep.subr.mxu0 0.0
    %11810 = vmatpush1.msra.mxu0 %v11642
    %11811 = vmatprep.subr.mxu0 0.0
    %11812 = vmatpush1.msra.mxu0 %v11643
    %11813 = vmatprep.subr.mxu0 0.0
    %11814 = vmatpush1.msra.mxu0 %v11644
    %11815 = vmatprep.subr.mxu0 0.0
    %11816 = vmatpush1.msra.mxu0 %v11645
    %11817 = vmatprep.subr.mxu0 0.0
    %11818 = vmatpush1.msra.mxu0 %v11646
    %11819 = vmatprep.subr.mxu0 0.0
    %11820 = vmatpush1.msra.mxu0 %v11647
    %11821 = vmatprep.subr.mxu0 0.0
    %11822 = vmatpush1.msra.mxu0 %v11648
    %11823 = vmatprep.subr.mxu0 0.0
    %11824 = vmatpush1.msra.mxu0 %v11649
    %11825 = vmatprep.subr.mxu0 0.0
    %11826 = vmatpush1.msra.mxu0 %v11650
    %11827 = vmatprep.subr.mxu0 0.0
    %11828 = vmatpush1.msra.mxu0 %v11651
    %11829 = vmatprep.subr.mxu0 0.0
    %11830 = vmatpush1.msra.mxu0 %v11652
    %11831 = vmatprep.subr.mxu0 0.0
    %11832 = vmatpush1.msra.mxu0 %v11653
    %11833 = vmatprep.subr.mxu0 0.0
    %11834 = vmatpush1.msra.mxu0 %v11654
    %11835 = vmatprep.subr.mxu0 0.0
    %11836 = vmatpush1.msra.mxu0 %v11655
    %11837 = vmatprep.subr.mxu0 0.0
    %11838 = vmatpush1.msra.mxu0 %v11656
    %11839 = vmatprep.subr.mxu0 0.0
    %11840 = vmatpush1.msra.mxu0 %v11657
    %11841 = vmatprep.subr.mxu0 0.0
    %11842 = vmatpush1.msra.mxu0 %v11658
    %11843 = vmatprep.subr.mxu0 0.0
    %11844 = vmatpush1.msra.mxu0 %v11659
    %11845 = vmatprep.subr.mxu0 0.0
    %11846 = vmatpush1.msra.mxu0 %v11660
    %11847 = vmatprep.subr.mxu0 0.0
    %11848 = vmatpush1.msra.mxu0 %v11661
    %11849 = vmatprep.subr.mxu0 0.0
    %11850 = vmatpush1.msra.mxu0 %v11662
    %11851 = vmatprep.subr.mxu0 0.0
    %11852 = vmatpush1.msra.mxu0 %v11663
    %11853 = vmatprep.subr.mxu0 0.0
    %11854 = vmatpush1.msra.mxu0 %v11664
    %11855 = vmatprep.subr.mxu0 0.0
    %11856 = vmatpush1.msra.mxu0 %v11665
    %11857 = vmatprep.subr.mxu0 0.0
    %11858 = vmatpush1.msra.mxu0 %v11666
    %11859 = vmatprep.subr.mxu0 0.0
    %11860 = vmatpush1.msra.mxu0 %v11667
    %11861 = vmatprep.subr.mxu0 0.0
    %11862 = vmatpush1.msra.mxu0 %v11668
    %11863 = vmatprep.subr.mxu0 0.0
    %11864 = vmatpush1.msra.mxu0 %v11669
    %11865 = vmatprep.subr.mxu0 0.0
    %11866 = vmatpush1.msra.mxu0 %v11670
    %11867 = vmatprep.subr.mxu0 0.0
    %11868 = vmatpush1.msra.mxu0 %v11671
    %11869 = vmatprep.subr.mxu0 0.0
    %11870 = vmatpush1.msra.mxu0 %v11672
    %11871 = vmatprep.mubr.f32.mxu0 %v11604
    %11872 = vmatmul.mubr.f32.gmra.mrb[0].mxu0 %v11603
    %v11873 = vpop.f32.mrb[0].mxu0
    %v11874 = vadd.f32 %v11804, %v11873
    %v11875 = vpop.f32.mrb[0].mxu0
    %11876 = vdwg.mxu0
    %11877 = vmatprep.subr.mxu0 0.0
    %11878 = vmatpush1.msra.mxu0 %v11673
    %11879 = vmatprep.subr.mxu0 0.0
    %11880 = vmatpush1.msra.mxu0 %v11674
    %11881 = vmatprep.subr.mxu0 0.0
    %11882 = vmatpush1.msra.mxu0 %v11675
    %11883 = vmatprep.subr.mxu0 0.0
    %11884 = vmatpush1.msra.mxu0 %v11676
    %11885 = vmatprep.subr.mxu0 0.0
    %11886 = vmatpush1.msra.mxu0 %v11677
    %11887 = vmatprep.subr.mxu0 0.0
    %11888 = vmatpush1.msra.mxu0 %v11678
    %11889 = vmatprep.subr.mxu0 0.0
    %11890 = vmatpush1.msra.mxu0 %v11679
    %11891 = vmatprep.subr.mxu0 0.0
    %11892 = vmatpush1.msra.mxu0 %v11680
    %11893 = vmatprep.subr.mxu0 0.0
    %11894 = vmatpush1.msra.mxu0 %v11681
    %11895 = vmatprep.subr.mxu0 0.0
    %11896 = vmatpush1.msra.mxu0 %v11682
    %11897 = vmatprep.subr.mxu0 0.0
    %11898 = vmatpush1.msra.mxu0 %v11683
    %11899 = vmatprep.subr.mxu0 0.0
    %11900 = vmatpush1.msra.mxu0 %v11684
    %11901 = vmatprep.subr.mxu0 0.0
    %11902 = vmatpush1.msra.mxu0 %v11685
    %11903 = vmatprep.subr.mxu0 0.0
    %11904 = vmatpush1.msra.mxu0 %v11686
    %11905 = vmatprep.subr.mxu0 0.0
    %11906 = vmatpush1.msra.mxu0 %v11687
    %11907 = vmatprep.subr.mxu0 0.0
    %11908 = vmatpush1.msra.mxu0 %v11688
    %11909 = vmatprep.subr.mxu0 0.0
    %11910 = vmatpush1.msra.mxu0 %v11689
    %11911 = vmatprep.subr.mxu0 0.0
    %11912 = vmatpush1.msra.mxu0 %v11690
    %11913 = vmatprep.subr.mxu0 0.0
    %11914 = vmatpush1.msra.mxu0 %v11691
    %11915 = vmatprep.subr.mxu0 0.0
    %11916 = vmatpush1.msra.mxu0 %v11692
    %11917 = vmatprep.subr.mxu0 0.0
    %11918 = vmatpush1.msra.mxu0 %v11693
    %11919 = vmatprep.subr.mxu0 0.0
    %11920 = vmatpush1.msra.mxu0 %v11694
    %11921 = vmatprep.subr.mxu0 0.0
    %11922 = vmatpush1.msra.mxu0 %v11695
    %11923 = vmatprep.subr.mxu0 0.0
    %11924 = vmatpush1.msra.mxu0 %v11696
    %11925 = vmatprep.subr.mxu0 0.0
    %11926 = vmatpush1.msra.mxu0 %v11697
    %11927 = vmatprep.subr.mxu0 0.0
    %11928 = vmatpush1.msra.mxu0 %v11698
    %11929 = vmatprep.subr.mxu0 0.0
    %11930 = vmatpush1.msra.mxu0 %v11699
    %11931 = vmatprep.subr.mxu0 0.0
    %11932 = vmatpush1.msra.mxu0 %v11700
    %11933 = vmatprep.subr.mxu0 0.0
    %11934 = vmatpush1.msra.mxu0 %v11701
    %11935 = vmatprep.subr.mxu0 0.0
    %11936 = vmatpush1.msra.mxu0 %v11702
    %11937 = vmatprep.subr.mxu0 0.0
    %11938 = vmatpush1.msra.mxu0 %v11703
    %11939 = vmatprep.subr.mxu0 0.0
    %11940 = vmatpush1.msra.mxu0 %v11704
    %11941 = vmatprep.mubr.f32.mxu0 %v11606
    %11942 = vmatmul.mubr.f32.gmra.mrb[0].mxu0 %v11605
    %v11943 = vpop.f32.mrb[0].mxu0
    %v11944 = vadd.f32 %v11874, %v11943
    %v11945 = vpop.f32.mrb[0].mxu0
    %11946 = vdwg.mxu0
    %11947 = vmatprep.subr.mxu0 0.0
    %11948 = vmatpush1.msra.mxu0 %v11705
    %11949 = vmatprep.subr.mxu0 0.0
    %11950 = vmatpush1.msra.mxu0 %v11706
    %11951 = vmatprep.subr.mxu0 0.0
    %11952 = vmatpush1.msra.mxu0 %v11707
    %11953 = vmatprep.subr.mxu0 0.0
    %11954 = vmatpush1.msra.mxu0 %v11708
    %11955 = vmatprep.subr.mxu0 0.0
    %11956 = vmatpush1.msra.mxu0 %v11709
    %11957 = vmatprep.subr.mxu0 0.0
    %11958 = vmatpush1.msra.mxu0 %v11710
    %11959 = vmatprep.subr.mxu0 0.0
    %11960 = vmatpush1.msra.mxu0 %v11711
    %11961 = vmatprep.subr.mxu0 0.0
    %11962 = vmatpush1.msra.mxu0 %v11712
    %11963 = vmatprep.subr.mxu0 0.0
    %11964 = vmatpush1.msra.mxu0 %v11713
    %11965 = vmatprep.subr.mxu0 0.0
    %11966 = vmatpush1.msra.mxu0 %v11714
    %11967 = vmatprep.subr.mxu0 0.0
    %11968 = vmatpush1.msra.mxu0 %v11715
    %11969 = vmatprep.subr.mxu0 0.0
    %11970 = vmatpush1.msra.mxu0 %v11716
    %11971 = vmatprep.subr.mxu0 0.0
    %11972 = vmatpush1.msra.mxu0 %v11717
    %11973 = vmatprep.subr.mxu0 0.0
    %11974 = vmatpush1.msra.mxu0 %v11718
    %11975 = vmatprep.subr.mxu0 0.0
    %11976 = vmatpush1.msra.mxu0 %v11719
    %11977 = vmatprep.subr.mxu0 0.0
    %11978 = vmatpush1.msra.mxu0 %v11720
    %11979 = vmatprep.subr.mxu0 0.0
    %11980 = vmatpush1.msra.mxu0 %v11721
    %11981 = vmatprep.subr.mxu0 0.0
    %11982 = vmatpush1.msra.mxu0 %v11722
    %11983 = vmatprep.subr.mxu0 0.0
    %11984 = vmatpush1.msra.mxu0 %v11723
    %11985 = vmatprep.subr.mxu0 0.0
    %11986 = vmatpush1.msra.mxu0 %v11724
    %11987 = vmatprep.subr.mxu0 0.0
    %11988 = vmatpush1.msra.mxu0 %v11725
    %11989 = vmatprep.subr.mxu0 0.0
    %11990 = vmatpush1.msra.mxu0 %v11726
    %11991 = vmatprep.subr.mxu0 0.0
    %11992 = vmatpush1.msra.mxu0 %v11727
    %11993 = vmatprep.subr.mxu0 0.0
    %11994 = vmatpush1.msra.mxu0 %v11728
    %11995 = vmatprep.subr.mxu0 0.0
    %11996 = vmatpush1.msra.mxu0 %v11729
    %11997 = vmatprep.subr.mxu0 0.0
    %11998 = vmatpush1.msra.mxu0 %v11730
    %11999 = vmatprep.subr.mxu0 0.0
    %12000 = vmatpush1.msra.mxu0 %v11731
    %12001 = vmatprep.subr.mxu0 0.0
    %12002 = vmatpush1.msra.mxu0 %v11732
    %12003 = vmatprep.subr.mxu0 0.0
    %12004 = vmatpush1.msra.mxu0 %v11733
    %12005 = vmatprep.subr.mxu0 0.0
    %12006 = vmatpush1.msra.mxu0 %v11734
    %12007 = vmatprep.subr.mxu0 0.0
    %12008 = vmatpush1.msra.mxu0 %v11735
    %12009 = vmatprep.subr.mxu0 0.0
    %12010 = vmatpush1.msra.mxu0 %v11736
    %12011 = vmatprep.mubr.f32.mxu0 %v11608
    %12012 = vmatmul.mubr.f32.gmra.mrb[0].mxu0 %v11607
    %v12013 = vpop.f32.mrb[0].mxu0
    %v12014 = vadd.f32 %v11944, %v12013
    %v12015 = vpop.f32.mrb[0].mxu0
    %12016 = vdwg.mxu0
    %12017 = vst [vmem:[#allocation13] sm:$0xff] %v12014
    // Predicated region
    $region46: #{tpu_custom_call.1} parent=1 // pred_check
      _
    $region47: #{tpu_custom_call.1} parent=1 // pred_check_branch
      %12019 = sbr.rel (0) target = $region49
    $region48: #{tpu_custom_call.1} parent=1 // pred_region
      %s12021 = ssub.s32 128, 128
      %12022 = vsyncadd [#allocation7], %s12021
      %s12024 = sshll.u32 [#allocation13], 4
      %s12025 = int_to_ptr.vmem [resolvable:$true] %s12024
      %12027 = dma.vmem_to_hbm [thread:$0]  %s12025, 128, %s7, [#allocation7]
    $region49: #{tpu_custom_call.1} parent=1 // pred_fallthru
      _
    // Predicated region
    $region50: #{tpu_custom_call.1} parent=1 // pred_check
      _
    $region51: #{tpu_custom_call.1} parent=1 // pred_check_branch
      %12029 = sbr.rel (0) target = $region53
    $region52: #{tpu_custom_call.1} parent=1 // pred_region
      %12030 = dma.done [#allocation7], 128
    $region53: #{tpu_custom_call.1} parent=1 // pred_fallthru
      _
    %12031 = vsyncpa [#allocation6], 1
    %12032 = vsyncpa [#allocation9], 1
    %12033 = vsyncpa [#allocation12], 1
    %12034 = vsyncpa [#allocation7], 1

</llo_original>
